<compile_context>
chip_gen: v7x
topology: tpu7x:2x2x1
jax: 0.10.0
libtpu: 0.0.40
codegen_flags: <defaults>
</compile_context>

<pallas_src>
import jax
import jax.numpy as jnp
from jax.experimental import pallas as pl
from jax.experimental.pallas import tpu as pltpu


# ------------------------------ Pallas kernel -------------------------------

def _disc_latent_kernel(x_ref, w1_ref, w2_ref, w3_ref, w4_ref, w5_ref,
                        wc_ref, bc_ref, feat_ref, cls_ref):
    n_batch = x_ref.shape[0]
    length = x_ref.shape[2]
    w_refs = (w1_ref, w2_ref, w3_ref, w4_ref, w5_ref)

    # Per-batch activations, channel-major (C, L_cur).  Layer-0 input: (1, L).
    hs = [x_ref[n] for n in range(n_batch)]
    l_cur = length

    # ---- feature layers: Conv1d(k=4, s=2, p=1) -> BatchNorm1d -> LeakyReLU(0.2) ----
    for w_ref in w_refs:
        _, c_out, c_in = w_ref.shape
        l_out = l_cur // 2

        # Tap-selection matrices: sel_k[li, lo] = 1  iff  li == 2*lo + k - 1.
        # Encodes stride 2 / padding 1; out-of-range taps simply never match,
        # giving exact zero padding at the edges of every batch element.
        li = jax.lax.broadcasted_iota(jnp.int32, (l_cur, l_out), 0)
        lo = jax.lax.broadcasted_iota(jnp.int32, (l_cur, l_out), 1)
        sels = [jnp.where(li == 2 * lo + (k - 1), 1.0, 0.0).astype(jnp.float32)
                for k in range(4)]

        # Convolution.  Feature-layer bias omitted: BN mean-subtraction cancels it.
        zs = []
        for n in range(n_batch):
            h = hs[n]                                              # (c_in, l_cur)
            acc = jnp.zeros((c_out, l_out), jnp.float32)
            for k in range(4):
                wk = w_ref[k]                                      # (c_out, c_in)
                if c_in == 1:
                    mixed = wk * h                                 # outer product
                else:
                    mixed = jnp.dot(wk, h, preferred_element_type=jnp.float32)
                acc = acc + jnp.dot(mixed, sels[k],
                                    preferred_element_type=jnp.float32)
            zs.append(acc)                                         # (c_out, l_out)

        # BatchNorm1d, training mode: per-channel stats over batch*length,
        # biased variance, eps=1e-5, gamma=1, beta=0 (PyTorch defaults).
        cnt = float(n_batch * l_out)
        mean = sum(jnp.sum(z, axis=1, keepdims=True) for z in zs) / cnt       # (c_out, 1)
        var = sum(jnp.sum(jnp.square(z - mean), axis=1, keepdims=True)
                  for z in zs) / cnt
        inv = jax.lax.rsqrt(var + 1e-5)

        hs = []
        for z in zs:
            y = (z - mean) * inv
            hs.append(jnp.where(y > 0, y, 0.2 * y))                # LeakyReLU(0.2)
        l_cur = l_out

    # ---- features output: (N, 16*ndf, L/32), written per batch element ----
    for n in range(n_batch):
        feat_ref[n] = hs[n]

    # ---- classifier: Conv1d(16*ndf, 1, k=4, s=1, p=0) + bias + Sigmoid ----
    l_f = l_cur
    l_cls = l_f - 3
    li = jax.lax.broadcasted_iota(jnp.int32, (l_f, l_cls), 0)
    lo = jax.lax.broadcasted_iota(jnp.int32, (l_f, l_cls), 1)
    selc = [jnp.where(li == lo + k, 1.0, 0.0).astype(jnp.float32)
            for k in range(4)]
    for n in range(n_batch):
        h = hs[n]                                                  # (c5, l_f)
        acc = jnp.zeros((1, l_cls), jnp.float32)
        for k in range(4):
            g = jnp.dot(h, selc[k], preferred_element_type=jnp.float32)   # (c5, l_cls)
            acc = acc + jnp.sum(wc_ref[k] * g, axis=0, keepdims=True)     # (1, l_cls)
        cls_ref[n] = jax.nn.sigmoid(acc + bc_ref[...])


# ------------------------------- Wrapper -------------------------------------

def _full_block_spec(shape):
    zeros = (0,) * len(shape)
    return pl.BlockSpec(shape, lambda i: zeros)


def discriminator_latent_forward(x, params):
    """x: (N, 1, L) f32 -> (classifier (N*(L//32-3),), features (N, 16*ndf, L//32))."""
    n_batch, _, length = x.shape
    assert length % 32 == 0 and length // 32 >= 4, "latent length must be a multiple of 32 and >= 128"

    # Kernel weight layouts: feature layers (K, C_out, C_in); classifier (K, C_in, 1).
    feat_ws = [jnp.transpose(w, (2, 0, 1)) for (w, _b) in params["features"]]
    wc, bc = params["classifier"]
    wc_k = jnp.transpose(wc, (2, 1, 0))            # (4, 16*ndf, 1)
    bc2 = bc.reshape(1, 1)

    c5 = feat_ws[-1].shape[1]
    l_f = length // 32
    l_cls = l_f - 3

    inputs = (x, *feat_ws, wc_k, bc2)
    out_shapes = (jax.ShapeDtypeStruct((n_batch, c5, l_f), jnp.float32),
                  jax.ShapeDtypeStruct((n_batch, 1, l_cls), jnp.float32))

    features, cls = pl.pallas_call(
        _disc_latent_kernel,
        out_shape=out_shapes,
        grid=(1,),
        in_specs=[_full_block_spec(a.shape) for a in inputs],
        out_specs=tuple(_full_block_spec(s.shape) for s in out_shapes),
        compiler_params=pltpu.CompilerParams(dimension_semantics=("arbitrary",)),
    )(*inputs)

    # .view(-1, 1).squeeze(1) in the reference module
    return cls.reshape(-1), features


# ---------------------- Pure-JAX reference (for checking) --------------------

def _ref_conv1d(x, w, b, stride, pad):
    n, c_in, l = x.shape
    c_out, _, k = w.shape
    xp = jnp.pad(x, ((0, 0), (0, 0), (pad, pad)))
    l_out = (l + 2 * pad - k) // stride + 1
    taps = jnp.stack([xp[:, :, t:t + stride * l_out:stride] for t in range(k)],
                     axis=2)                                  # (n, c_in, k, l_out)
    out = jnp.einsum("nckl,ock->nol", taps, w,
                     precision=jax.lax.Precision.HIGHEST)
    return out + b[None, :, None]


def _reference_forward(x, params):
    h = x
    for (w, b) in params["features"]:
        h = _ref_conv1d(h, w, b, stride=2, pad=1)
        mean = jnp.mean(h, axis=(0, 2), keepdims=True)
        var = jnp.mean(jnp.square(h - mean), axis=(0, 2), keepdims=True)
        h = (h - mean) * jax.lax.rsqrt(var + 1e-5)
        h = jnp.where(h > 0, h, 0.2 * h)
    features = h
    wc, bc = params["classifier"]
    c = _ref_conv1d(features, wc, bc, stride=1, pad=0)
    return jax.nn.sigmoid(c).reshape(-1), features


# ------------------------------ Parameters -----------------------------------

def init_params(key, ndf):
    """Deterministic synthetic parameters in the PyTorch Conv1d layout (C_out, C_in, K)."""
    keys = jax.random.split(key, 12)
    chans = [1, ndf, ndf * 2, ndf * 4, ndf * 8, ndf * 16]
    feats = []
    for i in range(5):
        c_in, c_out = chans[i], chans[i + 1]
        w = 0.05 * jax.random.normal(keys[2 * i], (c_out, c_in, 4), jnp.float32)
        b = 0.05 * jax.random.normal(keys[2 * i + 1], (c_out,), jnp.float32)
        feats.append((w, b))
    wc = 0.05 * jax.random.normal(keys[10], (1, ndf * 16, 4), jnp.float32)
    bc = 0.05 * jax.random.normal(keys[11], (1,), jnp.float32)
    # NOTE: feature-layer conv biases are kept for shape fidelity but are not fed to
    # the kernel -- with training-mode BatchNorm (gamma=1, beta=0) the batch-mean
    # subtraction cancels a per-channel bias exactly, so they have zero effect.
    # BatchNorm gamma/beta stay at their default init (ones/zeros).
    return {"features": feats, "classifier": (wc, bc)}


if __name__ == "__main__":
    key = jax.random.PRNGKey(0)
    k_x, k_p = jax.random.split(key)

    ndf = 4
    n_batch, length = 2, 128   # 128 -> 64 -> 32 -> 16 -> 8 -> 4 -> classifier (k=4) -> 1

    x = jax.random.normal(k_x, (n_batch, 1, length), jnp.float32)
    params = init_params(k_p, ndf)

    fwd = jax.jit(discriminator_latent_forward)
    classifier, features = fwd(x, params)
    jax.block_until_ready((classifier, features))

    assert classifier.shape == (n_batch,), classifier.shape
    assert features.shape == (n_batch, ndf * 16, length // 32), features.shape
    assert bool(jnp.all(jnp.isfinite(classifier)))
    assert bool(jnp.all(jnp.isfinite(features)))

    # Cross-check against a pure-JAX reference (loose tolerance: in-kernel MXU
    # matmuls may run at reduced input precision).
    ref_cls, ref_feat = _reference_forward(x, params)
    assert bool(jnp.allclose(classifier, ref_cls, rtol=5e-2, atol=5e-2)), "classifier mismatch"
    assert bool(jnp.allclose(features, ref_feat, rtol=5e-2, atol=5e-2)), "features mismatch"

    print("KERNEL_OK")
</pallas_src>

<mosaic_0001>
module attributes {stable_mosaic.version = 11 : i64} {
  func.func @_disc_latent_kernel(%arg0: i32, %arg1: memref<2x1x128xf32, #tpu.memory_space<vmem>>, %arg2: memref<4x4x1xf32, #tpu.memory_space<vmem>>, %arg3: memref<4x8x4xf32, #tpu.memory_space<vmem>>, %arg4: memref<4x16x8xf32, #tpu.memory_space<vmem>>, %arg5: memref<4x32x16xf32, #tpu.memory_space<vmem>>, %arg6: memref<4x64x32xf32, #tpu.memory_space<vmem>>, %arg7: memref<4x64x1xf32, #tpu.memory_space<vmem>>, %arg8: memref<1x1xf32, #tpu.memory_space<vmem>>, %arg9: memref<2x64x4xf32, #tpu.memory_space<vmem>>, %arg10: memref<2x1x1xf32, #tpu.memory_space<vmem>>) attributes {dimension_semantics = [#tpu.dimension_semantics<arbitrary>], iteration_bounds = array<i64: 1>, scalar_prefetch = 0 : i64, scratch_operands = 0 : i64, tpu.core_type = #tpu.core_type<tc>, window_params = [{pipeline_mode = #tpu.pipeline_mode<synchronous>, transform_indices = @transform_0, window_bounds = array<i64: 2, 1, 128>}, {pipeline_mode = #tpu.pipeline_mode<synchronous>, transform_indices = @transform_1, window_bounds = array<i64: 4, 4, 1>}, {pipeline_mode = #tpu.pipeline_mode<synchronous>, transform_indices = @transform_2, window_bounds = array<i64: 4, 8, 4>}, {pipeline_mode = #tpu.pipeline_mode<synchronous>, transform_indices = @transform_3, window_bounds = array<i64: 4, 16, 8>}, {pipeline_mode = #tpu.pipeline_mode<synchronous>, transform_indices = @transform_4, window_bounds = array<i64: 4, 32, 16>}, {pipeline_mode = #tpu.pipeline_mode<synchronous>, transform_indices = @transform_5, window_bounds = array<i64: 4, 64, 32>}, {pipeline_mode = #tpu.pipeline_mode<synchronous>, transform_indices = @transform_6, window_bounds = array<i64: 4, 64, 1>}, {pipeline_mode = #tpu.pipeline_mode<synchronous>, transform_indices = @transform_7, window_bounds = array<i64: 1, 1>}, {pipeline_mode = #tpu.pipeline_mode<synchronous>, transform_indices = @transform_8, window_bounds = array<i64: 2, 64, 4>}, {pipeline_mode = #tpu.pipeline_mode<synchronous>, transform_indices = @transform_9, window_bounds = array<i64: 2, 1, 1>}]} {
    %c0 = arith.constant 0 : index
    %c0_0 = arith.constant 0 : index
    %c0_1 = arith.constant 0 : index
    %0 = vector.load %arg1[%c0, %c0_0, %c0_1] : memref<2x1x128xf32, #tpu.memory_space<vmem>>, vector<1x1x128xf32>
    %1 = vector.shape_cast %0 : vector<1x1x128xf32> to vector<1x128xf32>
    %c1 = arith.constant 1 : index
    %c0_2 = arith.constant 0 : index
    %c0_3 = arith.constant 0 : index
    %2 = vector.load %arg1[%c1, %c0_2, %c0_3] : memref<2x1x128xf32, #tpu.memory_space<vmem>>, vector<1x1x128xf32>
    %3 = vector.shape_cast %2 : vector<1x1x128xf32> to vector<1x128xf32>
    %4 = tpu.iota {dimensions = array<i32: 0>} : vector<128x64xi32>
    %5 = tpu.iota {dimensions = array<i32: 1>} : vector<128x64xi32>
    %c2_i32 = arith.constant 2 : i32
    %6 = vector.broadcast %c2_i32 : i32 to vector<128x64xi32>
    %7 = arith.muli %6, %5 : vector<128x64xi32>
    %c-1_i32 = arith.constant -1 : i32
    %8 = vector.broadcast %c-1_i32 : i32 to vector<128x64xi32>
    %9 = arith.addi %7, %8 : vector<128x64xi32>
    %10 = arith.cmpi eq, %4, %9 : vector<128x64xi32>
    %cst = arith.constant 1.000000e+00 : f32
    %cst_4 = arith.constant 0.000000e+00 : f32
    %11 = vector.broadcast %cst : f32 to vector<128x64xf32>
    %12 = vector.broadcast %cst_4 : f32 to vector<128x64xf32>
    %13 = arith.select %10, %11, %12 : vector<128x64xi1>, vector<128x64xf32>
    %c2_i32_5 = arith.constant 2 : i32
    %14 = vector.broadcast %c2_i32_5 : i32 to vector<128x64xi32>
    %15 = arith.muli %14, %5 : vector<128x64xi32>
    %c0_i32 = arith.constant 0 : i32
    %16 = vector.broadcast %c0_i32 : i32 to vector<128x64xi32>
    %17 = arith.addi %15, %16 : vector<128x64xi32>
    %18 = arith.cmpi eq, %4, %17 : vector<128x64xi32>
    %cst_6 = arith.constant 1.000000e+00 : f32
    %cst_7 = arith.constant 0.000000e+00 : f32
    %19 = vector.broadcast %cst_6 : f32 to vector<128x64xf32>
    %20 = vector.broadcast %cst_7 : f32 to vector<128x64xf32>
    %21 = arith.select %18, %19, %20 : vector<128x64xi1>, vector<128x64xf32>
    %c2_i32_8 = arith.constant 2 : i32
    %22 = vector.broadcast %c2_i32_8 : i32 to vector<128x64xi32>
    %23 = arith.muli %22, %5 : vector<128x64xi32>
    %c1_i32 = arith.constant 1 : i32
    %24 = vector.broadcast %c1_i32 : i32 to vector<128x64xi32>
    %25 = arith.addi %23, %24 : vector<128x64xi32>
    %26 = arith.cmpi eq, %4, %25 : vector<128x64xi32>
    %cst_9 = arith.constant 1.000000e+00 : f32
    %cst_10 = arith.constant 0.000000e+00 : f32
    %27 = vector.broadcast %cst_9 : f32 to vector<128x64xf32>
    %28 = vector.broadcast %cst_10 : f32 to vector<128x64xf32>
    %29 = arith.select %26, %27, %28 : vector<128x64xi1>, vector<128x64xf32>
    %c2_i32_11 = arith.constant 2 : i32
    %30 = vector.broadcast %c2_i32_11 : i32 to vector<128x64xi32>
    %31 = arith.muli %30, %5 : vector<128x64xi32>
    %c2_i32_12 = arith.constant 2 : i32
    %32 = vector.broadcast %c2_i32_12 : i32 to vector<128x64xi32>
    %33 = arith.addi %31, %32 : vector<128x64xi32>
    %34 = arith.cmpi eq, %4, %33 : vector<128x64xi32>
    %cst_13 = arith.constant 1.000000e+00 : f32
    %cst_14 = arith.constant 0.000000e+00 : f32
    %35 = vector.broadcast %cst_13 : f32 to vector<128x64xf32>
    %36 = vector.broadcast %cst_14 : f32 to vector<128x64xf32>
    %37 = arith.select %34, %35, %36 : vector<128x64xi1>, vector<128x64xf32>
    %cst_15 = arith.constant 0.000000e+00 : f32
    %38 = vector.broadcast %cst_15 : f32 to vector<4x64xf32>
    %c0_16 = arith.constant 0 : index
    %c0_17 = arith.constant 0 : index
    %c0_18 = arith.constant 0 : index
    %39 = vector.load %arg2[%c0_16, %c0_17, %c0_18] : memref<4x4x1xf32, #tpu.memory_space<vmem>>, vector<1x4x1xf32>
    %40 = vector.shape_cast %39 : vector<1x4x1xf32> to vector<4x1xf32>
    %41 = vector.broadcast %40 : vector<4x1xf32> to vector<4x128xf32>
    %42 = vector.broadcast %1 : vector<1x128xf32> to vector<4x128xf32>
    %43 = arith.mulf %41, %42 : vector<4x128xf32>
    %cst_19 = arith.constant dense<0.000000e+00> : vector<4x64xf32>
    %44 = tpu.matmul %43, %13, %cst_19 {dimension_numbers = #tpu.dot_dimension_numbers<[1], [0], [0], [1], [0, 0, 1, 1], [], []>} : vector<4x128xf32>, vector<128x64xf32>, vector<4x64xf32> -> vector<4x64xf32>
    %45 = arith.addf %38, %44 : vector<4x64xf32>
    %c1_20 = arith.constant 1 : index
    %c0_21 = arith.constant 0 : index
    %c0_22 = arith.constant 0 : index
    %46 = vector.load %arg2[%c1_20, %c0_21, %c0_22] : memref<4x4x1xf32, #tpu.memory_space<vmem>>, vector<1x4x1xf32>
    %47 = vector.shape_cast %46 : vector<1x4x1xf32> to vector<4x1xf32>
    %48 = vector.broadcast %47 : vector<4x1xf32> to vector<4x128xf32>
    %49 = vector.broadcast %1 : vector<1x128xf32> to vector<4x128xf32>
    %50 = arith.mulf %48, %49 : vector<4x128xf32>
    %cst_23 = arith.constant dense<0.000000e+00> : vector<4x64xf32>
    %51 = tpu.matmul %50, %21, %cst_23 {dimension_numbers = #tpu.dot_dimension_numbers<[1], [0], [0], [1], [0, 0, 1, 1], [], []>} : vector<4x128xf32>, vector<128x64xf32>, vector<4x64xf32> -> vector<4x64xf32>
    %52 = arith.addf %45, %51 : vector<4x64xf32>
    %c2 = arith.constant 2 : index
    %c0_24 = arith.constant 0 : index
    %c0_25 = arith.constant 0 : index
    %53 = vector.load %arg2[%c2, %c0_24, %c0_25] : memref<4x4x1xf32, #tpu.memory_space<vmem>>, vector<1x4x1xf32>
    %54 = vector.shape_cast %53 : vector<1x4x1xf32> to vector<4x1xf32>
    %55 = vector.broadcast %54 : vector<4x1xf32> to vector<4x128xf32>
    %56 = vector.broadcast %1 : vector<1x128xf32> to vector<4x128xf32>
    %57 = arith.mulf %55, %56 : vector<4x128xf32>
    %cst_26 = arith.constant dense<0.000000e+00> : vector<4x64xf32>
    %58 = tpu.matmul %57, %29, %cst_26 {dimension_numbers = #tpu.dot_dimension_numbers<[1], [0], [0], [1], [0, 0, 1, 1], [], []>} : vector<4x128xf32>, vector<128x64xf32>, vector<4x64xf32> -> vector<4x64xf32>
    %59 = arith.addf %52, %58 : vector<4x64xf32>
    %c3 = arith.constant 3 : index
    %c0_27 = arith.constant 0 : index
    %c0_28 = arith.constant 0 : index
    %60 = vector.load %arg2[%c3, %c0_27, %c0_28] : memref<4x4x1xf32, #tpu.memory_space<vmem>>, vector<1x4x1xf32>
    %61 = vector.shape_cast %60 : vector<1x4x1xf32> to vector<4x1xf32>
    %62 = vector.broadcast %61 : vector<4x1xf32> to vector<4x128xf32>
    %63 = vector.broadcast %1 : vector<1x128xf32> to vector<4x128xf32>
    %64 = arith.mulf %62, %63 : vector<4x128xf32>
    %cst_29 = arith.constant dense<0.000000e+00> : vector<4x64xf32>
    %65 = tpu.matmul %64, %37, %cst_29 {dimension_numbers = #tpu.dot_dimension_numbers<[1], [0], [0], [1], [0, 0, 1, 1], [], []>} : vector<4x128xf32>, vector<128x64xf32>, vector<4x64xf32> -> vector<4x64xf32>
    %66 = arith.addf %59, %65 : vector<4x64xf32>
    %cst_30 = arith.constant 0.000000e+00 : f32
    %67 = vector.broadcast %cst_30 : f32 to vector<4x64xf32>
    %c0_31 = arith.constant 0 : index
    %c0_32 = arith.constant 0 : index
    %c0_33 = arith.constant 0 : index
    %68 = vector.load %arg2[%c0_31, %c0_32, %c0_33] : memref<4x4x1xf32, #tpu.memory_space<vmem>>, vector<1x4x1xf32>
    %69 = vector.shape_cast %68 : vector<1x4x1xf32> to vector<4x1xf32>
    %70 = vector.broadcast %69 : vector<4x1xf32> to vector<4x128xf32>
    %71 = vector.broadcast %3 : vector<1x128xf32> to vector<4x128xf32>
    %72 = arith.mulf %70, %71 : vector<4x128xf32>
    %cst_34 = arith.constant dense<0.000000e+00> : vector<4x64xf32>
    %73 = tpu.matmul %72, %13, %cst_34 {dimension_numbers = #tpu.dot_dimension_numbers<[1], [0], [0], [1], [0, 0, 1, 1], [], []>} : vector<4x128xf32>, vector<128x64xf32>, vector<4x64xf32> -> vector<4x64xf32>
    %74 = arith.addf %67, %73 : vector<4x64xf32>
    %c1_35 = arith.constant 1 : index
    %c0_36 = arith.constant 0 : index
    %c0_37 = arith.constant 0 : index
    %75 = vector.load %arg2[%c1_35, %c0_36, %c0_37] : memref<4x4x1xf32, #tpu.memory_space<vmem>>, vector<1x4x1xf32>
    %76 = vector.shape_cast %75 : vector<1x4x1xf32> to vector<4x1xf32>
    %77 = vector.broadcast %76 : vector<4x1xf32> to vector<4x128xf32>
    %78 = vector.broadcast %3 : vector<1x128xf32> to vector<4x128xf32>
    %79 = arith.mulf %77, %78 : vector<4x128xf32>
    %cst_38 = arith.constant dense<0.000000e+00> : vector<4x64xf32>
    %80 = tpu.matmul %79, %21, %cst_38 {dimension_numbers = #tpu.dot_dimension_numbers<[1], [0], [0], [1], [0, 0, 1, 1], [], []>} : vector<4x128xf32>, vector<128x64xf32>, vector<4x64xf32> -> vector<4x64xf32>
    %81 = arith.addf %74, %80 : vector<4x64xf32>
    %c2_39 = arith.constant 2 : index
    %c0_40 = arith.constant 0 : index
    %c0_41 = arith.constant 0 : index
    %82 = vector.load %arg2[%c2_39, %c0_40, %c0_41] : memref<4x4x1xf32, #tpu.memory_space<vmem>>, vector<1x4x1xf32>
    %83 = vector.shape_cast %82 : vector<1x4x1xf32> to vector<4x1xf32>
    %84 = vector.broadcast %83 : vector<4x1xf32> to vector<4x128xf32>
    %85 = vector.broadcast %3 : vector<1x128xf32> to vector<4x128xf32>
    %86 = arith.mulf %84, %85 : vector<4x128xf32>
    %cst_42 = arith.constant dense<0.000000e+00> : vector<4x64xf32>
    %87 = tpu.matmul %86, %29, %cst_42 {dimension_numbers = #tpu.dot_dimension_numbers<[1], [0], [0], [1], [0, 0, 1, 1], [], []>} : vector<4x128xf32>, vector<128x64xf32>, vector<4x64xf32> -> vector<4x64xf32>
    %88 = arith.addf %81, %87 : vector<4x64xf32>
    %c3_43 = arith.constant 3 : index
    %c0_44 = arith.constant 0 : index
    %c0_45 = arith.constant 0 : index
    %89 = vector.load %arg2[%c3_43, %c0_44, %c0_45] : memref<4x4x1xf32, #tpu.memory_space<vmem>>, vector<1x4x1xf32>
    %90 = vector.shape_cast %89 : vector<1x4x1xf32> to vector<4x1xf32>
    %91 = vector.broadcast %90 : vector<4x1xf32> to vector<4x128xf32>
    %92 = vector.broadcast %3 : vector<1x128xf32> to vector<4x128xf32>
    %93 = arith.mulf %91, %92 : vector<4x128xf32>
    %cst_46 = arith.constant dense<0.000000e+00> : vector<4x64xf32>
    %94 = tpu.matmul %93, %37, %cst_46 {dimension_numbers = #tpu.dot_dimension_numbers<[1], [0], [0], [1], [0, 0, 1, 1], [], []>} : vector<4x128xf32>, vector<128x64xf32>, vector<4x64xf32> -> vector<4x64xf32>
    %95 = arith.addf %88, %94 : vector<4x64xf32>
    %cst_47 = arith.constant dense<0.000000e+00> : vector<4xf32>
    %96 = vector.multi_reduction <add>, %66, %cst_47 [1] : vector<4x64xf32> to vector<4xf32>
    %97 = vector.shape_cast %96 : vector<4xf32> to vector<4x1xf32>
    %cst_48 = arith.constant 0.000000e+00 : f32
    %98 = vector.broadcast %cst_48 : f32 to vector<4x1xf32>
    %99 = arith.addf %98, %97 : vector<4x1xf32>
    %cst_49 = arith.constant dense<0.000000e+00> : vector<4xf32>
    %100 = vector.multi_reduction <add>, %95, %cst_49 [1] : vector<4x64xf32> to vector<4xf32>
    %101 = vector.shape_cast %100 : vector<4xf32> to vector<4x1xf32>
    %102 = arith.addf %99, %101 : vector<4x1xf32>
    %cst_50 = arith.constant 1.280000e+02 : f32
    %103 = vector.broadcast %cst_50 : f32 to vector<4x1xf32>
    %104 = arith.divf %102, %103 : vector<4x1xf32>
    %105 = vector.broadcast %104 : vector<4x1xf32> to vector<4x64xf32>
    %106 = arith.subf %66, %105 : vector<4x64xf32>
    %107 = arith.mulf %106, %106 : vector<4x64xf32>
    %cst_51 = arith.constant dense<0.000000e+00> : vector<4xf32>
    %108 = vector.multi_reduction <add>, %107, %cst_51 [1] : vector<4x64xf32> to vector<4xf32>
    %109 = vector.shape_cast %108 : vector<4xf32> to vector<4x1xf32>
    %cst_52 = arith.constant 0.000000e+00 : f32
    %110 = vector.broadcast %cst_52 : f32 to vector<4x1xf32>
    %111 = arith.addf %110, %109 : vector<4x1xf32>
    %112 = vector.broadcast %104 : vector<4x1xf32> to vector<4x64xf32>
    %113 = arith.subf %95, %112 : vector<4x64xf32>
    %114 = arith.mulf %113, %113 : vector<4x64xf32>
    %cst_53 = arith.constant dense<0.000000e+00> : vector<4xf32>
    %115 = vector.multi_reduction <add>, %114, %cst_53 [1] : vector<4x64xf32> to vector<4xf32>
    %116 = vector.shape_cast %115 : vector<4xf32> to vector<4x1xf32>
    %117 = arith.addf %111, %116 : vector<4x1xf32>
    %cst_54 = arith.constant 1.280000e+02 : f32
    %118 = vector.broadcast %cst_54 : f32 to vector<4x1xf32>
    %119 = arith.divf %117, %118 : vector<4x1xf32>
    %cst_55 = arith.constant 9.99999974E-6 : f32
    %120 = vector.broadcast %cst_55 : f32 to vector<4x1xf32>
    %121 = arith.addf %119, %120 : vector<4x1xf32>
    %122 = math.rsqrt %121 : vector<4x1xf32>
    %123 = vector.broadcast %104 : vector<4x1xf32> to vector<4x64xf32>
    %124 = arith.subf %66, %123 : vector<4x64xf32>
    %125 = vector.broadcast %122 : vector<4x1xf32> to vector<4x64xf32>
    %126 = arith.mulf %124, %125 : vector<4x64xf32>
    %cst_56 = arith.constant 0.000000e+00 : f32
    %127 = vector.broadcast %cst_56 : f32 to vector<4x64xf32>
    %128 = arith.cmpf ogt, %126, %127 : vector<4x64xf32>
    %cst_57 = arith.constant 2.000000e-01 : f32
    %129 = vector.broadcast %cst_57 : f32 to vector<4x64xf32>
    %130 = arith.mulf %129, %126 : vector<4x64xf32>
    %131 = arith.select %128, %126, %130 : vector<4x64xi1>, vector<4x64xf32>
    %132 = vector.broadcast %104 : vector<4x1xf32> to vector<4x64xf32>
    %133 = arith.subf %95, %132 : vector<4x64xf32>
    %134 = vector.broadcast %122 : vector<4x1xf32> to vector<4x64xf32>
    %135 = arith.mulf %133, %134 : vector<4x64xf32>
    %cst_58 = arith.constant 0.000000e+00 : f32
    %136 = vector.broadcast %cst_58 : f32 to vector<4x64xf32>
    %137 = arith.cmpf ogt, %135, %136 : vector<4x64xf32>
    %cst_59 = arith.constant 2.000000e-01 : f32
    %138 = vector.broadcast %cst_59 : f32 to vector<4x64xf32>
    %139 = arith.mulf %138, %135 : vector<4x64xf32>
    %140 = arith.select %137, %135, %139 : vector<4x64xi1>, vector<4x64xf32>
    %141 = tpu.iota {dimensions = array<i32: 0>} : vector<64x32xi32>
    %142 = tpu.iota {dimensions = array<i32: 1>} : vector<64x32xi32>
    %c2_i32_60 = arith.constant 2 : i32
    %143 = vector.broadcast %c2_i32_60 : i32 to vector<64x32xi32>
    %144 = arith.muli %143, %142 : vector<64x32xi32>
    %c-1_i32_61 = arith.constant -1 : i32
    %145 = vector.broadcast %c-1_i32_61 : i32 to vector<64x32xi32>
    %146 = arith.addi %144, %145 : vector<64x32xi32>
    %147 = arith.cmpi eq, %141, %146 : vector<64x32xi32>
    %cst_62 = arith.constant 1.000000e+00 : f32
    %cst_63 = arith.constant 0.000000e+00 : f32
    %148 = vector.broadcast %cst_62 : f32 to vector<64x32xf32>
    %149 = vector.broadcast %cst_63 : f32 to vector<64x32xf32>
    %150 = arith.select %147, %148, %149 : vector<64x32xi1>, vector<64x32xf32>
    %c2_i32_64 = arith.constant 2 : i32
    %151 = vector.broadcast %c2_i32_64 : i32 to vector<64x32xi32>
    %152 = arith.muli %151, %142 : vector<64x32xi32>
    %c0_i32_65 = arith.constant 0 : i32
    %153 = vector.broadcast %c0_i32_65 : i32 to vector<64x32xi32>
    %154 = arith.addi %152, %153 : vector<64x32xi32>
    %155 = arith.cmpi eq, %141, %154 : vector<64x32xi32>
    %cst_66 = arith.constant 1.000000e+00 : f32
    %cst_67 = arith.constant 0.000000e+00 : f32
    %156 = vector.broadcast %cst_66 : f32 to vector<64x32xf32>
    %157 = vector.broadcast %cst_67 : f32 to vector<64x32xf32>
    %158 = arith.select %155, %156, %157 : vector<64x32xi1>, vector<64x32xf32>
    %c2_i32_68 = arith.constant 2 : i32
    %159 = vector.broadcast %c2_i32_68 : i32 to vector<64x32xi32>
    %160 = arith.muli %159, %142 : vector<64x32xi32>
    %c1_i32_69 = arith.constant 1 : i32
    %161 = vector.broadcast %c1_i32_69 : i32 to vector<64x32xi32>
    %162 = arith.addi %160, %161 : vector<64x32xi32>
    %163 = arith.cmpi eq, %141, %162 : vector<64x32xi32>
    %cst_70 = arith.constant 1.000000e+00 : f32
    %cst_71 = arith.constant 0.000000e+00 : f32
    %164 = vector.broadcast %cst_70 : f32 to vector<64x32xf32>
    %165 = vector.broadcast %cst_71 : f32 to vector<64x32xf32>
    %166 = arith.select %163, %164, %165 : vector<64x32xi1>, vector<64x32xf32>
    %c2_i32_72 = arith.constant 2 : i32
    %167 = vector.broadcast %c2_i32_72 : i32 to vector<64x32xi32>
    %168 = arith.muli %167, %142 : vector<64x32xi32>
    %c2_i32_73 = arith.constant 2 : i32
    %169 = vector.broadcast %c2_i32_73 : i32 to vector<64x32xi32>
    %170 = arith.addi %168, %169 : vector<64x32xi32>
    %171 = arith.cmpi eq, %141, %170 : vector<64x32xi32>
    %cst_74 = arith.constant 1.000000e+00 : f32
    %cst_75 = arith.constant 0.000000e+00 : f32
    %172 = vector.broadcast %cst_74 : f32 to vector<64x32xf32>
    %173 = vector.broadcast %cst_75 : f32 to vector<64x32xf32>
    %174 = arith.select %171, %172, %173 : vector<64x32xi1>, vector<64x32xf32>
    %cst_76 = arith.constant 0.000000e+00 : f32
    %175 = vector.broadcast %cst_76 : f32 to vector<8x32xf32>
    %c0_77 = arith.constant 0 : index
    %c0_78 = arith.constant 0 : index
    %c0_79 = arith.constant 0 : index
    %176 = vector.load %arg3[%c0_77, %c0_78, %c0_79] : memref<4x8x4xf32, #tpu.memory_space<vmem>>, vector<1x8x4xf32>
    %177 = vector.shape_cast %176 : vector<1x8x4xf32> to vector<8x4xf32>
    %cst_80 = arith.constant dense<0.000000e+00> : vector<8x64xf32>
    %178 = tpu.matmul %177, %131, %cst_80 {dimension_numbers = #tpu.dot_dimension_numbers<[1], [0], [0], [1], [0, 0, 1, 1], [], []>} : vector<8x4xf32>, vector<4x64xf32>, vector<8x64xf32> -> vector<8x64xf32>
    %cst_81 = arith.constant dense<0.000000e+00> : vector<8x32xf32>
    %179 = tpu.matmul %178, %150, %cst_81 {dimension_numbers = #tpu.dot_dimension_numbers<[1], [0], [0], [1], [0, 0, 1, 1], [], []>} : vector<8x64xf32>, vector<64x32xf32>, vector<8x32xf32> -> vector<8x32xf32>
    %180 = arith.addf %175, %179 : vector<8x32xf32>
    %c1_82 = arith.constant 1 : index
    %c0_83 = arith.constant 0 : index
    %c0_84 = arith.constant 0 : index
    %181 = vector.load %arg3[%c1_82, %c0_83, %c0_84] : memref<4x8x4xf32, #tpu.memory_space<vmem>>, vector<1x8x4xf32>
    %182 = vector.shape_cast %181 : vector<1x8x4xf32> to vector<8x4xf32>
    %cst_85 = arith.constant dense<0.000000e+00> : vector<8x64xf32>
    %183 = tpu.matmul %182, %131, %cst_85 {dimension_numbers = #tpu.dot_dimension_numbers<[1], [0], [0], [1], [0, 0, 1, 1], [], []>} : vector<8x4xf32>, vector<4x64xf32>, vector<8x64xf32> -> vector<8x64xf32>
    %cst_86 = arith.constant dense<0.000000e+00> : vector<8x32xf32>
    %184 = tpu.matmul %183, %158, %cst_86 {dimension_numbers = #tpu.dot_dimension_numbers<[1], [0], [0], [1], [0, 0, 1, 1], [], []>} : vector<8x64xf32>, vector<64x32xf32>, vector<8x32xf32> -> vector<8x32xf32>
    %185 = arith.addf %180, %184 : vector<8x32xf32>
    %c2_87 = arith.constant 2 : index
    %c0_88 = arith.constant 0 : index
    %c0_89 = arith.constant 0 : index
    %186 = vector.load %arg3[%c2_87, %c0_88, %c0_89] : memref<4x8x4xf32, #tpu.memory_space<vmem>>, vector<1x8x4xf32>
    %187 = vector.shape_cast %186 : vector<1x8x4xf32> to vector<8x4xf32>
    %cst_90 = arith.constant dense<0.000000e+00> : vector<8x64xf32>
    %188 = tpu.matmul %187, %131, %cst_90 {dimension_numbers = #tpu.dot_dimension_numbers<[1], [0], [0], [1], [0, 0, 1, 1], [], []>} : vector<8x4xf32>, vector<4x64xf32>, vector<8x64xf32> -> vector<8x64xf32>
    %cst_91 = arith.constant dense<0.000000e+00> : vector<8x32xf32>
    %189 = tpu.matmul %188, %166, %cst_91 {dimension_numbers = #tpu.dot_dimension_numbers<[1], [0], [0], [1], [0, 0, 1, 1], [], []>} : vector<8x64xf32>, vector<64x32xf32>, vector<8x32xf32> -> vector<8x32xf32>
    %190 = arith.addf %185, %189 : vector<8x32xf32>
    %c3_92 = arith.constant 3 : index
    %c0_93 = arith.constant 0 : index
    %c0_94 = arith.constant 0 : index
    %191 = vector.load %arg3[%c3_92, %c0_93, %c0_94] : memref<4x8x4xf32, #tpu.memory_space<vmem>>, vector<1x8x4xf32>
    %192 = vector.shape_cast %191 : vector<1x8x4xf32> to vector<8x4xf32>
    %cst_95 = arith.constant dense<0.000000e+00> : vector<8x64xf32>
    %193 = tpu.matmul %192, %131, %cst_95 {dimension_numbers = #tpu.dot_dimension_numbers<[1], [0], [0], [1], [0, 0, 1, 1], [], []>} : vector<8x4xf32>, vector<4x64xf32>, vector<8x64xf32> -> vector<8x64xf32>
    %cst_96 = arith.constant dense<0.000000e+00> : vector<8x32xf32>
    %194 = tpu.matmul %193, %174, %cst_96 {dimension_numbers = #tpu.dot_dimension_numbers<[1], [0], [0], [1], [0, 0, 1, 1], [], []>} : vector<8x64xf32>, vector<64x32xf32>, vector<8x32xf32> -> vector<8x32xf32>
    %195 = arith.addf %190, %194 : vector<8x32xf32>
    %cst_97 = arith.constant 0.000000e+00 : f32
    %196 = vector.broadcast %cst_97 : f32 to vector<8x32xf32>
    %c0_98 = arith.constant 0 : index
    %c0_99 = arith.constant 0 : index
    %c0_100 = arith.constant 0 : index
    %197 = vector.load %arg3[%c0_98, %c0_99, %c0_100] : memref<4x8x4xf32, #tpu.memory_space<vmem>>, vector<1x8x4xf32>
    %198 = vector.shape_cast %197 : vector<1x8x4xf32> to vector<8x4xf32>
    %cst_101 = arith.constant dense<0.000000e+00> : vector<8x64xf32>
    %199 = tpu.matmul %198, %140, %cst_101 {dimension_numbers = #tpu.dot_dimension_numbers<[1], [0], [0], [1], [0, 0, 1, 1], [], []>} : vector<8x4xf32>, vector<4x64xf32>, vector<8x64xf32> -> vector<8x64xf32>
    %cst_102 = arith.constant dense<0.000000e+00> : vector<8x32xf32>
    %200 = tpu.matmul %199, %150, %cst_102 {dimension_numbers = #tpu.dot_dimension_numbers<[1], [0], [0], [1], [0, 0, 1, 1], [], []>} : vector<8x64xf32>, vector<64x32xf32>, vector<8x32xf32> -> vector<8x32xf32>
    %201 = arith.addf %196, %200 : vector<8x32xf32>
    %c1_103 = arith.constant 1 : index
    %c0_104 = arith.constant 0 : index
    %c0_105 = arith.constant 0 : index
    %202 = vector.load %arg3[%c1_103, %c0_104, %c0_105] : memref<4x8x4xf32, #tpu.memory_space<vmem>>, vector<1x8x4xf32>
    %203 = vector.shape_cast %202 : vector<1x8x4xf32> to vector<8x4xf32>
    %cst_106 = arith.constant dense<0.000000e+00> : vector<8x64xf32>
    %204 = tpu.matmul %203, %140, %cst_106 {dimension_numbers = #tpu.dot_dimension_numbers<[1], [0], [0], [1], [0, 0, 1, 1], [], []>} : vector<8x4xf32>, vector<4x64xf32>, vector<8x64xf32> -> vector<8x64xf32>
    %cst_107 = arith.constant dense<0.000000e+00> : vector<8x32xf32>
    %205 = tpu.matmul %204, %158, %cst_107 {dimension_numbers = #tpu.dot_dimension_numbers<[1], [0], [0], [1], [0, 0, 1, 1], [], []>} : vector<8x64xf32>, vector<64x32xf32>, vector<8x32xf32> -> vector<8x32xf32>
    %206 = arith.addf %201, %205 : vector<8x32xf32>
    %c2_108 = arith.constant 2 : index
    %c0_109 = arith.constant 0 : index
    %c0_110 = arith.constant 0 : index
    %207 = vector.load %arg3[%c2_108, %c0_109, %c0_110] : memref<4x8x4xf32, #tpu.memory_space<vmem>>, vector<1x8x4xf32>
    %208 = vector.shape_cast %207 : vector<1x8x4xf32> to vector<8x4xf32>
    %cst_111 = arith.constant dense<0.000000e+00> : vector<8x64xf32>
    %209 = tpu.matmul %208, %140, %cst_111 {dimension_numbers = #tpu.dot_dimension_numbers<[1], [0], [0], [1], [0, 0, 1, 1], [], []>} : vector<8x4xf32>, vector<4x64xf32>, vector<8x64xf32> -> vector<8x64xf32>
    %cst_112 = arith.constant dense<0.000000e+00> : vector<8x32xf32>
    %210 = tpu.matmul %209, %166, %cst_112 {dimension_numbers = #tpu.dot_dimension_numbers<[1], [0], [0], [1], [0, 0, 1, 1], [], []>} : vector<8x64xf32>, vector<64x32xf32>, vector<8x32xf32> -> vector<8x32xf32>
    %211 = arith.addf %206, %210 : vector<8x32xf32>
    %c3_113 = arith.constant 3 : index
    %c0_114 = arith.constant 0 : index
    %c0_115 = arith.constant 0 : index
    %212 = vector.load %arg3[%c3_113, %c0_114, %c0_115] : memref<4x8x4xf32, #tpu.memory_space<vmem>>, vector<1x8x4xf32>
    %213 = vector.shape_cast %212 : vector<1x8x4xf32> to vector<8x4xf32>
    %cst_116 = arith.constant dense<0.000000e+00> : vector<8x64xf32>
    %214 = tpu.matmul %213, %140, %cst_116 {dimension_numbers = #tpu.dot_dimension_numbers<[1], [0], [0], [1], [0, 0, 1, 1], [], []>} : vector<8x4xf32>, vector<4x64xf32>, vector<8x64xf32> -> vector<8x64xf32>
    %cst_117 = arith.constant dense<0.000000e+00> : vector<8x32xf32>
    %215 = tpu.matmul %214, %174, %cst_117 {dimension_numbers = #tpu.dot_dimension_numbers<[1], [0], [0], [1], [0, 0, 1, 1], [], []>} : vector<8x64xf32>, vector<64x32xf32>, vector<8x32xf32> -> vector<8x32xf32>
    %216 = arith.addf %211, %215 : vector<8x32xf32>
    %cst_118 = arith.constant dense<0.000000e+00> : vector<8xf32>
    %217 = vector.multi_reduction <add>, %195, %cst_118 [1] : vector<8x32xf32> to vector<8xf32>
    %218 = vector.shape_cast %217 : vector<8xf32> to vector<8x1xf32>
    %cst_119 = arith.constant 0.000000e+00 : f32
    %219 = vector.broadcast %cst_119 : f32 to vector<8x1xf32>
    %220 = arith.addf %219, %218 : vector<8x1xf32>
    %cst_120 = arith.constant dense<0.000000e+00> : vector<8xf32>
    %221 = vector.multi_reduction <add>, %216, %cst_120 [1] : vector<8x32xf32> to vector<8xf32>
    %222 = vector.shape_cast %221 : vector<8xf32> to vector<8x1xf32>
    %223 = arith.addf %220, %222 : vector<8x1xf32>
    %cst_121 = arith.constant 6.400000e+01 : f32
    %224 = vector.broadcast %cst_121 : f32 to vector<8x1xf32>
    %225 = arith.divf %223, %224 : vector<8x1xf32>
    %226 = vector.broadcast %225 : vector<8x1xf32> to vector<8x32xf32>
    %227 = arith.subf %195, %226 : vector<8x32xf32>
    %228 = arith.mulf %227, %227 : vector<8x32xf32>
    %cst_122 = arith.constant dense<0.000000e+00> : vector<8xf32>
    %229 = vector.multi_reduction <add>, %228, %cst_122 [1] : vector<8x32xf32> to vector<8xf32>
    %230 = vector.shape_cast %229 : vector<8xf32> to vector<8x1xf32>
    %cst_123 = arith.constant 0.000000e+00 : f32
    %231 = vector.broadcast %cst_123 : f32 to vector<8x1xf32>
    %232 = arith.addf %231, %230 : vector<8x1xf32>
    %233 = vector.broadcast %225 : vector<8x1xf32> to vector<8x32xf32>
    %234 = arith.subf %216, %233 : vector<8x32xf32>
    %235 = arith.mulf %234, %234 : vector<8x32xf32>
    %cst_124 = arith.constant dense<0.000000e+00> : vector<8xf32>
    %236 = vector.multi_reduction <add>, %235, %cst_124 [1] : vector<8x32xf32> to vector<8xf32>
    %237 = vector.shape_cast %236 : vector<8xf32> to vector<8x1xf32>
    %238 = arith.addf %232, %237 : vector<8x1xf32>
    %cst_125 = arith.constant 6.400000e+01 : f32
    %239 = vector.broadcast %cst_125 : f32 to vector<8x1xf32>
    %240 = arith.divf %238, %239 : vector<8x1xf32>
    %cst_126 = arith.constant 9.99999974E-6 : f32
    %241 = vector.broadcast %cst_126 : f32 to vector<8x1xf32>
    %242 = arith.addf %240, %241 : vector<8x1xf32>
    %243 = math.rsqrt %242 : vector<8x1xf32>
    %244 = vector.broadcast %225 : vector<8x1xf32> to vector<8x32xf32>
    %245 = arith.subf %195, %244 : vector<8x32xf32>
    %246 = vector.broadcast %243 : vector<8x1xf32> to vector<8x32xf32>
    %247 = arith.mulf %245, %246 : vector<8x32xf32>
    %cst_127 = arith.constant 0.000000e+00 : f32
    %248 = vector.broadcast %cst_127 : f32 to vector<8x32xf32>
    %249 = arith.cmpf ogt, %247, %248 : vector<8x32xf32>
    %cst_128 = arith.constant 2.000000e-01 : f32
    %250 = vector.broadcast %cst_128 : f32 to vector<8x32xf32>
    %251 = arith.mulf %250, %247 : vector<8x32xf32>
    %252 = arith.select %249, %247, %251 : vector<8x32xi1>, vector<8x32xf32>
    %253 = vector.broadcast %225 : vector<8x1xf32> to vector<8x32xf32>
    %254 = arith.subf %216, %253 : vector<8x32xf32>
    %255 = vector.broadcast %243 : vector<8x1xf32> to vector<8x32xf32>
    %256 = arith.mulf %254, %255 : vector<8x32xf32>
    %cst_129 = arith.constant 0.000000e+00 : f32
    %257 = vector.broadcast %cst_129 : f32 to vector<8x32xf32>
    %258 = arith.cmpf ogt, %256, %257 : vector<8x32xf32>
    %cst_130 = arith.constant 2.000000e-01 : f32
    %259 = vector.broadcast %cst_130 : f32 to vector<8x32xf32>
    %260 = arith.mulf %259, %256 : vector<8x32xf32>
    %261 = arith.select %258, %256, %260 : vector<8x32xi1>, vector<8x32xf32>
    %262 = tpu.iota {dimensions = array<i32: 0>} : vector<32x16xi32>
    %263 = tpu.iota {dimensions = array<i32: 1>} : vector<32x16xi32>
    %c2_i32_131 = arith.constant 2 : i32
    %264 = vector.broadcast %c2_i32_131 : i32 to vector<32x16xi32>
    %265 = arith.muli %264, %263 : vector<32x16xi32>
    %c-1_i32_132 = arith.constant -1 : i32
    %266 = vector.broadcast %c-1_i32_132 : i32 to vector<32x16xi32>
    %267 = arith.addi %265, %266 : vector<32x16xi32>
    %268 = arith.cmpi eq, %262, %267 : vector<32x16xi32>
    %cst_133 = arith.constant 1.000000e+00 : f32
    %cst_134 = arith.constant 0.000000e+00 : f32
    %269 = vector.broadcast %cst_133 : f32 to vector<32x16xf32>
    %270 = vector.broadcast %cst_134 : f32 to vector<32x16xf32>
    %271 = arith.select %268, %269, %270 : vector<32x16xi1>, vector<32x16xf32>
    %c2_i32_135 = arith.constant 2 : i32
    %272 = vector.broadcast %c2_i32_135 : i32 to vector<32x16xi32>
    %273 = arith.muli %272, %263 : vector<32x16xi32>
    %c0_i32_136 = arith.constant 0 : i32
    %274 = vector.broadcast %c0_i32_136 : i32 to vector<32x16xi32>
    %275 = arith.addi %273, %274 : vector<32x16xi32>
    %276 = arith.cmpi eq, %262, %275 : vector<32x16xi32>
    %cst_137 = arith.constant 1.000000e+00 : f32
    %cst_138 = arith.constant 0.000000e+00 : f32
    %277 = vector.broadcast %cst_137 : f32 to vector<32x16xf32>
    %278 = vector.broadcast %cst_138 : f32 to vector<32x16xf32>
    %279 = arith.select %276, %277, %278 : vector<32x16xi1>, vector<32x16xf32>
    %c2_i32_139 = arith.constant 2 : i32
    %280 = vector.broadcast %c2_i32_139 : i32 to vector<32x16xi32>
    %281 = arith.muli %280, %263 : vector<32x16xi32>
    %c1_i32_140 = arith.constant 1 : i32
    %282 = vector.broadcast %c1_i32_140 : i32 to vector<32x16xi32>
    %283 = arith.addi %281, %282 : vector<32x16xi32>
    %284 = arith.cmpi eq, %262, %283 : vector<32x16xi32>
    %cst_141 = arith.constant 1.000000e+00 : f32
    %cst_142 = arith.constant 0.000000e+00 : f32
    %285 = vector.broadcast %cst_141 : f32 to vector<32x16xf32>
    %286 = vector.broadcast %cst_142 : f32 to vector<32x16xf32>
    %287 = arith.select %284, %285, %286 : vector<32x16xi1>, vector<32x16xf32>
    %c2_i32_143 = arith.constant 2 : i32
    %288 = vector.broadcast %c2_i32_143 : i32 to vector<32x16xi32>
    %289 = arith.muli %288, %263 : vector<32x16xi32>
    %c2_i32_144 = arith.constant 2 : i32
    %290 = vector.broadcast %c2_i32_144 : i32 to vector<32x16xi32>
    %291 = arith.addi %289, %290 : vector<32x16xi32>
    %292 = arith.cmpi eq, %262, %291 : vector<32x16xi32>
    %cst_145 = arith.constant 1.000000e+00 : f32
    %cst_146 = arith.constant 0.000000e+00 : f32
    %293 = vector.broadcast %cst_145 : f32 to vector<32x16xf32>
    %294 = vector.broadcast %cst_146 : f32 to vector<32x16xf32>
    %295 = arith.select %292, %293, %294 : vector<32x16xi1>, vector<32x16xf32>
    %cst_147 = arith.constant 0.000000e+00 : f32
    %296 = vector.broadcast %cst_147 : f32 to vector<16x16xf32>
    %c0_148 = arith.constant 0 : index
    %c0_149 = arith.constant 0 : index
    %c0_150 = arith.constant 0 : index
    %297 = vector.load %arg4[%c0_148, %c0_149, %c0_150] : memref<4x16x8xf32, #tpu.memory_space<vmem>>, vector<1x16x8xf32>
    %298 = vector.shape_cast %297 : vector<1x16x8xf32> to vector<16x8xf32>
    %cst_151 = arith.constant dense<0.000000e+00> : vector<16x32xf32>
    %299 = tpu.matmul %298, %252, %cst_151 {dimension_numbers = #tpu.dot_dimension_numbers<[1], [0], [0], [1], [0, 0, 1, 1], [], []>} : vector<16x8xf32>, vector<8x32xf32>, vector<16x32xf32> -> vector<16x32xf32>
    %cst_152 = arith.constant dense<0.000000e+00> : vector<16x16xf32>
    %300 = tpu.matmul %299, %271, %cst_152 {dimension_numbers = #tpu.dot_dimension_numbers<[1], [0], [0], [1], [0, 0, 1, 1], [], []>} : vector<16x32xf32>, vector<32x16xf32>, vector<16x16xf32> -> vector<16x16xf32>
    %301 = arith.addf %296, %300 : vector<16x16xf32>
    %c1_153 = arith.constant 1 : index
    %c0_154 = arith.constant 0 : index
    %c0_155 = arith.constant 0 : index
    %302 = vector.load %arg4[%c1_153, %c0_154, %c0_155] : memref<4x16x8xf32, #tpu.memory_space<vmem>>, vector<1x16x8xf32>
    %303 = vector.shape_cast %302 : vector<1x16x8xf32> to vector<16x8xf32>
    %cst_156 = arith.constant dense<0.000000e+00> : vector<16x32xf32>
    %304 = tpu.matmul %303, %252, %cst_156 {dimension_numbers = #tpu.dot_dimension_numbers<[1], [0], [0], [1], [0, 0, 1, 1], [], []>} : vector<16x8xf32>, vector<8x32xf32>, vector<16x32xf32> -> vector<16x32xf32>
    %cst_157 = arith.constant dense<0.000000e+00> : vector<16x16xf32>
    %305 = tpu.matmul %304, %279, %cst_157 {dimension_numbers = #tpu.dot_dimension_numbers<[1], [0], [0], [1], [0, 0, 1, 1], [], []>} : vector<16x32xf32>, vector<32x16xf32>, vector<16x16xf32> -> vector<16x16xf32>
    %306 = arith.addf %301, %305 : vector<16x16xf32>
    %c2_158 = arith.constant 2 : index
    %c0_159 = arith.constant 0 : index
    %c0_160 = arith.constant 0 : index
    %307 = vector.load %arg4[%c2_158, %c0_159, %c0_160] : memref<4x16x8xf32, #tpu.memory_space<vmem>>, vector<1x16x8xf32>
    %308 = vector.shape_cast %307 : vector<1x16x8xf32> to vector<16x8xf32>
    %cst_161 = arith.constant dense<0.000000e+00> : vector<16x32xf32>
    %309 = tpu.matmul %308, %252, %cst_161 {dimension_numbers = #tpu.dot_dimension_numbers<[1], [0], [0], [1], [0, 0, 1, 1], [], []>} : vector<16x8xf32>, vector<8x32xf32>, vector<16x32xf32> -> vector<16x32xf32>
    %cst_162 = arith.constant dense<0.000000e+00> : vector<16x16xf32>
    %310 = tpu.matmul %309, %287, %cst_162 {dimension_numbers = #tpu.dot_dimension_numbers<[1], [0], [0], [1], [0, 0, 1, 1], [], []>} : vector<16x32xf32>, vector<32x16xf32>, vector<16x16xf32> -> vector<16x16xf32>
    %311 = arith.addf %306, %310 : vector<16x16xf32>
    %c3_163 = arith.constant 3 : index
    %c0_164 = arith.constant 0 : index
    %c0_165 = arith.constant 0 : index
    %312 = vector.load %arg4[%c3_163, %c0_164, %c0_165] : memref<4x16x8xf32, #tpu.memory_space<vmem>>, vector<1x16x8xf32>
    %313 = vector.shape_cast %312 : vector<1x16x8xf32> to vector<16x8xf32>
    %cst_166 = arith.constant dense<0.000000e+00> : vector<16x32xf32>
    %314 = tpu.matmul %313, %252, %cst_166 {dimension_numbers = #tpu.dot_dimension_numbers<[1], [0], [0], [1], [0, 0, 1, 1], [], []>} : vector<16x8xf32>, vector<8x32xf32>, vector<16x32xf32> -> vector<16x32xf32>
    %cst_167 = arith.constant dense<0.000000e+00> : vector<16x16xf32>
    %315 = tpu.matmul %314, %295, %cst_167 {dimension_numbers = #tpu.dot_dimension_numbers<[1], [0], [0], [1], [0, 0, 1, 1], [], []>} : vector<16x32xf32>, vector<32x16xf32>, vector<16x16xf32> -> vector<16x16xf32>
    %316 = arith.addf %311, %315 : vector<16x16xf32>
    %cst_168 = arith.constant 0.000000e+00 : f32
    %317 = vector.broadcast %cst_168 : f32 to vector<16x16xf32>
    %c0_169 = arith.constant 0 : index
    %c0_170 = arith.constant 0 : index
    %c0_171 = arith.constant 0 : index
    %318 = vector.load %arg4[%c0_169, %c0_170, %c0_171] : memref<4x16x8xf32, #tpu.memory_space<vmem>>, vector<1x16x8xf32>
    %319 = vector.shape_cast %318 : vector<1x16x8xf32> to vector<16x8xf32>
    %cst_172 = arith.constant dense<0.000000e+00> : vector<16x32xf32>
    %320 = tpu.matmul %319, %261, %cst_172 {dimension_numbers = #tpu.dot_dimension_numbers<[1], [0], [0], [1], [0, 0, 1, 1], [], []>} : vector<16x8xf32>, vector<8x32xf32>, vector<16x32xf32> -> vector<16x32xf32>
    %cst_173 = arith.constant dense<0.000000e+00> : vector<16x16xf32>
    %321 = tpu.matmul %320, %271, %cst_173 {dimension_numbers = #tpu.dot_dimension_numbers<[1], [0], [0], [1], [0, 0, 1, 1], [], []>} : vector<16x32xf32>, vector<32x16xf32>, vector<16x16xf32> -> vector<16x16xf32>
    %322 = arith.addf %317, %321 : vector<16x16xf32>
    %c1_174 = arith.constant 1 : index
    %c0_175 = arith.constant 0 : index
    %c0_176 = arith.constant 0 : index
    %323 = vector.load %arg4[%c1_174, %c0_175, %c0_176] : memref<4x16x8xf32, #tpu.memory_space<vmem>>, vector<1x16x8xf32>
    %324 = vector.shape_cast %323 : vector<1x16x8xf32> to vector<16x8xf32>
    %cst_177 = arith.constant dense<0.000000e+00> : vector<16x32xf32>
    %325 = tpu.matmul %324, %261, %cst_177 {dimension_numbers = #tpu.dot_dimension_numbers<[1], [0], [0], [1], [0, 0, 1, 1], [], []>} : vector<16x8xf32>, vector<8x32xf32>, vector<16x32xf32> -> vector<16x32xf32>
    %cst_178 = arith.constant dense<0.000000e+00> : vector<16x16xf32>
    %326 = tpu.matmul %325, %279, %cst_178 {dimension_numbers = #tpu.dot_dimension_numbers<[1], [0], [0], [1], [0, 0, 1, 1], [], []>} : vector<16x32xf32>, vector<32x16xf32>, vector<16x16xf32> -> vector<16x16xf32>
    %327 = arith.addf %322, %326 : vector<16x16xf32>
    %c2_179 = arith.constant 2 : index
    %c0_180 = arith.constant 0 : index
    %c0_181 = arith.constant 0 : index
    %328 = vector.load %arg4[%c2_179, %c0_180, %c0_181] : memref<4x16x8xf32, #tpu.memory_space<vmem>>, vector<1x16x8xf32>
    %329 = vector.shape_cast %328 : vector<1x16x8xf32> to vector<16x8xf32>
    %cst_182 = arith.constant dense<0.000000e+00> : vector<16x32xf32>
    %330 = tpu.matmul %329, %261, %cst_182 {dimension_numbers = #tpu.dot_dimension_numbers<[1], [0], [0], [1], [0, 0, 1, 1], [], []>} : vector<16x8xf32>, vector<8x32xf32>, vector<16x32xf32> -> vector<16x32xf32>
    %cst_183 = arith.constant dense<0.000000e+00> : vector<16x16xf32>
    %331 = tpu.matmul %330, %287, %cst_183 {dimension_numbers = #tpu.dot_dimension_numbers<[1], [0], [0], [1], [0, 0, 1, 1], [], []>} : vector<16x32xf32>, vector<32x16xf32>, vector<16x16xf32> -> vector<16x16xf32>
    %332 = arith.addf %327, %331 : vector<16x16xf32>
    %c3_184 = arith.constant 3 : index
    %c0_185 = arith.constant 0 : index
    %c0_186 = arith.constant 0 : index
    %333 = vector.load %arg4[%c3_184, %c0_185, %c0_186] : memref<4x16x8xf32, #tpu.memory_space<vmem>>, vector<1x16x8xf32>
    %334 = vector.shape_cast %333 : vector<1x16x8xf32> to vector<16x8xf32>
    %cst_187 = arith.constant dense<0.000000e+00> : vector<16x32xf32>
    %335 = tpu.matmul %334, %261, %cst_187 {dimension_numbers = #tpu.dot_dimension_numbers<[1], [0], [0], [1], [0, 0, 1, 1], [], []>} : vector<16x8xf32>, vector<8x32xf32>, vector<16x32xf32> -> vector<16x32xf32>
    %cst_188 = arith.constant dense<0.000000e+00> : vector<16x16xf32>
    %336 = tpu.matmul %335, %295, %cst_188 {dimension_numbers = #tpu.dot_dimension_numbers<[1], [0], [0], [1], [0, 0, 1, 1], [], []>} : vector<16x32xf32>, vector<32x16xf32>, vector<16x16xf32> -> vector<16x16xf32>
    %337 = arith.addf %332, %336 : vector<16x16xf32>
    %cst_189 = arith.constant dense<0.000000e+00> : vector<16xf32>
    %338 = vector.multi_reduction <add>, %316, %cst_189 [1] : vector<16x16xf32> to vector<16xf32>
    %339 = vector.shape_cast %338 : vector<16xf32> to vector<16x1xf32>
    %cst_190 = arith.constant 0.000000e+00 : f32
    %340 = vector.broadcast %cst_190 : f32 to vector<16x1xf32>
    %341 = arith.addf %340, %339 : vector<16x1xf32>
    %cst_191 = arith.constant dense<0.000000e+00> : vector<16xf32>
    %342 = vector.multi_reduction <add>, %337, %cst_191 [1] : vector<16x16xf32> to vector<16xf32>
    %343 = vector.shape_cast %342 : vector<16xf32> to vector<16x1xf32>
    %344 = arith.addf %341, %343 : vector<16x1xf32>
    %cst_192 = arith.constant 3.200000e+01 : f32
    %345 = vector.broadcast %cst_192 : f32 to vector<16x1xf32>
    %346 = arith.divf %344, %345 : vector<16x1xf32>
    %347 = vector.broadcast %346 : vector<16x1xf32> to vector<16x16xf32>
    %348 = arith.subf %316, %347 : vector<16x16xf32>
    %349 = arith.mulf %348, %348 : vector<16x16xf32>
    %cst_193 = arith.constant dense<0.000000e+00> : vector<16xf32>
    %350 = vector.multi_reduction <add>, %349, %cst_193 [1] : vector<16x16xf32> to vector<16xf32>
    %351 = vector.shape_cast %350 : vector<16xf32> to vector<16x1xf32>
    %cst_194 = arith.constant 0.000000e+00 : f32
    %352 = vector.broadcast %cst_194 : f32 to vector<16x1xf32>
    %353 = arith.addf %352, %351 : vector<16x1xf32>
    %354 = vector.broadcast %346 : vector<16x1xf32> to vector<16x16xf32>
    %355 = arith.subf %337, %354 : vector<16x16xf32>
    %356 = arith.mulf %355, %355 : vector<16x16xf32>
    %cst_195 = arith.constant dense<0.000000e+00> : vector<16xf32>
    %357 = vector.multi_reduction <add>, %356, %cst_195 [1] : vector<16x16xf32> to vector<16xf32>
    %358 = vector.shape_cast %357 : vector<16xf32> to vector<16x1xf32>
    %359 = arith.addf %353, %358 : vector<16x1xf32>
    %cst_196 = arith.constant 3.200000e+01 : f32
    %360 = vector.broadcast %cst_196 : f32 to vector<16x1xf32>
    %361 = arith.divf %359, %360 : vector<16x1xf32>
    %cst_197 = arith.constant 9.99999974E-6 : f32
    %362 = vector.broadcast %cst_197 : f32 to vector<16x1xf32>
    %363 = arith.addf %361, %362 : vector<16x1xf32>
    %364 = math.rsqrt %363 : vector<16x1xf32>
    %365 = vector.broadcast %346 : vector<16x1xf32> to vector<16x16xf32>
    %366 = arith.subf %316, %365 : vector<16x16xf32>
    %367 = vector.broadcast %364 : vector<16x1xf32> to vector<16x16xf32>
    %368 = arith.mulf %366, %367 : vector<16x16xf32>
    %cst_198 = arith.constant 0.000000e+00 : f32
    %369 = vector.broadcast %cst_198 : f32 to vector<16x16xf32>
    %370 = arith.cmpf ogt, %368, %369 : vector<16x16xf32>
    %cst_199 = arith.constant 2.000000e-01 : f32
    %371 = vector.broadcast %cst_199 : f32 to vector<16x16xf32>
    %372 = arith.mulf %371, %368 : vector<16x16xf32>
    %373 = arith.select %370, %368, %372 : vector<16x16xi1>, vector<16x16xf32>
    %374 = vector.broadcast %346 : vector<16x1xf32> to vector<16x16xf32>
    %375 = arith.subf %337, %374 : vector<16x16xf32>
    %376 = vector.broadcast %364 : vector<16x1xf32> to vector<16x16xf32>
    %377 = arith.mulf %375, %376 : vector<16x16xf32>
    %cst_200 = arith.constant 0.000000e+00 : f32
    %378 = vector.broadcast %cst_200 : f32 to vector<16x16xf32>
    %379 = arith.cmpf ogt, %377, %378 : vector<16x16xf32>
    %cst_201 = arith.constant 2.000000e-01 : f32
    %380 = vector.broadcast %cst_201 : f32 to vector<16x16xf32>
    %381 = arith.mulf %380, %377 : vector<16x16xf32>
    %382 = arith.select %379, %377, %381 : vector<16x16xi1>, vector<16x16xf32>
    %383 = tpu.iota {dimensions = array<i32: 0>} : vector<16x8xi32>
    %384 = tpu.iota {dimensions = array<i32: 1>} : vector<16x8xi32>
    %c2_i32_202 = arith.constant 2 : i32
    %385 = vector.broadcast %c2_i32_202 : i32 to vector<16x8xi32>
    %386 = arith.muli %385, %384 : vector<16x8xi32>
    %c-1_i32_203 = arith.constant -1 : i32
    %387 = vector.broadcast %c-1_i32_203 : i32 to vector<16x8xi32>
    %388 = arith.addi %386, %387 : vector<16x8xi32>
    %389 = arith.cmpi eq, %383, %388 : vector<16x8xi32>
    %cst_204 = arith.constant 1.000000e+00 : f32
    %cst_205 = arith.constant 0.000000e+00 : f32
    %390 = vector.broadcast %cst_204 : f32 to vector<16x8xf32>
    %391 = vector.broadcast %cst_205 : f32 to vector<16x8xf32>
    %392 = arith.select %389, %390, %391 : vector<16x8xi1>, vector<16x8xf32>
    %c2_i32_206 = arith.constant 2 : i32
    %393 = vector.broadcast %c2_i32_206 : i32 to vector<16x8xi32>
    %394 = arith.muli %393, %384 : vector<16x8xi32>
    %c0_i32_207 = arith.constant 0 : i32
    %395 = vector.broadcast %c0_i32_207 : i32 to vector<16x8xi32>
    %396 = arith.addi %394, %395 : vector<16x8xi32>
    %397 = arith.cmpi eq, %383, %396 : vector<16x8xi32>
    %cst_208 = arith.constant 1.000000e+00 : f32
    %cst_209 = arith.constant 0.000000e+00 : f32
    %398 = vector.broadcast %cst_208 : f32 to vector<16x8xf32>
    %399 = vector.broadcast %cst_209 : f32 to vector<16x8xf32>
    %400 = arith.select %397, %398, %399 : vector<16x8xi1>, vector<16x8xf32>
    %c2_i32_210 = arith.constant 2 : i32
    %401 = vector.broadcast %c2_i32_210 : i32 to vector<16x8xi32>
    %402 = arith.muli %401, %384 : vector<16x8xi32>
    %c1_i32_211 = arith.constant 1 : i32
    %403 = vector.broadcast %c1_i32_211 : i32 to vector<16x8xi32>
    %404 = arith.addi %402, %403 : vector<16x8xi32>
    %405 = arith.cmpi eq, %383, %404 : vector<16x8xi32>
    %cst_212 = arith.constant 1.000000e+00 : f32
    %cst_213 = arith.constant 0.000000e+00 : f32
    %406 = vector.broadcast %cst_212 : f32 to vector<16x8xf32>
    %407 = vector.broadcast %cst_213 : f32 to vector<16x8xf32>
    %408 = arith.select %405, %406, %407 : vector<16x8xi1>, vector<16x8xf32>
    %c2_i32_214 = arith.constant 2 : i32
    %409 = vector.broadcast %c2_i32_214 : i32 to vector<16x8xi32>
    %410 = arith.muli %409, %384 : vector<16x8xi32>
    %c2_i32_215 = arith.constant 2 : i32
    %411 = vector.broadcast %c2_i32_215 : i32 to vector<16x8xi32>
    %412 = arith.addi %410, %411 : vector<16x8xi32>
    %413 = arith.cmpi eq, %383, %412 : vector<16x8xi32>
    %cst_216 = arith.constant 1.000000e+00 : f32
    %cst_217 = arith.constant 0.000000e+00 : f32
    %414 = vector.broadcast %cst_216 : f32 to vector<16x8xf32>
    %415 = vector.broadcast %cst_217 : f32 to vector<16x8xf32>
    %416 = arith.select %413, %414, %415 : vector<16x8xi1>, vector<16x8xf32>
    %cst_218 = arith.constant 0.000000e+00 : f32
    %417 = vector.broadcast %cst_218 : f32 to vector<32x8xf32>
    %c0_219 = arith.constant 0 : index
    %c0_220 = arith.constant 0 : index
    %c0_221 = arith.constant 0 : index
    %418 = vector.load %arg5[%c0_219, %c0_220, %c0_221] : memref<4x32x16xf32, #tpu.memory_space<vmem>>, vector<1x32x16xf32>
    %419 = vector.shape_cast %418 : vector<1x32x16xf32> to vector<32x16xf32>
    %cst_222 = arith.constant dense<0.000000e+00> : vector<32x16xf32>
    %420 = tpu.matmul %419, %373, %cst_222 {dimension_numbers = #tpu.dot_dimension_numbers<[1], [0], [0], [1], [0, 0, 1, 1], [], []>} : vector<32x16xf32>, vector<16x16xf32>, vector<32x16xf32> -> vector<32x16xf32>
    %cst_223 = arith.constant dense<0.000000e+00> : vector<32x8xf32>
    %421 = tpu.matmul %420, %392, %cst_223 {dimension_numbers = #tpu.dot_dimension_numbers<[1], [0], [0], [1], [0, 0, 1, 1], [], []>} : vector<32x16xf32>, vector<16x8xf32>, vector<32x8xf32> -> vector<32x8xf32>
    %422 = arith.addf %417, %421 : vector<32x8xf32>
    %c1_224 = arith.constant 1 : index
    %c0_225 = arith.constant 0 : index
    %c0_226 = arith.constant 0 : index
    %423 = vector.load %arg5[%c1_224, %c0_225, %c0_226] : memref<4x32x16xf32, #tpu.memory_space<vmem>>, vector<1x32x16xf32>
    %424 = vector.shape_cast %423 : vector<1x32x16xf32> to vector<32x16xf32>
    %cst_227 = arith.constant dense<0.000000e+00> : vector<32x16xf32>
    %425 = tpu.matmul %424, %373, %cst_227 {dimension_numbers = #tpu.dot_dimension_numbers<[1], [0], [0], [1], [0, 0, 1, 1], [], []>} : vector<32x16xf32>, vector<16x16xf32>, vector<32x16xf32> -> vector<32x16xf32>
    %cst_228 = arith.constant dense<0.000000e+00> : vector<32x8xf32>
    %426 = tpu.matmul %425, %400, %cst_228 {dimension_numbers = #tpu.dot_dimension_numbers<[1], [0], [0], [1], [0, 0, 1, 1], [], []>} : vector<32x16xf32>, vector<16x8xf32>, vector<32x8xf32> -> vector<32x8xf32>
    %427 = arith.addf %422, %426 : vector<32x8xf32>
    %c2_229 = arith.constant 2 : index
    %c0_230 = arith.constant 0 : index
    %c0_231 = arith.constant 0 : index
    %428 = vector.load %arg5[%c2_229, %c0_230, %c0_231] : memref<4x32x16xf32, #tpu.memory_space<vmem>>, vector<1x32x16xf32>
    %429 = vector.shape_cast %428 : vector<1x32x16xf32> to vector<32x16xf32>
    %cst_232 = arith.constant dense<0.000000e+00> : vector<32x16xf32>
    %430 = tpu.matmul %429, %373, %cst_232 {dimension_numbers = #tpu.dot_dimension_numbers<[1], [0], [0], [1], [0, 0, 1, 1], [], []>} : vector<32x16xf32>, vector<16x16xf32>, vector<32x16xf32> -> vector<32x16xf32>
    %cst_233 = arith.constant dense<0.000000e+00> : vector<32x8xf32>
    %431 = tpu.matmul %430, %408, %cst_233 {dimension_numbers = #tpu.dot_dimension_numbers<[1], [0], [0], [1], [0, 0, 1, 1], [], []>} : vector<32x16xf32>, vector<16x8xf32>, vector<32x8xf32> -> vector<32x8xf32>
    %432 = arith.addf %427, %431 : vector<32x8xf32>
    %c3_234 = arith.constant 3 : index
    %c0_235 = arith.constant 0 : index
    %c0_236 = arith.constant 0 : index
    %433 = vector.load %arg5[%c3_234, %c0_235, %c0_236] : memref<4x32x16xf32, #tpu.memory_space<vmem>>, vector<1x32x16xf32>
    %434 = vector.shape_cast %433 : vector<1x32x16xf32> to vector<32x16xf32>
    %cst_237 = arith.constant dense<0.000000e+00> : vector<32x16xf32>
    %435 = tpu.matmul %434, %373, %cst_237 {dimension_numbers = #tpu.dot_dimension_numbers<[1], [0], [0], [1], [0, 0, 1, 1], [], []>} : vector<32x16xf32>, vector<16x16xf32>, vector<32x16xf32> -> vector<32x16xf32>
    %cst_238 = arith.constant dense<0.000000e+00> : vector<32x8xf32>
    %436 = tpu.matmul %435, %416, %cst_238 {dimension_numbers = #tpu.dot_dimension_numbers<[1], [0], [0], [1], [0, 0, 1, 1], [], []>} : vector<32x16xf32>, vector<16x8xf32>, vector<32x8xf32> -> vector<32x8xf32>
    %437 = arith.addf %432, %436 : vector<32x8xf32>
    %cst_239 = arith.constant 0.000000e+00 : f32
    %438 = vector.broadcast %cst_239 : f32 to vector<32x8xf32>
    %c0_240 = arith.constant 0 : index
    %c0_241 = arith.constant 0 : index
    %c0_242 = arith.constant 0 : index
    %439 = vector.load %arg5[%c0_240, %c0_241, %c0_242] : memref<4x32x16xf32, #tpu.memory_space<vmem>>, vector<1x32x16xf32>
    %440 = vector.shape_cast %439 : vector<1x32x16xf32> to vector<32x16xf32>
    %cst_243 = arith.constant dense<0.000000e+00> : vector<32x16xf32>
    %441 = tpu.matmul %440, %382, %cst_243 {dimension_numbers = #tpu.dot_dimension_numbers<[1], [0], [0], [1], [0, 0, 1, 1], [], []>} : vector<32x16xf32>, vector<16x16xf32>, vector<32x16xf32> -> vector<32x16xf32>
    %cst_244 = arith.constant dense<0.000000e+00> : vector<32x8xf32>
    %442 = tpu.matmul %441, %392, %cst_244 {dimension_numbers = #tpu.dot_dimension_numbers<[1], [0], [0], [1], [0, 0, 1, 1], [], []>} : vector<32x16xf32>, vector<16x8xf32>, vector<32x8xf32> -> vector<32x8xf32>
    %443 = arith.addf %438, %442 : vector<32x8xf32>
    %c1_245 = arith.constant 1 : index
    %c0_246 = arith.constant 0 : index
    %c0_247 = arith.constant 0 : index
    %444 = vector.load %arg5[%c1_245, %c0_246, %c0_247] : memref<4x32x16xf32, #tpu.memory_space<vmem>>, vector<1x32x16xf32>
    %445 = vector.shape_cast %444 : vector<1x32x16xf32> to vector<32x16xf32>
    %cst_248 = arith.constant dense<0.000000e+00> : vector<32x16xf32>
    %446 = tpu.matmul %445, %382, %cst_248 {dimension_numbers = #tpu.dot_dimension_numbers<[1], [0], [0], [1], [0, 0, 1, 1], [], []>} : vector<32x16xf32>, vector<16x16xf32>, vector<32x16xf32> -> vector<32x16xf32>
    %cst_249 = arith.constant dense<0.000000e+00> : vector<32x8xf32>
    %447 = tpu.matmul %446, %400, %cst_249 {dimension_numbers = #tpu.dot_dimension_numbers<[1], [0], [0], [1], [0, 0, 1, 1], [], []>} : vector<32x16xf32>, vector<16x8xf32>, vector<32x8xf32> -> vector<32x8xf32>
    %448 = arith.addf %443, %447 : vector<32x8xf32>
    %c2_250 = arith.constant 2 : index
    %c0_251 = arith.constant 0 : index
    %c0_252 = arith.constant 0 : index
    %449 = vector.load %arg5[%c2_250, %c0_251, %c0_252] : memref<4x32x16xf32, #tpu.memory_space<vmem>>, vector<1x32x16xf32>
    %450 = vector.shape_cast %449 : vector<1x32x16xf32> to vector<32x16xf32>
    %cst_253 = arith.constant dense<0.000000e+00> : vector<32x16xf32>
    %451 = tpu.matmul %450, %382, %cst_253 {dimension_numbers = #tpu.dot_dimension_numbers<[1], [0], [0], [1], [0, 0, 1, 1], [], []>} : vector<32x16xf32>, vector<16x16xf32>, vector<32x16xf32> -> vector<32x16xf32>
    %cst_254 = arith.constant dense<0.000000e+00> : vector<32x8xf32>
    %452 = tpu.matmul %451, %408, %cst_254 {dimension_numbers = #tpu.dot_dimension_numbers<[1], [0], [0], [1], [0, 0, 1, 1], [], []>} : vector<32x16xf32>, vector<16x8xf32>, vector<32x8xf32> -> vector<32x8xf32>
    %453 = arith.addf %448, %452 : vector<32x8xf32>
    %c3_255 = arith.constant 3 : index
    %c0_256 = arith.constant 0 : index
    %c0_257 = arith.constant 0 : index
    %454 = vector.load %arg5[%c3_255, %c0_256, %c0_257] : memref<4x32x16xf32, #tpu.memory_space<vmem>>, vector<1x32x16xf32>
    %455 = vector.shape_cast %454 : vector<1x32x16xf32> to vector<32x16xf32>
    %cst_258 = arith.constant dense<0.000000e+00> : vector<32x16xf32>
    %456 = tpu.matmul %455, %382, %cst_258 {dimension_numbers = #tpu.dot_dimension_numbers<[1], [0], [0], [1], [0, 0, 1, 1], [], []>} : vector<32x16xf32>, vector<16x16xf32>, vector<32x16xf32> -> vector<32x16xf32>
    %cst_259 = arith.constant dense<0.000000e+00> : vector<32x8xf32>
    %457 = tpu.matmul %456, %416, %cst_259 {dimension_numbers = #tpu.dot_dimension_numbers<[1], [0], [0], [1], [0, 0, 1, 1], [], []>} : vector<32x16xf32>, vector<16x8xf32>, vector<32x8xf32> -> vector<32x8xf32>
    %458 = arith.addf %453, %457 : vector<32x8xf32>
    %cst_260 = arith.constant dense<0.000000e+00> : vector<32xf32>
    %459 = vector.multi_reduction <add>, %437, %cst_260 [1] : vector<32x8xf32> to vector<32xf32>
    %460 = vector.shape_cast %459 : vector<32xf32> to vector<32x1xf32>
    %cst_261 = arith.constant 0.000000e+00 : f32
    %461 = vector.broadcast %cst_261 : f32 to vector<32x1xf32>
    %462 = arith.addf %461, %460 : vector<32x1xf32>
    %cst_262 = arith.constant dense<0.000000e+00> : vector<32xf32>
    %463 = vector.multi_reduction <add>, %458, %cst_262 [1] : vector<32x8xf32> to vector<32xf32>
    %464 = vector.shape_cast %463 : vector<32xf32> to vector<32x1xf32>
    %465 = arith.addf %462, %464 : vector<32x1xf32>
    %cst_263 = arith.constant 1.600000e+01 : f32
    %466 = vector.broadcast %cst_263 : f32 to vector<32x1xf32>
    %467 = arith.divf %465, %466 : vector<32x1xf32>
    %468 = vector.broadcast %467 : vector<32x1xf32> to vector<32x8xf32>
    %469 = arith.subf %437, %468 : vector<32x8xf32>
    %470 = arith.mulf %469, %469 : vector<32x8xf32>
    %cst_264 = arith.constant dense<0.000000e+00> : vector<32xf32>
    %471 = vector.multi_reduction <add>, %470, %cst_264 [1] : vector<32x8xf32> to vector<32xf32>
    %472 = vector.shape_cast %471 : vector<32xf32> to vector<32x1xf32>
    %cst_265 = arith.constant 0.000000e+00 : f32
    %473 = vector.broadcast %cst_265 : f32 to vector<32x1xf32>
    %474 = arith.addf %473, %472 : vector<32x1xf32>
    %475 = vector.broadcast %467 : vector<32x1xf32> to vector<32x8xf32>
    %476 = arith.subf %458, %475 : vector<32x8xf32>
    %477 = arith.mulf %476, %476 : vector<32x8xf32>
    %cst_266 = arith.constant dense<0.000000e+00> : vector<32xf32>
    %478 = vector.multi_reduction <add>, %477, %cst_266 [1] : vector<32x8xf32> to vector<32xf32>
    %479 = vector.shape_cast %478 : vector<32xf32> to vector<32x1xf32>
    %480 = arith.addf %474, %479 : vector<32x1xf32>
    %cst_267 = arith.constant 1.600000e+01 : f32
    %481 = vector.broadcast %cst_267 : f32 to vector<32x1xf32>
    %482 = arith.divf %480, %481 : vector<32x1xf32>
    %cst_268 = arith.constant 9.99999974E-6 : f32
    %483 = vector.broadcast %cst_268 : f32 to vector<32x1xf32>
    %484 = arith.addf %482, %483 : vector<32x1xf32>
    %485 = math.rsqrt %484 : vector<32x1xf32>
    %486 = vector.broadcast %467 : vector<32x1xf32> to vector<32x8xf32>
    %487 = arith.subf %437, %486 : vector<32x8xf32>
    %488 = vector.broadcast %485 : vector<32x1xf32> to vector<32x8xf32>
    %489 = arith.mulf %487, %488 : vector<32x8xf32>
    %cst_269 = arith.constant 0.000000e+00 : f32
    %490 = vector.broadcast %cst_269 : f32 to vector<32x8xf32>
    %491 = arith.cmpf ogt, %489, %490 : vector<32x8xf32>
    %cst_270 = arith.constant 2.000000e-01 : f32
    %492 = vector.broadcast %cst_270 : f32 to vector<32x8xf32>
    %493 = arith.mulf %492, %489 : vector<32x8xf32>
    %494 = arith.select %491, %489, %493 : vector<32x8xi1>, vector<32x8xf32>
    %495 = vector.broadcast %467 : vector<32x1xf32> to vector<32x8xf32>
    %496 = arith.subf %458, %495 : vector<32x8xf32>
    %497 = vector.broadcast %485 : vector<32x1xf32> to vector<32x8xf32>
    %498 = arith.mulf %496, %497 : vector<32x8xf32>
    %cst_271 = arith.constant 0.000000e+00 : f32
    %499 = vector.broadcast %cst_271 : f32 to vector<32x8xf32>
    %500 = arith.cmpf ogt, %498, %499 : vector<32x8xf32>
    %cst_272 = arith.constant 2.000000e-01 : f32
    %501 = vector.broadcast %cst_272 : f32 to vector<32x8xf32>
    %502 = arith.mulf %501, %498 : vector<32x8xf32>
    %503 = arith.select %500, %498, %502 : vector<32x8xi1>, vector<32x8xf32>
    %504 = tpu.iota {dimensions = array<i32: 0>} : vector<8x4xi32>
    %505 = tpu.iota {dimensions = array<i32: 1>} : vector<8x4xi32>
    %c2_i32_273 = arith.constant 2 : i32
    %506 = vector.broadcast %c2_i32_273 : i32 to vector<8x4xi32>
    %507 = arith.muli %506, %505 : vector<8x4xi32>
    %c-1_i32_274 = arith.constant -1 : i32
    %508 = vector.broadcast %c-1_i32_274 : i32 to vector<8x4xi32>
    %509 = arith.addi %507, %508 : vector<8x4xi32>
    %510 = arith.cmpi eq, %504, %509 : vector<8x4xi32>
    %cst_275 = arith.constant 1.000000e+00 : f32
    %cst_276 = arith.constant 0.000000e+00 : f32
    %511 = vector.broadcast %cst_275 : f32 to vector<8x4xf32>
    %512 = vector.broadcast %cst_276 : f32 to vector<8x4xf32>
    %513 = arith.select %510, %511, %512 : vector<8x4xi1>, vector<8x4xf32>
    %c2_i32_277 = arith.constant 2 : i32
    %514 = vector.broadcast %c2_i32_277 : i32 to vector<8x4xi32>
    %515 = arith.muli %514, %505 : vector<8x4xi32>
    %c0_i32_278 = arith.constant 0 : i32
    %516 = vector.broadcast %c0_i32_278 : i32 to vector<8x4xi32>
    %517 = arith.addi %515, %516 : vector<8x4xi32>
    %518 = arith.cmpi eq, %504, %517 : vector<8x4xi32>
    %cst_279 = arith.constant 1.000000e+00 : f32
    %cst_280 = arith.constant 0.000000e+00 : f32
    %519 = vector.broadcast %cst_279 : f32 to vector<8x4xf32>
    %520 = vector.broadcast %cst_280 : f32 to vector<8x4xf32>
    %521 = arith.select %518, %519, %520 : vector<8x4xi1>, vector<8x4xf32>
    %c2_i32_281 = arith.constant 2 : i32
    %522 = vector.broadcast %c2_i32_281 : i32 to vector<8x4xi32>
    %523 = arith.muli %522, %505 : vector<8x4xi32>
    %c1_i32_282 = arith.constant 1 : i32
    %524 = vector.broadcast %c1_i32_282 : i32 to vector<8x4xi32>
    %525 = arith.addi %523, %524 : vector<8x4xi32>
    %526 = arith.cmpi eq, %504, %525 : vector<8x4xi32>
    %cst_283 = arith.constant 1.000000e+00 : f32
    %cst_284 = arith.constant 0.000000e+00 : f32
    %527 = vector.broadcast %cst_283 : f32 to vector<8x4xf32>
    %528 = vector.broadcast %cst_284 : f32 to vector<8x4xf32>
    %529 = arith.select %526, %527, %528 : vector<8x4xi1>, vector<8x4xf32>
    %c2_i32_285 = arith.constant 2 : i32
    %530 = vector.broadcast %c2_i32_285 : i32 to vector<8x4xi32>
    %531 = arith.muli %530, %505 : vector<8x4xi32>
    %c2_i32_286 = arith.constant 2 : i32
    %532 = vector.broadcast %c2_i32_286 : i32 to vector<8x4xi32>
    %533 = arith.addi %531, %532 : vector<8x4xi32>
    %534 = arith.cmpi eq, %504, %533 : vector<8x4xi32>
    %cst_287 = arith.constant 1.000000e+00 : f32
    %cst_288 = arith.constant 0.000000e+00 : f32
    %535 = vector.broadcast %cst_287 : f32 to vector<8x4xf32>
    %536 = vector.broadcast %cst_288 : f32 to vector<8x4xf32>
    %537 = arith.select %534, %535, %536 : vector<8x4xi1>, vector<8x4xf32>
    %cst_289 = arith.constant 0.000000e+00 : f32
    %538 = vector.broadcast %cst_289 : f32 to vector<64x4xf32>
    %c0_290 = arith.constant 0 : index
    %c0_291 = arith.constant 0 : index
    %c0_292 = arith.constant 0 : index
    %539 = vector.load %arg6[%c0_290, %c0_291, %c0_292] : memref<4x64x32xf32, #tpu.memory_space<vmem>>, vector<1x64x32xf32>
    %540 = vector.shape_cast %539 : vector<1x64x32xf32> to vector<64x32xf32>
    %cst_293 = arith.constant dense<0.000000e+00> : vector<64x8xf32>
    %541 = tpu.matmul %540, %494, %cst_293 {dimension_numbers = #tpu.dot_dimension_numbers<[1], [0], [0], [1], [0, 0, 1, 1], [], []>} : vector<64x32xf32>, vector<32x8xf32>, vector<64x8xf32> -> vector<64x8xf32>
    %cst_294 = arith.constant dense<0.000000e+00> : vector<64x4xf32>
    %542 = tpu.matmul %541, %513, %cst_294 {dimension_numbers = #tpu.dot_dimension_numbers<[1], [0], [0], [1], [0, 0, 1, 1], [], []>} : vector<64x8xf32>, vector<8x4xf32>, vector<64x4xf32> -> vector<64x4xf32>
    %543 = arith.addf %538, %542 : vector<64x4xf32>
    %c1_295 = arith.constant 1 : index
    %c0_296 = arith.constant 0 : index
    %c0_297 = arith.constant 0 : index
    %544 = vector.load %arg6[%c1_295, %c0_296, %c0_297] : memref<4x64x32xf32, #tpu.memory_space<vmem>>, vector<1x64x32xf32>
    %545 = vector.shape_cast %544 : vector<1x64x32xf32> to vector<64x32xf32>
    %cst_298 = arith.constant dense<0.000000e+00> : vector<64x8xf32>
    %546 = tpu.matmul %545, %494, %cst_298 {dimension_numbers = #tpu.dot_dimension_numbers<[1], [0], [0], [1], [0, 0, 1, 1], [], []>} : vector<64x32xf32>, vector<32x8xf32>, vector<64x8xf32> -> vector<64x8xf32>
    %cst_299 = arith.constant dense<0.000000e+00> : vector<64x4xf32>
    %547 = tpu.matmul %546, %521, %cst_299 {dimension_numbers = #tpu.dot_dimension_numbers<[1], [0], [0], [1], [0, 0, 1, 1], [], []>} : vector<64x8xf32>, vector<8x4xf32>, vector<64x4xf32> -> vector<64x4xf32>
    %548 = arith.addf %543, %547 : vector<64x4xf32>
    %c2_300 = arith.constant 2 : index
    %c0_301 = arith.constant 0 : index
    %c0_302 = arith.constant 0 : index
    %549 = vector.load %arg6[%c2_300, %c0_301, %c0_302] : memref<4x64x32xf32, #tpu.memory_space<vmem>>, vector<1x64x32xf32>
    %550 = vector.shape_cast %549 : vector<1x64x32xf32> to vector<64x32xf32>
    %cst_303 = arith.constant dense<0.000000e+00> : vector<64x8xf32>
    %551 = tpu.matmul %550, %494, %cst_303 {dimension_numbers = #tpu.dot_dimension_numbers<[1], [0], [0], [1], [0, 0, 1, 1], [], []>} : vector<64x32xf32>, vector<32x8xf32>, vector<64x8xf32> -> vector<64x8xf32>
    %cst_304 = arith.constant dense<0.000000e+00> : vector<64x4xf32>
    %552 = tpu.matmul %551, %529, %cst_304 {dimension_numbers = #tpu.dot_dimension_numbers<[1], [0], [0], [1], [0, 0, 1, 1], [], []>} : vector<64x8xf32>, vector<8x4xf32>, vector<64x4xf32> -> vector<64x4xf32>
    %553 = arith.addf %548, %552 : vector<64x4xf32>
    %c3_305 = arith.constant 3 : index
    %c0_306 = arith.constant 0 : index
    %c0_307 = arith.constant 0 : index
    %554 = vector.load %arg6[%c3_305, %c0_306, %c0_307] : memref<4x64x32xf32, #tpu.memory_space<vmem>>, vector<1x64x32xf32>
    %555 = vector.shape_cast %554 : vector<1x64x32xf32> to vector<64x32xf32>
    %cst_308 = arith.constant dense<0.000000e+00> : vector<64x8xf32>
    %556 = tpu.matmul %555, %494, %cst_308 {dimension_numbers = #tpu.dot_dimension_numbers<[1], [0], [0], [1], [0, 0, 1, 1], [], []>} : vector<64x32xf32>, vector<32x8xf32>, vector<64x8xf32> -> vector<64x8xf32>
    %cst_309 = arith.constant dense<0.000000e+00> : vector<64x4xf32>
    %557 = tpu.matmul %556, %537, %cst_309 {dimension_numbers = #tpu.dot_dimension_numbers<[1], [0], [0], [1], [0, 0, 1, 1], [], []>} : vector<64x8xf32>, vector<8x4xf32>, vector<64x4xf32> -> vector<64x4xf32>
    %558 = arith.addf %553, %557 : vector<64x4xf32>
    %cst_310 = arith.constant 0.000000e+00 : f32
    %559 = vector.broadcast %cst_310 : f32 to vector<64x4xf32>
    %c0_311 = arith.constant 0 : index
    %c0_312 = arith.constant 0 : index
    %c0_313 = arith.constant 0 : index
    %560 = vector.load %arg6[%c0_311, %c0_312, %c0_313] : memref<4x64x32xf32, #tpu.memory_space<vmem>>, vector<1x64x32xf32>
    %561 = vector.shape_cast %560 : vector<1x64x32xf32> to vector<64x32xf32>
    %cst_314 = arith.constant dense<0.000000e+00> : vector<64x8xf32>
    %562 = tpu.matmul %561, %503, %cst_314 {dimension_numbers = #tpu.dot_dimension_numbers<[1], [0], [0], [1], [0, 0, 1, 1], [], []>} : vector<64x32xf32>, vector<32x8xf32>, vector<64x8xf32> -> vector<64x8xf32>
    %cst_315 = arith.constant dense<0.000000e+00> : vector<64x4xf32>
    %563 = tpu.matmul %562, %513, %cst_315 {dimension_numbers = #tpu.dot_dimension_numbers<[1], [0], [0], [1], [0, 0, 1, 1], [], []>} : vector<64x8xf32>, vector<8x4xf32>, vector<64x4xf32> -> vector<64x4xf32>
    %564 = arith.addf %559, %563 : vector<64x4xf32>
    %c1_316 = arith.constant 1 : index
    %c0_317 = arith.constant 0 : index
    %c0_318 = arith.constant 0 : index
    %565 = vector.load %arg6[%c1_316, %c0_317, %c0_318] : memref<4x64x32xf32, #tpu.memory_space<vmem>>, vector<1x64x32xf32>
    %566 = vector.shape_cast %565 : vector<1x64x32xf32> to vector<64x32xf32>
    %cst_319 = arith.constant dense<0.000000e+00> : vector<64x8xf32>
    %567 = tpu.matmul %566, %503, %cst_319 {dimension_numbers = #tpu.dot_dimension_numbers<[1], [0], [0], [1], [0, 0, 1, 1], [], []>} : vector<64x32xf32>, vector<32x8xf32>, vector<64x8xf32> -> vector<64x8xf32>
    %cst_320 = arith.constant dense<0.000000e+00> : vector<64x4xf32>
    %568 = tpu.matmul %567, %521, %cst_320 {dimension_numbers = #tpu.dot_dimension_numbers<[1], [0], [0], [1], [0, 0, 1, 1], [], []>} : vector<64x8xf32>, vector<8x4xf32>, vector<64x4xf32> -> vector<64x4xf32>
    %569 = arith.addf %564, %568 : vector<64x4xf32>
    %c2_321 = arith.constant 2 : index
    %c0_322 = arith.constant 0 : index
    %c0_323 = arith.constant 0 : index
    %570 = vector.load %arg6[%c2_321, %c0_322, %c0_323] : memref<4x64x32xf32, #tpu.memory_space<vmem>>, vector<1x64x32xf32>
    %571 = vector.shape_cast %570 : vector<1x64x32xf32> to vector<64x32xf32>
    %cst_324 = arith.constant dense<0.000000e+00> : vector<64x8xf32>
    %572 = tpu.matmul %571, %503, %cst_324 {dimension_numbers = #tpu.dot_dimension_numbers<[1], [0], [0], [1], [0, 0, 1, 1], [], []>} : vector<64x32xf32>, vector<32x8xf32>, vector<64x8xf32> -> vector<64x8xf32>
    %cst_325 = arith.constant dense<0.000000e+00> : vector<64x4xf32>
    %573 = tpu.matmul %572, %529, %cst_325 {dimension_numbers = #tpu.dot_dimension_numbers<[1], [0], [0], [1], [0, 0, 1, 1], [], []>} : vector<64x8xf32>, vector<8x4xf32>, vector<64x4xf32> -> vector<64x4xf32>
    %574 = arith.addf %569, %573 : vector<64x4xf32>
    %c3_326 = arith.constant 3 : index
    %c0_327 = arith.constant 0 : index
    %c0_328 = arith.constant 0 : index
    %575 = vector.load %arg6[%c3_326, %c0_327, %c0_328] : memref<4x64x32xf32, #tpu.memory_space<vmem>>, vector<1x64x32xf32>
    %576 = vector.shape_cast %575 : vector<1x64x32xf32> to vector<64x32xf32>
    %cst_329 = arith.constant dense<0.000000e+00> : vector<64x8xf32>
    %577 = tpu.matmul %576, %503, %cst_329 {dimension_numbers = #tpu.dot_dimension_numbers<[1], [0], [0], [1], [0, 0, 1, 1], [], []>} : vector<64x32xf32>, vector<32x8xf32>, vector<64x8xf32> -> vector<64x8xf32>
    %cst_330 = arith.constant dense<0.000000e+00> : vector<64x4xf32>
    %578 = tpu.matmul %577, %537, %cst_330 {dimension_numbers = #tpu.dot_dimension_numbers<[1], [0], [0], [1], [0, 0, 1, 1], [], []>} : vector<64x8xf32>, vector<8x4xf32>, vector<64x4xf32> -> vector<64x4xf32>
    %579 = arith.addf %574, %578 : vector<64x4xf32>
    %cst_331 = arith.constant dense<0.000000e+00> : vector<64xf32>
    %580 = vector.multi_reduction <add>, %558, %cst_331 [1] : vector<64x4xf32> to vector<64xf32>
    %581 = vector.shape_cast %580 : vector<64xf32> to vector<64x1xf32>
    %cst_332 = arith.constant 0.000000e+00 : f32
    %582 = vector.broadcast %cst_332 : f32 to vector<64x1xf32>
    %583 = arith.addf %582, %581 : vector<64x1xf32>
    %cst_333 = arith.constant dense<0.000000e+00> : vector<64xf32>
    %584 = vector.multi_reduction <add>, %579, %cst_333 [1] : vector<64x4xf32> to vector<64xf32>
    %585 = vector.shape_cast %584 : vector<64xf32> to vector<64x1xf32>
    %586 = arith.addf %583, %585 : vector<64x1xf32>
    %cst_334 = arith.constant 8.000000e+00 : f32
    %587 = vector.broadcast %cst_334 : f32 to vector<64x1xf32>
    %588 = arith.divf %586, %587 : vector<64x1xf32>
    %589 = vector.broadcast %588 : vector<64x1xf32> to vector<64x4xf32>
    %590 = arith.subf %558, %589 : vector<64x4xf32>
    %591 = arith.mulf %590, %590 : vector<64x4xf32>
    %cst_335 = arith.constant dense<0.000000e+00> : vector<64xf32>
    %592 = vector.multi_reduction <add>, %591, %cst_335 [1] : vector<64x4xf32> to vector<64xf32>
    %593 = vector.shape_cast %592 : vector<64xf32> to vector<64x1xf32>
    %cst_336 = arith.constant 0.000000e+00 : f32
    %594 = vector.broadcast %cst_336 : f32 to vector<64x1xf32>
    %595 = arith.addf %594, %593 : vector<64x1xf32>
    %596 = vector.broadcast %588 : vector<64x1xf32> to vector<64x4xf32>
    %597 = arith.subf %579, %596 : vector<64x4xf32>
    %598 = arith.mulf %597, %597 : vector<64x4xf32>
    %cst_337 = arith.constant dense<0.000000e+00> : vector<64xf32>
    %599 = vector.multi_reduction <add>, %598, %cst_337 [1] : vector<64x4xf32> to vector<64xf32>
    %600 = vector.shape_cast %599 : vector<64xf32> to vector<64x1xf32>
    %601 = arith.addf %595, %600 : vector<64x1xf32>
    %cst_338 = arith.constant 8.000000e+00 : f32
    %602 = vector.broadcast %cst_338 : f32 to vector<64x1xf32>
    %603 = arith.divf %601, %602 : vector<64x1xf32>
    %cst_339 = arith.constant 9.99999974E-6 : f32
    %604 = vector.broadcast %cst_339 : f32 to vector<64x1xf32>
    %605 = arith.addf %603, %604 : vector<64x1xf32>
    %606 = math.rsqrt %605 : vector<64x1xf32>
    %607 = vector.broadcast %588 : vector<64x1xf32> to vector<64x4xf32>
    %608 = arith.subf %558, %607 : vector<64x4xf32>
    %609 = vector.broadcast %606 : vector<64x1xf32> to vector<64x4xf32>
    %610 = arith.mulf %608, %609 : vector<64x4xf32>
    %cst_340 = arith.constant 0.000000e+00 : f32
    %611 = vector.broadcast %cst_340 : f32 to vector<64x4xf32>
    %612 = arith.cmpf ogt, %610, %611 : vector<64x4xf32>
    %cst_341 = arith.constant 2.000000e-01 : f32
    %613 = vector.broadcast %cst_341 : f32 to vector<64x4xf32>
    %614 = arith.mulf %613, %610 : vector<64x4xf32>
    %615 = arith.select %612, %610, %614 : vector<64x4xi1>, vector<64x4xf32>
    %616 = vector.broadcast %588 : vector<64x1xf32> to vector<64x4xf32>
    %617 = arith.subf %579, %616 : vector<64x4xf32>
    %618 = vector.broadcast %606 : vector<64x1xf32> to vector<64x4xf32>
    %619 = arith.mulf %617, %618 : vector<64x4xf32>
    %cst_342 = arith.constant 0.000000e+00 : f32
    %620 = vector.broadcast %cst_342 : f32 to vector<64x4xf32>
    %621 = arith.cmpf ogt, %619, %620 : vector<64x4xf32>
    %cst_343 = arith.constant 2.000000e-01 : f32
    %622 = vector.broadcast %cst_343 : f32 to vector<64x4xf32>
    %623 = arith.mulf %622, %619 : vector<64x4xf32>
    %624 = arith.select %621, %619, %623 : vector<64x4xi1>, vector<64x4xf32>
    %c0_344 = arith.constant 0 : index
    %c0_345 = arith.constant 0 : index
    %c0_346 = arith.constant 0 : index
    %625 = vector.load %arg9[%c0_344, %c0_345, %c0_346] : memref<2x64x4xf32, #tpu.memory_space<vmem>>, vector<1x64x4xf32>
    %626 = vector.shape_cast %625 : vector<1x64x4xf32> to vector<64x4xf32>
    %627 = vector.shape_cast %615 : vector<64x4xf32> to vector<1x64x4xf32>
    tpu.vector_store %arg9[%c0_344, %c0_345, %c0_346], %627 {strides = array<i32>} : memref<2x64x4xf32, #tpu.memory_space<vmem>>, vector<1x64x4xf32>,
    %c1_347 = arith.constant 1 : index
    %c0_348 = arith.constant 0 : index
    %c0_349 = arith.constant 0 : index
    %628 = vector.load %arg9[%c1_347, %c0_348, %c0_349] : memref<2x64x4xf32, #tpu.memory_space<vmem>>, vector<1x64x4xf32>
    %629 = vector.shape_cast %628 : vector<1x64x4xf32> to vector<64x4xf32>
    %630 = vector.shape_cast %624 : vector<64x4xf32> to vector<1x64x4xf32>
    tpu.vector_store %arg9[%c1_347, %c0_348, %c0_349], %630 {strides = array<i32>} : memref<2x64x4xf32, #tpu.memory_space<vmem>>, vector<1x64x4xf32>,
    %631 = tpu.iota {dimensions = array<i32: 0>} : vector<4x1xi32>
    %632 = tpu.iota {dimensions = array<i32: 1>} : vector<4x1xi32>
    %c0_i32_350 = arith.constant 0 : i32
    %633 = vector.broadcast %c0_i32_350 : i32 to vector<4x1xi32>
    %634 = arith.addi %632, %633 : vector<4x1xi32>
    %635 = arith.cmpi eq, %631, %634 : vector<4x1xi32>
    %cst_351 = arith.constant 1.000000e+00 : f32
    %cst_352 = arith.constant 0.000000e+00 : f32
    %636 = vector.broadcast %cst_351 : f32 to vector<4x1xf32>
    %637 = vector.broadcast %cst_352 : f32 to vector<4x1xf32>
    %638 = arith.select %635, %636, %637 : vector<4x1xi1>, vector<4x1xf32>
    %c1_i32_353 = arith.constant 1 : i32
    %639 = vector.broadcast %c1_i32_353 : i32 to vector<4x1xi32>
    %640 = arith.addi %632, %639 : vector<4x1xi32>
    %641 = arith.cmpi eq, %631, %640 : vector<4x1xi32>
    %cst_354 = arith.constant 1.000000e+00 : f32
    %cst_355 = arith.constant 0.000000e+00 : f32
    %642 = vector.broadcast %cst_354 : f32 to vector<4x1xf32>
    %643 = vector.broadcast %cst_355 : f32 to vector<4x1xf32>
    %644 = arith.select %641, %642, %643 : vector<4x1xi1>, vector<4x1xf32>
    %c2_i32_356 = arith.constant 2 : i32
    %645 = vector.broadcast %c2_i32_356 : i32 to vector<4x1xi32>
    %646 = arith.addi %632, %645 : vector<4x1xi32>
    %647 = arith.cmpi eq, %631, %646 : vector<4x1xi32>
    %cst_357 = arith.constant 1.000000e+00 : f32
    %cst_358 = arith.constant 0.000000e+00 : f32
    %648 = vector.broadcast %cst_357 : f32 to vector<4x1xf32>
    %649 = vector.broadcast %cst_358 : f32 to vector<4x1xf32>
    %650 = arith.select %647, %648, %649 : vector<4x1xi1>, vector<4x1xf32>
    %c3_i32 = arith.constant 3 : i32
    %651 = vector.broadcast %c3_i32 : i32 to vector<4x1xi32>
    %652 = arith.addi %632, %651 : vector<4x1xi32>
    %653 = arith.cmpi eq, %631, %652 : vector<4x1xi32>
    %cst_359 = arith.constant 1.000000e+00 : f32
    %cst_360 = arith.constant 0.000000e+00 : f32
    %654 = vector.broadcast %cst_359 : f32 to vector<4x1xf32>
    %655 = vector.broadcast %cst_360 : f32 to vector<4x1xf32>
    %656 = arith.select %653, %654, %655 : vector<4x1xi1>, vector<4x1xf32>
    %cst_361 = arith.constant 0.000000e+00 : f32
    %657 = vector.broadcast %cst_361 : f32 to vector<1x1xf32>
    %cst_362 = arith.constant dense<0.000000e+00> : vector<64x1xf32>
    %658 = tpu.matmul %615, %638, %cst_362 {dimension_numbers = #tpu.dot_dimension_numbers<[1], [0], [0], [1], [0, 0, 1, 1], [], []>} : vector<64x4xf32>, vector<4x1xf32>, vector<64x1xf32> -> vector<64x1xf32>
    %c0_363 = arith.constant 0 : index
    %c0_364 = arith.constant 0 : index
    %c0_365 = arith.constant 0 : index
    %659 = vector.load %arg7[%c0_363, %c0_364, %c0_365] : memref<4x64x1xf32, #tpu.memory_space<vmem>>, vector<1x64x1xf32>
    %660 = vector.shape_cast %659 : vector<1x64x1xf32> to vector<64x1xf32>
    %661 = arith.mulf %660, %658 : vector<64x1xf32>
    %cst_366 = arith.constant dense<0.000000e+00> : vector<1xf32>
    %662 = vector.multi_reduction <add>, %661, %cst_366 [0] : vector<64x1xf32> to vector<1xf32>
    %663 = vector.shape_cast %662 : vector<1xf32> to vector<1x1xf32>
    %664 = arith.addf %657, %663 : vector<1x1xf32>
    %cst_367 = arith.constant dense<0.000000e+00> : vector<64x1xf32>
    %665 = tpu.matmul %615, %644, %cst_367 {dimension_numbers = #tpu.dot_dimension_numbers<[1], [0], [0], [1], [0, 0, 1, 1], [], []>} : vector<64x4xf32>, vector<4x1xf32>, vector<64x1xf32> -> vector<64x1xf32>
    %c1_368 = arith.constant 1 : index
    %c0_369 = arith.constant 0 : index
    %c0_370 = arith.constant 0 : index
    %666 = vector.load %arg7[%c1_368, %c0_369, %c0_370] : memref<4x64x1xf32, #tpu.memory_space<vmem>>, vector<1x64x1xf32>
    %667 = vector.shape_cast %666 : vector<1x64x1xf32> to vector<64x1xf32>
    %668 = arith.mulf %667, %665 : vector<64x1xf32>
    %cst_371 = arith.constant dense<0.000000e+00> : vector<1xf32>
    %669 = vector.multi_reduction <add>, %668, %cst_371 [0] : vector<64x1xf32> to vector<1xf32>
    %670 = vector.shape_cast %669 : vector<1xf32> to vector<1x1xf32>
    %671 = arith.addf %664, %670 : vector<1x1xf32>
    %cst_372 = arith.constant dense<0.000000e+00> : vector<64x1xf32>
    %672 = tpu.matmul %615, %650, %cst_372 {dimension_numbers = #tpu.dot_dimension_numbers<[1], [0], [0], [1], [0, 0, 1, 1], [], []>} : vector<64x4xf32>, vector<4x1xf32>, vector<64x1xf32> -> vector<64x1xf32>
    %c2_373 = arith.constant 2 : index
    %c0_374 = arith.constant 0 : index
    %c0_375 = arith.constant 0 : index
    %673 = vector.load %arg7[%c2_373, %c0_374, %c0_375] : memref<4x64x1xf32, #tpu.memory_space<vmem>>, vector<1x64x1xf32>
    %674 = vector.shape_cast %673 : vector<1x64x1xf32> to vector<64x1xf32>
    %675 = arith.mulf %674, %672 : vector<64x1xf32>
    %cst_376 = arith.constant dense<0.000000e+00> : vector<1xf32>
    %676 = vector.multi_reduction <add>, %675, %cst_376 [0] : vector<64x1xf32> to vector<1xf32>
    %677 = vector.shape_cast %676 : vector<1xf32> to vector<1x1xf32>
    %678 = arith.addf %671, %677 : vector<1x1xf32>
    %cst_377 = arith.constant dense<0.000000e+00> : vector<64x1xf32>
    %679 = tpu.matmul %615, %656, %cst_377 {dimension_numbers = #tpu.dot_dimension_numbers<[1], [0], [0], [1], [0, 0, 1, 1], [], []>} : vector<64x4xf32>, vector<4x1xf32>, vector<64x1xf32> -> vector<64x1xf32>
    %c3_378 = arith.constant 3 : index
    %c0_379 = arith.constant 0 : index
    %c0_380 = arith.constant 0 : index
    %680 = vector.load %arg7[%c3_378, %c0_379, %c0_380] : memref<4x64x1xf32, #tpu.memory_space<vmem>>, vector<1x64x1xf32>
    %681 = vector.shape_cast %680 : vector<1x64x1xf32> to vector<64x1xf32>
    %682 = arith.mulf %681, %679 : vector<64x1xf32>
    %cst_381 = arith.constant dense<0.000000e+00> : vector<1xf32>
    %683 = vector.multi_reduction <add>, %682, %cst_381 [0] : vector<64x1xf32> to vector<1xf32>
    %684 = vector.shape_cast %683 : vector<1xf32> to vector<1x1xf32>
    %685 = arith.addf %678, %684 : vector<1x1xf32>
    %c0_382 = arith.constant 0 : index
    %c0_383 = arith.constant 0 : index
    %686 = vector.load %arg8[%c0_382, %c0_383] : memref<1x1xf32, #tpu.memory_space<vmem>>, vector<1x1xf32>
    %687 = arith.addf %685, %686 : vector<1x1xf32>
    %688 = arith.negf %687 : vector<1x1xf32>
    %689 = math.exp %688 : vector<1x1xf32>
    %cst_384 = arith.constant 1.000000e+00 : f32
    %690 = vector.broadcast %cst_384 : f32 to vector<1x1xf32>
    %691 = arith.addf %690, %689 : vector<1x1xf32>
    %692 = arith.divf %690, %691 : vector<1x1xf32>
    %c0_385 = arith.constant 0 : index
    %c0_386 = arith.constant 0 : index
    %c0_387 = arith.constant 0 : index
    %693 = vector.load %arg10[%c0_385, %c0_386, %c0_387] : memref<2x1x1xf32, #tpu.memory_space<vmem>>, vector<1x1x1xf32>
    %694 = vector.shape_cast %693 : vector<1x1x1xf32> to vector<1x1xf32>
    %695 = vector.shape_cast %692 : vector<1x1xf32> to vector<1x1x1xf32>
    tpu.vector_store %arg10[%c0_385, %c0_386, %c0_387], %695 {strides = array<i32>} : memref<2x1x1xf32, #tpu.memory_space<vmem>>, vector<1x1x1xf32>,
    %cst_388 = arith.constant 0.000000e+00 : f32
    %696 = vector.broadcast %cst_388 : f32 to vector<1x1xf32>
    %cst_389 = arith.constant dense<0.000000e+00> : vector<64x1xf32>
    %697 = tpu.matmul %624, %638, %cst_389 {dimension_numbers = #tpu.dot_dimension_numbers<[1], [0], [0], [1], [0, 0, 1, 1], [], []>} : vector<64x4xf32>, vector<4x1xf32>, vector<64x1xf32> -> vector<64x1xf32>
    %c0_390 = arith.constant 0 : index
    %c0_391 = arith.constant 0 : index
    %c0_392 = arith.constant 0 : index
    %698 = vector.load %arg7[%c0_390, %c0_391, %c0_392] : memref<4x64x1xf32, #tpu.memory_space<vmem>>, vector<1x64x1xf32>
    %699 = vector.shape_cast %698 : vector<1x64x1xf32> to vector<64x1xf32>
    %700 = arith.mulf %699, %697 : vector<64x1xf32>
    %cst_393 = arith.constant dense<0.000000e+00> : vector<1xf32>
    %701 = vector.multi_reduction <add>, %700, %cst_393 [0] : vector<64x1xf32> to vector<1xf32>
    %702 = vector.shape_cast %701 : vector<1xf32> to vector<1x1xf32>
    %703 = arith.addf %696, %702 : vector<1x1xf32>
    %cst_394 = arith.constant dense<0.000000e+00> : vector<64x1xf32>
    %704 = tpu.matmul %624, %644, %cst_394 {dimension_numbers = #tpu.dot_dimension_numbers<[1], [0], [0], [1], [0, 0, 1, 1], [], []>} : vector<64x4xf32>, vector<4x1xf32>, vector<64x1xf32> -> vector<64x1xf32>
    %c1_395 = arith.constant 1 : index
    %c0_396 = arith.constant 0 : index
    %c0_397 = arith.constant 0 : index
    %705 = vector.load %arg7[%c1_395, %c0_396, %c0_397] : memref<4x64x1xf32, #tpu.memory_space<vmem>>, vector<1x64x1xf32>
    %706 = vector.shape_cast %705 : vector<1x64x1xf32> to vector<64x1xf32>
    %707 = arith.mulf %706, %704 : vector<64x1xf32>
    %cst_398 = arith.constant dense<0.000000e+00> : vector<1xf32>
    %708 = vector.multi_reduction <add>, %707, %cst_398 [0] : vector<64x1xf32> to vector<1xf32>
    %709 = vector.shape_cast %708 : vector<1xf32> to vector<1x1xf32>
    %710 = arith.addf %703, %709 : vector<1x1xf32>
    %cst_399 = arith.constant dense<0.000000e+00> : vector<64x1xf32>
    %711 = tpu.matmul %624, %650, %cst_399 {dimension_numbers = #tpu.dot_dimension_numbers<[1], [0], [0], [1], [0, 0, 1, 1], [], []>} : vector<64x4xf32>, vector<4x1xf32>, vector<64x1xf32> -> vector<64x1xf32>
    %c2_400 = arith.constant 2 : index
    %c0_401 = arith.constant 0 : index
    %c0_402 = arith.constant 0 : index
    %712 = vector.load %arg7[%c2_400, %c0_401, %c0_402] : memref<4x64x1xf32, #tpu.memory_space<vmem>>, vector<1x64x1xf32>
    %713 = vector.shape_cast %712 : vector<1x64x1xf32> to vector<64x1xf32>
    %714 = arith.mulf %713, %711 : vector<64x1xf32>
    %cst_403 = arith.constant dense<0.000000e+00> : vector<1xf32>
    %715 = vector.multi_reduction <add>, %714, %cst_403 [0] : vector<64x1xf32> to vector<1xf32>
    %716 = vector.shape_cast %715 : vector<1xf32> to vector<1x1xf32>
    %717 = arith.addf %710, %716 : vector<1x1xf32>
    %cst_404 = arith.constant dense<0.000000e+00> : vector<64x1xf32>
    %718 = tpu.matmul %624, %656, %cst_404 {dimension_numbers = #tpu.dot_dimension_numbers<[1], [0], [0], [1], [0, 0, 1, 1], [], []>} : vector<64x4xf32>, vector<4x1xf32>, vector<64x1xf32> -> vector<64x1xf32>
    %c3_405 = arith.constant 3 : index
    %c0_406 = arith.constant 0 : index
    %c0_407 = arith.constant 0 : index
    %719 = vector.load %arg7[%c3_405, %c0_406, %c0_407] : memref<4x64x1xf32, #tpu.memory_space<vmem>>, vector<1x64x1xf32>
    %720 = vector.shape_cast %719 : vector<1x64x1xf32> to vector<64x1xf32>
    %721 = arith.mulf %720, %718 : vector<64x1xf32>
    %cst_408 = arith.constant dense<0.000000e+00> : vector<1xf32>
    %722 = vector.multi_reduction <add>, %721, %cst_408 [0] : vector<64x1xf32> to vector<1xf32>
    %723 = vector.shape_cast %722 : vector<1xf32> to vector<1x1xf32>
    %724 = arith.addf %717, %723 : vector<1x1xf32>
    %c0_409 = arith.constant 0 : index
    %c0_410 = arith.constant 0 : index
    %725 = vector.load %arg8[%c0_409, %c0_410] : memref<1x1xf32, #tpu.memory_space<vmem>>, vector<1x1xf32>
    %726 = arith.addf %724, %725 : vector<1x1xf32>
    %727 = arith.negf %726 : vector<1x1xf32>
    %728 = math.exp %727 : vector<1x1xf32>
    %cst_411 = arith.constant 1.000000e+00 : f32
    %729 = vector.broadcast %cst_411 : f32 to vector<1x1xf32>
    %730 = arith.addf %729, %728 : vector<1x1xf32>
    %731 = arith.divf %729, %730 : vector<1x1xf32>
    %c1_412 = arith.constant 1 : index
    %c0_413 = arith.constant 0 : index
    %c0_414 = arith.constant 0 : index
    %732 = vector.load %arg10[%c1_412, %c0_413, %c0_414] : memref<2x1x1xf32, #tpu.memory_space<vmem>>, vector<1x1x1xf32>
    %733 = vector.shape_cast %732 : vector<1x1x1xf32> to vector<1x1xf32>
    %734 = vector.shape_cast %731 : vector<1x1xf32> to vector<1x1x1xf32>
    tpu.vector_store %arg10[%c1_412, %c0_413, %c0_414], %734 {strides = array<i32>} : memref<2x1x1xf32, #tpu.memory_space<vmem>>, vector<1x1x1xf32>,
    return
  }
  func.func @transform_0(%arg0: i32) -> (i32, i32, i32) {
    %c0_i32 = arith.constant 0 : i32
    %c0_i32_0 = arith.constant 0 : i32
    %c0_i32_1 = arith.constant 0 : i32
    %c0_i32_2 = arith.constant 0 : i32
    return %c0_i32, %c0_i32_0, %c0_i32_1 : i32, i32, i32
  }
  func.func @transform_1(%arg0: i32) -> (i32, i32, i32) {
    %c0_i32 = arith.constant 0 : i32
    %c0_i32_0 = arith.constant 0 : i32
    %c0_i32_1 = arith.constant 0 : i32
    %c0_i32_2 = arith.constant 0 : i32
    return %c0_i32, %c0_i32_0, %c0_i32_1 : i32, i32, i32
  }
  func.func @transform_2(%arg0: i32) -> (i32, i32, i32) {
    %c0_i32 = arith.constant 0 : i32
    %c0_i32_0 = arith.constant 0 : i32
    %c0_i32_1 = arith.constant 0 : i32
    %c0_i32_2 = arith.constant 0 : i32
    return %c0_i32, %c0_i32_0, %c0_i32_1 : i32, i32, i32
  }
  func.func @transform_3(%arg0: i32) -> (i32, i32, i32) {
    %c0_i32 = arith.constant 0 : i32
    %c0_i32_0 = arith.constant 0 : i32
    %c0_i32_1 = arith.constant 0 : i32
    %c0_i32_2 = arith.constant 0 : i32
    return %c0_i32, %c0_i32_0, %c0_i32_1 : i32, i32, i32
  }
  func.func @transform_4(%arg0: i32) -> (i32, i32, i32) {
    %c0_i32 = arith.constant 0 : i32
    %c0_i32_0 = arith.constant 0 : i32
    %c0_i32_1 = arith.constant 0 : i32
    %c0_i32_2 = arith.constant 0 : i32
    return %c0_i32, %c0_i32_0, %c0_i32_1 : i32, i32, i32
  }
  func.func @transform_5(%arg0: i32) -> (i32, i32, i32) {
    %c0_i32 = arith.constant 0 : i32
    %c0_i32_0 = arith.constant 0 : i32
    %c0_i32_1 = arith.constant 0 : i32
    %c0_i32_2 = arith.constant 0 : i32
    return %c0_i32, %c0_i32_0, %c0_i32_1 : i32, i32, i32
  }
  func.func @transform_6(%arg0: i32) -> (i32, i32, i32) {
    %c0_i32 = arith.constant 0 : i32
    %c0_i32_0 = arith.constant 0 : i32
    %c0_i32_1 = arith.constant 0 : i32
    %c0_i32_2 = arith.constant 0 : i32
    return %c0_i32, %c0_i32_0, %c0_i32_1 : i32, i32, i32
  }
  func.func @transform_7(%arg0: i32) -> (i32, i32) {
    %c0_i32 = arith.constant 0 : i32
    %c0_i32_0 = arith.constant 0 : i32
    %c0_i32_1 = arith.constant 0 : i32
    return %c0_i32, %c0_i32_0 : i32, i32
  }
  func.func @transform_8(%arg0: i32) -> (i32, i32, i32) {
    %c0_i32 = arith.constant 0 : i32
    %c0_i32_0 = arith.constant 0 : i32
    %c0_i32_1 = arith.constant 0 : i32
    %c0_i32_2 = arith.constant 0 : i32
    return %c0_i32, %c0_i32_0, %c0_i32_1 : i32, i32, i32
  }
  func.func @transform_9(%arg0: i32) -> (i32, i32, i32) {
    %c0_i32 = arith.constant 0 : i32
    %c0_i32_0 = arith.constant 0 : i32
    %c0_i32_1 = arith.constant 0 : i32
    %c0_i32_2 = arith.constant 0 : i32
    return %c0_i32, %c0_i32_0, %c0_i32_1 : i32, i32, i32
  }
}

</mosaic_0001>

<llo_original>
// kernel: discriminator_latent_forward.1
$region0: #{discriminator_latent_forward.1}
  #allocation0 [shape = 'u32[]', space=smem, size = 0x4, offset = 0x4, fixed_abs, tag = 'smem constant byte address 0x4 - core index']
  #allocation1 [shape = 'u32[144,128]{1,0:T(1,128)}', space=vmem, size = 0x12000, scoped, tag = 'internal scratch']
  #allocation2 [shape = 'f32[1,1]{1,0:T(1,128)S(1)}', space=vmem, size = 0x200, scoped, tag = 'scoped memory for discriminator_latent_forward.1']
  %s0 = inlined_call_operand.vmem [shape: f32[2,1,128], index: 0, kind: input, shape index: {}]
  %s1 = inlined_call_operand.vmem [shape: f32[4,4,1], index: 1, kind: input, shape index: {}]
  %s2 = inlined_call_operand.vmem [shape: f32[4,8,4], index: 2, kind: input, shape index: {}]
  %s3 = inlined_call_operand.vmem [shape: f32[4,16,8], index: 3, kind: input, shape index: {}]
  %s4 = inlined_call_operand.vmem [shape: f32[4,32,16], index: 4, kind: input, shape index: {}]
  %s5 = inlined_call_operand.vmem [shape: f32[4,64,32], index: 5, kind: input, shape index: {}]
  %s6 = inlined_call_operand.vmem [shape: f32[4,64,1], index: 6, kind: input, shape index: {}]
  %s7 = inlined_call_operand.<no memory space> [shape: f32[1,1], index: 7, kind: input, shape index: {}]
  %s8 = inlined_call_operand.vmem [shape: f32[2,64,4], index: 8, kind: output, shape index: {0}]
  %s9 = inlined_call_operand.vmem [shape: f32[2,1,1], index: 9, kind: output, shape index: {1}]
  %10 = xla_tuple %s8, %s9
  %s11 = sld [smem:[#allocation0]]
  $region50: #{discriminator_latent_forward.1} parent=0
    _
  %s13 = ssub.s32 1, %s11
  %s14 = scalar_select 0, %s13, %s11
  %v15 = vstv %s7
  %16 = vst [vmem:[#allocation2] sm:$0x1] %v15
  // Predicated region
  $region2: #{discriminator_latent_forward.1} parent=0 // pred_check
    _
  $region3: #{discriminator_latent_forward.1} parent=0 // pred_check_branch
    %18 = sbr.rel (0) target = $region5
  $region4: #{discriminator_latent_forward.1} parent=0 // pred_region
    _
  $region5: #{discriminator_latent_forward.1} parent=0 // pred_fallthru
    _
  // Predicated region
  $region6: #{discriminator_latent_forward.1} parent=0 // pred_check
    _
  $region7: #{discriminator_latent_forward.1} parent=0 // pred_check_branch
    %20 = sbr.rel (0) target = $region9
  $region8: #{discriminator_latent_forward.1} parent=0 // pred_region
    _
  $region9: #{discriminator_latent_forward.1} parent=0 // pred_fallthru
    _
  // Predicated region
  $region10: #{discriminator_latent_forward.1} parent=0 // pred_check
    _
  $region11: #{discriminator_latent_forward.1} parent=0 // pred_check_branch
    %22 = sbr.rel (0) target = $region13
  $region12: #{discriminator_latent_forward.1} parent=0 // pred_region
    _
  $region13: #{discriminator_latent_forward.1} parent=0 // pred_fallthru
    _
  // Predicated region
  $region14: #{discriminator_latent_forward.1} parent=0 // pred_check
    _
  $region15: #{discriminator_latent_forward.1} parent=0 // pred_check_branch
    %24 = sbr.rel (0) target = $region17
  $region16: #{discriminator_latent_forward.1} parent=0 // pred_region
    _
  $region17: #{discriminator_latent_forward.1} parent=0 // pred_fallthru
    _
  // Predicated region
  $region18: #{discriminator_latent_forward.1} parent=0 // pred_check
    _
  $region19: #{discriminator_latent_forward.1} parent=0 // pred_check_branch
    %26 = sbr.rel (0) target = $region21
  $region20: #{discriminator_latent_forward.1} parent=0 // pred_region
    _
  $region21: #{discriminator_latent_forward.1} parent=0 // pred_fallthru
    _
  // Predicated region
  $region22: #{discriminator_latent_forward.1} parent=0 // pred_check
    _
  $region23: #{discriminator_latent_forward.1} parent=0 // pred_check_branch
    %28 = sbr.rel (0) target = $region25
  $region24: #{discriminator_latent_forward.1} parent=0 // pred_region
    _
  $region25: #{discriminator_latent_forward.1} parent=0 // pred_fallthru
    _
  // Predicated region
  $region26: #{discriminator_latent_forward.1} parent=0 // pred_check
    _
  $region27: #{discriminator_latent_forward.1} parent=0 // pred_check_branch
    %30 = sbr.rel (0) target = $region29
  $region28: #{discriminator_latent_forward.1} parent=0 // pred_region
    _
  $region29: #{discriminator_latent_forward.1} parent=0 // pred_fallthru
    _
  // Predicated region
  $region30: #{discriminator_latent_forward.1} parent=0 // pred_check
    _
  $region31: #{discriminator_latent_forward.1} parent=0 // pred_check_branch
    %32 = sbr.rel (0) target = $region33
  $region32: #{discriminator_latent_forward.1} parent=0 // pred_region
    _
  $region33: #{discriminator_latent_forward.1} parent=0 // pred_fallthru
    _
  %v33 = vld [vmem:[%s0] sm:$0x1]
  %s34 = scalar_lea.vmem %s0, 1
  %v35 = vld [vmem:[%s34] sm:$0x1]
  %v36 = vlaneseq
  %v37 = vshrl.u32 %v36, 7
  %v38 = vadd.s32 %v37, 8
  %v39 = vadd.s32 %v37, 16
  %v40 = vadd.s32 %v37, 24
  %v41 = vadd.s32 %v37, 32
  %v42 = vadd.s32 %v37, 40
  %v43 = vadd.s32 %v37, 48
  %v44 = vadd.s32 %v37, 56
  %v45 = vadd.s32 %v37, 64
  %v46 = vadd.s32 %v37, 72
  %v47 = vadd.s32 %v37, 80
  %v48 = vadd.s32 %v37, 88
  %v49 = vadd.s32 %v37, 96
  %v50 = vadd.s32 %v37, 104
  %v51 = vadd.s32 %v37, 112
  %v52 = vadd.s32 %v37, 120
  %v53 = vlaneseq
  %v54 = vand.u32 %v53, 127
  %v55 = vmul.u32 %v54, 2
  %v56 = vadd.s32 %v55, 4294967295
  %vm57 = vcmp.eq.s32.totalorder %v37, %v56
  %vm58 = vcmp.eq.s32.totalorder %v38, %v56
  %vm59 = vcmp.eq.s32.totalorder %v39, %v56
  %vm60 = vcmp.eq.s32.totalorder %v40, %v56
  %vm61 = vcmp.eq.s32.totalorder %v41, %v56
  %vm62 = vcmp.eq.s32.totalorder %v42, %v56
  %vm63 = vcmp.eq.s32.totalorder %v43, %v56
  %vm64 = vcmp.eq.s32.totalorder %v44, %v56
  %vm65 = vcmp.eq.s32.totalorder %v45, %v56
  %vm66 = vcmp.eq.s32.totalorder %v46, %v56
  %vm67 = vcmp.eq.s32.totalorder %v47, %v56
  %vm68 = vcmp.eq.s32.totalorder %v48, %v56
  %vm69 = vcmp.eq.s32.totalorder %v49, %v56
  %vm70 = vcmp.eq.s32.totalorder %v50, %v56
  %vm71 = vcmp.eq.s32.totalorder %v51, %v56
  %vm72 = vcmp.eq.s32.totalorder %v52, %v56
  %v73 = vsel %vm57, 1.0, 0.0
  %v74 = vsel %vm58, 1.0, 0.0
  %v75 = vsel %vm59, 1.0, 0.0
  %v76 = vsel %vm60, 1.0, 0.0
  %v77 = vsel %vm61, 1.0, 0.0
  %v78 = vsel %vm62, 1.0, 0.0
  %v79 = vsel %vm63, 1.0, 0.0
  %v80 = vsel %vm64, 1.0, 0.0
  %v81 = vsel %vm65, 1.0, 0.0
  %v82 = vsel %vm66, 1.0, 0.0
  %v83 = vsel %vm67, 1.0, 0.0
  %v84 = vsel %vm68, 1.0, 0.0
  %v85 = vsel %vm69, 1.0, 0.0
  %v86 = vsel %vm70, 1.0, 0.0
  %v87 = vsel %vm71, 1.0, 0.0
  %v88 = vsel %vm72, 1.0, 0.0
  %vm89 = vcmp.eq.s32.totalorder %v37, %v55
  %vm90 = vcmp.eq.s32.totalorder %v38, %v55
  %vm91 = vcmp.eq.s32.totalorder %v39, %v55
  %vm92 = vcmp.eq.s32.totalorder %v40, %v55
  %vm93 = vcmp.eq.s32.totalorder %v41, %v55
  %vm94 = vcmp.eq.s32.totalorder %v42, %v55
  %vm95 = vcmp.eq.s32.totalorder %v43, %v55
  %vm96 = vcmp.eq.s32.totalorder %v44, %v55
  %vm97 = vcmp.eq.s32.totalorder %v45, %v55
  %vm98 = vcmp.eq.s32.totalorder %v46, %v55
  %vm99 = vcmp.eq.s32.totalorder %v47, %v55
  %vm100 = vcmp.eq.s32.totalorder %v48, %v55
  %vm101 = vcmp.eq.s32.totalorder %v49, %v55
  %vm102 = vcmp.eq.s32.totalorder %v50, %v55
  %vm103 = vcmp.eq.s32.totalorder %v51, %v55
  %vm104 = vcmp.eq.s32.totalorder %v52, %v55
  %v105 = vsel %vm89, 1.0, 0.0
  %v106 = vsel %vm90, 1.0, 0.0
  %v107 = vsel %vm91, 1.0, 0.0
  %v108 = vsel %vm92, 1.0, 0.0
  %v109 = vsel %vm93, 1.0, 0.0
  %v110 = vsel %vm94, 1.0, 0.0
  %v111 = vsel %vm95, 1.0, 0.0
  %v112 = vsel %vm96, 1.0, 0.0
  %v113 = vsel %vm97, 1.0, 0.0
  %v114 = vsel %vm98, 1.0, 0.0
  %v115 = vsel %vm99, 1.0, 0.0
  %v116 = vsel %vm100, 1.0, 0.0
  %v117 = vsel %vm101, 1.0, 0.0
  %v118 = vsel %vm102, 1.0, 0.0
  %v119 = vsel %vm103, 1.0, 0.0
  %v120 = vsel %vm104, 1.0, 0.0
  %v121 = vadd.s32 %v55, 1
  %vm122 = vcmp.eq.s32.totalorder %v37, %v121
  %vm123 = vcmp.eq.s32.totalorder %v38, %v121
  %vm124 = vcmp.eq.s32.totalorder %v39, %v121
  %vm125 = vcmp.eq.s32.totalorder %v40, %v121
  %vm126 = vcmp.eq.s32.totalorder %v41, %v121
  %vm127 = vcmp.eq.s32.totalorder %v42, %v121
  %vm128 = vcmp.eq.s32.totalorder %v43, %v121
  %vm129 = vcmp.eq.s32.totalorder %v44, %v121
  %vm130 = vcmp.eq.s32.totalorder %v45, %v121
  %vm131 = vcmp.eq.s32.totalorder %v46, %v121
  %vm132 = vcmp.eq.s32.totalorder %v47, %v121
  %vm133 = vcmp.eq.s32.totalorder %v48, %v121
  %vm134 = vcmp.eq.s32.totalorder %v49, %v121
  %vm135 = vcmp.eq.s32.totalorder %v50, %v121
  %vm136 = vcmp.eq.s32.totalorder %v51, %v121
  %vm137 = vcmp.eq.s32.totalorder %v52, %v121
  %v138 = vsel %vm122, 1.0, 0.0
  %v139 = vsel %vm123, 1.0, 0.0
  %v140 = vsel %vm124, 1.0, 0.0
  %v141 = vsel %vm125, 1.0, 0.0
  %v142 = vsel %vm126, 1.0, 0.0
  %v143 = vsel %vm127, 1.0, 0.0
  %v144 = vsel %vm128, 1.0, 0.0
  %v145 = vsel %vm129, 1.0, 0.0
  %v146 = vsel %vm130, 1.0, 0.0
  %v147 = vsel %vm131, 1.0, 0.0
  %v148 = vsel %vm132, 1.0, 0.0
  %v149 = vsel %vm133, 1.0, 0.0
  %v150 = vsel %vm134, 1.0, 0.0
  %v151 = vsel %vm135, 1.0, 0.0
  %v152 = vsel %vm136, 1.0, 0.0
  %v153 = vsel %vm137, 1.0, 0.0
  %v154 = vadd.s32 %v55, 2
  %vm155 = vcmp.eq.s32.totalorder %v37, %v154
  %vm156 = vcmp.eq.s32.totalorder %v38, %v154
  %vm157 = vcmp.eq.s32.totalorder %v39, %v154
  %vm158 = vcmp.eq.s32.totalorder %v40, %v154
  %vm159 = vcmp.eq.s32.totalorder %v41, %v154
  %vm160 = vcmp.eq.s32.totalorder %v42, %v154
  %vm161 = vcmp.eq.s32.totalorder %v43, %v154
  %vm162 = vcmp.eq.s32.totalorder %v44, %v154
  %vm163 = vcmp.eq.s32.totalorder %v45, %v154
  %vm164 = vcmp.eq.s32.totalorder %v46, %v154
  %vm165 = vcmp.eq.s32.totalorder %v47, %v154
  %vm166 = vcmp.eq.s32.totalorder %v48, %v154
  %vm167 = vcmp.eq.s32.totalorder %v49, %v154
  %vm168 = vcmp.eq.s32.totalorder %v50, %v154
  %vm169 = vcmp.eq.s32.totalorder %v51, %v154
  %vm170 = vcmp.eq.s32.totalorder %v52, %v154
  %v171 = vsel %vm155, 1.0, 0.0
  %v172 = vsel %vm156, 1.0, 0.0
  %v173 = vsel %vm157, 1.0, 0.0
  %v174 = vsel %vm158, 1.0, 0.0
  %v175 = vsel %vm159, 1.0, 0.0
  %v176 = vsel %vm160, 1.0, 0.0
  %v177 = vsel %vm161, 1.0, 0.0
  %v178 = vsel %vm162, 1.0, 0.0
  %v179 = vsel %vm163, 1.0, 0.0
  %v180 = vsel %vm164, 1.0, 0.0
  %v181 = vsel %vm165, 1.0, 0.0
  %v182 = vsel %vm166, 1.0, 0.0
  %v183 = vsel %vm167, 1.0, 0.0
  %v184 = vsel %vm168, 1.0, 0.0
  %v185 = vsel %vm169, 1.0, 0.0
  %v186 = vsel %vm170, 1.0, 0.0
  %v187 = vld [vmem:[%s1] sm:$0xf]
  %189 = vset.pattern.permute.xlu0 0
  %190 = vperm.xlu0 %189, %v187
  %v191 = vpop.permute.xlu0 %190
  %v194 = vlaneseq
  %v195 = vshrl.u32 %v194, 7
  %v196 = vsub.s32 0, %v195
  %v197 = vrot.slane %v33, %v196
  %v199 = vmul.f32 %v191, %v197
  %s200 = scalar_lea.vmem %s1, 4
  %v201 = vld [vmem:[%s200] sm:$0xf]
  %203 = vset.pattern.permute.xlu0 0
  %204 = vperm.xlu0 %203, %v201
  %v205 = vpop.permute.xlu0 %204
  %v207 = vmul.f32 %v205, %v197
  %208 = vmatprep.subr.mxu0 0.0
  %209 = vmatpush1.msra.mxu0 %v105
  %210 = vmatprep.subr.mxu0 0.0
  %211 = vmatpush1.msra.mxu0 %v106
  %212 = vmatprep.subr.mxu0 0.0
  %213 = vmatpush1.msra.mxu0 %v107
  %214 = vmatprep.subr.mxu0 0.0
  %215 = vmatpush1.msra.mxu0 %v108
  %216 = vmatprep.subr.mxu0 0.0
  %217 = vmatpush1.msra.mxu0 %v109
  %218 = vmatprep.subr.mxu0 0.0
  %219 = vmatpush1.msra.mxu0 %v110
  %220 = vmatprep.subr.mxu0 0.0
  %221 = vmatpush1.msra.mxu0 %v111
  %222 = vmatprep.subr.mxu0 0.0
  %223 = vmatpush1.msra.mxu0 %v112
  %224 = vmatprep.subr.mxu0 0.0
  %225 = vmatpush1.msra.mxu0 %v113
  %226 = vmatprep.subr.mxu0 0.0
  %227 = vmatpush1.msra.mxu0 %v114
  %228 = vmatprep.subr.mxu0 0.0
  %229 = vmatpush1.msra.mxu0 %v115
  %230 = vmatprep.subr.mxu0 0.0
  %231 = vmatpush1.msra.mxu0 %v116
  %232 = vmatprep.subr.mxu0 0.0
  %233 = vmatpush1.msra.mxu0 %v117
  %234 = vmatprep.subr.mxu0 0.0
  %235 = vmatpush1.msra.mxu0 %v118
  %236 = vmatprep.subr.mxu0 0.0
  %237 = vmatpush1.msra.mxu0 %v119
  %238 = vmatprep.subr.mxu0 0.0
  %239 = vmatpush1.msra.mxu0 %v120
  %240 = vmatprep.subr.mxu0 0.0
  %241 = vmatpush1.msra.mxu0 0.0
  %242 = vmatprep.subr.mxu0 0.0
  %243 = vmatpush1.msra.mxu0 0.0
  %244 = vmatprep.subr.mxu0 0.0
  %245 = vmatpush1.msra.mxu0 0.0
  %246 = vmatprep.subr.mxu0 0.0
  %247 = vmatpush1.msra.mxu0 0.0
  %248 = vmatprep.subr.mxu0 0.0
  %249 = vmatpush1.msra.mxu0 0.0
  %250 = vmatprep.subr.mxu0 0.0
  %251 = vmatpush1.msra.mxu0 0.0
  %252 = vmatprep.subr.mxu0 0.0
  %253 = vmatpush1.msra.mxu0 0.0
  %254 = vmatprep.subr.mxu0 0.0
  %255 = vmatpush1.msra.mxu0 0.0
  %256 = vmatprep.subr.mxu0 0.0
  %257 = vmatpush1.msra.mxu0 0.0
  %258 = vmatprep.subr.mxu0 0.0
  %259 = vmatpush1.msra.mxu0 0.0
  %260 = vmatprep.subr.mxu0 0.0
  %261 = vmatpush1.msra.mxu0 0.0
  %262 = vmatprep.subr.mxu0 0.0
  %263 = vmatpush1.msra.mxu0 0.0
  %264 = vmatprep.subr.mxu0 0.0
  %265 = vmatpush1.msra.mxu0 0.0
  %266 = vmatprep.subr.mxu0 0.0
  %267 = vmatpush1.msra.mxu0 0.0
  %268 = vmatprep.subr.mxu0 0.0
  %269 = vmatpush1.msra.mxu0 0.0
  %270 = vmatprep.subr.mxu0 0.0
  %271 = vmatpush1.msra.mxu0 0.0
  %272 = vmatprep.mubr.f32.mxu0 0.0
  %273 = vmatmul.mubr.f32.gmra.mrb[0].mxu0 %v207
  %v274 = vpop.f32.mrb[0].mxu0
  %v275 = vadd.f32 0.0, %v274
  %v276 = vpop.f32.mrb[0].mxu0
  %277 = vdwg.mxu0
  %278 = vmatprep.subr.mxu0 0.0
  %279 = vmatpush1.msra.mxu0 %v73
  %280 = vmatprep.subr.mxu0 0.0
  %281 = vmatpush1.msra.mxu0 %v74
  %282 = vmatprep.subr.mxu0 0.0
  %283 = vmatpush1.msra.mxu0 %v75
  %284 = vmatprep.subr.mxu0 0.0
  %285 = vmatpush1.msra.mxu0 %v76
  %286 = vmatprep.subr.mxu0 0.0
  %287 = vmatpush1.msra.mxu0 %v77
  %288 = vmatprep.subr.mxu0 0.0
  %289 = vmatpush1.msra.mxu0 %v78
  %290 = vmatprep.subr.mxu0 0.0
  %291 = vmatpush1.msra.mxu0 %v79
  %292 = vmatprep.subr.mxu0 0.0
  %293 = vmatpush1.msra.mxu0 %v80
  %294 = vmatprep.subr.mxu0 0.0
  %295 = vmatpush1.msra.mxu0 %v81
  %296 = vmatprep.subr.mxu0 0.0
  %297 = vmatpush1.msra.mxu0 %v82
  %298 = vmatprep.subr.mxu0 0.0
  %299 = vmatpush1.msra.mxu0 %v83
  %300 = vmatprep.subr.mxu0 0.0
  %301 = vmatpush1.msra.mxu0 %v84
  %302 = vmatprep.subr.mxu0 0.0
  %303 = vmatpush1.msra.mxu0 %v85
  %304 = vmatprep.subr.mxu0 0.0
  %305 = vmatpush1.msra.mxu0 %v86
  %306 = vmatprep.subr.mxu0 0.0
  %307 = vmatpush1.msra.mxu0 %v87
  %308 = vmatprep.subr.mxu0 0.0
  %309 = vmatpush1.msra.mxu0 %v88
  %310 = vmatprep.subr.mxu0 0.0
  %311 = vmatpush1.msra.mxu0 0.0
  %312 = vmatprep.subr.mxu0 0.0
  %313 = vmatpush1.msra.mxu0 0.0
  %314 = vmatprep.subr.mxu0 0.0
  %315 = vmatpush1.msra.mxu0 0.0
  %316 = vmatprep.subr.mxu0 0.0
  %317 = vmatpush1.msra.mxu0 0.0
  %318 = vmatprep.subr.mxu0 0.0
  %319 = vmatpush1.msra.mxu0 0.0
  %320 = vmatprep.subr.mxu0 0.0
  %321 = vmatpush1.msra.mxu0 0.0
  %322 = vmatprep.subr.mxu0 0.0
  %323 = vmatpush1.msra.mxu0 0.0
  %324 = vmatprep.subr.mxu0 0.0
  %325 = vmatpush1.msra.mxu0 0.0
  %326 = vmatprep.subr.mxu0 0.0
  %327 = vmatpush1.msra.mxu0 0.0
  %328 = vmatprep.subr.mxu0 0.0
  %329 = vmatpush1.msra.mxu0 0.0
  %330 = vmatprep.subr.mxu0 0.0
  %331 = vmatpush1.msra.mxu0 0.0
  %332 = vmatprep.subr.mxu0 0.0
  %333 = vmatpush1.msra.mxu0 0.0
  %334 = vmatprep.subr.mxu0 0.0
  %335 = vmatpush1.msra.mxu0 0.0
  %336 = vmatprep.subr.mxu0 0.0
  %337 = vmatpush1.msra.mxu0 0.0
  %338 = vmatprep.subr.mxu0 0.0
  %339 = vmatpush1.msra.mxu0 0.0
  %340 = vmatprep.subr.mxu0 0.0
  %341 = vmatpush1.msra.mxu0 0.0
  %342 = vmatprep.mubr.f32.mxu0 0.0
  %343 = vmatmul.mubr.f32.gmra.mrb[0].mxu0 %v199
  %v344 = vpop.f32.mrb[0].mxu0
  %v345 = vadd.f32 %v275, %v344
  %v346 = vpop.f32.mrb[0].mxu0
  %347 = vdwg.mxu0
  %s348 = scalar_lea.vmem %s1, 8
  %v349 = vld [vmem:[%s348] sm:$0xf]
  %351 = vset.pattern.permute.xlu0 0
  %352 = vperm.xlu0 %351, %v349
  %v353 = vpop.permute.xlu0 %352
  %v355 = vmul.f32 %v353, %v197
  %356 = vmatprep.subr.mxu0 0.0
  %357 = vmatpush1.msra.mxu0 %v138
  %358 = vmatprep.subr.mxu0 0.0
  %359 = vmatpush1.msra.mxu0 %v139
  %360 = vmatprep.subr.mxu0 0.0
  %361 = vmatpush1.msra.mxu0 %v140
  %362 = vmatprep.subr.mxu0 0.0
  %363 = vmatpush1.msra.mxu0 %v141
  %364 = vmatprep.subr.mxu0 0.0
  %365 = vmatpush1.msra.mxu0 %v142
  %366 = vmatprep.subr.mxu0 0.0
  %367 = vmatpush1.msra.mxu0 %v143
  %368 = vmatprep.subr.mxu0 0.0
  %369 = vmatpush1.msra.mxu0 %v144
  %370 = vmatprep.subr.mxu0 0.0
  %371 = vmatpush1.msra.mxu0 %v145
  %372 = vmatprep.subr.mxu0 0.0
  %373 = vmatpush1.msra.mxu0 %v146
  %374 = vmatprep.subr.mxu0 0.0
  %375 = vmatpush1.msra.mxu0 %v147
  %376 = vmatprep.subr.mxu0 0.0
  %377 = vmatpush1.msra.mxu0 %v148
  %378 = vmatprep.subr.mxu0 0.0
  %379 = vmatpush1.msra.mxu0 %v149
  %380 = vmatprep.subr.mxu0 0.0
  %381 = vmatpush1.msra.mxu0 %v150
  %382 = vmatprep.subr.mxu0 0.0
  %383 = vmatpush1.msra.mxu0 %v151
  %384 = vmatprep.subr.mxu0 0.0
  %385 = vmatpush1.msra.mxu0 %v152
  %386 = vmatprep.subr.mxu0 0.0
  %387 = vmatpush1.msra.mxu0 %v153
  %388 = vmatprep.subr.mxu0 0.0
  %389 = vmatpush1.msra.mxu0 0.0
  %390 = vmatprep.subr.mxu0 0.0
  %391 = vmatpush1.msra.mxu0 0.0
  %392 = vmatprep.subr.mxu0 0.0
  %393 = vmatpush1.msra.mxu0 0.0
  %394 = vmatprep.subr.mxu0 0.0
  %395 = vmatpush1.msra.mxu0 0.0
  %396 = vmatprep.subr.mxu0 0.0
  %397 = vmatpush1.msra.mxu0 0.0
  %398 = vmatprep.subr.mxu0 0.0
  %399 = vmatpush1.msra.mxu0 0.0
  %400 = vmatprep.subr.mxu0 0.0
  %401 = vmatpush1.msra.mxu0 0.0
  %402 = vmatprep.subr.mxu0 0.0
  %403 = vmatpush1.msra.mxu0 0.0
  %404 = vmatprep.subr.mxu0 0.0
  %405 = vmatpush1.msra.mxu0 0.0
  %406 = vmatprep.subr.mxu0 0.0
  %407 = vmatpush1.msra.mxu0 0.0
  %408 = vmatprep.subr.mxu0 0.0
  %409 = vmatpush1.msra.mxu0 0.0
  %410 = vmatprep.subr.mxu0 0.0
  %411 = vmatpush1.msra.mxu0 0.0
  %412 = vmatprep.subr.mxu0 0.0
  %413 = vmatpush1.msra.mxu0 0.0
  %414 = vmatprep.subr.mxu0 0.0
  %415 = vmatpush1.msra.mxu0 0.0
  %416 = vmatprep.subr.mxu0 0.0
  %417 = vmatpush1.msra.mxu0 0.0
  %418 = vmatprep.subr.mxu0 0.0
  %419 = vmatpush1.msra.mxu0 0.0
  %420 = vmatprep.mubr.f32.mxu0 0.0
  %421 = vmatmul.mubr.f32.gmra.mrb[0].mxu0 %v355
  %v422 = vpop.f32.mrb[0].mxu0
  %v423 = vadd.f32 0.0, %v422
  %v424 = vpop.f32.mrb[0].mxu0
  %425 = vdwg.mxu0
  %v426 = vadd.f32 %v345, %v423
  %s427 = scalar_lea.vmem %s1, 12
  %v428 = vld [vmem:[%s427] sm:$0xf]
  %430 = vset.pattern.permute.xlu0 0
  %431 = vperm.xlu0 %430, %v428
  %v432 = vpop.permute.xlu0 %431
  %v434 = vmul.f32 %v432, %v197
  %435 = vmatprep.subr.mxu0 0.0
  %436 = vmatpush1.msra.mxu0 %v171
  %437 = vmatprep.subr.mxu0 0.0
  %438 = vmatpush1.msra.mxu0 %v172
  %439 = vmatprep.subr.mxu0 0.0
  %440 = vmatpush1.msra.mxu0 %v173
  %441 = vmatprep.subr.mxu0 0.0
  %442 = vmatpush1.msra.mxu0 %v174
  %443 = vmatprep.subr.mxu0 0.0
  %444 = vmatpush1.msra.mxu0 %v175
  %445 = vmatprep.subr.mxu0 0.0
  %446 = vmatpush1.msra.mxu0 %v176
  %447 = vmatprep.subr.mxu0 0.0
  %448 = vmatpush1.msra.mxu0 %v177
  %449 = vmatprep.subr.mxu0 0.0
  %450 = vmatpush1.msra.mxu0 %v178
  %451 = vmatprep.subr.mxu0 0.0
  %452 = vmatpush1.msra.mxu0 %v179
  %453 = vmatprep.subr.mxu0 0.0
  %454 = vmatpush1.msra.mxu0 %v180
  %455 = vmatprep.subr.mxu0 0.0
  %456 = vmatpush1.msra.mxu0 %v181
  %457 = vmatprep.subr.mxu0 0.0
  %458 = vmatpush1.msra.mxu0 %v182
  %459 = vmatprep.subr.mxu0 0.0
  %460 = vmatpush1.msra.mxu0 %v183
  %461 = vmatprep.subr.mxu0 0.0
  %462 = vmatpush1.msra.mxu0 %v184
  %463 = vmatprep.subr.mxu0 0.0
  %464 = vmatpush1.msra.mxu0 %v185
  %465 = vmatprep.subr.mxu0 0.0
  %466 = vmatpush1.msra.mxu0 %v186
  %467 = vmatprep.subr.mxu0 0.0
  %468 = vmatpush1.msra.mxu0 0.0
  %469 = vmatprep.subr.mxu0 0.0
  %470 = vmatpush1.msra.mxu0 0.0
  %471 = vmatprep.subr.mxu0 0.0
  %472 = vmatpush1.msra.mxu0 0.0
  %473 = vmatprep.subr.mxu0 0.0
  %474 = vmatpush1.msra.mxu0 0.0
  %475 = vmatprep.subr.mxu0 0.0
  %476 = vmatpush1.msra.mxu0 0.0
  %477 = vmatprep.subr.mxu0 0.0
  %478 = vmatpush1.msra.mxu0 0.0
  %479 = vmatprep.subr.mxu0 0.0
  %480 = vmatpush1.msra.mxu0 0.0
  %481 = vmatprep.subr.mxu0 0.0
  %482 = vmatpush1.msra.mxu0 0.0
  %483 = vmatprep.subr.mxu0 0.0
  %484 = vmatpush1.msra.mxu0 0.0
  %485 = vmatprep.subr.mxu0 0.0
  %486 = vmatpush1.msra.mxu0 0.0
  %487 = vmatprep.subr.mxu0 0.0
  %488 = vmatpush1.msra.mxu0 0.0
  %489 = vmatprep.subr.mxu0 0.0
  %490 = vmatpush1.msra.mxu0 0.0
  %491 = vmatprep.subr.mxu0 0.0
  %492 = vmatpush1.msra.mxu0 0.0
  %493 = vmatprep.subr.mxu0 0.0
  %494 = vmatpush1.msra.mxu0 0.0
  %495 = vmatprep.subr.mxu0 0.0
  %496 = vmatpush1.msra.mxu0 0.0
  %497 = vmatprep.subr.mxu0 0.0
  %498 = vmatpush1.msra.mxu0 0.0
  %499 = vmatprep.mubr.f32.mxu0 0.0
  %500 = vmatmul.mubr.f32.gmra.mrb[0].mxu0 %v434
  %v501 = vpop.f32.mrb[0].mxu0
  %v502 = vadd.f32 0.0, %v501
  %v503 = vpop.f32.mrb[0].mxu0
  %504 = vdwg.mxu0
  %v505 = vadd.f32 %v426, %v502
  %v507 = vlaneseq
  %v508 = vshrl.u32 %v507, 7
  %v509 = vsub.s32 0, %v508
  %v510 = vrot.slane %v35, %v509
  %v512 = vmul.f32 %v191, %v510
  %v513 = vmul.f32 %v205, %v510
  %514 = vmatprep.subr.mxu0 0.0
  %515 = vmatpush1.msra.mxu0 %v105
  %516 = vmatprep.subr.mxu0 0.0
  %517 = vmatpush1.msra.mxu0 %v106
  %518 = vmatprep.subr.mxu0 0.0
  %519 = vmatpush1.msra.mxu0 %v107
  %520 = vmatprep.subr.mxu0 0.0
  %521 = vmatpush1.msra.mxu0 %v108
  %522 = vmatprep.subr.mxu0 0.0
  %523 = vmatpush1.msra.mxu0 %v109
  %524 = vmatprep.subr.mxu0 0.0
  %525 = vmatpush1.msra.mxu0 %v110
  %526 = vmatprep.subr.mxu0 0.0
  %527 = vmatpush1.msra.mxu0 %v111
  %528 = vmatprep.subr.mxu0 0.0
  %529 = vmatpush1.msra.mxu0 %v112
  %530 = vmatprep.subr.mxu0 0.0
  %531 = vmatpush1.msra.mxu0 %v113
  %532 = vmatprep.subr.mxu0 0.0
  %533 = vmatpush1.msra.mxu0 %v114
  %534 = vmatprep.subr.mxu0 0.0
  %535 = vmatpush1.msra.mxu0 %v115
  %536 = vmatprep.subr.mxu0 0.0
  %537 = vmatpush1.msra.mxu0 %v116
  %538 = vmatprep.subr.mxu0 0.0
  %539 = vmatpush1.msra.mxu0 %v117
  %540 = vmatprep.subr.mxu0 0.0
  %541 = vmatpush1.msra.mxu0 %v118
  %542 = vmatprep.subr.mxu0 0.0
  %543 = vmatpush1.msra.mxu0 %v119
  %544 = vmatprep.subr.mxu0 0.0
  %545 = vmatpush1.msra.mxu0 %v120
  %546 = vmatprep.subr.mxu0 0.0
  %547 = vmatpush1.msra.mxu0 0.0
  %548 = vmatprep.subr.mxu0 0.0
  %549 = vmatpush1.msra.mxu0 0.0
  %550 = vmatprep.subr.mxu0 0.0
  %551 = vmatpush1.msra.mxu0 0.0
  %552 = vmatprep.subr.mxu0 0.0
  %553 = vmatpush1.msra.mxu0 0.0
  %554 = vmatprep.subr.mxu0 0.0
  %555 = vmatpush1.msra.mxu0 0.0
  %556 = vmatprep.subr.mxu0 0.0
  %557 = vmatpush1.msra.mxu0 0.0
  %558 = vmatprep.subr.mxu0 0.0
  %559 = vmatpush1.msra.mxu0 0.0
  %560 = vmatprep.subr.mxu0 0.0
  %561 = vmatpush1.msra.mxu0 0.0
  %562 = vmatprep.subr.mxu0 0.0
  %563 = vmatpush1.msra.mxu0 0.0
  %564 = vmatprep.subr.mxu0 0.0
  %565 = vmatpush1.msra.mxu0 0.0
  %566 = vmatprep.subr.mxu0 0.0
  %567 = vmatpush1.msra.mxu0 0.0
  %568 = vmatprep.subr.mxu0 0.0
  %569 = vmatpush1.msra.mxu0 0.0
  %570 = vmatprep.subr.mxu0 0.0
  %571 = vmatpush1.msra.mxu0 0.0
  %572 = vmatprep.subr.mxu0 0.0
  %573 = vmatpush1.msra.mxu0 0.0
  %574 = vmatprep.subr.mxu0 0.0
  %575 = vmatpush1.msra.mxu0 0.0
  %576 = vmatprep.subr.mxu0 0.0
  %577 = vmatpush1.msra.mxu0 0.0
  %578 = vmatprep.mubr.f32.mxu0 0.0
  %579 = vmatmul.mubr.f32.gmra.mrb[0].mxu0 %v513
  %v580 = vpop.f32.mrb[0].mxu0
  %v581 = vadd.f32 0.0, %v580
  %v582 = vpop.f32.mrb[0].mxu0
  %583 = vdwg.mxu0
  %584 = vmatprep.subr.mxu0 0.0
  %585 = vmatpush1.msra.mxu0 %v73
  %586 = vmatprep.subr.mxu0 0.0
  %587 = vmatpush1.msra.mxu0 %v74
  %588 = vmatprep.subr.mxu0 0.0
  %589 = vmatpush1.msra.mxu0 %v75
  %590 = vmatprep.subr.mxu0 0.0
  %591 = vmatpush1.msra.mxu0 %v76
  %592 = vmatprep.subr.mxu0 0.0
  %593 = vmatpush1.msra.mxu0 %v77
  %594 = vmatprep.subr.mxu0 0.0
  %595 = vmatpush1.msra.mxu0 %v78
  %596 = vmatprep.subr.mxu0 0.0
  %597 = vmatpush1.msra.mxu0 %v79
  %598 = vmatprep.subr.mxu0 0.0
  %599 = vmatpush1.msra.mxu0 %v80
  %600 = vmatprep.subr.mxu0 0.0
  %601 = vmatpush1.msra.mxu0 %v81
  %602 = vmatprep.subr.mxu0 0.0
  %603 = vmatpush1.msra.mxu0 %v82
  %604 = vmatprep.subr.mxu0 0.0
  %605 = vmatpush1.msra.mxu0 %v83
  %606 = vmatprep.subr.mxu0 0.0
  %607 = vmatpush1.msra.mxu0 %v84
  %608 = vmatprep.subr.mxu0 0.0
  %609 = vmatpush1.msra.mxu0 %v85
  %610 = vmatprep.subr.mxu0 0.0
  %611 = vmatpush1.msra.mxu0 %v86
  %612 = vmatprep.subr.mxu0 0.0
  %613 = vmatpush1.msra.mxu0 %v87
  %614 = vmatprep.subr.mxu0 0.0
  %615 = vmatpush1.msra.mxu0 %v88
  %616 = vmatprep.subr.mxu0 0.0
  %617 = vmatpush1.msra.mxu0 0.0
  %618 = vmatprep.subr.mxu0 0.0
  %619 = vmatpush1.msra.mxu0 0.0
  %620 = vmatprep.subr.mxu0 0.0
  %621 = vmatpush1.msra.mxu0 0.0
  %622 = vmatprep.subr.mxu0 0.0
  %623 = vmatpush1.msra.mxu0 0.0
  %624 = vmatprep.subr.mxu0 0.0
  %625 = vmatpush1.msra.mxu0 0.0
  %626 = vmatprep.subr.mxu0 0.0
  %627 = vmatpush1.msra.mxu0 0.0
  %628 = vmatprep.subr.mxu0 0.0
  %629 = vmatpush1.msra.mxu0 0.0
  %630 = vmatprep.subr.mxu0 0.0
  %631 = vmatpush1.msra.mxu0 0.0
  %632 = vmatprep.subr.mxu0 0.0
  %633 = vmatpush1.msra.mxu0 0.0
  %634 = vmatprep.subr.mxu0 0.0
  %635 = vmatpush1.msra.mxu0 0.0
  %636 = vmatprep.subr.mxu0 0.0
  %637 = vmatpush1.msra.mxu0 0.0
  %638 = vmatprep.subr.mxu0 0.0
  %639 = vmatpush1.msra.mxu0 0.0
  %640 = vmatprep.subr.mxu0 0.0
  %641 = vmatpush1.msra.mxu0 0.0
  %642 = vmatprep.subr.mxu0 0.0
  %643 = vmatpush1.msra.mxu0 0.0
  %644 = vmatprep.subr.mxu0 0.0
  %645 = vmatpush1.msra.mxu0 0.0
  %646 = vmatprep.subr.mxu0 0.0
  %647 = vmatpush1.msra.mxu0 0.0
  %648 = vmatprep.mubr.f32.mxu0 0.0
  %649 = vmatmul.mubr.f32.gmra.mrb[0].mxu0 %v512
  %v650 = vpop.f32.mrb[0].mxu0
  %v651 = vadd.f32 %v581, %v650
  %v652 = vpop.f32.mrb[0].mxu0
  %653 = vdwg.mxu0
  %v654 = vmul.f32 %v353, %v510
  %655 = vmatprep.subr.mxu0 0.0
  %656 = vmatpush1.msra.mxu0 %v138
  %657 = vmatprep.subr.mxu0 0.0
  %658 = vmatpush1.msra.mxu0 %v139
  %659 = vmatprep.subr.mxu0 0.0
  %660 = vmatpush1.msra.mxu0 %v140
  %661 = vmatprep.subr.mxu0 0.0
  %662 = vmatpush1.msra.mxu0 %v141
  %663 = vmatprep.subr.mxu0 0.0
  %664 = vmatpush1.msra.mxu0 %v142
  %665 = vmatprep.subr.mxu0 0.0
  %666 = vmatpush1.msra.mxu0 %v143
  %667 = vmatprep.subr.mxu0 0.0
  %668 = vmatpush1.msra.mxu0 %v144
  %669 = vmatprep.subr.mxu0 0.0
  %670 = vmatpush1.msra.mxu0 %v145
  %671 = vmatprep.subr.mxu0 0.0
  %672 = vmatpush1.msra.mxu0 %v146
  %673 = vmatprep.subr.mxu0 0.0
  %674 = vmatpush1.msra.mxu0 %v147
  %675 = vmatprep.subr.mxu0 0.0
  %676 = vmatpush1.msra.mxu0 %v148
  %677 = vmatprep.subr.mxu0 0.0
  %678 = vmatpush1.msra.mxu0 %v149
  %679 = vmatprep.subr.mxu0 0.0
  %680 = vmatpush1.msra.mxu0 %v150
  %681 = vmatprep.subr.mxu0 0.0
  %682 = vmatpush1.msra.mxu0 %v151
  %683 = vmatprep.subr.mxu0 0.0
  %684 = vmatpush1.msra.mxu0 %v152
  %685 = vmatprep.subr.mxu0 0.0
  %686 = vmatpush1.msra.mxu0 %v153
  %687 = vmatprep.subr.mxu0 0.0
  %688 = vmatpush1.msra.mxu0 0.0
  %689 = vmatprep.subr.mxu0 0.0
  %690 = vmatpush1.msra.mxu0 0.0
  %691 = vmatprep.subr.mxu0 0.0
  %692 = vmatpush1.msra.mxu0 0.0
  %693 = vmatprep.subr.mxu0 0.0
  %694 = vmatpush1.msra.mxu0 0.0
  %695 = vmatprep.subr.mxu0 0.0
  %696 = vmatpush1.msra.mxu0 0.0
  %697 = vmatprep.subr.mxu0 0.0
  %698 = vmatpush1.msra.mxu0 0.0
  %699 = vmatprep.subr.mxu0 0.0
  %700 = vmatpush1.msra.mxu0 0.0
  %701 = vmatprep.subr.mxu0 0.0
  %702 = vmatpush1.msra.mxu0 0.0
  %703 = vmatprep.subr.mxu0 0.0
  %704 = vmatpush1.msra.mxu0 0.0
  %705 = vmatprep.subr.mxu0 0.0
  %706 = vmatpush1.msra.mxu0 0.0
  %707 = vmatprep.subr.mxu0 0.0
  %708 = vmatpush1.msra.mxu0 0.0
  %709 = vmatprep.subr.mxu0 0.0
  %710 = vmatpush1.msra.mxu0 0.0
  %711 = vmatprep.subr.mxu0 0.0
  %712 = vmatpush1.msra.mxu0 0.0
  %713 = vmatprep.subr.mxu0 0.0
  %714 = vmatpush1.msra.mxu0 0.0
  %715 = vmatprep.subr.mxu0 0.0
  %716 = vmatpush1.msra.mxu0 0.0
  %717 = vmatprep.subr.mxu0 0.0
  %718 = vmatpush1.msra.mxu0 0.0
  %719 = vmatprep.mubr.f32.mxu0 0.0
  %720 = vmatmul.mubr.f32.gmra.mrb[0].mxu0 %v654
  %v721 = vpop.f32.mrb[0].mxu0
  %v722 = vadd.f32 0.0, %v721
  %v723 = vpop.f32.mrb[0].mxu0
  %724 = vdwg.mxu0
  %v725 = vadd.f32 %v651, %v722
  %v726 = vmul.f32 %v432, %v510
  %727 = vmatprep.subr.mxu0 0.0
  %728 = vmatpush1.msra.mxu0 %v171
  %729 = vmatprep.subr.mxu0 0.0
  %730 = vmatpush1.msra.mxu0 %v172
  %731 = vmatprep.subr.mxu0 0.0
  %732 = vmatpush1.msra.mxu0 %v173
  %733 = vmatprep.subr.mxu0 0.0
  %734 = vmatpush1.msra.mxu0 %v174
  %735 = vmatprep.subr.mxu0 0.0
  %736 = vmatpush1.msra.mxu0 %v175
  %737 = vmatprep.subr.mxu0 0.0
  %738 = vmatpush1.msra.mxu0 %v176
  %739 = vmatprep.subr.mxu0 0.0
  %740 = vmatpush1.msra.mxu0 %v177
  %741 = vmatprep.subr.mxu0 0.0
  %742 = vmatpush1.msra.mxu0 %v178
  %743 = vmatprep.subr.mxu0 0.0
  %744 = vmatpush1.msra.mxu0 %v179
  %745 = vmatprep.subr.mxu0 0.0
  %746 = vmatpush1.msra.mxu0 %v180
  %747 = vmatprep.subr.mxu0 0.0
  %748 = vmatpush1.msra.mxu0 %v181
  %749 = vmatprep.subr.mxu0 0.0
  %750 = vmatpush1.msra.mxu0 %v182
  %751 = vmatprep.subr.mxu0 0.0
  %752 = vmatpush1.msra.mxu0 %v183
  %753 = vmatprep.subr.mxu0 0.0
  %754 = vmatpush1.msra.mxu0 %v184
  %755 = vmatprep.subr.mxu0 0.0
  %756 = vmatpush1.msra.mxu0 %v185
  %757 = vmatprep.subr.mxu0 0.0
  %758 = vmatpush1.msra.mxu0 %v186
  %759 = vmatprep.subr.mxu0 0.0
  %760 = vmatpush1.msra.mxu0 0.0
  %761 = vmatprep.subr.mxu0 0.0
  %762 = vmatpush1.msra.mxu0 0.0
  %763 = vmatprep.subr.mxu0 0.0
  %764 = vmatpush1.msra.mxu0 0.0
  %765 = vmatprep.subr.mxu0 0.0
  %766 = vmatpush1.msra.mxu0 0.0
  %767 = vmatprep.subr.mxu0 0.0
  %768 = vmatpush1.msra.mxu0 0.0
  %769 = vmatprep.subr.mxu0 0.0
  %770 = vmatpush1.msra.mxu0 0.0
  %771 = vmatprep.subr.mxu0 0.0
  %772 = vmatpush1.msra.mxu0 0.0
  %773 = vmatprep.subr.mxu0 0.0
  %774 = vmatpush1.msra.mxu0 0.0
  %775 = vmatprep.subr.mxu0 0.0
  %776 = vmatpush1.msra.mxu0 0.0
  %777 = vmatprep.subr.mxu0 0.0
  %778 = vmatpush1.msra.mxu0 0.0
  %779 = vmatprep.subr.mxu0 0.0
  %780 = vmatpush1.msra.mxu0 0.0
  %781 = vmatprep.subr.mxu0 0.0
  %782 = vmatpush1.msra.mxu0 0.0
  %783 = vmatprep.subr.mxu0 0.0
  %784 = vmatpush1.msra.mxu0 0.0
  %785 = vmatprep.subr.mxu0 0.0
  %786 = vmatpush1.msra.mxu0 0.0
  %787 = vmatprep.subr.mxu0 0.0
  %788 = vmatpush1.msra.mxu0 0.0
  %789 = vmatprep.subr.mxu0 0.0
  %790 = vmatpush1.msra.mxu0 0.0
  %791 = vmatprep.mubr.f32.mxu0 0.0
  %792 = vmatmul.mubr.f32.gmra.mrb[0].mxu0 %v726
  %v793 = vpop.f32.mrb[0].mxu0
  %v794 = vadd.f32 0.0, %v793
  %v795 = vpop.f32.mrb[0].mxu0
  %796 = vdwg.mxu0
  %v797 = vadd.f32 %v725, %v794
  %vm798 = vcmask 519168
  %v799 = vsel %vm798, %v505, 0.0
  %800 = vadd.xlane.f32.xlu0 %v799
  %v801 = vpop.xlane.xlu0 %800
  %v802 = vadd.f32 %v801, 0.0
  %v803 = vsel %vm798, %v797, 0.0
  %804 = vadd.xlane.f32.xlu0 %v803
  %v805 = vpop.xlane.xlu0 %804
  %v806 = vadd.f32 %v802, %v805
  %v807 = vrcp.pop 128.0
  %v808 = vmul.f32 %v806, %v807
  %v809 = vsub.f32 %v505, %v808
  %v810 = vmul.f32 %v809, %v809
  %v811 = vsel %vm798, %v810, 0.0
  %812 = vadd.xlane.f32.xlu0 %v811
  %v813 = vpop.xlane.xlu0 %812
  %v814 = vadd.f32 %v813, 0.0
  %v815 = vsub.f32 %v797, %v808
  %v816 = vmul.f32 %v815, %v815
  %v817 = vsel %vm798, %v816, 0.0
  %818 = vadd.xlane.f32.xlu0 %v817
  %v819 = vpop.xlane.xlu0 %818
  %v820 = vadd.f32 %v814, %v819
  %v821 = vmul.f32 %v820, %v807
  %v822 = vadd.f32 %v821, 1e-05
  %v823 = vrsqrt.pop %v822
  %v824 = vmul.f32 %v809, %v823
  %vm825 = vcmp.gt.f32.partialorder %v824, 0.0
  %v826 = vmul.f32 %v824, 0.2
  %v827 = vsel %vm825, %v824, %v826
  %v828 = vmul.f32 %v815, %v823
  %vm829 = vcmp.gt.f32.partialorder %v828, 0.0
  %v830 = vmul.f32 %v828, 0.2
  %v831 = vsel %vm829, %v828, %v830
  %v832 = vld [vmem:[%s2] sm:$0xff]
  %vm833 = vcmask 31744
  %v835 = vsel %vm833, %v832, 0
  %vm837 = vcmask 1043456
  %v839 = vsel %vm837, %v827, 0
  %841 = vmatprep.subr.mxu0 0.0
  %842 = vmatpush1.msra.mxu0 %v839
  %843 = vmatprep.subr.mxu0 0.0
  %844 = vmatpush1.msra.mxu0 0.0
  %845 = vmatprep.subr.mxu0 0.0
  %846 = vmatpush1.msra.mxu0 0.0
  %847 = vmatprep.subr.mxu0 0.0
  %848 = vmatpush1.msra.mxu0 0.0
  %849 = vmatprep.subr.mxu0 0.0
  %850 = vmatpush1.msra.mxu0 0.0
  %851 = vmatprep.subr.mxu0 0.0
  %852 = vmatpush1.msra.mxu0 0.0
  %853 = vmatprep.subr.mxu0 0.0
  %854 = vmatpush1.msra.mxu0 0.0
  %855 = vmatprep.subr.mxu0 0.0
  %856 = vmatpush1.msra.mxu0 0.0
  %857 = vmatprep.subr.mxu0 0.0
  %858 = vmatpush1.msra.mxu0 0.0
  %859 = vmatprep.subr.mxu0 0.0
  %860 = vmatpush1.msra.mxu0 0.0
  %861 = vmatprep.subr.mxu0 0.0
  %862 = vmatpush1.msra.mxu0 0.0
  %863 = vmatprep.subr.mxu0 0.0
  %864 = vmatpush1.msra.mxu0 0.0
  %865 = vmatprep.subr.mxu0 0.0
  %866 = vmatpush1.msra.mxu0 0.0
  %867 = vmatprep.subr.mxu0 0.0
  %868 = vmatpush1.msra.mxu0 0.0
  %869 = vmatprep.subr.mxu0 0.0
  %870 = vmatpush1.msra.mxu0 0.0
  %871 = vmatprep.subr.mxu0 0.0
  %872 = vmatpush1.msra.mxu0 0.0
  %873 = vmatprep.subr.mxu0 0.0
  %874 = vmatpush1.msra.mxu0 0.0
  %875 = vmatprep.subr.mxu0 0.0
  %876 = vmatpush1.msra.mxu0 0.0
  %877 = vmatprep.subr.mxu0 0.0
  %878 = vmatpush1.msra.mxu0 0.0
  %879 = vmatprep.subr.mxu0 0.0
  %880 = vmatpush1.msra.mxu0 0.0
  %881 = vmatprep.subr.mxu0 0.0
  %882 = vmatpush1.msra.mxu0 0.0
  %883 = vmatprep.subr.mxu0 0.0
  %884 = vmatpush1.msra.mxu0 0.0
  %885 = vmatprep.subr.mxu0 0.0
  %886 = vmatpush1.msra.mxu0 0.0
  %887 = vmatprep.subr.mxu0 0.0
  %888 = vmatpush1.msra.mxu0 0.0
  %889 = vmatprep.subr.mxu0 0.0
  %890 = vmatpush1.msra.mxu0 0.0
  %891 = vmatprep.subr.mxu0 0.0
  %892 = vmatpush1.msra.mxu0 0.0
  %893 = vmatprep.subr.mxu0 0.0
  %894 = vmatpush1.msra.mxu0 0.0
  %895 = vmatprep.subr.mxu0 0.0
  %896 = vmatpush1.msra.mxu0 0.0
  %897 = vmatprep.subr.mxu0 0.0
  %898 = vmatpush1.msra.mxu0 0.0
  %899 = vmatprep.subr.mxu0 0.0
  %900 = vmatpush1.msra.mxu0 0.0
  %901 = vmatprep.subr.mxu0 0.0
  %902 = vmatpush1.msra.mxu0 0.0
  %903 = vmatprep.subr.mxu0 0.0
  %904 = vmatpush1.msra.mxu0 0.0
  %905 = vmatprep.mubr.f32.mxu0 0.0
  %906 = vmatmul.mubr.f32.gmra.mrb[0].mxu0 %v835
  %v907 = vpop.f32.mrb[0].mxu0
  %v908 = vadd.f32 0.0, %v907
  %v909 = vpop.f32.mrb[0].mxu0
  %910 = vdwg.mxu0
  %s911 = scalar_lea.vmem %s2, 8
  %v912 = vld [vmem:[%s911] sm:$0xff]
  %v914 = vsel %vm833, %v912, 0
  %916 = vmatprep.subr.mxu0 0.0
  %917 = vmatpush1.msra.mxu0 %v839
  %918 = vmatprep.subr.mxu0 0.0
  %919 = vmatpush1.msra.mxu0 0.0
  %920 = vmatprep.subr.mxu0 0.0
  %921 = vmatpush1.msra.mxu0 0.0
  %922 = vmatprep.subr.mxu0 0.0
  %923 = vmatpush1.msra.mxu0 0.0
  %924 = vmatprep.subr.mxu0 0.0
  %925 = vmatpush1.msra.mxu0 0.0
  %926 = vmatprep.subr.mxu0 0.0
  %927 = vmatpush1.msra.mxu0 0.0
  %928 = vmatprep.subr.mxu0 0.0
  %929 = vmatpush1.msra.mxu0 0.0
  %930 = vmatprep.subr.mxu0 0.0
  %931 = vmatpush1.msra.mxu0 0.0
  %932 = vmatprep.subr.mxu0 0.0
  %933 = vmatpush1.msra.mxu0 0.0
  %934 = vmatprep.subr.mxu0 0.0
  %935 = vmatpush1.msra.mxu0 0.0
  %936 = vmatprep.subr.mxu0 0.0
  %937 = vmatpush1.msra.mxu0 0.0
  %938 = vmatprep.subr.mxu0 0.0
  %939 = vmatpush1.msra.mxu0 0.0
  %940 = vmatprep.subr.mxu0 0.0
  %941 = vmatpush1.msra.mxu0 0.0
  %942 = vmatprep.subr.mxu0 0.0
  %943 = vmatpush1.msra.mxu0 0.0
  %944 = vmatprep.subr.mxu0 0.0
  %945 = vmatpush1.msra.mxu0 0.0
  %946 = vmatprep.subr.mxu0 0.0
  %947 = vmatpush1.msra.mxu0 0.0
  %948 = vmatprep.subr.mxu0 0.0
  %949 = vmatpush1.msra.mxu0 0.0
  %950 = vmatprep.subr.mxu0 0.0
  %951 = vmatpush1.msra.mxu0 0.0
  %952 = vmatprep.subr.mxu0 0.0
  %953 = vmatpush1.msra.mxu0 0.0
  %954 = vmatprep.subr.mxu0 0.0
  %955 = vmatpush1.msra.mxu0 0.0
  %956 = vmatprep.subr.mxu0 0.0
  %957 = vmatpush1.msra.mxu0 0.0
  %958 = vmatprep.subr.mxu0 0.0
  %959 = vmatpush1.msra.mxu0 0.0
  %960 = vmatprep.subr.mxu0 0.0
  %961 = vmatpush1.msra.mxu0 0.0
  %962 = vmatprep.subr.mxu0 0.0
  %963 = vmatpush1.msra.mxu0 0.0
  %964 = vmatprep.subr.mxu0 0.0
  %965 = vmatpush1.msra.mxu0 0.0
  %966 = vmatprep.subr.mxu0 0.0
  %967 = vmatpush1.msra.mxu0 0.0
  %968 = vmatprep.subr.mxu0 0.0
  %969 = vmatpush1.msra.mxu0 0.0
  %970 = vmatprep.subr.mxu0 0.0
  %971 = vmatpush1.msra.mxu0 0.0
  %972 = vmatprep.subr.mxu0 0.0
  %973 = vmatpush1.msra.mxu0 0.0
  %974 = vmatprep.subr.mxu0 0.0
  %975 = vmatpush1.msra.mxu0 0.0
  %976 = vmatprep.subr.mxu0 0.0
  %977 = vmatpush1.msra.mxu0 0.0
  %978 = vmatprep.subr.mxu0 0.0
  %979 = vmatpush1.msra.mxu0 0.0
  %980 = vmatprep.mubr.f32.mxu0 0.0
  %981 = vmatmul.mubr.f32.gmra.mrb[0].mxu0 %v914
  %v982 = vpop.f32.mrb[0].mxu0
  %v983 = vadd.f32 0.0, %v982
  %v984 = vpop.f32.mrb[0].mxu0
  %985 = vdwg.mxu0
  %vm986 = vcmask 523264
  %v988 = vsel %vm986, %v983, 0
  %990 = vmatprep.subr.mxu0 0.0
  %991 = vmatpush1.msra.mxu0 %v105
  %992 = vmatprep.subr.mxu0 0.0
  %993 = vmatpush1.msra.mxu0 %v106
  %994 = vmatprep.subr.mxu0 0.0
  %995 = vmatpush1.msra.mxu0 %v107
  %996 = vmatprep.subr.mxu0 0.0
  %997 = vmatpush1.msra.mxu0 %v108
  %998 = vmatprep.subr.mxu0 0.0
  %999 = vmatpush1.msra.mxu0 %v109
  %1000 = vmatprep.subr.mxu0 0.0
  %1001 = vmatpush1.msra.mxu0 %v110
  %1002 = vmatprep.subr.mxu0 0.0
  %1003 = vmatpush1.msra.mxu0 %v111
  %1004 = vmatprep.subr.mxu0 0.0
  %1005 = vmatpush1.msra.mxu0 %v112
  %1006 = vmatprep.subr.mxu0 0.0
  %1007 = vmatpush1.msra.mxu0 0.0
  %1008 = vmatprep.subr.mxu0 0.0
  %1009 = vmatpush1.msra.mxu0 0.0
  %1010 = vmatprep.subr.mxu0 0.0
  %1011 = vmatpush1.msra.mxu0 0.0
  %1012 = vmatprep.subr.mxu0 0.0
  %1013 = vmatpush1.msra.mxu0 0.0
  %1014 = vmatprep.subr.mxu0 0.0
  %1015 = vmatpush1.msra.mxu0 0.0
  %1016 = vmatprep.subr.mxu0 0.0
  %1017 = vmatpush1.msra.mxu0 0.0
  %1018 = vmatprep.subr.mxu0 0.0
  %1019 = vmatpush1.msra.mxu0 0.0
  %1020 = vmatprep.subr.mxu0 0.0
  %1021 = vmatpush1.msra.mxu0 0.0
  %1022 = vmatprep.subr.mxu0 0.0
  %1023 = vmatpush1.msra.mxu0 0.0
  %1024 = vmatprep.subr.mxu0 0.0
  %1025 = vmatpush1.msra.mxu0 0.0
  %1026 = vmatprep.subr.mxu0 0.0
  %1027 = vmatpush1.msra.mxu0 0.0
  %1028 = vmatprep.subr.mxu0 0.0
  %1029 = vmatpush1.msra.mxu0 0.0
  %1030 = vmatprep.subr.mxu0 0.0
  %1031 = vmatpush1.msra.mxu0 0.0
  %1032 = vmatprep.subr.mxu0 0.0
  %1033 = vmatpush1.msra.mxu0 0.0
  %1034 = vmatprep.subr.mxu0 0.0
  %1035 = vmatpush1.msra.mxu0 0.0
  %1036 = vmatprep.subr.mxu0 0.0
  %1037 = vmatpush1.msra.mxu0 0.0
  %1038 = vmatprep.subr.mxu0 0.0
  %1039 = vmatpush1.msra.mxu0 0.0
  %1040 = vmatprep.subr.mxu0 0.0
  %1041 = vmatpush1.msra.mxu0 0.0
  %1042 = vmatprep.subr.mxu0 0.0
  %1043 = vmatpush1.msra.mxu0 0.0
  %1044 = vmatprep.subr.mxu0 0.0
  %1045 = vmatpush1.msra.mxu0 0.0
  %1046 = vmatprep.subr.mxu0 0.0
  %1047 = vmatpush1.msra.mxu0 0.0
  %1048 = vmatprep.subr.mxu0 0.0
  %1049 = vmatpush1.msra.mxu0 0.0
  %1050 = vmatprep.subr.mxu0 0.0
  %1051 = vmatpush1.msra.mxu0 0.0
  %1052 = vmatprep.subr.mxu0 0.0
  %1053 = vmatpush1.msra.mxu0 0.0
  %1054 = vmatprep.mubr.f32.mxu0 0.0
  %1055 = vmatmul.mubr.f32.gmra.mrb[0].mxu0 %v988
  %v1056 = vpop.f32.mrb[0].mxu0
  %v1057 = vadd.f32 0.0, %v1056
  %v1058 = vpop.f32.mrb[0].mxu0
  %1059 = vdwg.mxu0
  %v1061 = vsel %vm986, %v908, 0
  %1063 = vmatprep.subr.mxu0 0.0
  %1064 = vmatpush1.msra.mxu0 %v73
  %1065 = vmatprep.subr.mxu0 0.0
  %1066 = vmatpush1.msra.mxu0 %v74
  %1067 = vmatprep.subr.mxu0 0.0
  %1068 = vmatpush1.msra.mxu0 %v75
  %1069 = vmatprep.subr.mxu0 0.0
  %1070 = vmatpush1.msra.mxu0 %v76
  %1071 = vmatprep.subr.mxu0 0.0
  %1072 = vmatpush1.msra.mxu0 %v77
  %1073 = vmatprep.subr.mxu0 0.0
  %1074 = vmatpush1.msra.mxu0 %v78
  %1075 = vmatprep.subr.mxu0 0.0
  %1076 = vmatpush1.msra.mxu0 %v79
  %1077 = vmatprep.subr.mxu0 0.0
  %1078 = vmatpush1.msra.mxu0 %v80
  %1079 = vmatprep.subr.mxu0 0.0
  %1080 = vmatpush1.msra.mxu0 0.0
  %1081 = vmatprep.subr.mxu0 0.0
  %1082 = vmatpush1.msra.mxu0 0.0
  %1083 = vmatprep.subr.mxu0 0.0
  %1084 = vmatpush1.msra.mxu0 0.0
  %1085 = vmatprep.subr.mxu0 0.0
  %1086 = vmatpush1.msra.mxu0 0.0
  %1087 = vmatprep.subr.mxu0 0.0
  %1088 = vmatpush1.msra.mxu0 0.0
  %1089 = vmatprep.subr.mxu0 0.0
  %1090 = vmatpush1.msra.mxu0 0.0
  %1091 = vmatprep.subr.mxu0 0.0
  %1092 = vmatpush1.msra.mxu0 0.0
  %1093 = vmatprep.subr.mxu0 0.0
  %1094 = vmatpush1.msra.mxu0 0.0
  %1095 = vmatprep.subr.mxu0 0.0
  %1096 = vmatpush1.msra.mxu0 0.0
  %1097 = vmatprep.subr.mxu0 0.0
  %1098 = vmatpush1.msra.mxu0 0.0
  %1099 = vmatprep.subr.mxu0 0.0
  %1100 = vmatpush1.msra.mxu0 0.0
  %1101 = vmatprep.subr.mxu0 0.0
  %1102 = vmatpush1.msra.mxu0 0.0
  %1103 = vmatprep.subr.mxu0 0.0
  %1104 = vmatpush1.msra.mxu0 0.0
  %1105 = vmatprep.subr.mxu0 0.0
  %1106 = vmatpush1.msra.mxu0 0.0
  %1107 = vmatprep.subr.mxu0 0.0
  %1108 = vmatpush1.msra.mxu0 0.0
  %1109 = vmatprep.subr.mxu0 0.0
  %1110 = vmatpush1.msra.mxu0 0.0
  %1111 = vmatprep.subr.mxu0 0.0
  %1112 = vmatpush1.msra.mxu0 0.0
  %1113 = vmatprep.subr.mxu0 0.0
  %1114 = vmatpush1.msra.mxu0 0.0
  %1115 = vmatprep.subr.mxu0 0.0
  %1116 = vmatpush1.msra.mxu0 0.0
  %1117 = vmatprep.subr.mxu0 0.0
  %1118 = vmatpush1.msra.mxu0 0.0
  %1119 = vmatprep.subr.mxu0 0.0
  %1120 = vmatpush1.msra.mxu0 0.0
  %1121 = vmatprep.subr.mxu0 0.0
  %1122 = vmatpush1.msra.mxu0 0.0
  %1123 = vmatprep.subr.mxu0 0.0
  %1124 = vmatpush1.msra.mxu0 0.0
  %1125 = vmatprep.subr.mxu0 0.0
  %1126 = vmatpush1.msra.mxu0 0.0
  %1127 = vmatprep.mubr.f32.mxu0 0.0
  %1128 = vmatmul.mubr.f32.gmra.mrb[0].mxu0 %v1061
  %v1129 = vpop.f32.mrb[0].mxu0
  %v1130 = vadd.f32 %v1057, %v1129
  %v1131 = vpop.f32.mrb[0].mxu0
  %1132 = vdwg.mxu0
  %s1133 = scalar_lea.vmem %s2, 16
  %v1134 = vld [vmem:[%s1133] sm:$0xff]
  %v1136 = vsel %vm833, %v1134, 0
  %1138 = vmatprep.subr.mxu0 0.0
  %1139 = vmatpush1.msra.mxu0 %v839
  %1140 = vmatprep.subr.mxu0 0.0
  %1141 = vmatpush1.msra.mxu0 0.0
  %1142 = vmatprep.subr.mxu0 0.0
  %1143 = vmatpush1.msra.mxu0 0.0
  %1144 = vmatprep.subr.mxu0 0.0
  %1145 = vmatpush1.msra.mxu0 0.0
  %1146 = vmatprep.subr.mxu0 0.0
  %1147 = vmatpush1.msra.mxu0 0.0
  %1148 = vmatprep.subr.mxu0 0.0
  %1149 = vmatpush1.msra.mxu0 0.0
  %1150 = vmatprep.subr.mxu0 0.0
  %1151 = vmatpush1.msra.mxu0 0.0
  %1152 = vmatprep.subr.mxu0 0.0
  %1153 = vmatpush1.msra.mxu0 0.0
  %1154 = vmatprep.subr.mxu0 0.0
  %1155 = vmatpush1.msra.mxu0 0.0
  %1156 = vmatprep.subr.mxu0 0.0
  %1157 = vmatpush1.msra.mxu0 0.0
  %1158 = vmatprep.subr.mxu0 0.0
  %1159 = vmatpush1.msra.mxu0 0.0
  %1160 = vmatprep.subr.mxu0 0.0
  %1161 = vmatpush1.msra.mxu0 0.0
  %1162 = vmatprep.subr.mxu0 0.0
  %1163 = vmatpush1.msra.mxu0 0.0
  %1164 = vmatprep.subr.mxu0 0.0
  %1165 = vmatpush1.msra.mxu0 0.0
  %1166 = vmatprep.subr.mxu0 0.0
  %1167 = vmatpush1.msra.mxu0 0.0
  %1168 = vmatprep.subr.mxu0 0.0
  %1169 = vmatpush1.msra.mxu0 0.0
  %1170 = vmatprep.subr.mxu0 0.0
  %1171 = vmatpush1.msra.mxu0 0.0
  %1172 = vmatprep.subr.mxu0 0.0
  %1173 = vmatpush1.msra.mxu0 0.0
  %1174 = vmatprep.subr.mxu0 0.0
  %1175 = vmatpush1.msra.mxu0 0.0
  %1176 = vmatprep.subr.mxu0 0.0
  %1177 = vmatpush1.msra.mxu0 0.0
  %1178 = vmatprep.subr.mxu0 0.0
  %1179 = vmatpush1.msra.mxu0 0.0
  %1180 = vmatprep.subr.mxu0 0.0
  %1181 = vmatpush1.msra.mxu0 0.0
  %1182 = vmatprep.subr.mxu0 0.0
  %1183 = vmatpush1.msra.mxu0 0.0
  %1184 = vmatprep.subr.mxu0 0.0
  %1185 = vmatpush1.msra.mxu0 0.0
  %1186 = vmatprep.subr.mxu0 0.0
  %1187 = vmatpush1.msra.mxu0 0.0
  %1188 = vmatprep.subr.mxu0 0.0
  %1189 = vmatpush1.msra.mxu0 0.0
  %1190 = vmatprep.subr.mxu0 0.0
  %1191 = vmatpush1.msra.mxu0 0.0
  %1192 = vmatprep.subr.mxu0 0.0
  %1193 = vmatpush1.msra.mxu0 0.0
  %1194 = vmatprep.subr.mxu0 0.0
  %1195 = vmatpush1.msra.mxu0 0.0
  %1196 = vmatprep.subr.mxu0 0.0
  %1197 = vmatpush1.msra.mxu0 0.0
  %1198 = vmatprep.subr.mxu0 0.0
  %1199 = vmatpush1.msra.mxu0 0.0
  %1200 = vmatprep.subr.mxu0 0.0
  %1201 = vmatpush1.msra.mxu0 0.0
  %1202 = vmatprep.mubr.f32.mxu0 0.0
  %1203 = vmatmul.mubr.f32.gmra.mrb[0].mxu0 %v1136
  %v1204 = vpop.f32.mrb[0].mxu0
  %v1205 = vadd.f32 0.0, %v1204
  %v1206 = vpop.f32.mrb[0].mxu0
  %1207 = vdwg.mxu0
  %v1209 = vsel %vm986, %v1205, 0
  %1211 = vmatprep.subr.mxu0 0.0
  %1212 = vmatpush1.msra.mxu0 %v138
  %1213 = vmatprep.subr.mxu0 0.0
  %1214 = vmatpush1.msra.mxu0 %v139
  %1215 = vmatprep.subr.mxu0 0.0
  %1216 = vmatpush1.msra.mxu0 %v140
  %1217 = vmatprep.subr.mxu0 0.0
  %1218 = vmatpush1.msra.mxu0 %v141
  %1219 = vmatprep.subr.mxu0 0.0
  %1220 = vmatpush1.msra.mxu0 %v142
  %1221 = vmatprep.subr.mxu0 0.0
  %1222 = vmatpush1.msra.mxu0 %v143
  %1223 = vmatprep.subr.mxu0 0.0
  %1224 = vmatpush1.msra.mxu0 %v144
  %1225 = vmatprep.subr.mxu0 0.0
  %1226 = vmatpush1.msra.mxu0 %v145
  %1227 = vmatprep.subr.mxu0 0.0
  %1228 = vmatpush1.msra.mxu0 0.0
  %1229 = vmatprep.subr.mxu0 0.0
  %1230 = vmatpush1.msra.mxu0 0.0
  %1231 = vmatprep.subr.mxu0 0.0
  %1232 = vmatpush1.msra.mxu0 0.0
  %1233 = vmatprep.subr.mxu0 0.0
  %1234 = vmatpush1.msra.mxu0 0.0
  %1235 = vmatprep.subr.mxu0 0.0
  %1236 = vmatpush1.msra.mxu0 0.0
  %1237 = vmatprep.subr.mxu0 0.0
  %1238 = vmatpush1.msra.mxu0 0.0
  %1239 = vmatprep.subr.mxu0 0.0
  %1240 = vmatpush1.msra.mxu0 0.0
  %1241 = vmatprep.subr.mxu0 0.0
  %1242 = vmatpush1.msra.mxu0 0.0
  %1243 = vmatprep.subr.mxu0 0.0
  %1244 = vmatpush1.msra.mxu0 0.0
  %1245 = vmatprep.subr.mxu0 0.0
  %1246 = vmatpush1.msra.mxu0 0.0
  %1247 = vmatprep.subr.mxu0 0.0
  %1248 = vmatpush1.msra.mxu0 0.0
  %1249 = vmatprep.subr.mxu0 0.0
  %1250 = vmatpush1.msra.mxu0 0.0
  %1251 = vmatprep.subr.mxu0 0.0
  %1252 = vmatpush1.msra.mxu0 0.0
  %1253 = vmatprep.subr.mxu0 0.0
  %1254 = vmatpush1.msra.mxu0 0.0
  %1255 = vmatprep.subr.mxu0 0.0
  %1256 = vmatpush1.msra.mxu0 0.0
  %1257 = vmatprep.subr.mxu0 0.0
  %1258 = vmatpush1.msra.mxu0 0.0
  %1259 = vmatprep.subr.mxu0 0.0
  %1260 = vmatpush1.msra.mxu0 0.0
  %1261 = vmatprep.subr.mxu0 0.0
  %1262 = vmatpush1.msra.mxu0 0.0
  %1263 = vmatprep.subr.mxu0 0.0
  %1264 = vmatpush1.msra.mxu0 0.0
  %1265 = vmatprep.subr.mxu0 0.0
  %1266 = vmatpush1.msra.mxu0 0.0
  %1267 = vmatprep.subr.mxu0 0.0
  %1268 = vmatpush1.msra.mxu0 0.0
  %1269 = vmatprep.subr.mxu0 0.0
  %1270 = vmatpush1.msra.mxu0 0.0
  %1271 = vmatprep.subr.mxu0 0.0
  %1272 = vmatpush1.msra.mxu0 0.0
  %1273 = vmatprep.subr.mxu0 0.0
  %1274 = vmatpush1.msra.mxu0 0.0
  %1275 = vmatprep.mubr.f32.mxu0 0.0
  %1276 = vmatmul.mubr.f32.gmra.mrb[0].mxu0 %v1209
  %v1277 = vpop.f32.mrb[0].mxu0
  %v1278 = vadd.f32 0.0, %v1277
  %v1279 = vpop.f32.mrb[0].mxu0
  %1280 = vdwg.mxu0
  %v1281 = vadd.f32 %v1130, %v1278
  %s1282 = scalar_lea.vmem %s2, 24
  %v1283 = vld [vmem:[%s1282] sm:$0xff]
  %v1285 = vsel %vm833, %v1283, 0
  %1287 = vmatprep.subr.mxu0 0.0
  %1288 = vmatpush1.msra.mxu0 %v839
  %1289 = vmatprep.subr.mxu0 0.0
  %1290 = vmatpush1.msra.mxu0 0.0
  %1291 = vmatprep.subr.mxu0 0.0
  %1292 = vmatpush1.msra.mxu0 0.0
  %1293 = vmatprep.subr.mxu0 0.0
  %1294 = vmatpush1.msra.mxu0 0.0
  %1295 = vmatprep.subr.mxu0 0.0
  %1296 = vmatpush1.msra.mxu0 0.0
  %1297 = vmatprep.subr.mxu0 0.0
  %1298 = vmatpush1.msra.mxu0 0.0
  %1299 = vmatprep.subr.mxu0 0.0
  %1300 = vmatpush1.msra.mxu0 0.0
  %1301 = vmatprep.subr.mxu0 0.0
  %1302 = vmatpush1.msra.mxu0 0.0
  %1303 = vmatprep.subr.mxu0 0.0
  %1304 = vmatpush1.msra.mxu0 0.0
  %1305 = vmatprep.subr.mxu0 0.0
  %1306 = vmatpush1.msra.mxu0 0.0
  %1307 = vmatprep.subr.mxu0 0.0
  %1308 = vmatpush1.msra.mxu0 0.0
  %1309 = vmatprep.subr.mxu0 0.0
  %1310 = vmatpush1.msra.mxu0 0.0
  %1311 = vmatprep.subr.mxu0 0.0
  %1312 = vmatpush1.msra.mxu0 0.0
  %1313 = vmatprep.subr.mxu0 0.0
  %1314 = vmatpush1.msra.mxu0 0.0
  %1315 = vmatprep.subr.mxu0 0.0
  %1316 = vmatpush1.msra.mxu0 0.0
  %1317 = vmatprep.subr.mxu0 0.0
  %1318 = vmatpush1.msra.mxu0 0.0
  %1319 = vmatprep.subr.mxu0 0.0
  %1320 = vmatpush1.msra.mxu0 0.0
  %1321 = vmatprep.subr.mxu0 0.0
  %1322 = vmatpush1.msra.mxu0 0.0
  %1323 = vmatprep.subr.mxu0 0.0
  %1324 = vmatpush1.msra.mxu0 0.0
  %1325 = vmatprep.subr.mxu0 0.0
  %1326 = vmatpush1.msra.mxu0 0.0
  %1327 = vmatprep.subr.mxu0 0.0
  %1328 = vmatpush1.msra.mxu0 0.0
  %1329 = vmatprep.subr.mxu0 0.0
  %1330 = vmatpush1.msra.mxu0 0.0
  %1331 = vmatprep.subr.mxu0 0.0
  %1332 = vmatpush1.msra.mxu0 0.0
  %1333 = vmatprep.subr.mxu0 0.0
  %1334 = vmatpush1.msra.mxu0 0.0
  %1335 = vmatprep.subr.mxu0 0.0
  %1336 = vmatpush1.msra.mxu0 0.0
  %1337 = vmatprep.subr.mxu0 0.0
  %1338 = vmatpush1.msra.mxu0 0.0
  %1339 = vmatprep.subr.mxu0 0.0
  %1340 = vmatpush1.msra.mxu0 0.0
  %1341 = vmatprep.subr.mxu0 0.0
  %1342 = vmatpush1.msra.mxu0 0.0
  %1343 = vmatprep.subr.mxu0 0.0
  %1344 = vmatpush1.msra.mxu0 0.0
  %1345 = vmatprep.subr.mxu0 0.0
  %1346 = vmatpush1.msra.mxu0 0.0
  %1347 = vmatprep.subr.mxu0 0.0
  %1348 = vmatpush1.msra.mxu0 0.0
  %1349 = vmatprep.subr.mxu0 0.0
  %1350 = vmatpush1.msra.mxu0 0.0
  %1351 = vmatprep.mubr.f32.mxu0 0.0
  %1352 = vmatmul.mubr.f32.gmra.mrb[0].mxu0 %v1285
  %v1353 = vpop.f32.mrb[0].mxu0
  %v1354 = vadd.f32 0.0, %v1353
  %v1355 = vpop.f32.mrb[0].mxu0
  %1356 = vdwg.mxu0
  %v1358 = vsel %vm986, %v1354, 0
  %1360 = vmatprep.subr.mxu0 0.0
  %1361 = vmatpush1.msra.mxu0 %v171
  %1362 = vmatprep.subr.mxu0 0.0
  %1363 = vmatpush1.msra.mxu0 %v172
  %1364 = vmatprep.subr.mxu0 0.0
  %1365 = vmatpush1.msra.mxu0 %v173
  %1366 = vmatprep.subr.mxu0 0.0
  %1367 = vmatpush1.msra.mxu0 %v174
  %1368 = vmatprep.subr.mxu0 0.0
  %1369 = vmatpush1.msra.mxu0 %v175
  %1370 = vmatprep.subr.mxu0 0.0
  %1371 = vmatpush1.msra.mxu0 %v176
  %1372 = vmatprep.subr.mxu0 0.0
  %1373 = vmatpush1.msra.mxu0 %v177
  %1374 = vmatprep.subr.mxu0 0.0
  %1375 = vmatpush1.msra.mxu0 %v178
  %1376 = vmatprep.subr.mxu0 0.0
  %1377 = vmatpush1.msra.mxu0 0.0
  %1378 = vmatprep.subr.mxu0 0.0
  %1379 = vmatpush1.msra.mxu0 0.0
  %1380 = vmatprep.subr.mxu0 0.0
  %1381 = vmatpush1.msra.mxu0 0.0
  %1382 = vmatprep.subr.mxu0 0.0
  %1383 = vmatpush1.msra.mxu0 0.0
  %1384 = vmatprep.subr.mxu0 0.0
  %1385 = vmatpush1.msra.mxu0 0.0
  %1386 = vmatprep.subr.mxu0 0.0
  %1387 = vmatpush1.msra.mxu0 0.0
  %1388 = vmatprep.subr.mxu0 0.0
  %1389 = vmatpush1.msra.mxu0 0.0
  %1390 = vmatprep.subr.mxu0 0.0
  %1391 = vmatpush1.msra.mxu0 0.0
  %1392 = vmatprep.subr.mxu0 0.0
  %1393 = vmatpush1.msra.mxu0 0.0
  %1394 = vmatprep.subr.mxu0 0.0
  %1395 = vmatpush1.msra.mxu0 0.0
  %1396 = vmatprep.subr.mxu0 0.0
  %1397 = vmatpush1.msra.mxu0 0.0
  %1398 = vmatprep.subr.mxu0 0.0
  %1399 = vmatpush1.msra.mxu0 0.0
  %1400 = vmatprep.subr.mxu0 0.0
  %1401 = vmatpush1.msra.mxu0 0.0
  %1402 = vmatprep.subr.mxu0 0.0
  %1403 = vmatpush1.msra.mxu0 0.0
  %1404 = vmatprep.subr.mxu0 0.0
  %1405 = vmatpush1.msra.mxu0 0.0
  %1406 = vmatprep.subr.mxu0 0.0
  %1407 = vmatpush1.msra.mxu0 0.0
  %1408 = vmatprep.subr.mxu0 0.0
  %1409 = vmatpush1.msra.mxu0 0.0
  %1410 = vmatprep.subr.mxu0 0.0
  %1411 = vmatpush1.msra.mxu0 0.0
  %1412 = vmatprep.subr.mxu0 0.0
  %1413 = vmatpush1.msra.mxu0 0.0
  %1414 = vmatprep.subr.mxu0 0.0
  %1415 = vmatpush1.msra.mxu0 0.0
  %1416 = vmatprep.subr.mxu0 0.0
  %1417 = vmatpush1.msra.mxu0 0.0
  %1418 = vmatprep.subr.mxu0 0.0
  %1419 = vmatpush1.msra.mxu0 0.0
  %1420 = vmatprep.subr.mxu0 0.0
  %1421 = vmatpush1.msra.mxu0 0.0
  %1422 = vmatprep.subr.mxu0 0.0
  %1423 = vmatpush1.msra.mxu0 0.0
  %1424 = vmatprep.mubr.f32.mxu0 0.0
  %1425 = vmatmul.mubr.f32.gmra.mrb[0].mxu0 %v1358
  %v1426 = vpop.f32.mrb[0].mxu0
  %v1427 = vadd.f32 0.0, %v1426
  %v1428 = vpop.f32.mrb[0].mxu0
  %1429 = vdwg.mxu0
  %v1430 = vadd.f32 %v1281, %v1427
  %v1432 = vsel %vm837, %v831, 0
  %1434 = vmatprep.subr.mxu0 0.0
  %1435 = vmatpush1.msra.mxu0 %v1432
  %1436 = vmatprep.subr.mxu0 0.0
  %1437 = vmatpush1.msra.mxu0 0.0
  %1438 = vmatprep.subr.mxu0 0.0
  %1439 = vmatpush1.msra.mxu0 0.0
  %1440 = vmatprep.subr.mxu0 0.0
  %1441 = vmatpush1.msra.mxu0 0.0
  %1442 = vmatprep.subr.mxu0 0.0
  %1443 = vmatpush1.msra.mxu0 0.0
  %1444 = vmatprep.subr.mxu0 0.0
  %1445 = vmatpush1.msra.mxu0 0.0
  %1446 = vmatprep.subr.mxu0 0.0
  %1447 = vmatpush1.msra.mxu0 0.0
  %1448 = vmatprep.subr.mxu0 0.0
  %1449 = vmatpush1.msra.mxu0 0.0
  %1450 = vmatprep.subr.mxu0 0.0
  %1451 = vmatpush1.msra.mxu0 0.0
  %1452 = vmatprep.subr.mxu0 0.0
  %1453 = vmatpush1.msra.mxu0 0.0
  %1454 = vmatprep.subr.mxu0 0.0
  %1455 = vmatpush1.msra.mxu0 0.0
  %1456 = vmatprep.subr.mxu0 0.0
  %1457 = vmatpush1.msra.mxu0 0.0
  %1458 = vmatprep.subr.mxu0 0.0
  %1459 = vmatpush1.msra.mxu0 0.0
  %1460 = vmatprep.subr.mxu0 0.0
  %1461 = vmatpush1.msra.mxu0 0.0
  %1462 = vmatprep.subr.mxu0 0.0
  %1463 = vmatpush1.msra.mxu0 0.0
  %1464 = vmatprep.subr.mxu0 0.0
  %1465 = vmatpush1.msra.mxu0 0.0
  %1466 = vmatprep.subr.mxu0 0.0
  %1467 = vmatpush1.msra.mxu0 0.0
  %1468 = vmatprep.subr.mxu0 0.0
  %1469 = vmatpush1.msra.mxu0 0.0
  %1470 = vmatprep.subr.mxu0 0.0
  %1471 = vmatpush1.msra.mxu0 0.0
  %1472 = vmatprep.subr.mxu0 0.0
  %1473 = vmatpush1.msra.mxu0 0.0
  %1474 = vmatprep.subr.mxu0 0.0
  %1475 = vmatpush1.msra.mxu0 0.0
  %1476 = vmatprep.subr.mxu0 0.0
  %1477 = vmatpush1.msra.mxu0 0.0
  %1478 = vmatprep.subr.mxu0 0.0
  %1479 = vmatpush1.msra.mxu0 0.0
  %1480 = vmatprep.subr.mxu0 0.0
  %1481 = vmatpush1.msra.mxu0 0.0
  %1482 = vmatprep.subr.mxu0 0.0
  %1483 = vmatpush1.msra.mxu0 0.0
  %1484 = vmatprep.subr.mxu0 0.0
  %1485 = vmatpush1.msra.mxu0 0.0
  %1486 = vmatprep.subr.mxu0 0.0
  %1487 = vmatpush1.msra.mxu0 0.0
  %1488 = vmatprep.subr.mxu0 0.0
  %1489 = vmatpush1.msra.mxu0 0.0
  %1490 = vmatprep.subr.mxu0 0.0
  %1491 = vmatpush1.msra.mxu0 0.0
  %1492 = vmatprep.subr.mxu0 0.0
  %1493 = vmatpush1.msra.mxu0 0.0
  %1494 = vmatprep.subr.mxu0 0.0
  %1495 = vmatpush1.msra.mxu0 0.0
  %1496 = vmatprep.subr.mxu0 0.0
  %1497 = vmatpush1.msra.mxu0 0.0
  %1498 = vmatprep.mubr.f32.mxu0 0.0
  %1499 = vmatmul.mubr.f32.gmra.mrb[0].mxu0 %v835
  %v1500 = vpop.f32.mrb[0].mxu0
  %v1501 = vadd.f32 0.0, %v1500
  %v1502 = vpop.f32.mrb[0].mxu0
  %1503 = vdwg.mxu0
  %1504 = vmatprep.subr.mxu0 0.0
  %1505 = vmatpush1.msra.mxu0 %v1432
  %1506 = vmatprep.subr.mxu0 0.0
  %1507 = vmatpush1.msra.mxu0 0.0
  %1508 = vmatprep.subr.mxu0 0.0
  %1509 = vmatpush1.msra.mxu0 0.0
  %1510 = vmatprep.subr.mxu0 0.0
  %1511 = vmatpush1.msra.mxu0 0.0
  %1512 = vmatprep.subr.mxu0 0.0
  %1513 = vmatpush1.msra.mxu0 0.0
  %1514 = vmatprep.subr.mxu0 0.0
  %1515 = vmatpush1.msra.mxu0 0.0
  %1516 = vmatprep.subr.mxu0 0.0
  %1517 = vmatpush1.msra.mxu0 0.0
  %1518 = vmatprep.subr.mxu0 0.0
  %1519 = vmatpush1.msra.mxu0 0.0
  %1520 = vmatprep.subr.mxu0 0.0
  %1521 = vmatpush1.msra.mxu0 0.0
  %1522 = vmatprep.subr.mxu0 0.0
  %1523 = vmatpush1.msra.mxu0 0.0
  %1524 = vmatprep.subr.mxu0 0.0
  %1525 = vmatpush1.msra.mxu0 0.0
  %1526 = vmatprep.subr.mxu0 0.0
  %1527 = vmatpush1.msra.mxu0 0.0
  %1528 = vmatprep.subr.mxu0 0.0
  %1529 = vmatpush1.msra.mxu0 0.0
  %1530 = vmatprep.subr.mxu0 0.0
  %1531 = vmatpush1.msra.mxu0 0.0
  %1532 = vmatprep.subr.mxu0 0.0
  %1533 = vmatpush1.msra.mxu0 0.0
  %1534 = vmatprep.subr.mxu0 0.0
  %1535 = vmatpush1.msra.mxu0 0.0
  %1536 = vmatprep.subr.mxu0 0.0
  %1537 = vmatpush1.msra.mxu0 0.0
  %1538 = vmatprep.subr.mxu0 0.0
  %1539 = vmatpush1.msra.mxu0 0.0
  %1540 = vmatprep.subr.mxu0 0.0
  %1541 = vmatpush1.msra.mxu0 0.0
  %1542 = vmatprep.subr.mxu0 0.0
  %1543 = vmatpush1.msra.mxu0 0.0
  %1544 = vmatprep.subr.mxu0 0.0
  %1545 = vmatpush1.msra.mxu0 0.0
  %1546 = vmatprep.subr.mxu0 0.0
  %1547 = vmatpush1.msra.mxu0 0.0
  %1548 = vmatprep.subr.mxu0 0.0
  %1549 = vmatpush1.msra.mxu0 0.0
  %1550 = vmatprep.subr.mxu0 0.0
  %1551 = vmatpush1.msra.mxu0 0.0
  %1552 = vmatprep.subr.mxu0 0.0
  %1553 = vmatpush1.msra.mxu0 0.0
  %1554 = vmatprep.subr.mxu0 0.0
  %1555 = vmatpush1.msra.mxu0 0.0
  %1556 = vmatprep.subr.mxu0 0.0
  %1557 = vmatpush1.msra.mxu0 0.0
  %1558 = vmatprep.subr.mxu0 0.0
  %1559 = vmatpush1.msra.mxu0 0.0
  %1560 = vmatprep.subr.mxu0 0.0
  %1561 = vmatpush1.msra.mxu0 0.0
  %1562 = vmatprep.subr.mxu0 0.0
  %1563 = vmatpush1.msra.mxu0 0.0
  %1564 = vmatprep.subr.mxu0 0.0
  %1565 = vmatpush1.msra.mxu0 0.0
  %1566 = vmatprep.subr.mxu0 0.0
  %1567 = vmatpush1.msra.mxu0 0.0
  %1568 = vmatprep.mubr.f32.mxu0 0.0
  %1569 = vmatmul.mubr.f32.gmra.mrb[0].mxu0 %v914
  %v1570 = vpop.f32.mrb[0].mxu0
  %v1571 = vadd.f32 0.0, %v1570
  %v1572 = vpop.f32.mrb[0].mxu0
  %1573 = vdwg.mxu0
  %v1575 = vsel %vm986, %v1571, 0
  %1577 = vmatprep.subr.mxu0 0.0
  %1578 = vmatpush1.msra.mxu0 %v105
  %1579 = vmatprep.subr.mxu0 0.0
  %1580 = vmatpush1.msra.mxu0 %v106
  %1581 = vmatprep.subr.mxu0 0.0
  %1582 = vmatpush1.msra.mxu0 %v107
  %1583 = vmatprep.subr.mxu0 0.0
  %1584 = vmatpush1.msra.mxu0 %v108
  %1585 = vmatprep.subr.mxu0 0.0
  %1586 = vmatpush1.msra.mxu0 %v109
  %1587 = vmatprep.subr.mxu0 0.0
  %1588 = vmatpush1.msra.mxu0 %v110
  %1589 = vmatprep.subr.mxu0 0.0
  %1590 = vmatpush1.msra.mxu0 %v111
  %1591 = vmatprep.subr.mxu0 0.0
  %1592 = vmatpush1.msra.mxu0 %v112
  %1593 = vmatprep.subr.mxu0 0.0
  %1594 = vmatpush1.msra.mxu0 0.0
  %1595 = vmatprep.subr.mxu0 0.0
  %1596 = vmatpush1.msra.mxu0 0.0
  %1597 = vmatprep.subr.mxu0 0.0
  %1598 = vmatpush1.msra.mxu0 0.0
  %1599 = vmatprep.subr.mxu0 0.0
  %1600 = vmatpush1.msra.mxu0 0.0
  %1601 = vmatprep.subr.mxu0 0.0
  %1602 = vmatpush1.msra.mxu0 0.0
  %1603 = vmatprep.subr.mxu0 0.0
  %1604 = vmatpush1.msra.mxu0 0.0
  %1605 = vmatprep.subr.mxu0 0.0
  %1606 = vmatpush1.msra.mxu0 0.0
  %1607 = vmatprep.subr.mxu0 0.0
  %1608 = vmatpush1.msra.mxu0 0.0
  %1609 = vmatprep.subr.mxu0 0.0
  %1610 = vmatpush1.msra.mxu0 0.0
  %1611 = vmatprep.subr.mxu0 0.0
  %1612 = vmatpush1.msra.mxu0 0.0
  %1613 = vmatprep.subr.mxu0 0.0
  %1614 = vmatpush1.msra.mxu0 0.0
  %1615 = vmatprep.subr.mxu0 0.0
  %1616 = vmatpush1.msra.mxu0 0.0
  %1617 = vmatprep.subr.mxu0 0.0
  %1618 = vmatpush1.msra.mxu0 0.0
  %1619 = vmatprep.subr.mxu0 0.0
  %1620 = vmatpush1.msra.mxu0 0.0
  %1621 = vmatprep.subr.mxu0 0.0
  %1622 = vmatpush1.msra.mxu0 0.0
  %1623 = vmatprep.subr.mxu0 0.0
  %1624 = vmatpush1.msra.mxu0 0.0
  %1625 = vmatprep.subr.mxu0 0.0
  %1626 = vmatpush1.msra.mxu0 0.0
  %1627 = vmatprep.subr.mxu0 0.0
  %1628 = vmatpush1.msra.mxu0 0.0
  %1629 = vmatprep.subr.mxu0 0.0
  %1630 = vmatpush1.msra.mxu0 0.0
  %1631 = vmatprep.subr.mxu0 0.0
  %1632 = vmatpush1.msra.mxu0 0.0
  %1633 = vmatprep.subr.mxu0 0.0
  %1634 = vmatpush1.msra.mxu0 0.0
  %1635 = vmatprep.subr.mxu0 0.0
  %1636 = vmatpush1.msra.mxu0 0.0
  %1637 = vmatprep.subr.mxu0 0.0
  %1638 = vmatpush1.msra.mxu0 0.0
  %1639 = vmatprep.subr.mxu0 0.0
  %1640 = vmatpush1.msra.mxu0 0.0
  %1641 = vmatprep.mubr.f32.mxu0 0.0
  %1642 = vmatmul.mubr.f32.gmra.mrb[0].mxu0 %v1575
  %v1643 = vpop.f32.mrb[0].mxu0
  %v1644 = vadd.f32 0.0, %v1643
  %v1645 = vpop.f32.mrb[0].mxu0
  %1646 = vdwg.mxu0
  %v1648 = vsel %vm986, %v1501, 0
  %1650 = vmatprep.subr.mxu0 0.0
  %1651 = vmatpush1.msra.mxu0 %v73
  %1652 = vmatprep.subr.mxu0 0.0
  %1653 = vmatpush1.msra.mxu0 %v74
  %1654 = vmatprep.subr.mxu0 0.0
  %1655 = vmatpush1.msra.mxu0 %v75
  %1656 = vmatprep.subr.mxu0 0.0
  %1657 = vmatpush1.msra.mxu0 %v76
  %1658 = vmatprep.subr.mxu0 0.0
  %1659 = vmatpush1.msra.mxu0 %v77
  %1660 = vmatprep.subr.mxu0 0.0
  %1661 = vmatpush1.msra.mxu0 %v78
  %1662 = vmatprep.subr.mxu0 0.0
  %1663 = vmatpush1.msra.mxu0 %v79
  %1664 = vmatprep.subr.mxu0 0.0
  %1665 = vmatpush1.msra.mxu0 %v80
  %1666 = vmatprep.subr.mxu0 0.0
  %1667 = vmatpush1.msra.mxu0 0.0
  %1668 = vmatprep.subr.mxu0 0.0
  %1669 = vmatpush1.msra.mxu0 0.0
  %1670 = vmatprep.subr.mxu0 0.0
  %1671 = vmatpush1.msra.mxu0 0.0
  %1672 = vmatprep.subr.mxu0 0.0
  %1673 = vmatpush1.msra.mxu0 0.0
  %1674 = vmatprep.subr.mxu0 0.0
  %1675 = vmatpush1.msra.mxu0 0.0
  %1676 = vmatprep.subr.mxu0 0.0
  %1677 = vmatpush1.msra.mxu0 0.0
  %1678 = vmatprep.subr.mxu0 0.0
  %1679 = vmatpush1.msra.mxu0 0.0
  %1680 = vmatprep.subr.mxu0 0.0
  %1681 = vmatpush1.msra.mxu0 0.0
  %1682 = vmatprep.subr.mxu0 0.0
  %1683 = vmatpush1.msra.mxu0 0.0
  %1684 = vmatprep.subr.mxu0 0.0
  %1685 = vmatpush1.msra.mxu0 0.0
  %1686 = vmatprep.subr.mxu0 0.0
  %1687 = vmatpush1.msra.mxu0 0.0
  %1688 = vmatprep.subr.mxu0 0.0
  %1689 = vmatpush1.msra.mxu0 0.0
  %1690 = vmatprep.subr.mxu0 0.0
  %1691 = vmatpush1.msra.mxu0 0.0
  %1692 = vmatprep.subr.mxu0 0.0
  %1693 = vmatpush1.msra.mxu0 0.0
  %1694 = vmatprep.subr.mxu0 0.0
  %1695 = vmatpush1.msra.mxu0 0.0
  %1696 = vmatprep.subr.mxu0 0.0
  %1697 = vmatpush1.msra.mxu0 0.0
  %1698 = vmatprep.subr.mxu0 0.0
  %1699 = vmatpush1.msra.mxu0 0.0
  %1700 = vmatprep.subr.mxu0 0.0
  %1701 = vmatpush1.msra.mxu0 0.0
  %1702 = vmatprep.subr.mxu0 0.0
  %1703 = vmatpush1.msra.mxu0 0.0
  %1704 = vmatprep.subr.mxu0 0.0
  %1705 = vmatpush1.msra.mxu0 0.0
  %1706 = vmatprep.subr.mxu0 0.0
  %1707 = vmatpush1.msra.mxu0 0.0
  %1708 = vmatprep.subr.mxu0 0.0
  %1709 = vmatpush1.msra.mxu0 0.0
  %1710 = vmatprep.subr.mxu0 0.0
  %1711 = vmatpush1.msra.mxu0 0.0
  %1712 = vmatprep.subr.mxu0 0.0
  %1713 = vmatpush1.msra.mxu0 0.0
  %1714 = vmatprep.mubr.f32.mxu0 0.0
  %1715 = vmatmul.mubr.f32.gmra.mrb[0].mxu0 %v1648
  %v1716 = vpop.f32.mrb[0].mxu0
  %v1717 = vadd.f32 %v1644, %v1716
  %v1718 = vpop.f32.mrb[0].mxu0
  %1719 = vdwg.mxu0
  %1720 = vmatprep.subr.mxu0 0.0
  %1721 = vmatpush1.msra.mxu0 %v1432
  %1722 = vmatprep.subr.mxu0 0.0
  %1723 = vmatpush1.msra.mxu0 0.0
  %1724 = vmatprep.subr.mxu0 0.0
  %1725 = vmatpush1.msra.mxu0 0.0
  %1726 = vmatprep.subr.mxu0 0.0
  %1727 = vmatpush1.msra.mxu0 0.0
  %1728 = vmatprep.subr.mxu0 0.0
  %1729 = vmatpush1.msra.mxu0 0.0
  %1730 = vmatprep.subr.mxu0 0.0
  %1731 = vmatpush1.msra.mxu0 0.0
  %1732 = vmatprep.subr.mxu0 0.0
  %1733 = vmatpush1.msra.mxu0 0.0
  %1734 = vmatprep.subr.mxu0 0.0
  %1735 = vmatpush1.msra.mxu0 0.0
  %1736 = vmatprep.subr.mxu0 0.0
  %1737 = vmatpush1.msra.mxu0 0.0
  %1738 = vmatprep.subr.mxu0 0.0
  %1739 = vmatpush1.msra.mxu0 0.0
  %1740 = vmatprep.subr.mxu0 0.0
  %1741 = vmatpush1.msra.mxu0 0.0
  %1742 = vmatprep.subr.mxu0 0.0
  %1743 = vmatpush1.msra.mxu0 0.0
  %1744 = vmatprep.subr.mxu0 0.0
  %1745 = vmatpush1.msra.mxu0 0.0
  %1746 = vmatprep.subr.mxu0 0.0
  %1747 = vmatpush1.msra.mxu0 0.0
  %1748 = vmatprep.subr.mxu0 0.0
  %1749 = vmatpush1.msra.mxu0 0.0
  %1750 = vmatprep.subr.mxu0 0.0
  %1751 = vmatpush1.msra.mxu0 0.0
  %1752 = vmatprep.subr.mxu0 0.0
  %1753 = vmatpush1.msra.mxu0 0.0
  %1754 = vmatprep.subr.mxu0 0.0
  %1755 = vmatpush1.msra.mxu0 0.0
  %1756 = vmatprep.subr.mxu0 0.0
  %1757 = vmatpush1.msra.mxu0 0.0
  %1758 = vmatprep.subr.mxu0 0.0
  %1759 = vmatpush1.msra.mxu0 0.0
  %1760 = vmatprep.subr.mxu0 0.0
  %1761 = vmatpush1.msra.mxu0 0.0
  %1762 = vmatprep.subr.mxu0 0.0
  %1763 = vmatpush1.msra.mxu0 0.0
  %1764 = vmatprep.subr.mxu0 0.0
  %1765 = vmatpush1.msra.mxu0 0.0
  %1766 = vmatprep.subr.mxu0 0.0
  %1767 = vmatpush1.msra.mxu0 0.0
  %1768 = vmatprep.subr.mxu0 0.0
  %1769 = vmatpush1.msra.mxu0 0.0
  %1770 = vmatprep.subr.mxu0 0.0
  %1771 = vmatpush1.msra.mxu0 0.0
  %1772 = vmatprep.subr.mxu0 0.0
  %1773 = vmatpush1.msra.mxu0 0.0
  %1774 = vmatprep.subr.mxu0 0.0
  %1775 = vmatpush1.msra.mxu0 0.0
  %1776 = vmatprep.subr.mxu0 0.0
  %1777 = vmatpush1.msra.mxu0 0.0
  %1778 = vmatprep.subr.mxu0 0.0
  %1779 = vmatpush1.msra.mxu0 0.0
  %1780 = vmatprep.subr.mxu0 0.0
  %1781 = vmatpush1.msra.mxu0 0.0
  %1782 = vmatprep.subr.mxu0 0.0
  %1783 = vmatpush1.msra.mxu0 0.0
  %1784 = vmatprep.mubr.f32.mxu0 0.0
  %1785 = vmatmul.mubr.f32.gmra.mrb[0].mxu0 %v1136
  %v1786 = vpop.f32.mrb[0].mxu0
  %v1787 = vadd.f32 0.0, %v1786
  %v1788 = vpop.f32.mrb[0].mxu0
  %1789 = vdwg.mxu0
  %v1791 = vsel %vm986, %v1787, 0
  %1793 = vmatprep.subr.mxu0 0.0
  %1794 = vmatpush1.msra.mxu0 %v138
  %1795 = vmatprep.subr.mxu0 0.0
  %1796 = vmatpush1.msra.mxu0 %v139
  %1797 = vmatprep.subr.mxu0 0.0
  %1798 = vmatpush1.msra.mxu0 %v140
  %1799 = vmatprep.subr.mxu0 0.0
  %1800 = vmatpush1.msra.mxu0 %v141
  %1801 = vmatprep.subr.mxu0 0.0
  %1802 = vmatpush1.msra.mxu0 %v142
  %1803 = vmatprep.subr.mxu0 0.0
  %1804 = vmatpush1.msra.mxu0 %v143
  %1805 = vmatprep.subr.mxu0 0.0
  %1806 = vmatpush1.msra.mxu0 %v144
  %1807 = vmatprep.subr.mxu0 0.0
  %1808 = vmatpush1.msra.mxu0 %v145
  %1809 = vmatprep.subr.mxu0 0.0
  %1810 = vmatpush1.msra.mxu0 0.0
  %1811 = vmatprep.subr.mxu0 0.0
  %1812 = vmatpush1.msra.mxu0 0.0
  %1813 = vmatprep.subr.mxu0 0.0
  %1814 = vmatpush1.msra.mxu0 0.0
  %1815 = vmatprep.subr.mxu0 0.0
  %1816 = vmatpush1.msra.mxu0 0.0
  %1817 = vmatprep.subr.mxu0 0.0
  %1818 = vmatpush1.msra.mxu0 0.0
  %1819 = vmatprep.subr.mxu0 0.0
  %1820 = vmatpush1.msra.mxu0 0.0
  %1821 = vmatprep.subr.mxu0 0.0
  %1822 = vmatpush1.msra.mxu0 0.0
  %1823 = vmatprep.subr.mxu0 0.0
  %1824 = vmatpush1.msra.mxu0 0.0
  %1825 = vmatprep.subr.mxu0 0.0
  %1826 = vmatpush1.msra.mxu0 0.0
  %1827 = vmatprep.subr.mxu0 0.0
  %1828 = vmatpush1.msra.mxu0 0.0
  %1829 = vmatprep.subr.mxu0 0.0
  %1830 = vmatpush1.msra.mxu0 0.0
  %1831 = vmatprep.subr.mxu0 0.0
  %1832 = vmatpush1.msra.mxu0 0.0
  %1833 = vmatprep.subr.mxu0 0.0
  %1834 = vmatpush1.msra.mxu0 0.0
  %1835 = vmatprep.subr.mxu0 0.0
  %1836 = vmatpush1.msra.mxu0 0.0
  %1837 = vmatprep.subr.mxu0 0.0
  %1838 = vmatpush1.msra.mxu0 0.0
  %1839 = vmatprep.subr.mxu0 0.0
  %1840 = vmatpush1.msra.mxu0 0.0
  %1841 = vmatprep.subr.mxu0 0.0
  %1842 = vmatpush1.msra.mxu0 0.0
  %1843 = vmatprep.subr.mxu0 0.0
  %1844 = vmatpush1.msra.mxu0 0.0
  %1845 = vmatprep.subr.mxu0 0.0
  %1846 = vmatpush1.msra.mxu0 0.0
  %1847 = vmatprep.subr.mxu0 0.0
  %1848 = vmatpush1.msra.mxu0 0.0
  %1849 = vmatprep.subr.mxu0 0.0
  %1850 = vmatpush1.msra.mxu0 0.0
  %1851 = vmatprep.subr.mxu0 0.0
  %1852 = vmatpush1.msra.mxu0 0.0
  %1853 = vmatprep.subr.mxu0 0.0
  %1854 = vmatpush1.msra.mxu0 0.0
  %1855 = vmatprep.subr.mxu0 0.0
  %1856 = vmatpush1.msra.mxu0 0.0
  %1857 = vmatprep.mubr.f32.mxu0 0.0
  %1858 = vmatmul.mubr.f32.gmra.mrb[0].mxu0 %v1791
  %v1859 = vpop.f32.mrb[0].mxu0
  %v1860 = vadd.f32 0.0, %v1859
  %v1861 = vpop.f32.mrb[0].mxu0
  %1862 = vdwg.mxu0
  %v1863 = vadd.f32 %v1717, %v1860
  %1864 = vmatprep.subr.mxu0 0.0
  %1865 = vmatpush1.msra.mxu0 %v1432
  %1866 = vmatprep.subr.mxu0 0.0
  %1867 = vmatpush1.msra.mxu0 0.0
  %1868 = vmatprep.subr.mxu0 0.0
  %1869 = vmatpush1.msra.mxu0 0.0
  %1870 = vmatprep.subr.mxu0 0.0
  %1871 = vmatpush1.msra.mxu0 0.0
  %1872 = vmatprep.subr.mxu0 0.0
  %1873 = vmatpush1.msra.mxu0 0.0
  %1874 = vmatprep.subr.mxu0 0.0
  %1875 = vmatpush1.msra.mxu0 0.0
  %1876 = vmatprep.subr.mxu0 0.0
  %1877 = vmatpush1.msra.mxu0 0.0
  %1878 = vmatprep.subr.mxu0 0.0
  %1879 = vmatpush1.msra.mxu0 0.0
  %1880 = vmatprep.subr.mxu0 0.0
  %1881 = vmatpush1.msra.mxu0 0.0
  %1882 = vmatprep.subr.mxu0 0.0
  %1883 = vmatpush1.msra.mxu0 0.0
  %1884 = vmatprep.subr.mxu0 0.0
  %1885 = vmatpush1.msra.mxu0 0.0
  %1886 = vmatprep.subr.mxu0 0.0
  %1887 = vmatpush1.msra.mxu0 0.0
  %1888 = vmatprep.subr.mxu0 0.0
  %1889 = vmatpush1.msra.mxu0 0.0
  %1890 = vmatprep.subr.mxu0 0.0
  %1891 = vmatpush1.msra.mxu0 0.0
  %1892 = vmatprep.subr.mxu0 0.0
  %1893 = vmatpush1.msra.mxu0 0.0
  %1894 = vmatprep.subr.mxu0 0.0
  %1895 = vmatpush1.msra.mxu0 0.0
  %1896 = vmatprep.subr.mxu0 0.0
  %1897 = vmatpush1.msra.mxu0 0.0
  %1898 = vmatprep.subr.mxu0 0.0
  %1899 = vmatpush1.msra.mxu0 0.0
  %1900 = vmatprep.subr.mxu0 0.0
  %1901 = vmatpush1.msra.mxu0 0.0
  %1902 = vmatprep.subr.mxu0 0.0
  %1903 = vmatpush1.msra.mxu0 0.0
  %1904 = vmatprep.subr.mxu0 0.0
  %1905 = vmatpush1.msra.mxu0 0.0
  %1906 = vmatprep.subr.mxu0 0.0
  %1907 = vmatpush1.msra.mxu0 0.0
  %1908 = vmatprep.subr.mxu0 0.0
  %1909 = vmatpush1.msra.mxu0 0.0
  %1910 = vmatprep.subr.mxu0 0.0
  %1911 = vmatpush1.msra.mxu0 0.0
  %1912 = vmatprep.subr.mxu0 0.0
  %1913 = vmatpush1.msra.mxu0 0.0
  %1914 = vmatprep.subr.mxu0 0.0
  %1915 = vmatpush1.msra.mxu0 0.0
  %1916 = vmatprep.subr.mxu0 0.0
  %1917 = vmatpush1.msra.mxu0 0.0
  %1918 = vmatprep.subr.mxu0 0.0
  %1919 = vmatpush1.msra.mxu0 0.0
  %1920 = vmatprep.subr.mxu0 0.0
  %1921 = vmatpush1.msra.mxu0 0.0
  %1922 = vmatprep.subr.mxu0 0.0
  %1923 = vmatpush1.msra.mxu0 0.0
  %1924 = vmatprep.subr.mxu0 0.0
  %1925 = vmatpush1.msra.mxu0 0.0
  %1926 = vmatprep.subr.mxu0 0.0
  %1927 = vmatpush1.msra.mxu0 0.0
  %1928 = vmatprep.mubr.f32.mxu0 0.0
  %1929 = vmatmul.mubr.f32.gmra.mrb[0].mxu0 %v1285
  %v1930 = vpop.f32.mrb[0].mxu0
  %v1931 = vadd.f32 0.0, %v1930
  %v1932 = vpop.f32.mrb[0].mxu0
  %1933 = vdwg.mxu0
  %v1935 = vsel %vm986, %v1931, 0
  %1937 = vmatprep.subr.mxu0 0.0
  %1938 = vmatpush1.msra.mxu0 %v171
  %1939 = vmatprep.subr.mxu0 0.0
  %1940 = vmatpush1.msra.mxu0 %v172
  %1941 = vmatprep.subr.mxu0 0.0
  %1942 = vmatpush1.msra.mxu0 %v173
  %1943 = vmatprep.subr.mxu0 0.0
  %1944 = vmatpush1.msra.mxu0 %v174
  %1945 = vmatprep.subr.mxu0 0.0
  %1946 = vmatpush1.msra.mxu0 %v175
  %1947 = vmatprep.subr.mxu0 0.0
  %1948 = vmatpush1.msra.mxu0 %v176
  %1949 = vmatprep.subr.mxu0 0.0
  %1950 = vmatpush1.msra.mxu0 %v177
  %1951 = vmatprep.subr.mxu0 0.0
  %1952 = vmatpush1.msra.mxu0 %v178
  %1953 = vmatprep.subr.mxu0 0.0
  %1954 = vmatpush1.msra.mxu0 0.0
  %1955 = vmatprep.subr.mxu0 0.0
  %1956 = vmatpush1.msra.mxu0 0.0
  %1957 = vmatprep.subr.mxu0 0.0
  %1958 = vmatpush1.msra.mxu0 0.0
  %1959 = vmatprep.subr.mxu0 0.0
  %1960 = vmatpush1.msra.mxu0 0.0
  %1961 = vmatprep.subr.mxu0 0.0
  %1962 = vmatpush1.msra.mxu0 0.0
  %1963 = vmatprep.subr.mxu0 0.0
  %1964 = vmatpush1.msra.mxu0 0.0
  %1965 = vmatprep.subr.mxu0 0.0
  %1966 = vmatpush1.msra.mxu0 0.0
  %1967 = vmatprep.subr.mxu0 0.0
  %1968 = vmatpush1.msra.mxu0 0.0
  %1969 = vmatprep.subr.mxu0 0.0
  %1970 = vmatpush1.msra.mxu0 0.0
  %1971 = vmatprep.subr.mxu0 0.0
  %1972 = vmatpush1.msra.mxu0 0.0
  %1973 = vmatprep.subr.mxu0 0.0
  %1974 = vmatpush1.msra.mxu0 0.0
  %1975 = vmatprep.subr.mxu0 0.0
  %1976 = vmatpush1.msra.mxu0 0.0
  %1977 = vmatprep.subr.mxu0 0.0
  %1978 = vmatpush1.msra.mxu0 0.0
  %1979 = vmatprep.subr.mxu0 0.0
  %1980 = vmatpush1.msra.mxu0 0.0
  %1981 = vmatprep.subr.mxu0 0.0
  %1982 = vmatpush1.msra.mxu0 0.0
  %1983 = vmatprep.subr.mxu0 0.0
  %1984 = vmatpush1.msra.mxu0 0.0
  %1985 = vmatprep.subr.mxu0 0.0
  %1986 = vmatpush1.msra.mxu0 0.0
  %1987 = vmatprep.subr.mxu0 0.0
  %1988 = vmatpush1.msra.mxu0 0.0
  %1989 = vmatprep.subr.mxu0 0.0
  %1990 = vmatpush1.msra.mxu0 0.0
  %1991 = vmatprep.subr.mxu0 0.0
  %1992 = vmatpush1.msra.mxu0 0.0
  %1993 = vmatprep.subr.mxu0 0.0
  %1994 = vmatpush1.msra.mxu0 0.0
  %1995 = vmatprep.subr.mxu0 0.0
  %1996 = vmatpush1.msra.mxu0 0.0
  %1997 = vmatprep.subr.mxu0 0.0
  %1998 = vmatpush1.msra.mxu0 0.0
  %1999 = vmatprep.subr.mxu0 0.0
  %2000 = vmatpush1.msra.mxu0 0.0
  %2001 = vmatprep.mubr.f32.mxu0 0.0
  %2002 = vmatmul.mubr.f32.gmra.mrb[0].mxu0 %v1935
  %v2003 = vpop.f32.mrb[0].mxu0
  %v2004 = vadd.f32 0.0, %v2003
  %v2005 = vpop.f32.mrb[0].mxu0
  %2006 = vdwg.mxu0
  %v2007 = vadd.f32 %v1863, %v2004
  %vm2008 = vcmask 261120
  %v2009 = vsel %vm2008, %v1430, 0.0
  %2010 = vadd.xlane.f32.xlu0 %v2009
  %v2011 = vpop.xlane.xlu0 %2010
  %v2012 = vadd.f32 %v2011, 0.0
  %v2013 = vsel %vm2008, %v2007, 0.0
  %2014 = vadd.xlane.f32.xlu0 %v2013
  %v2015 = vpop.xlane.xlu0 %2014
  %v2016 = vadd.f32 %v2012, %v2015
  %v2017 = vrcp.pop 64.0
  %v2018 = vmul.f32 %v2016, %v2017
  %v2019 = vsub.f32 %v1430, %v2018
  %v2020 = vmul.f32 %v2019, %v2019
  %v2021 = vsel %vm2008, %v2020, 0.0
  %2022 = vadd.xlane.f32.xlu0 %v2021
  %v2023 = vpop.xlane.xlu0 %2022
  %v2024 = vadd.f32 %v2023, 0.0
  %v2025 = vsub.f32 %v2007, %v2018
  %v2026 = vmul.f32 %v2025, %v2025
  %v2027 = vsel %vm2008, %v2026, 0.0
  %2028 = vadd.xlane.f32.xlu0 %v2027
  %v2029 = vpop.xlane.xlu0 %2028
  %v2030 = vadd.f32 %v2024, %v2029
  %v2031 = vmul.f32 %v2030, %v2017
  %v2032 = vadd.f32 %v2031, 1e-05
  %v2033 = vrsqrt.pop %v2032
  %v2034 = vmul.f32 %v2019, %v2033
  %vm2035 = vcmp.gt.f32.partialorder %v2034, 0.0
  %v2036 = vmul.f32 %v2034, 0.2
  %v2037 = vsel %vm2035, %v2034, %v2036
  %v2038 = vmul.f32 %v2025, %v2033
  %vm2039 = vcmp.gt.f32.partialorder %v2038, 0.0
  %v2040 = vmul.f32 %v2038, 0.2
  %v2041 = vsel %vm2039, %v2038, %v2040
  %v2042 = vld [vmem:[%s3] sm:$0xff]
  %v2043 = vld [vmem:[%s3 + $0x8] sm:$0xff]
  %vm2044 = vcmask 64512
  %v2046 = vsel %vm2044, %v2042, 0
  %v2049 = vsel %vm2044, %v2043, 0
  %2051 = vmatprep.subr.mxu0 0.0
  %2052 = vmatpush1.msra.mxu0 %v2037
  %2053 = vmatprep.subr.mxu0 0.0
  %2054 = vmatpush1.msra.mxu0 0.0
  %2055 = vmatprep.subr.mxu0 0.0
  %2056 = vmatpush1.msra.mxu0 0.0
  %2057 = vmatprep.subr.mxu0 0.0
  %2058 = vmatpush1.msra.mxu0 0.0
  %2059 = vmatprep.subr.mxu0 0.0
  %2060 = vmatpush1.msra.mxu0 0.0
  %2061 = vmatprep.subr.mxu0 0.0
  %2062 = vmatpush1.msra.mxu0 0.0
  %2063 = vmatprep.subr.mxu0 0.0
  %2064 = vmatpush1.msra.mxu0 0.0
  %2065 = vmatprep.subr.mxu0 0.0
  %2066 = vmatpush1.msra.mxu0 0.0
  %2067 = vmatprep.subr.mxu0 0.0
  %2068 = vmatpush1.msra.mxu0 0.0
  %2069 = vmatprep.subr.mxu0 0.0
  %2070 = vmatpush1.msra.mxu0 0.0
  %2071 = vmatprep.subr.mxu0 0.0
  %2072 = vmatpush1.msra.mxu0 0.0
  %2073 = vmatprep.subr.mxu0 0.0
  %2074 = vmatpush1.msra.mxu0 0.0
  %2075 = vmatprep.subr.mxu0 0.0
  %2076 = vmatpush1.msra.mxu0 0.0
  %2077 = vmatprep.subr.mxu0 0.0
  %2078 = vmatpush1.msra.mxu0 0.0
  %2079 = vmatprep.subr.mxu0 0.0
  %2080 = vmatpush1.msra.mxu0 0.0
  %2081 = vmatprep.subr.mxu0 0.0
  %2082 = vmatpush1.msra.mxu0 0.0
  %2083 = vmatprep.subr.mxu0 0.0
  %2084 = vmatpush1.msra.mxu0 0.0
  %2085 = vmatprep.subr.mxu0 0.0
  %2086 = vmatpush1.msra.mxu0 0.0
  %2087 = vmatprep.subr.mxu0 0.0
  %2088 = vmatpush1.msra.mxu0 0.0
  %2089 = vmatprep.subr.mxu0 0.0
  %2090 = vmatpush1.msra.mxu0 0.0
  %2091 = vmatprep.subr.mxu0 0.0
  %2092 = vmatpush1.msra.mxu0 0.0
  %2093 = vmatprep.subr.mxu0 0.0
  %2094 = vmatpush1.msra.mxu0 0.0
  %2095 = vmatprep.subr.mxu0 0.0
  %2096 = vmatpush1.msra.mxu0 0.0
  %2097 = vmatprep.subr.mxu0 0.0
  %2098 = vmatpush1.msra.mxu0 0.0
  %2099 = vmatprep.subr.mxu0 0.0
  %2100 = vmatpush1.msra.mxu0 0.0
  %2101 = vmatprep.subr.mxu0 0.0
  %2102 = vmatpush1.msra.mxu0 0.0
  %2103 = vmatprep.subr.mxu0 0.0
  %2104 = vmatpush1.msra.mxu0 0.0
  %2105 = vmatprep.subr.mxu0 0.0
  %2106 = vmatpush1.msra.mxu0 0.0
  %2107 = vmatprep.subr.mxu0 0.0
  %2108 = vmatpush1.msra.mxu0 0.0
  %2109 = vmatprep.subr.mxu0 0.0
  %2110 = vmatpush1.msra.mxu0 0.0
  %2111 = vmatprep.subr.mxu0 0.0
  %2112 = vmatpush1.msra.mxu0 0.0
  %2113 = vmatprep.subr.mxu0 0.0
  %2114 = vmatpush1.msra.mxu0 0.0
  %2115 = vmatprep.mubr.f32.mxu0 0.0
  %2116 = vmatmul.mubr.f32.gmra.mrb[0].mxu0 %v2046
  %v2117 = vpop.f32.mrb[0].mxu0
  %v2118 = vadd.f32 0.0, %v2117
  %v2119 = vpop.f32.mrb[0].mxu0
  %2120 = vmatprep.mubr.f32.mxu0 0.0
  %2121 = vmatmul.mubr.f32.gmra.mrb[0].mxu0 %v2049
  %v2122 = vpop.f32.mrb[0].mxu0
  %v2123 = vadd.f32 0.0, %v2122
  %v2124 = vpop.f32.mrb[0].mxu0
  %2125 = vdwg.mxu0
  %s2126 = scalar_lea.vmem %s3, 16
  %v2127 = vld [vmem:[%s2126] sm:$0xff]
  %v2128 = vld [vmem:[%s2126 + $0x8] sm:$0xff]
  %v2130 = vsel %vm2044, %v2127, 0
  %v2133 = vsel %vm2044, %v2128, 0
  %2135 = vmatprep.subr.mxu0 0.0
  %2136 = vmatpush1.msra.mxu0 %v2037
  %2137 = vmatprep.subr.mxu0 0.0
  %2138 = vmatpush1.msra.mxu0 0.0
  %2139 = vmatprep.subr.mxu0 0.0
  %2140 = vmatpush1.msra.mxu0 0.0
  %2141 = vmatprep.subr.mxu0 0.0
  %2142 = vmatpush1.msra.mxu0 0.0
  %2143 = vmatprep.subr.mxu0 0.0
  %2144 = vmatpush1.msra.mxu0 0.0
  %2145 = vmatprep.subr.mxu0 0.0
  %2146 = vmatpush1.msra.mxu0 0.0
  %2147 = vmatprep.subr.mxu0 0.0
  %2148 = vmatpush1.msra.mxu0 0.0
  %2149 = vmatprep.subr.mxu0 0.0
  %2150 = vmatpush1.msra.mxu0 0.0
  %2151 = vmatprep.subr.mxu0 0.0
  %2152 = vmatpush1.msra.mxu0 0.0
  %2153 = vmatprep.subr.mxu0 0.0
  %2154 = vmatpush1.msra.mxu0 0.0
  %2155 = vmatprep.subr.mxu0 0.0
  %2156 = vmatpush1.msra.mxu0 0.0
  %2157 = vmatprep.subr.mxu0 0.0
  %2158 = vmatpush1.msra.mxu0 0.0
  %2159 = vmatprep.subr.mxu0 0.0
  %2160 = vmatpush1.msra.mxu0 0.0
  %2161 = vmatprep.subr.mxu0 0.0
  %2162 = vmatpush1.msra.mxu0 0.0
  %2163 = vmatprep.subr.mxu0 0.0
  %2164 = vmatpush1.msra.mxu0 0.0
  %2165 = vmatprep.subr.mxu0 0.0
  %2166 = vmatpush1.msra.mxu0 0.0
  %2167 = vmatprep.subr.mxu0 0.0
  %2168 = vmatpush1.msra.mxu0 0.0
  %2169 = vmatprep.subr.mxu0 0.0
  %2170 = vmatpush1.msra.mxu0 0.0
  %2171 = vmatprep.subr.mxu0 0.0
  %2172 = vmatpush1.msra.mxu0 0.0
  %2173 = vmatprep.subr.mxu0 0.0
  %2174 = vmatpush1.msra.mxu0 0.0
  %2175 = vmatprep.subr.mxu0 0.0
  %2176 = vmatpush1.msra.mxu0 0.0
  %2177 = vmatprep.subr.mxu0 0.0
  %2178 = vmatpush1.msra.mxu0 0.0
  %2179 = vmatprep.subr.mxu0 0.0
  %2180 = vmatpush1.msra.mxu0 0.0
  %2181 = vmatprep.subr.mxu0 0.0
  %2182 = vmatpush1.msra.mxu0 0.0
  %2183 = vmatprep.subr.mxu0 0.0
  %2184 = vmatpush1.msra.mxu0 0.0
  %2185 = vmatprep.subr.mxu0 0.0
  %2186 = vmatpush1.msra.mxu0 0.0
  %2187 = vmatprep.subr.mxu0 0.0
  %2188 = vmatpush1.msra.mxu0 0.0
  %2189 = vmatprep.subr.mxu0 0.0
  %2190 = vmatpush1.msra.mxu0 0.0
  %2191 = vmatprep.subr.mxu0 0.0
  %2192 = vmatpush1.msra.mxu0 0.0
  %2193 = vmatprep.subr.mxu0 0.0
  %2194 = vmatpush1.msra.mxu0 0.0
  %2195 = vmatprep.subr.mxu0 0.0
  %2196 = vmatpush1.msra.mxu0 0.0
  %2197 = vmatprep.subr.mxu0 0.0
  %2198 = vmatpush1.msra.mxu0 0.0
  %2199 = vmatprep.mubr.f32.mxu0 0.0
  %2200 = vmatmul.mubr.f32.gmra.mrb[0].mxu0 %v2130
  %v2201 = vpop.f32.mrb[0].mxu0
  %v2202 = vadd.f32 0.0, %v2201
  %v2203 = vpop.f32.mrb[0].mxu0
  %2204 = vmatprep.mubr.f32.mxu0 0.0
  %2205 = vmatmul.mubr.f32.gmra.mrb[0].mxu0 %v2133
  %v2206 = vpop.f32.mrb[0].mxu0
  %v2207 = vadd.f32 0.0, %v2206
  %v2208 = vpop.f32.mrb[0].mxu0
  %2209 = vdwg.mxu0
  %v2211 = vsel %vm2008, %v2202, 0
  %v2214 = vsel %vm2008, %v2207, 0
  %2216 = vmatprep.subr.mxu0 0.0
  %2217 = vmatpush1.msra.mxu0 %v105
  %2218 = vmatprep.subr.mxu0 0.0
  %2219 = vmatpush1.msra.mxu0 %v106
  %2220 = vmatprep.subr.mxu0 0.0
  %2221 = vmatpush1.msra.mxu0 %v107
  %2222 = vmatprep.subr.mxu0 0.0
  %2223 = vmatpush1.msra.mxu0 %v108
  %2224 = vmatprep.subr.mxu0 0.0
  %2225 = vmatpush1.msra.mxu0 0.0
  %2226 = vmatprep.subr.mxu0 0.0
  %2227 = vmatpush1.msra.mxu0 0.0
  %2228 = vmatprep.subr.mxu0 0.0
  %2229 = vmatpush1.msra.mxu0 0.0
  %2230 = vmatprep.subr.mxu0 0.0
  %2231 = vmatpush1.msra.mxu0 0.0
  %2232 = vmatprep.subr.mxu0 0.0
  %2233 = vmatpush1.msra.mxu0 0.0
  %2234 = vmatprep.subr.mxu0 0.0
  %2235 = vmatpush1.msra.mxu0 0.0
  %2236 = vmatprep.subr.mxu0 0.0
  %2237 = vmatpush1.msra.mxu0 0.0
  %2238 = vmatprep.subr.mxu0 0.0
  %2239 = vmatpush1.msra.mxu0 0.0
  %2240 = vmatprep.subr.mxu0 0.0
  %2241 = vmatpush1.msra.mxu0 0.0
  %2242 = vmatprep.subr.mxu0 0.0
  %2243 = vmatpush1.msra.mxu0 0.0
  %2244 = vmatprep.subr.mxu0 0.0
  %2245 = vmatpush1.msra.mxu0 0.0
  %2246 = vmatprep.subr.mxu0 0.0
  %2247 = vmatpush1.msra.mxu0 0.0
  %2248 = vmatprep.subr.mxu0 0.0
  %2249 = vmatpush1.msra.mxu0 0.0
  %2250 = vmatprep.subr.mxu0 0.0
  %2251 = vmatpush1.msra.mxu0 0.0
  %2252 = vmatprep.subr.mxu0 0.0
  %2253 = vmatpush1.msra.mxu0 0.0
  %2254 = vmatprep.subr.mxu0 0.0
  %2255 = vmatpush1.msra.mxu0 0.0
  %2256 = vmatprep.subr.mxu0 0.0
  %2257 = vmatpush1.msra.mxu0 0.0
  %2258 = vmatprep.subr.mxu0 0.0
  %2259 = vmatpush1.msra.mxu0 0.0
  %2260 = vmatprep.subr.mxu0 0.0
  %2261 = vmatpush1.msra.mxu0 0.0
  %2262 = vmatprep.subr.mxu0 0.0
  %2263 = vmatpush1.msra.mxu0 0.0
  %2264 = vmatprep.subr.mxu0 0.0
  %2265 = vmatpush1.msra.mxu0 0.0
  %2266 = vmatprep.subr.mxu0 0.0
  %2267 = vmatpush1.msra.mxu0 0.0
  %2268 = vmatprep.subr.mxu0 0.0
  %2269 = vmatpush1.msra.mxu0 0.0
  %2270 = vmatprep.subr.mxu0 0.0
  %2271 = vmatpush1.msra.mxu0 0.0
  %2272 = vmatprep.subr.mxu0 0.0
  %2273 = vmatpush1.msra.mxu0 0.0
  %2274 = vmatprep.subr.mxu0 0.0
  %2275 = vmatpush1.msra.mxu0 0.0
  %2276 = vmatprep.subr.mxu0 0.0
  %2277 = vmatpush1.msra.mxu0 0.0
  %2278 = vmatprep.subr.mxu0 0.0
  %2279 = vmatpush1.msra.mxu0 0.0
  %2280 = vmatprep.mubr.f32.mxu0 0.0
  %2281 = vmatmul.mubr.f32.gmra.mrb[0].mxu0 %v2211
  %v2282 = vpop.f32.mrb[0].mxu0
  %v2283 = vadd.f32 0.0, %v2282
  %v2284 = vpop.f32.mrb[0].mxu0
  %2285 = vmatprep.mubr.f32.mxu0 0.0
  %2286 = vmatmul.mubr.f32.gmra.mrb[0].mxu0 %v2214
  %v2287 = vpop.f32.mrb[0].mxu0
  %v2288 = vadd.f32 0.0, %v2287
  %v2289 = vpop.f32.mrb[0].mxu0
  %2290 = vdwg.mxu0
  %v2292 = vsel %vm2008, %v2118, 0
  %v2295 = vsel %vm2008, %v2123, 0
  %2297 = vmatprep.subr.mxu0 0.0
  %2298 = vmatpush1.msra.mxu0 %v73
  %2299 = vmatprep.subr.mxu0 0.0
  %2300 = vmatpush1.msra.mxu0 %v74
  %2301 = vmatprep.subr.mxu0 0.0
  %2302 = vmatpush1.msra.mxu0 %v75
  %2303 = vmatprep.subr.mxu0 0.0
  %2304 = vmatpush1.msra.mxu0 %v76
  %2305 = vmatprep.subr.mxu0 0.0
  %2306 = vmatpush1.msra.mxu0 0.0
  %2307 = vmatprep.subr.mxu0 0.0
  %2308 = vmatpush1.msra.mxu0 0.0
  %2309 = vmatprep.subr.mxu0 0.0
  %2310 = vmatpush1.msra.mxu0 0.0
  %2311 = vmatprep.subr.mxu0 0.0
  %2312 = vmatpush1.msra.mxu0 0.0
  %2313 = vmatprep.subr.mxu0 0.0
  %2314 = vmatpush1.msra.mxu0 0.0
  %2315 = vmatprep.subr.mxu0 0.0
  %2316 = vmatpush1.msra.mxu0 0.0
  %2317 = vmatprep.subr.mxu0 0.0
  %2318 = vmatpush1.msra.mxu0 0.0
  %2319 = vmatprep.subr.mxu0 0.0
  %2320 = vmatpush1.msra.mxu0 0.0
  %2321 = vmatprep.subr.mxu0 0.0
  %2322 = vmatpush1.msra.mxu0 0.0
  %2323 = vmatprep.subr.mxu0 0.0
  %2324 = vmatpush1.msra.mxu0 0.0
  %2325 = vmatprep.subr.mxu0 0.0
  %2326 = vmatpush1.msra.mxu0 0.0
  %2327 = vmatprep.subr.mxu0 0.0
  %2328 = vmatpush1.msra.mxu0 0.0
  %2329 = vmatprep.subr.mxu0 0.0
  %2330 = vmatpush1.msra.mxu0 0.0
  %2331 = vmatprep.subr.mxu0 0.0
  %2332 = vmatpush1.msra.mxu0 0.0
  %2333 = vmatprep.subr.mxu0 0.0
  %2334 = vmatpush1.msra.mxu0 0.0
  %2335 = vmatprep.subr.mxu0 0.0
  %2336 = vmatpush1.msra.mxu0 0.0
  %2337 = vmatprep.subr.mxu0 0.0
  %2338 = vmatpush1.msra.mxu0 0.0
  %2339 = vmatprep.subr.mxu0 0.0
  %2340 = vmatpush1.msra.mxu0 0.0
  %2341 = vmatprep.subr.mxu0 0.0
  %2342 = vmatpush1.msra.mxu0 0.0
  %2343 = vmatprep.subr.mxu0 0.0
  %2344 = vmatpush1.msra.mxu0 0.0
  %2345 = vmatprep.subr.mxu0 0.0
  %2346 = vmatpush1.msra.mxu0 0.0
  %2347 = vmatprep.subr.mxu0 0.0
  %2348 = vmatpush1.msra.mxu0 0.0
  %2349 = vmatprep.subr.mxu0 0.0
  %2350 = vmatpush1.msra.mxu0 0.0
  %2351 = vmatprep.subr.mxu0 0.0
  %2352 = vmatpush1.msra.mxu0 0.0
  %2353 = vmatprep.subr.mxu0 0.0
  %2354 = vmatpush1.msra.mxu0 0.0
  %2355 = vmatprep.subr.mxu0 0.0
  %2356 = vmatpush1.msra.mxu0 0.0
  %2357 = vmatprep.subr.mxu0 0.0
  %2358 = vmatpush1.msra.mxu0 0.0
  %2359 = vmatprep.subr.mxu0 0.0
  %2360 = vmatpush1.msra.mxu0 0.0
  %2361 = vmatprep.mubr.f32.mxu0 0.0
  %2362 = vmatmul.mubr.f32.gmra.mrb[0].mxu0 %v2292
  %v2363 = vpop.f32.mrb[0].mxu0
  %v2364 = vadd.f32 %v2283, %v2363
  %v2365 = vpop.f32.mrb[0].mxu0
  %2366 = vmatprep.mubr.f32.mxu0 0.0
  %2367 = vmatmul.mubr.f32.gmra.mrb[0].mxu0 %v2295
  %v2368 = vpop.f32.mrb[0].mxu0
  %v2369 = vadd.f32 %v2288, %v2368
  %v2370 = vpop.f32.mrb[0].mxu0
  %2371 = vdwg.mxu0
  %s2372 = scalar_lea.vmem %s3, 32
  %v2373 = vld [vmem:[%s2372] sm:$0xff]
  %v2374 = vld [vmem:[%s2372 + $0x8] sm:$0xff]
  %v2376 = vsel %vm2044, %v2373, 0
  %v2379 = vsel %vm2044, %v2374, 0
  %2381 = vmatprep.subr.mxu0 0.0
  %2382 = vmatpush1.msra.mxu0 %v2037
  %2383 = vmatprep.subr.mxu0 0.0
  %2384 = vmatpush1.msra.mxu0 0.0
  %2385 = vmatprep.subr.mxu0 0.0
  %2386 = vmatpush1.msra.mxu0 0.0
  %2387 = vmatprep.subr.mxu0 0.0
  %2388 = vmatpush1.msra.mxu0 0.0
  %2389 = vmatprep.subr.mxu0 0.0
  %2390 = vmatpush1.msra.mxu0 0.0
  %2391 = vmatprep.subr.mxu0 0.0
  %2392 = vmatpush1.msra.mxu0 0.0
  %2393 = vmatprep.subr.mxu0 0.0
  %2394 = vmatpush1.msra.mxu0 0.0
  %2395 = vmatprep.subr.mxu0 0.0
  %2396 = vmatpush1.msra.mxu0 0.0
  %2397 = vmatprep.subr.mxu0 0.0
  %2398 = vmatpush1.msra.mxu0 0.0
  %2399 = vmatprep.subr.mxu0 0.0
  %2400 = vmatpush1.msra.mxu0 0.0
  %2401 = vmatprep.subr.mxu0 0.0
  %2402 = vmatpush1.msra.mxu0 0.0
  %2403 = vmatprep.subr.mxu0 0.0
  %2404 = vmatpush1.msra.mxu0 0.0
  %2405 = vmatprep.subr.mxu0 0.0
  %2406 = vmatpush1.msra.mxu0 0.0
  %2407 = vmatprep.subr.mxu0 0.0
  %2408 = vmatpush1.msra.mxu0 0.0
  %2409 = vmatprep.subr.mxu0 0.0
  %2410 = vmatpush1.msra.mxu0 0.0
  %2411 = vmatprep.subr.mxu0 0.0
  %2412 = vmatpush1.msra.mxu0 0.0
  %2413 = vmatprep.subr.mxu0 0.0
  %2414 = vmatpush1.msra.mxu0 0.0
  %2415 = vmatprep.subr.mxu0 0.0
  %2416 = vmatpush1.msra.mxu0 0.0
  %2417 = vmatprep.subr.mxu0 0.0
  %2418 = vmatpush1.msra.mxu0 0.0
  %2419 = vmatprep.subr.mxu0 0.0
  %2420 = vmatpush1.msra.mxu0 0.0
  %2421 = vmatprep.subr.mxu0 0.0
  %2422 = vmatpush1.msra.mxu0 0.0
  %2423 = vmatprep.subr.mxu0 0.0
  %2424 = vmatpush1.msra.mxu0 0.0
  %2425 = vmatprep.subr.mxu0 0.0
  %2426 = vmatpush1.msra.mxu0 0.0
  %2427 = vmatprep.subr.mxu0 0.0
  %2428 = vmatpush1.msra.mxu0 0.0
  %2429 = vmatprep.subr.mxu0 0.0
  %2430 = vmatpush1.msra.mxu0 0.0
  %2431 = vmatprep.subr.mxu0 0.0
  %2432 = vmatpush1.msra.mxu0 0.0
  %2433 = vmatprep.subr.mxu0 0.0
  %2434 = vmatpush1.msra.mxu0 0.0
  %2435 = vmatprep.subr.mxu0 0.0
  %2436 = vmatpush1.msra.mxu0 0.0
  %2437 = vmatprep.subr.mxu0 0.0
  %2438 = vmatpush1.msra.mxu0 0.0
  %2439 = vmatprep.subr.mxu0 0.0
  %2440 = vmatpush1.msra.mxu0 0.0
  %2441 = vmatprep.subr.mxu0 0.0
  %2442 = vmatpush1.msra.mxu0 0.0
  %2443 = vmatprep.subr.mxu0 0.0
  %2444 = vmatpush1.msra.mxu0 0.0
  %2445 = vmatprep.mubr.f32.mxu0 0.0
  %2446 = vmatmul.mubr.f32.gmra.mrb[0].mxu0 %v2376
  %v2447 = vpop.f32.mrb[0].mxu0
  %v2448 = vadd.f32 0.0, %v2447
  %v2449 = vpop.f32.mrb[0].mxu0
  %2450 = vmatprep.mubr.f32.mxu0 0.0
  %2451 = vmatmul.mubr.f32.gmra.mrb[0].mxu0 %v2379
  %v2452 = vpop.f32.mrb[0].mxu0
  %v2453 = vadd.f32 0.0, %v2452
  %v2454 = vpop.f32.mrb[0].mxu0
  %2455 = vdwg.mxu0
  %v2457 = vsel %vm2008, %v2448, 0
  %v2460 = vsel %vm2008, %v2453, 0
  %2462 = vmatprep.subr.mxu0 0.0
  %2463 = vmatpush1.msra.mxu0 %v138
  %2464 = vmatprep.subr.mxu0 0.0
  %2465 = vmatpush1.msra.mxu0 %v139
  %2466 = vmatprep.subr.mxu0 0.0
  %2467 = vmatpush1.msra.mxu0 %v140
  %2468 = vmatprep.subr.mxu0 0.0
  %2469 = vmatpush1.msra.mxu0 %v141
  %2470 = vmatprep.subr.mxu0 0.0
  %2471 = vmatpush1.msra.mxu0 0.0
  %2472 = vmatprep.subr.mxu0 0.0
  %2473 = vmatpush1.msra.mxu0 0.0
  %2474 = vmatprep.subr.mxu0 0.0
  %2475 = vmatpush1.msra.mxu0 0.0
  %2476 = vmatprep.subr.mxu0 0.0
  %2477 = vmatpush1.msra.mxu0 0.0
  %2478 = vmatprep.subr.mxu0 0.0
  %2479 = vmatpush1.msra.mxu0 0.0
  %2480 = vmatprep.subr.mxu0 0.0
  %2481 = vmatpush1.msra.mxu0 0.0
  %2482 = vmatprep.subr.mxu0 0.0
  %2483 = vmatpush1.msra.mxu0 0.0
  %2484 = vmatprep.subr.mxu0 0.0
  %2485 = vmatpush1.msra.mxu0 0.0
  %2486 = vmatprep.subr.mxu0 0.0
  %2487 = vmatpush1.msra.mxu0 0.0
  %2488 = vmatprep.subr.mxu0 0.0
  %2489 = vmatpush1.msra.mxu0 0.0
  %2490 = vmatprep.subr.mxu0 0.0
  %2491 = vmatpush1.msra.mxu0 0.0
  %2492 = vmatprep.subr.mxu0 0.0
  %2493 = vmatpush1.msra.mxu0 0.0
  %2494 = vmatprep.subr.mxu0 0.0
  %2495 = vmatpush1.msra.mxu0 0.0
  %2496 = vmatprep.subr.mxu0 0.0
  %2497 = vmatpush1.msra.mxu0 0.0
  %2498 = vmatprep.subr.mxu0 0.0
  %2499 = vmatpush1.msra.mxu0 0.0
  %2500 = vmatprep.subr.mxu0 0.0
  %2501 = vmatpush1.msra.mxu0 0.0
  %2502 = vmatprep.subr.mxu0 0.0
  %2503 = vmatpush1.msra.mxu0 0.0
  %2504 = vmatprep.subr.mxu0 0.0
  %2505 = vmatpush1.msra.mxu0 0.0
  %2506 = vmatprep.subr.mxu0 0.0
  %2507 = vmatpush1.msra.mxu0 0.0
  %2508 = vmatprep.subr.mxu0 0.0
  %2509 = vmatpush1.msra.mxu0 0.0
  %2510 = vmatprep.subr.mxu0 0.0
  %2511 = vmatpush1.msra.mxu0 0.0
  %2512 = vmatprep.subr.mxu0 0.0
  %2513 = vmatpush1.msra.mxu0 0.0
  %2514 = vmatprep.subr.mxu0 0.0
  %2515 = vmatpush1.msra.mxu0 0.0
  %2516 = vmatprep.subr.mxu0 0.0
  %2517 = vmatpush1.msra.mxu0 0.0
  %2518 = vmatprep.subr.mxu0 0.0
  %2519 = vmatpush1.msra.mxu0 0.0
  %2520 = vmatprep.subr.mxu0 0.0
  %2521 = vmatpush1.msra.mxu0 0.0
  %2522 = vmatprep.subr.mxu0 0.0
  %2523 = vmatpush1.msra.mxu0 0.0
  %2524 = vmatprep.subr.mxu0 0.0
  %2525 = vmatpush1.msra.mxu0 0.0
  %2526 = vmatprep.mubr.f32.mxu0 0.0
  %2527 = vmatmul.mubr.f32.gmra.mrb[0].mxu0 %v2457
  %v2528 = vpop.f32.mrb[0].mxu0
  %v2529 = vadd.f32 0.0, %v2528
  %v2530 = vpop.f32.mrb[0].mxu0
  %2531 = vmatprep.mubr.f32.mxu0 0.0
  %2532 = vmatmul.mubr.f32.gmra.mrb[0].mxu0 %v2460
  %v2533 = vpop.f32.mrb[0].mxu0
  %v2534 = vadd.f32 0.0, %v2533
  %v2535 = vpop.f32.mrb[0].mxu0
  %2536 = vdwg.mxu0
  %v2537 = vadd.f32 %v2364, %v2529
  %v2538 = vadd.f32 %v2369, %v2534
  %s2539 = scalar_lea.vmem %s3, 48
  %v2540 = vld [vmem:[%s2539] sm:$0xff]
  %v2541 = vld [vmem:[%s2539 + $0x8] sm:$0xff]
  %v2543 = vsel %vm2044, %v2540, 0
  %v2546 = vsel %vm2044, %v2541, 0
  %2548 = vmatprep.subr.mxu0 0.0
  %2549 = vmatpush1.msra.mxu0 %v2037
  %2550 = vmatprep.subr.mxu0 0.0
  %2551 = vmatpush1.msra.mxu0 0.0
  %2552 = vmatprep.subr.mxu0 0.0
  %2553 = vmatpush1.msra.mxu0 0.0
  %2554 = vmatprep.subr.mxu0 0.0
  %2555 = vmatpush1.msra.mxu0 0.0
  %2556 = vmatprep.subr.mxu0 0.0
  %2557 = vmatpush1.msra.mxu0 0.0
  %2558 = vmatprep.subr.mxu0 0.0
  %2559 = vmatpush1.msra.mxu0 0.0
  %2560 = vmatprep.subr.mxu0 0.0
  %2561 = vmatpush1.msra.mxu0 0.0
  %2562 = vmatprep.subr.mxu0 0.0
  %2563 = vmatpush1.msra.mxu0 0.0
  %2564 = vmatprep.subr.mxu0 0.0
  %2565 = vmatpush1.msra.mxu0 0.0
  %2566 = vmatprep.subr.mxu0 0.0
  %2567 = vmatpush1.msra.mxu0 0.0
  %2568 = vmatprep.subr.mxu0 0.0
  %2569 = vmatpush1.msra.mxu0 0.0
  %2570 = vmatprep.subr.mxu0 0.0
  %2571 = vmatpush1.msra.mxu0 0.0
  %2572 = vmatprep.subr.mxu0 0.0
  %2573 = vmatpush1.msra.mxu0 0.0
  %2574 = vmatprep.subr.mxu0 0.0
  %2575 = vmatpush1.msra.mxu0 0.0
  %2576 = vmatprep.subr.mxu0 0.0
  %2577 = vmatpush1.msra.mxu0 0.0
  %2578 = vmatprep.subr.mxu0 0.0
  %2579 = vmatpush1.msra.mxu0 0.0
  %2580 = vmatprep.subr.mxu0 0.0
  %2581 = vmatpush1.msra.mxu0 0.0
  %2582 = vmatprep.subr.mxu0 0.0
  %2583 = vmatpush1.msra.mxu0 0.0
  %2584 = vmatprep.subr.mxu0 0.0
  %2585 = vmatpush1.msra.mxu0 0.0
  %2586 = vmatprep.subr.mxu0 0.0
  %2587 = vmatpush1.msra.mxu0 0.0
  %2588 = vmatprep.subr.mxu0 0.0
  %2589 = vmatpush1.msra.mxu0 0.0
  %2590 = vmatprep.subr.mxu0 0.0
  %2591 = vmatpush1.msra.mxu0 0.0
  %2592 = vmatprep.subr.mxu0 0.0
  %2593 = vmatpush1.msra.mxu0 0.0
  %2594 = vmatprep.subr.mxu0 0.0
  %2595 = vmatpush1.msra.mxu0 0.0
  %2596 = vmatprep.subr.mxu0 0.0
  %2597 = vmatpush1.msra.mxu0 0.0
  %2598 = vmatprep.subr.mxu0 0.0
  %2599 = vmatpush1.msra.mxu0 0.0
  %2600 = vmatprep.subr.mxu0 0.0
  %2601 = vmatpush1.msra.mxu0 0.0
  %2602 = vmatprep.subr.mxu0 0.0
  %2603 = vmatpush1.msra.mxu0 0.0
  %2604 = vmatprep.subr.mxu0 0.0
  %2605 = vmatpush1.msra.mxu0 0.0
  %2606 = vmatprep.subr.mxu0 0.0
  %2607 = vmatpush1.msra.mxu0 0.0
  %2608 = vmatprep.subr.mxu0 0.0
  %2609 = vmatpush1.msra.mxu0 0.0
  %2610 = vmatprep.subr.mxu0 0.0
  %2611 = vmatpush1.msra.mxu0 0.0
  %2612 = vmatprep.mubr.f32.mxu0 0.0
  %2613 = vmatmul.mubr.f32.gmra.mrb[0].mxu0 %v2543
  %v2614 = vpop.f32.mrb[0].mxu0
  %v2615 = vadd.f32 0.0, %v2614
  %v2616 = vpop.f32.mrb[0].mxu0
  %2617 = vmatprep.mubr.f32.mxu0 0.0
  %2618 = vmatmul.mubr.f32.gmra.mrb[0].mxu0 %v2546
  %v2619 = vpop.f32.mrb[0].mxu0
  %v2620 = vadd.f32 0.0, %v2619
  %v2621 = vpop.f32.mrb[0].mxu0
  %2622 = vdwg.mxu0
  %v2624 = vsel %vm2008, %v2615, 0
  %v2627 = vsel %vm2008, %v2620, 0
  %2629 = vmatprep.subr.mxu0 0.0
  %2630 = vmatpush1.msra.mxu0 %v171
  %2631 = vmatprep.subr.mxu0 0.0
  %2632 = vmatpush1.msra.mxu0 %v172
  %2633 = vmatprep.subr.mxu0 0.0
  %2634 = vmatpush1.msra.mxu0 %v173
  %2635 = vmatprep.subr.mxu0 0.0
  %2636 = vmatpush1.msra.mxu0 %v174
  %2637 = vmatprep.subr.mxu0 0.0
  %2638 = vmatpush1.msra.mxu0 0.0
  %2639 = vmatprep.subr.mxu0 0.0
  %2640 = vmatpush1.msra.mxu0 0.0
  %2641 = vmatprep.subr.mxu0 0.0
  %2642 = vmatpush1.msra.mxu0 0.0
  %2643 = vmatprep.subr.mxu0 0.0
  %2644 = vmatpush1.msra.mxu0 0.0
  %2645 = vmatprep.subr.mxu0 0.0
  %2646 = vmatpush1.msra.mxu0 0.0
  %2647 = vmatprep.subr.mxu0 0.0
  %2648 = vmatpush1.msra.mxu0 0.0
  %2649 = vmatprep.subr.mxu0 0.0
  %2650 = vmatpush1.msra.mxu0 0.0
  %2651 = vmatprep.subr.mxu0 0.0
  %2652 = vmatpush1.msra.mxu0 0.0
  %2653 = vmatprep.subr.mxu0 0.0
  %2654 = vmatpush1.msra.mxu0 0.0
  %2655 = vmatprep.subr.mxu0 0.0
  %2656 = vmatpush1.msra.mxu0 0.0
  %2657 = vmatprep.subr.mxu0 0.0
  %2658 = vmatpush1.msra.mxu0 0.0
  %2659 = vmatprep.subr.mxu0 0.0
  %2660 = vmatpush1.msra.mxu0 0.0
  %2661 = vmatprep.subr.mxu0 0.0
  %2662 = vmatpush1.msra.mxu0 0.0
  %2663 = vmatprep.subr.mxu0 0.0
  %2664 = vmatpush1.msra.mxu0 0.0
  %2665 = vmatprep.subr.mxu0 0.0
  %2666 = vmatpush1.msra.mxu0 0.0
  %2667 = vmatprep.subr.mxu0 0.0
  %2668 = vmatpush1.msra.mxu0 0.0
  %2669 = vmatprep.subr.mxu0 0.0
  %2670 = vmatpush1.msra.mxu0 0.0
  %2671 = vmatprep.subr.mxu0 0.0
  %2672 = vmatpush1.msra.mxu0 0.0
  %2673 = vmatprep.subr.mxu0 0.0
  %2674 = vmatpush1.msra.mxu0 0.0
  %2675 = vmatprep.subr.mxu0 0.0
  %2676 = vmatpush1.msra.mxu0 0.0
  %2677 = vmatprep.subr.mxu0 0.0
  %2678 = vmatpush1.msra.mxu0 0.0
  %2679 = vmatprep.subr.mxu0 0.0
  %2680 = vmatpush1.msra.mxu0 0.0
  %2681 = vmatprep.subr.mxu0 0.0
  %2682 = vmatpush1.msra.mxu0 0.0
  %2683 = vmatprep.subr.mxu0 0.0
  %2684 = vmatpush1.msra.mxu0 0.0
  %2685 = vmatprep.subr.mxu0 0.0
  %2686 = vmatpush1.msra.mxu0 0.0
  %2687 = vmatprep.subr.mxu0 0.0
  %2688 = vmatpush1.msra.mxu0 0.0
  %2689 = vmatprep.subr.mxu0 0.0
  %2690 = vmatpush1.msra.mxu0 0.0
  %2691 = vmatprep.subr.mxu0 0.0
  %2692 = vmatpush1.msra.mxu0 0.0
  %2693 = vmatprep.mubr.f32.mxu0 0.0
  %2694 = vmatmul.mubr.f32.gmra.mrb[0].mxu0 %v2624
  %v2695 = vpop.f32.mrb[0].mxu0
  %v2696 = vadd.f32 0.0, %v2695
  %v2697 = vpop.f32.mrb[0].mxu0
  %2698 = vmatprep.mubr.f32.mxu0 0.0
  %2699 = vmatmul.mubr.f32.gmra.mrb[0].mxu0 %v2627
  %v2700 = vpop.f32.mrb[0].mxu0
  %v2701 = vadd.f32 0.0, %v2700
  %v2702 = vpop.f32.mrb[0].mxu0
  %2703 = vdwg.mxu0
  %v2704 = vadd.f32 %v2537, %v2696
  %v2705 = vadd.f32 %v2538, %v2701
  %2706 = vmatprep.subr.mxu0 0.0
  %2707 = vmatpush1.msra.mxu0 %v2041
  %2708 = vmatprep.subr.mxu0 0.0
  %2709 = vmatpush1.msra.mxu0 0.0
  %2710 = vmatprep.subr.mxu0 0.0
  %2711 = vmatpush1.msra.mxu0 0.0
  %2712 = vmatprep.subr.mxu0 0.0
  %2713 = vmatpush1.msra.mxu0 0.0
  %2714 = vmatprep.subr.mxu0 0.0
  %2715 = vmatpush1.msra.mxu0 0.0
  %2716 = vmatprep.subr.mxu0 0.0
  %2717 = vmatpush1.msra.mxu0 0.0
  %2718 = vmatprep.subr.mxu0 0.0
  %2719 = vmatpush1.msra.mxu0 0.0
  %2720 = vmatprep.subr.mxu0 0.0
  %2721 = vmatpush1.msra.mxu0 0.0
  %2722 = vmatprep.subr.mxu0 0.0
  %2723 = vmatpush1.msra.mxu0 0.0
  %2724 = vmatprep.subr.mxu0 0.0
  %2725 = vmatpush1.msra.mxu0 0.0
  %2726 = vmatprep.subr.mxu0 0.0
  %2727 = vmatpush1.msra.mxu0 0.0
  %2728 = vmatprep.subr.mxu0 0.0
  %2729 = vmatpush1.msra.mxu0 0.0
  %2730 = vmatprep.subr.mxu0 0.0
  %2731 = vmatpush1.msra.mxu0 0.0
  %2732 = vmatprep.subr.mxu0 0.0
  %2733 = vmatpush1.msra.mxu0 0.0
  %2734 = vmatprep.subr.mxu0 0.0
  %2735 = vmatpush1.msra.mxu0 0.0
  %2736 = vmatprep.subr.mxu0 0.0
  %2737 = vmatpush1.msra.mxu0 0.0
  %2738 = vmatprep.subr.mxu0 0.0
  %2739 = vmatpush1.msra.mxu0 0.0
  %2740 = vmatprep.subr.mxu0 0.0
  %2741 = vmatpush1.msra.mxu0 0.0
  %2742 = vmatprep.subr.mxu0 0.0
  %2743 = vmatpush1.msra.mxu0 0.0
  %2744 = vmatprep.subr.mxu0 0.0
  %2745 = vmatpush1.msra.mxu0 0.0
  %2746 = vmatprep.subr.mxu0 0.0
  %2747 = vmatpush1.msra.mxu0 0.0
  %2748 = vmatprep.subr.mxu0 0.0
  %2749 = vmatpush1.msra.mxu0 0.0
  %2750 = vmatprep.subr.mxu0 0.0
  %2751 = vmatpush1.msra.mxu0 0.0
  %2752 = vmatprep.subr.mxu0 0.0
  %2753 = vmatpush1.msra.mxu0 0.0
  %2754 = vmatprep.subr.mxu0 0.0
  %2755 = vmatpush1.msra.mxu0 0.0
  %2756 = vmatprep.subr.mxu0 0.0
  %2757 = vmatpush1.msra.mxu0 0.0
  %2758 = vmatprep.subr.mxu0 0.0
  %2759 = vmatpush1.msra.mxu0 0.0
  %2760 = vmatprep.subr.mxu0 0.0
  %2761 = vmatpush1.msra.mxu0 0.0
  %2762 = vmatprep.subr.mxu0 0.0
  %2763 = vmatpush1.msra.mxu0 0.0
  %2764 = vmatprep.subr.mxu0 0.0
  %2765 = vmatpush1.msra.mxu0 0.0
  %2766 = vmatprep.subr.mxu0 0.0
  %2767 = vmatpush1.msra.mxu0 0.0
  %2768 = vmatprep.subr.mxu0 0.0
  %2769 = vmatpush1.msra.mxu0 0.0
  %2770 = vmatprep.mubr.f32.mxu0 0.0
  %2771 = vmatmul.mubr.f32.gmra.mrb[0].mxu0 %v2046
  %v2772 = vpop.f32.mrb[0].mxu0
  %v2773 = vadd.f32 0.0, %v2772
  %v2774 = vpop.f32.mrb[0].mxu0
  %2775 = vmatprep.mubr.f32.mxu0 0.0
  %2776 = vmatmul.mubr.f32.gmra.mrb[0].mxu0 %v2049
  %v2777 = vpop.f32.mrb[0].mxu0
  %v2778 = vadd.f32 0.0, %v2777
  %v2779 = vpop.f32.mrb[0].mxu0
  %2780 = vdwg.mxu0
  %2781 = vmatprep.subr.mxu0 0.0
  %2782 = vmatpush1.msra.mxu0 %v2041
  %2783 = vmatprep.subr.mxu0 0.0
  %2784 = vmatpush1.msra.mxu0 0.0
  %2785 = vmatprep.subr.mxu0 0.0
  %2786 = vmatpush1.msra.mxu0 0.0
  %2787 = vmatprep.subr.mxu0 0.0
  %2788 = vmatpush1.msra.mxu0 0.0
  %2789 = vmatprep.subr.mxu0 0.0
  %2790 = vmatpush1.msra.mxu0 0.0
  %2791 = vmatprep.subr.mxu0 0.0
  %2792 = vmatpush1.msra.mxu0 0.0
  %2793 = vmatprep.subr.mxu0 0.0
  %2794 = vmatpush1.msra.mxu0 0.0
  %2795 = vmatprep.subr.mxu0 0.0
  %2796 = vmatpush1.msra.mxu0 0.0
  %2797 = vmatprep.subr.mxu0 0.0
  %2798 = vmatpush1.msra.mxu0 0.0
  %2799 = vmatprep.subr.mxu0 0.0
  %2800 = vmatpush1.msra.mxu0 0.0
  %2801 = vmatprep.subr.mxu0 0.0
  %2802 = vmatpush1.msra.mxu0 0.0
  %2803 = vmatprep.subr.mxu0 0.0
  %2804 = vmatpush1.msra.mxu0 0.0
  %2805 = vmatprep.subr.mxu0 0.0
  %2806 = vmatpush1.msra.mxu0 0.0
  %2807 = vmatprep.subr.mxu0 0.0
  %2808 = vmatpush1.msra.mxu0 0.0
  %2809 = vmatprep.subr.mxu0 0.0
  %2810 = vmatpush1.msra.mxu0 0.0
  %2811 = vmatprep.subr.mxu0 0.0
  %2812 = vmatpush1.msra.mxu0 0.0
  %2813 = vmatprep.subr.mxu0 0.0
  %2814 = vmatpush1.msra.mxu0 0.0
  %2815 = vmatprep.subr.mxu0 0.0
  %2816 = vmatpush1.msra.mxu0 0.0
  %2817 = vmatprep.subr.mxu0 0.0
  %2818 = vmatpush1.msra.mxu0 0.0
  %2819 = vmatprep.subr.mxu0 0.0
  %2820 = vmatpush1.msra.mxu0 0.0
  %2821 = vmatprep.subr.mxu0 0.0
  %2822 = vmatpush1.msra.mxu0 0.0
  %2823 = vmatprep.subr.mxu0 0.0
  %2824 = vmatpush1.msra.mxu0 0.0
  %2825 = vmatprep.subr.mxu0 0.0
  %2826 = vmatpush1.msra.mxu0 0.0
  %2827 = vmatprep.subr.mxu0 0.0
  %2828 = vmatpush1.msra.mxu0 0.0
  %2829 = vmatprep.subr.mxu0 0.0
  %2830 = vmatpush1.msra.mxu0 0.0
  %2831 = vmatprep.subr.mxu0 0.0
  %2832 = vmatpush1.msra.mxu0 0.0
  %2833 = vmatprep.subr.mxu0 0.0
  %2834 = vmatpush1.msra.mxu0 0.0
  %2835 = vmatprep.subr.mxu0 0.0
  %2836 = vmatpush1.msra.mxu0 0.0
  %2837 = vmatprep.subr.mxu0 0.0
  %2838 = vmatpush1.msra.mxu0 0.0
  %2839 = vmatprep.subr.mxu0 0.0
  %2840 = vmatpush1.msra.mxu0 0.0
  %2841 = vmatprep.subr.mxu0 0.0
  %2842 = vmatpush1.msra.mxu0 0.0
  %2843 = vmatprep.subr.mxu0 0.0
  %2844 = vmatpush1.msra.mxu0 0.0
  %2845 = vmatprep.mubr.f32.mxu0 0.0
  %2846 = vmatmul.mubr.f32.gmra.mrb[0].mxu0 %v2130
  %v2847 = vpop.f32.mrb[0].mxu0
  %v2848 = vadd.f32 0.0, %v2847
  %v2849 = vpop.f32.mrb[0].mxu0
  %2850 = vmatprep.mubr.f32.mxu0 0.0
  %2851 = vmatmul.mubr.f32.gmra.mrb[0].mxu0 %v2133
  %v2852 = vpop.f32.mrb[0].mxu0
  %v2853 = vadd.f32 0.0, %v2852
  %v2854 = vpop.f32.mrb[0].mxu0
  %2855 = vdwg.mxu0
  %v2857 = vsel %vm2008, %v2848, 0
  %v2860 = vsel %vm2008, %v2853, 0
  %2862 = vmatprep.subr.mxu0 0.0
  %2863 = vmatpush1.msra.mxu0 %v105
  %2864 = vmatprep.subr.mxu0 0.0
  %2865 = vmatpush1.msra.mxu0 %v106
  %2866 = vmatprep.subr.mxu0 0.0
  %2867 = vmatpush1.msra.mxu0 %v107
  %2868 = vmatprep.subr.mxu0 0.0
  %2869 = vmatpush1.msra.mxu0 %v108
  %2870 = vmatprep.subr.mxu0 0.0
  %2871 = vmatpush1.msra.mxu0 0.0
  %2872 = vmatprep.subr.mxu0 0.0
  %2873 = vmatpush1.msra.mxu0 0.0
  %2874 = vmatprep.subr.mxu0 0.0
  %2875 = vmatpush1.msra.mxu0 0.0
  %2876 = vmatprep.subr.mxu0 0.0
  %2877 = vmatpush1.msra.mxu0 0.0
  %2878 = vmatprep.subr.mxu0 0.0
  %2879 = vmatpush1.msra.mxu0 0.0
  %2880 = vmatprep.subr.mxu0 0.0
  %2881 = vmatpush1.msra.mxu0 0.0
  %2882 = vmatprep.subr.mxu0 0.0
  %2883 = vmatpush1.msra.mxu0 0.0
  %2884 = vmatprep.subr.mxu0 0.0
  %2885 = vmatpush1.msra.mxu0 0.0
  %2886 = vmatprep.subr.mxu0 0.0
  %2887 = vmatpush1.msra.mxu0 0.0
  %2888 = vmatprep.subr.mxu0 0.0
  %2889 = vmatpush1.msra.mxu0 0.0
  %2890 = vmatprep.subr.mxu0 0.0
  %2891 = vmatpush1.msra.mxu0 0.0
  %2892 = vmatprep.subr.mxu0 0.0
  %2893 = vmatpush1.msra.mxu0 0.0
  %2894 = vmatprep.subr.mxu0 0.0
  %2895 = vmatpush1.msra.mxu0 0.0
  %2896 = vmatprep.subr.mxu0 0.0
  %2897 = vmatpush1.msra.mxu0 0.0
  %2898 = vmatprep.subr.mxu0 0.0
  %2899 = vmatpush1.msra.mxu0 0.0
  %2900 = vmatprep.subr.mxu0 0.0
  %2901 = vmatpush1.msra.mxu0 0.0
  %2902 = vmatprep.subr.mxu0 0.0
  %2903 = vmatpush1.msra.mxu0 0.0
  %2904 = vmatprep.subr.mxu0 0.0
  %2905 = vmatpush1.msra.mxu0 0.0
  %2906 = vmatprep.subr.mxu0 0.0
  %2907 = vmatpush1.msra.mxu0 0.0
  %2908 = vmatprep.subr.mxu0 0.0
  %2909 = vmatpush1.msra.mxu0 0.0
  %2910 = vmatprep.subr.mxu0 0.0
  %2911 = vmatpush1.msra.mxu0 0.0
  %2912 = vmatprep.subr.mxu0 0.0
  %2913 = vmatpush1.msra.mxu0 0.0
  %2914 = vmatprep.subr.mxu0 0.0
  %2915 = vmatpush1.msra.mxu0 0.0
  %2916 = vmatprep.subr.mxu0 0.0
  %2917 = vmatpush1.msra.mxu0 0.0
  %2918 = vmatprep.subr.mxu0 0.0
  %2919 = vmatpush1.msra.mxu0 0.0
  %2920 = vmatprep.subr.mxu0 0.0
  %2921 = vmatpush1.msra.mxu0 0.0
  %2922 = vmatprep.subr.mxu0 0.0
  %2923 = vmatpush1.msra.mxu0 0.0
  %2924 = vmatprep.subr.mxu0 0.0
  %2925 = vmatpush1.msra.mxu0 0.0
  %2926 = vmatprep.mubr.f32.mxu0 0.0
  %2927 = vmatmul.mubr.f32.gmra.mrb[0].mxu0 %v2857
  %v2928 = vpop.f32.mrb[0].mxu0
  %v2929 = vadd.f32 0.0, %v2928
  %v2930 = vpop.f32.mrb[0].mxu0
  %2931 = vmatprep.mubr.f32.mxu0 0.0
  %2932 = vmatmul.mubr.f32.gmra.mrb[0].mxu0 %v2860
  %v2933 = vpop.f32.mrb[0].mxu0
  %v2934 = vadd.f32 0.0, %v2933
  %v2935 = vpop.f32.mrb[0].mxu0
  %2936 = vdwg.mxu0
  %v2938 = vsel %vm2008, %v2773, 0
  %v2941 = vsel %vm2008, %v2778, 0
  %2943 = vmatprep.subr.mxu0 0.0
  %2944 = vmatpush1.msra.mxu0 %v73
  %2945 = vmatprep.subr.mxu0 0.0
  %2946 = vmatpush1.msra.mxu0 %v74
  %2947 = vmatprep.subr.mxu0 0.0
  %2948 = vmatpush1.msra.mxu0 %v75
  %2949 = vmatprep.subr.mxu0 0.0
  %2950 = vmatpush1.msra.mxu0 %v76
  %2951 = vmatprep.subr.mxu0 0.0
  %2952 = vmatpush1.msra.mxu0 0.0
  %2953 = vmatprep.subr.mxu0 0.0
  %2954 = vmatpush1.msra.mxu0 0.0
  %2955 = vmatprep.subr.mxu0 0.0
  %2956 = vmatpush1.msra.mxu0 0.0
  %2957 = vmatprep.subr.mxu0 0.0
  %2958 = vmatpush1.msra.mxu0 0.0
  %2959 = vmatprep.subr.mxu0 0.0
  %2960 = vmatpush1.msra.mxu0 0.0
  %2961 = vmatprep.subr.mxu0 0.0
  %2962 = vmatpush1.msra.mxu0 0.0
  %2963 = vmatprep.subr.mxu0 0.0
  %2964 = vmatpush1.msra.mxu0 0.0
  %2965 = vmatprep.subr.mxu0 0.0
  %2966 = vmatpush1.msra.mxu0 0.0
  %2967 = vmatprep.subr.mxu0 0.0
  %2968 = vmatpush1.msra.mxu0 0.0
  %2969 = vmatprep.subr.mxu0 0.0
  %2970 = vmatpush1.msra.mxu0 0.0
  %2971 = vmatprep.subr.mxu0 0.0
  %2972 = vmatpush1.msra.mxu0 0.0
  %2973 = vmatprep.subr.mxu0 0.0
  %2974 = vmatpush1.msra.mxu0 0.0
  %2975 = vmatprep.subr.mxu0 0.0
  %2976 = vmatpush1.msra.mxu0 0.0
  %2977 = vmatprep.subr.mxu0 0.0
  %2978 = vmatpush1.msra.mxu0 0.0
  %2979 = vmatprep.subr.mxu0 0.0
  %2980 = vmatpush1.msra.mxu0 0.0
  %2981 = vmatprep.subr.mxu0 0.0
  %2982 = vmatpush1.msra.mxu0 0.0
  %2983 = vmatprep.subr.mxu0 0.0
  %2984 = vmatpush1.msra.mxu0 0.0
  %2985 = vmatprep.subr.mxu0 0.0
  %2986 = vmatpush1.msra.mxu0 0.0
  %2987 = vmatprep.subr.mxu0 0.0
  %2988 = vmatpush1.msra.mxu0 0.0
  %2989 = vmatprep.subr.mxu0 0.0
  %2990 = vmatpush1.msra.mxu0 0.0
  %2991 = vmatprep.subr.mxu0 0.0
  %2992 = vmatpush1.msra.mxu0 0.0
  %2993 = vmatprep.subr.mxu0 0.0
  %2994 = vmatpush1.msra.mxu0 0.0
  %2995 = vmatprep.subr.mxu0 0.0
  %2996 = vmatpush1.msra.mxu0 0.0
  %2997 = vmatprep.subr.mxu0 0.0
  %2998 = vmatpush1.msra.mxu0 0.0
  %2999 = vmatprep.subr.mxu0 0.0
  %3000 = vmatpush1.msra.mxu0 0.0
  %3001 = vmatprep.subr.mxu0 0.0
  %3002 = vmatpush1.msra.mxu0 0.0
  %3003 = vmatprep.subr.mxu0 0.0
  %3004 = vmatpush1.msra.mxu0 0.0
  %3005 = vmatprep.subr.mxu0 0.0
  %3006 = vmatpush1.msra.mxu0 0.0
  %3007 = vmatprep.mubr.f32.mxu0 0.0
  %3008 = vmatmul.mubr.f32.gmra.mrb[0].mxu0 %v2938
  %v3009 = vpop.f32.mrb[0].mxu0
  %v3010 = vadd.f32 %v2929, %v3009
  %v3011 = vpop.f32.mrb[0].mxu0
  %3012 = vmatprep.mubr.f32.mxu0 0.0
  %3013 = vmatmul.mubr.f32.gmra.mrb[0].mxu0 %v2941
  %v3014 = vpop.f32.mrb[0].mxu0
  %v3015 = vadd.f32 %v2934, %v3014
  %v3016 = vpop.f32.mrb[0].mxu0
  %3017 = vdwg.mxu0
  %3018 = vmatprep.subr.mxu0 0.0
  %3019 = vmatpush1.msra.mxu0 %v2041
  %3020 = vmatprep.subr.mxu0 0.0
  %3021 = vmatpush1.msra.mxu0 0.0
  %3022 = vmatprep.subr.mxu0 0.0
  %3023 = vmatpush1.msra.mxu0 0.0
  %3024 = vmatprep.subr.mxu0 0.0
  %3025 = vmatpush1.msra.mxu0 0.0
  %3026 = vmatprep.subr.mxu0 0.0
  %3027 = vmatpush1.msra.mxu0 0.0
  %3028 = vmatprep.subr.mxu0 0.0
  %3029 = vmatpush1.msra.mxu0 0.0
  %3030 = vmatprep.subr.mxu0 0.0
  %3031 = vmatpush1.msra.mxu0 0.0
  %3032 = vmatprep.subr.mxu0 0.0
  %3033 = vmatpush1.msra.mxu0 0.0
  %3034 = vmatprep.subr.mxu0 0.0
  %3035 = vmatpush1.msra.mxu0 0.0
  %3036 = vmatprep.subr.mxu0 0.0
  %3037 = vmatpush1.msra.mxu0 0.0
  %3038 = vmatprep.subr.mxu0 0.0
  %3039 = vmatpush1.msra.mxu0 0.0
  %3040 = vmatprep.subr.mxu0 0.0
  %3041 = vmatpush1.msra.mxu0 0.0
  %3042 = vmatprep.subr.mxu0 0.0
  %3043 = vmatpush1.msra.mxu0 0.0
  %3044 = vmatprep.subr.mxu0 0.0
  %3045 = vmatpush1.msra.mxu0 0.0
  %3046 = vmatprep.subr.mxu0 0.0
  %3047 = vmatpush1.msra.mxu0 0.0
  %3048 = vmatprep.subr.mxu0 0.0
  %3049 = vmatpush1.msra.mxu0 0.0
  %3050 = vmatprep.subr.mxu0 0.0
  %3051 = vmatpush1.msra.mxu0 0.0
  %3052 = vmatprep.subr.mxu0 0.0
  %3053 = vmatpush1.msra.mxu0 0.0
  %3054 = vmatprep.subr.mxu0 0.0
  %3055 = vmatpush1.msra.mxu0 0.0
  %3056 = vmatprep.subr.mxu0 0.0
  %3057 = vmatpush1.msra.mxu0 0.0
  %3058 = vmatprep.subr.mxu0 0.0
  %3059 = vmatpush1.msra.mxu0 0.0
  %3060 = vmatprep.subr.mxu0 0.0
  %3061 = vmatpush1.msra.mxu0 0.0
  %3062 = vmatprep.subr.mxu0 0.0
  %3063 = vmatpush1.msra.mxu0 0.0
  %3064 = vmatprep.subr.mxu0 0.0
  %3065 = vmatpush1.msra.mxu0 0.0
  %3066 = vmatprep.subr.mxu0 0.0
  %3067 = vmatpush1.msra.mxu0 0.0
  %3068 = vmatprep.subr.mxu0 0.0
  %3069 = vmatpush1.msra.mxu0 0.0
  %3070 = vmatprep.subr.mxu0 0.0
  %3071 = vmatpush1.msra.mxu0 0.0
  %3072 = vmatprep.subr.mxu0 0.0
  %3073 = vmatpush1.msra.mxu0 0.0
  %3074 = vmatprep.subr.mxu0 0.0
  %3075 = vmatpush1.msra.mxu0 0.0
  %3076 = vmatprep.subr.mxu0 0.0
  %3077 = vmatpush1.msra.mxu0 0.0
  %3078 = vmatprep.subr.mxu0 0.0
  %3079 = vmatpush1.msra.mxu0 0.0
  %3080 = vmatprep.subr.mxu0 0.0
  %3081 = vmatpush1.msra.mxu0 0.0
  %3082 = vmatprep.mubr.f32.mxu0 0.0
  %3083 = vmatmul.mubr.f32.gmra.mrb[0].mxu0 %v2376
  %v3084 = vpop.f32.mrb[0].mxu0
  %v3085 = vadd.f32 0.0, %v3084
  %v3086 = vpop.f32.mrb[0].mxu0
  %3087 = vmatprep.mubr.f32.mxu0 0.0
  %3088 = vmatmul.mubr.f32.gmra.mrb[0].mxu0 %v2379
  %v3089 = vpop.f32.mrb[0].mxu0
  %v3090 = vadd.f32 0.0, %v3089
  %v3091 = vpop.f32.mrb[0].mxu0
  %3092 = vdwg.mxu0
  %v3094 = vsel %vm2008, %v3085, 0
  %v3097 = vsel %vm2008, %v3090, 0
  %3099 = vmatprep.subr.mxu0 0.0
  %3100 = vmatpush1.msra.mxu0 %v138
  %3101 = vmatprep.subr.mxu0 0.0
  %3102 = vmatpush1.msra.mxu0 %v139
  %3103 = vmatprep.subr.mxu0 0.0
  %3104 = vmatpush1.msra.mxu0 %v140
  %3105 = vmatprep.subr.mxu0 0.0
  %3106 = vmatpush1.msra.mxu0 %v141
  %3107 = vmatprep.subr.mxu0 0.0
  %3108 = vmatpush1.msra.mxu0 0.0
  %3109 = vmatprep.subr.mxu0 0.0
  %3110 = vmatpush1.msra.mxu0 0.0
  %3111 = vmatprep.subr.mxu0 0.0
  %3112 = vmatpush1.msra.mxu0 0.0
  %3113 = vmatprep.subr.mxu0 0.0
  %3114 = vmatpush1.msra.mxu0 0.0
  %3115 = vmatprep.subr.mxu0 0.0
  %3116 = vmatpush1.msra.mxu0 0.0
  %3117 = vmatprep.subr.mxu0 0.0
  %3118 = vmatpush1.msra.mxu0 0.0
  %3119 = vmatprep.subr.mxu0 0.0
  %3120 = vmatpush1.msra.mxu0 0.0
  %3121 = vmatprep.subr.mxu0 0.0
  %3122 = vmatpush1.msra.mxu0 0.0
  %3123 = vmatprep.subr.mxu0 0.0
  %3124 = vmatpush1.msra.mxu0 0.0
  %3125 = vmatprep.subr.mxu0 0.0
  %3126 = vmatpush1.msra.mxu0 0.0
  %3127 = vmatprep.subr.mxu0 0.0
  %3128 = vmatpush1.msra.mxu0 0.0
  %3129 = vmatprep.subr.mxu0 0.0
  %3130 = vmatpush1.msra.mxu0 0.0
  %3131 = vmatprep.subr.mxu0 0.0
  %3132 = vmatpush1.msra.mxu0 0.0
  %3133 = vmatprep.subr.mxu0 0.0
  %3134 = vmatpush1.msra.mxu0 0.0
  %3135 = vmatprep.subr.mxu0 0.0
  %3136 = vmatpush1.msra.mxu0 0.0
  %3137 = vmatprep.subr.mxu0 0.0
  %3138 = vmatpush1.msra.mxu0 0.0
  %3139 = vmatprep.subr.mxu0 0.0
  %3140 = vmatpush1.msra.mxu0 0.0
  %3141 = vmatprep.subr.mxu0 0.0
  %3142 = vmatpush1.msra.mxu0 0.0
  %3143 = vmatprep.subr.mxu0 0.0
  %3144 = vmatpush1.msra.mxu0 0.0
  %3145 = vmatprep.subr.mxu0 0.0
  %3146 = vmatpush1.msra.mxu0 0.0
  %3147 = vmatprep.subr.mxu0 0.0
  %3148 = vmatpush1.msra.mxu0 0.0
  %3149 = vmatprep.subr.mxu0 0.0
  %3150 = vmatpush1.msra.mxu0 0.0
  %3151 = vmatprep.subr.mxu0 0.0
  %3152 = vmatpush1.msra.mxu0 0.0
  %3153 = vmatprep.subr.mxu0 0.0
  %3154 = vmatpush1.msra.mxu0 0.0
  %3155 = vmatprep.subr.mxu0 0.0
  %3156 = vmatpush1.msra.mxu0 0.0
  %3157 = vmatprep.subr.mxu0 0.0
  %3158 = vmatpush1.msra.mxu0 0.0
  %3159 = vmatprep.subr.mxu0 0.0
  %3160 = vmatpush1.msra.mxu0 0.0
  %3161 = vmatprep.subr.mxu0 0.0
  %3162 = vmatpush1.msra.mxu0 0.0
  %3163 = vmatprep.mubr.f32.mxu0 0.0
  %3164 = vmatmul.mubr.f32.gmra.mrb[0].mxu0 %v3094
  %v3165 = vpop.f32.mrb[0].mxu0
  %v3166 = vadd.f32 0.0, %v3165
  %v3167 = vpop.f32.mrb[0].mxu0
  %3168 = vmatprep.mubr.f32.mxu0 0.0
  %3169 = vmatmul.mubr.f32.gmra.mrb[0].mxu0 %v3097
  %v3170 = vpop.f32.mrb[0].mxu0
  %v3171 = vadd.f32 0.0, %v3170
  %v3172 = vpop.f32.mrb[0].mxu0
  %3173 = vdwg.mxu0
  %v3174 = vadd.f32 %v3010, %v3166
  %v3175 = vadd.f32 %v3015, %v3171
  %3176 = vmatprep.subr.mxu0 0.0
  %3177 = vmatpush1.msra.mxu0 %v2041
  %3178 = vmatprep.subr.mxu0 0.0
  %3179 = vmatpush1.msra.mxu0 0.0
  %3180 = vmatprep.subr.mxu0 0.0
  %3181 = vmatpush1.msra.mxu0 0.0
  %3182 = vmatprep.subr.mxu0 0.0
  %3183 = vmatpush1.msra.mxu0 0.0
  %3184 = vmatprep.subr.mxu0 0.0
  %3185 = vmatpush1.msra.mxu0 0.0
  %3186 = vmatprep.subr.mxu0 0.0
  %3187 = vmatpush1.msra.mxu0 0.0
  %3188 = vmatprep.subr.mxu0 0.0
  %3189 = vmatpush1.msra.mxu0 0.0
  %3190 = vmatprep.subr.mxu0 0.0
  %3191 = vmatpush1.msra.mxu0 0.0
  %3192 = vmatprep.subr.mxu0 0.0
  %3193 = vmatpush1.msra.mxu0 0.0
  %3194 = vmatprep.subr.mxu0 0.0
  %3195 = vmatpush1.msra.mxu0 0.0
  %3196 = vmatprep.subr.mxu0 0.0
  %3197 = vmatpush1.msra.mxu0 0.0
  %3198 = vmatprep.subr.mxu0 0.0
  %3199 = vmatpush1.msra.mxu0 0.0
  %3200 = vmatprep.subr.mxu0 0.0
  %3201 = vmatpush1.msra.mxu0 0.0
  %3202 = vmatprep.subr.mxu0 0.0
  %3203 = vmatpush1.msra.mxu0 0.0
  %3204 = vmatprep.subr.mxu0 0.0
  %3205 = vmatpush1.msra.mxu0 0.0
  %3206 = vmatprep.subr.mxu0 0.0
  %3207 = vmatpush1.msra.mxu0 0.0
  %3208 = vmatprep.subr.mxu0 0.0
  %3209 = vmatpush1.msra.mxu0 0.0
  %3210 = vmatprep.subr.mxu0 0.0
  %3211 = vmatpush1.msra.mxu0 0.0
  %3212 = vmatprep.subr.mxu0 0.0
  %3213 = vmatpush1.msra.mxu0 0.0
  %3214 = vmatprep.subr.mxu0 0.0
  %3215 = vmatpush1.msra.mxu0 0.0
  %3216 = vmatprep.subr.mxu0 0.0
  %3217 = vmatpush1.msra.mxu0 0.0
  %3218 = vmatprep.subr.mxu0 0.0
  %3219 = vmatpush1.msra.mxu0 0.0
  %3220 = vmatprep.subr.mxu0 0.0
  %3221 = vmatpush1.msra.mxu0 0.0
  %3222 = vmatprep.subr.mxu0 0.0
  %3223 = vmatpush1.msra.mxu0 0.0
  %3224 = vmatprep.subr.mxu0 0.0
  %3225 = vmatpush1.msra.mxu0 0.0
  %3226 = vmatprep.subr.mxu0 0.0
  %3227 = vmatpush1.msra.mxu0 0.0
  %3228 = vmatprep.subr.mxu0 0.0
  %3229 = vmatpush1.msra.mxu0 0.0
  %3230 = vmatprep.subr.mxu0 0.0
  %3231 = vmatpush1.msra.mxu0 0.0
  %3232 = vmatprep.subr.mxu0 0.0
  %3233 = vmatpush1.msra.mxu0 0.0
  %3234 = vmatprep.subr.mxu0 0.0
  %3235 = vmatpush1.msra.mxu0 0.0
  %3236 = vmatprep.subr.mxu0 0.0
  %3237 = vmatpush1.msra.mxu0 0.0
  %3238 = vmatprep.subr.mxu0 0.0
  %3239 = vmatpush1.msra.mxu0 0.0
  %3240 = vmatprep.mubr.f32.mxu0 0.0
  %3241 = vmatmul.mubr.f32.gmra.mrb[0].mxu0 %v2543
  %v3242 = vpop.f32.mrb[0].mxu0
  %v3243 = vadd.f32 0.0, %v3242
  %v3244 = vpop.f32.mrb[0].mxu0
  %3245 = vmatprep.mubr.f32.mxu0 0.0
  %3246 = vmatmul.mubr.f32.gmra.mrb[0].mxu0 %v2546
  %v3247 = vpop.f32.mrb[0].mxu0
  %v3248 = vadd.f32 0.0, %v3247
  %v3249 = vpop.f32.mrb[0].mxu0
  %3250 = vdwg.mxu0
  %v3252 = vsel %vm2008, %v3243, 0
  %v3255 = vsel %vm2008, %v3248, 0
  %3257 = vmatprep.subr.mxu0 0.0
  %3258 = vmatpush1.msra.mxu0 %v171
  %3259 = vmatprep.subr.mxu0 0.0
  %3260 = vmatpush1.msra.mxu0 %v172
  %3261 = vmatprep.subr.mxu0 0.0
  %3262 = vmatpush1.msra.mxu0 %v173
  %3263 = vmatprep.subr.mxu0 0.0
  %3264 = vmatpush1.msra.mxu0 %v174
  %3265 = vmatprep.subr.mxu0 0.0
  %3266 = vmatpush1.msra.mxu0 0.0
  %3267 = vmatprep.subr.mxu0 0.0
  %3268 = vmatpush1.msra.mxu0 0.0
  %3269 = vmatprep.subr.mxu0 0.0
  %3270 = vmatpush1.msra.mxu0 0.0
  %3271 = vmatprep.subr.mxu0 0.0
  %3272 = vmatpush1.msra.mxu0 0.0
  %3273 = vmatprep.subr.mxu0 0.0
  %3274 = vmatpush1.msra.mxu0 0.0
  %3275 = vmatprep.subr.mxu0 0.0
  %3276 = vmatpush1.msra.mxu0 0.0
  %3277 = vmatprep.subr.mxu0 0.0
  %3278 = vmatpush1.msra.mxu0 0.0
  %3279 = vmatprep.subr.mxu0 0.0
  %3280 = vmatpush1.msra.mxu0 0.0
  %3281 = vmatprep.subr.mxu0 0.0
  %3282 = vmatpush1.msra.mxu0 0.0
  %3283 = vmatprep.subr.mxu0 0.0
  %3284 = vmatpush1.msra.mxu0 0.0
  %3285 = vmatprep.subr.mxu0 0.0
  %3286 = vmatpush1.msra.mxu0 0.0
  %3287 = vmatprep.subr.mxu0 0.0
  %3288 = vmatpush1.msra.mxu0 0.0
  %3289 = vmatprep.subr.mxu0 0.0
  %3290 = vmatpush1.msra.mxu0 0.0
  %3291 = vmatprep.subr.mxu0 0.0
  %3292 = vmatpush1.msra.mxu0 0.0
  %3293 = vmatprep.subr.mxu0 0.0
  %3294 = vmatpush1.msra.mxu0 0.0
  %3295 = vmatprep.subr.mxu0 0.0
  %3296 = vmatpush1.msra.mxu0 0.0
  %3297 = vmatprep.subr.mxu0 0.0
  %3298 = vmatpush1.msra.mxu0 0.0
  %3299 = vmatprep.subr.mxu0 0.0
  %3300 = vmatpush1.msra.mxu0 0.0
  %3301 = vmatprep.subr.mxu0 0.0
  %3302 = vmatpush1.msra.mxu0 0.0
  %3303 = vmatprep.subr.mxu0 0.0
  %3304 = vmatpush1.msra.mxu0 0.0
  %3305 = vmatprep.subr.mxu0 0.0
  %3306 = vmatpush1.msra.mxu0 0.0
  %3307 = vmatprep.subr.mxu0 0.0
  %3308 = vmatpush1.msra.mxu0 0.0
  %3309 = vmatprep.subr.mxu0 0.0
  %3310 = vmatpush1.msra.mxu0 0.0
  %3311 = vmatprep.subr.mxu0 0.0
  %3312 = vmatpush1.msra.mxu0 0.0
  %3313 = vmatprep.subr.mxu0 0.0
  %3314 = vmatpush1.msra.mxu0 0.0
  %3315 = vmatprep.subr.mxu0 0.0
  %3316 = vmatpush1.msra.mxu0 0.0
  %3317 = vmatprep.subr.mxu0 0.0
  %3318 = vmatpush1.msra.mxu0 0.0
  %3319 = vmatprep.subr.mxu0 0.0
  %3320 = vmatpush1.msra.mxu0 0.0
  %3321 = vmatprep.mubr.f32.mxu0 0.0
  %3322 = vmatmul.mubr.f32.gmra.mrb[0].mxu0 %v3252
  %v3323 = vpop.f32.mrb[0].mxu0
  %v3324 = vadd.f32 0.0, %v3323
  %v3325 = vpop.f32.mrb[0].mxu0
  %3326 = vmatprep.mubr.f32.mxu0 0.0
  %3327 = vmatmul.mubr.f32.gmra.mrb[0].mxu0 %v3255
  %v3328 = vpop.f32.mrb[0].mxu0
  %v3329 = vadd.f32 0.0, %v3328
  %v3330 = vpop.f32.mrb[0].mxu0
  %3331 = vdwg.mxu0
  %v3332 = vadd.f32 %v3174, %v3324
  %v3333 = vadd.f32 %v3175, %v3329
  %vm3334 = vcmask 130048
  %v3335 = vsel %vm3334, %v2704, 0.0
  %3336 = vadd.xlane.f32.xlu0 %v3335
  %v3337 = vpop.xlane.xlu0 %3336
  %v3338 = vsel %vm3334, %v2705, 0.0
  %3339 = vadd.xlane.f32.xlu0 %v3338
  %v3340 = vpop.xlane.xlu0 %3339
  %v3341 = vadd.f32 %v3337, 0.0
  %v3342 = vadd.f32 %v3340, 0.0
  %v3343 = vsel %vm3334, %v3332, 0.0
  %3344 = vadd.xlane.f32.xlu0 %v3343
  %v3345 = vpop.xlane.xlu0 %3344
  %v3346 = vsel %vm3334, %v3333, 0.0
  %3347 = vadd.xlane.f32.xlu0 %v3346
  %v3348 = vpop.xlane.xlu0 %3347
  %v3349 = vadd.f32 %v3341, %v3345
  %v3350 = vadd.f32 %v3342, %v3348
  %v3351 = vrcp.pop 32.0
  %v3352 = vmul.f32 %v3349, %v3351
  %v3353 = vmul.f32 %v3350, %v3351
  %v3354 = vsub.f32 %v2704, %v3352
  %v3355 = vsub.f32 %v2705, %v3353
  %v3356 = vmul.f32 %v3354, %v3354
  %v3357 = vmul.f32 %v3355, %v3355
  %v3358 = vsel %vm3334, %v3356, 0.0
  %3359 = vadd.xlane.f32.xlu0 %v3358
  %v3360 = vpop.xlane.xlu0 %3359
  %v3361 = vsel %vm3334, %v3357, 0.0
  %3362 = vadd.xlane.f32.xlu0 %v3361
  %v3363 = vpop.xlane.xlu0 %3362
  %v3364 = vadd.f32 %v3360, 0.0
  %v3365 = vadd.f32 %v3363, 0.0
  %v3366 = vsub.f32 %v3332, %v3352
  %v3367 = vsub.f32 %v3333, %v3353
  %v3368 = vmul.f32 %v3366, %v3366
  %v3369 = vmul.f32 %v3367, %v3367
  %v3370 = vsel %vm3334, %v3368, 0.0
  %3371 = vadd.xlane.f32.xlu0 %v3370
  %v3372 = vpop.xlane.xlu0 %3371
  %v3373 = vsel %vm3334, %v3369, 0.0
  %3374 = vadd.xlane.f32.xlu0 %v3373
  %v3375 = vpop.xlane.xlu0 %3374
  %v3376 = vadd.f32 %v3364, %v3372
  %v3377 = vadd.f32 %v3365, %v3375
  %v3378 = vmul.f32 %v3376, %v3351
  %v3379 = vmul.f32 %v3377, %v3351
  %v3380 = vadd.f32 %v3378, 1e-05
  %v3381 = vadd.f32 %v3379, 1e-05
  %v3382 = vrsqrt.pop %v3380
  %v3383 = vrsqrt.pop %v3381
  %v3384 = vmul.f32 %v3354, %v3382
  %v3385 = vmul.f32 %v3355, %v3383
  %vm3386 = vcmp.gt.f32.partialorder %v3384, 0.0
  %vm3387 = vcmp.gt.f32.partialorder %v3385, 0.0
  %v3388 = vmul.f32 %v3384, 0.2
  %v3389 = vmul.f32 %v3385, 0.2
  %v3390 = vsel %vm3386, %v3384, %v3388
  %v3391 = vsel %vm3387, %v3385, %v3389
  %v3392 = vmul.f32 %v3366, %v3382
  %v3393 = vmul.f32 %v3367, %v3383
  %vm3394 = vcmp.gt.f32.partialorder %v3392, 0.0
  %vm3395 = vcmp.gt.f32.partialorder %v3393, 0.0
  %v3396 = vmul.f32 %v3392, 0.2
  %v3397 = vmul.f32 %v3393, 0.2
  %v3398 = vsel %vm3394, %v3392, %v3396
  %v3399 = vsel %vm3395, %v3393, %v3397
  %v3400 = vld [vmem:[%s4] sm:$0xff]
  %v3401 = vld [vmem:[%s4 + $0x8] sm:$0xff]
  %v3402 = vld [vmem:[%s4 + $0x10] sm:$0xff]
  %v3403 = vld [vmem:[%s4 + $0x18] sm:$0xff]
  %v3405 = vsel %vm3334, %v3400, 0
  %v3408 = vsel %vm3334, %v3401, 0
  %v3411 = vsel %vm3334, %v3402, 0
  %v3414 = vsel %vm3334, %v3403, 0
  %3416 = vmatprep.subr.mxu0 0.0
  %3417 = vmatpush1.msra.mxu0 %v3390
  %3418 = vmatprep.subr.mxu0 0.0
  %3419 = vmatpush1.msra.mxu0 %v3391
  %3420 = vmatprep.subr.mxu0 0.0
  %3421 = vmatpush1.msra.mxu0 0.0
  %3422 = vmatprep.subr.mxu0 0.0
  %3423 = vmatpush1.msra.mxu0 0.0
  %3424 = vmatprep.subr.mxu0 0.0
  %3425 = vmatpush1.msra.mxu0 0.0
  %3426 = vmatprep.subr.mxu0 0.0
  %3427 = vmatpush1.msra.mxu0 0.0
  %3428 = vmatprep.subr.mxu0 0.0
  %3429 = vmatpush1.msra.mxu0 0.0
  %3430 = vmatprep.subr.mxu0 0.0
  %3431 = vmatpush1.msra.mxu0 0.0
  %3432 = vmatprep.subr.mxu0 0.0
  %3433 = vmatpush1.msra.mxu0 0.0
  %3434 = vmatprep.subr.mxu0 0.0
  %3435 = vmatpush1.msra.mxu0 0.0
  %3436 = vmatprep.subr.mxu0 0.0
  %3437 = vmatpush1.msra.mxu0 0.0
  %3438 = vmatprep.subr.mxu0 0.0
  %3439 = vmatpush1.msra.mxu0 0.0
  %3440 = vmatprep.subr.mxu0 0.0
  %3441 = vmatpush1.msra.mxu0 0.0
  %3442 = vmatprep.subr.mxu0 0.0
  %3443 = vmatpush1.msra.mxu0 0.0
  %3444 = vmatprep.subr.mxu0 0.0
  %3445 = vmatpush1.msra.mxu0 0.0
  %3446 = vmatprep.subr.mxu0 0.0
  %3447 = vmatpush1.msra.mxu0 0.0
  %3448 = vmatprep.subr.mxu0 0.0
  %3449 = vmatpush1.msra.mxu0 0.0
  %3450 = vmatprep.subr.mxu0 0.0
  %3451 = vmatpush1.msra.mxu0 0.0
  %3452 = vmatprep.subr.mxu0 0.0
  %3453 = vmatpush1.msra.mxu0 0.0
  %3454 = vmatprep.subr.mxu0 0.0
  %3455 = vmatpush1.msra.mxu0 0.0
  %3456 = vmatprep.subr.mxu0 0.0
  %3457 = vmatpush1.msra.mxu0 0.0
  %3458 = vmatprep.subr.mxu0 0.0
  %3459 = vmatpush1.msra.mxu0 0.0
  %3460 = vmatprep.subr.mxu0 0.0
  %3461 = vmatpush1.msra.mxu0 0.0
  %3462 = vmatprep.subr.mxu0 0.0
  %3463 = vmatpush1.msra.mxu0 0.0
  %3464 = vmatprep.subr.mxu0 0.0
  %3465 = vmatpush1.msra.mxu0 0.0
  %3466 = vmatprep.subr.mxu0 0.0
  %3467 = vmatpush1.msra.mxu0 0.0
  %3468 = vmatprep.subr.mxu0 0.0
  %3469 = vmatpush1.msra.mxu0 0.0
  %3470 = vmatprep.subr.mxu0 0.0
  %3471 = vmatpush1.msra.mxu0 0.0
  %3472 = vmatprep.subr.mxu0 0.0
  %3473 = vmatpush1.msra.mxu0 0.0
  %3474 = vmatprep.subr.mxu0 0.0
  %3475 = vmatpush1.msra.mxu0 0.0
  %3476 = vmatprep.subr.mxu0 0.0
  %3477 = vmatpush1.msra.mxu0 0.0
  %3478 = vmatprep.subr.mxu0 0.0
  %3479 = vmatpush1.msra.mxu0 0.0
  %3480 = vmatprep.mubr.f32.mxu0 0.0
  %3481 = vmatmul.mubr.f32.gmra.mrb[0].mxu0 %v3405
  %v3482 = vpop.f32.mrb[0].mxu0
  %v3483 = vadd.f32 0.0, %v3482
  %v3484 = vpop.f32.mrb[0].mxu0
  %3485 = vmatprep.mubr.f32.mxu0 0.0
  %3486 = vmatmul.mubr.f32.gmra.mrb[0].mxu0 %v3408
  %v3487 = vpop.f32.mrb[0].mxu0
  %v3488 = vadd.f32 0.0, %v3487
  %v3489 = vpop.f32.mrb[0].mxu0
  %3490 = vmatprep.mubr.f32.mxu0 0.0
  %3491 = vmatmul.mubr.f32.gmra.mrb[0].mxu0 %v3411
  %v3492 = vpop.f32.mrb[0].mxu0
  %v3493 = vadd.f32 0.0, %v3492
  %v3494 = vpop.f32.mrb[0].mxu0
  %3495 = vmatprep.mubr.f32.mxu0 0.0
  %3496 = vmatmul.mubr.f32.gmra.mrb[0].mxu0 %v3414
  %v3497 = vpop.f32.mrb[0].mxu0
  %v3498 = vadd.f32 0.0, %v3497
  %v3499 = vpop.f32.mrb[0].mxu0
  %3500 = vdwg.mxu0
  %s3501 = scalar_lea.vmem %s4, 32
  %v3502 = vld [vmem:[%s3501] sm:$0xff]
  %v3503 = vld [vmem:[%s3501 + $0x8] sm:$0xff]
  %v3504 = vld [vmem:[%s3501 + $0x10] sm:$0xff]
  %v3505 = vld [vmem:[%s3501 + $0x18] sm:$0xff]
  %v3507 = vsel %vm3334, %v3502, 0
  %v3510 = vsel %vm3334, %v3503, 0
  %v3513 = vsel %vm3334, %v3504, 0
  %v3516 = vsel %vm3334, %v3505, 0
  %3518 = vmatprep.subr.mxu0 0.0
  %3519 = vmatpush1.msra.mxu0 %v3390
  %3520 = vmatprep.subr.mxu0 0.0
  %3521 = vmatpush1.msra.mxu0 %v3391
  %3522 = vmatprep.subr.mxu0 0.0
  %3523 = vmatpush1.msra.mxu0 0.0
  %3524 = vmatprep.subr.mxu0 0.0
  %3525 = vmatpush1.msra.mxu0 0.0
  %3526 = vmatprep.subr.mxu0 0.0
  %3527 = vmatpush1.msra.mxu0 0.0
  %3528 = vmatprep.subr.mxu0 0.0
  %3529 = vmatpush1.msra.mxu0 0.0
  %3530 = vmatprep.subr.mxu0 0.0
  %3531 = vmatpush1.msra.mxu0 0.0
  %3532 = vmatprep.subr.mxu0 0.0
  %3533 = vmatpush1.msra.mxu0 0.0
  %3534 = vmatprep.subr.mxu0 0.0
  %3535 = vmatpush1.msra.mxu0 0.0
  %3536 = vmatprep.subr.mxu0 0.0
  %3537 = vmatpush1.msra.mxu0 0.0
  %3538 = vmatprep.subr.mxu0 0.0
  %3539 = vmatpush1.msra.mxu0 0.0
  %3540 = vmatprep.subr.mxu0 0.0
  %3541 = vmatpush1.msra.mxu0 0.0
  %3542 = vmatprep.subr.mxu0 0.0
  %3543 = vmatpush1.msra.mxu0 0.0
  %3544 = vmatprep.subr.mxu0 0.0
  %3545 = vmatpush1.msra.mxu0 0.0
  %3546 = vmatprep.subr.mxu0 0.0
  %3547 = vmatpush1.msra.mxu0 0.0
  %3548 = vmatprep.subr.mxu0 0.0
  %3549 = vmatpush1.msra.mxu0 0.0
  %3550 = vmatprep.subr.mxu0 0.0
  %3551 = vmatpush1.msra.mxu0 0.0
  %3552 = vmatprep.subr.mxu0 0.0
  %3553 = vmatpush1.msra.mxu0 0.0
  %3554 = vmatprep.subr.mxu0 0.0
  %3555 = vmatpush1.msra.mxu0 0.0
  %3556 = vmatprep.subr.mxu0 0.0
  %3557 = vmatpush1.msra.mxu0 0.0
  %3558 = vmatprep.subr.mxu0 0.0
  %3559 = vmatpush1.msra.mxu0 0.0
  %3560 = vmatprep.subr.mxu0 0.0
  %3561 = vmatpush1.msra.mxu0 0.0
  %3562 = vmatprep.subr.mxu0 0.0
  %3563 = vmatpush1.msra.mxu0 0.0
  %3564 = vmatprep.subr.mxu0 0.0
  %3565 = vmatpush1.msra.mxu0 0.0
  %3566 = vmatprep.subr.mxu0 0.0
  %3567 = vmatpush1.msra.mxu0 0.0
  %3568 = vmatprep.subr.mxu0 0.0
  %3569 = vmatpush1.msra.mxu0 0.0
  %3570 = vmatprep.subr.mxu0 0.0
  %3571 = vmatpush1.msra.mxu0 0.0
  %3572 = vmatprep.subr.mxu0 0.0
  %3573 = vmatpush1.msra.mxu0 0.0
  %3574 = vmatprep.subr.mxu0 0.0
  %3575 = vmatpush1.msra.mxu0 0.0
  %3576 = vmatprep.subr.mxu0 0.0
  %3577 = vmatpush1.msra.mxu0 0.0
  %3578 = vmatprep.subr.mxu0 0.0
  %3579 = vmatpush1.msra.mxu0 0.0
  %3580 = vmatprep.subr.mxu0 0.0
  %3581 = vmatpush1.msra.mxu0 0.0
  %3582 = vmatprep.mubr.f32.mxu0 0.0
  %3583 = vmatmul.mubr.f32.gmra.mrb[0].mxu0 %v3507
  %v3584 = vpop.f32.mrb[0].mxu0
  %v3585 = vadd.f32 0.0, %v3584
  %v3586 = vpop.f32.mrb[0].mxu0
  %3587 = vmatprep.mubr.f32.mxu0 0.0
  %3588 = vmatmul.mubr.f32.gmra.mrb[0].mxu0 %v3510
  %v3589 = vpop.f32.mrb[0].mxu0
  %v3590 = vadd.f32 0.0, %v3589
  %v3591 = vpop.f32.mrb[0].mxu0
  %3592 = vmatprep.mubr.f32.mxu0 0.0
  %3593 = vmatmul.mubr.f32.gmra.mrb[0].mxu0 %v3513
  %v3594 = vpop.f32.mrb[0].mxu0
  %v3595 = vadd.f32 0.0, %v3594
  %v3596 = vpop.f32.mrb[0].mxu0
  %3597 = vmatprep.mubr.f32.mxu0 0.0
  %3598 = vmatmul.mubr.f32.gmra.mrb[0].mxu0 %v3516
  %v3599 = vpop.f32.mrb[0].mxu0
  %v3600 = vadd.f32 0.0, %v3599
  %v3601 = vpop.f32.mrb[0].mxu0
  %3602 = vdwg.mxu0
  %v3604 = vsel %vm3334, %v3585, 0
  %v3607 = vsel %vm3334, %v3590, 0
  %v3610 = vsel %vm3334, %v3595, 0
  %v3613 = vsel %vm3334, %v3600, 0
  %3615 = vmatprep.subr.mxu0 0.0
  %3616 = vmatpush1.msra.mxu0 %v105
  %3617 = vmatprep.subr.mxu0 0.0
  %3618 = vmatpush1.msra.mxu0 %v106
  %3619 = vmatprep.subr.mxu0 0.0
  %3620 = vmatpush1.msra.mxu0 0.0
  %3621 = vmatprep.subr.mxu0 0.0
  %3622 = vmatpush1.msra.mxu0 0.0
  %3623 = vmatprep.subr.mxu0 0.0
  %3624 = vmatpush1.msra.mxu0 0.0
  %3625 = vmatprep.subr.mxu0 0.0
  %3626 = vmatpush1.msra.mxu0 0.0
  %3627 = vmatprep.subr.mxu0 0.0
  %3628 = vmatpush1.msra.mxu0 0.0
  %3629 = vmatprep.subr.mxu0 0.0
  %3630 = vmatpush1.msra.mxu0 0.0
  %3631 = vmatprep.subr.mxu0 0.0
  %3632 = vmatpush1.msra.mxu0 0.0
  %3633 = vmatprep.subr.mxu0 0.0
  %3634 = vmatpush1.msra.mxu0 0.0
  %3635 = vmatprep.subr.mxu0 0.0
  %3636 = vmatpush1.msra.mxu0 0.0
  %3637 = vmatprep.subr.mxu0 0.0
  %3638 = vmatpush1.msra.mxu0 0.0
  %3639 = vmatprep.subr.mxu0 0.0
  %3640 = vmatpush1.msra.mxu0 0.0
  %3641 = vmatprep.subr.mxu0 0.0
  %3642 = vmatpush1.msra.mxu0 0.0
  %3643 = vmatprep.subr.mxu0 0.0
  %3644 = vmatpush1.msra.mxu0 0.0
  %3645 = vmatprep.subr.mxu0 0.0
  %3646 = vmatpush1.msra.mxu0 0.0
  %3647 = vmatprep.subr.mxu0 0.0
  %3648 = vmatpush1.msra.mxu0 0.0
  %3649 = vmatprep.subr.mxu0 0.0
  %3650 = vmatpush1.msra.mxu0 0.0
  %3651 = vmatprep.subr.mxu0 0.0
  %3652 = vmatpush1.msra.mxu0 0.0
  %3653 = vmatprep.subr.mxu0 0.0
  %3654 = vmatpush1.msra.mxu0 0.0
  %3655 = vmatprep.subr.mxu0 0.0
  %3656 = vmatpush1.msra.mxu0 0.0
  %3657 = vmatprep.subr.mxu0 0.0
  %3658 = vmatpush1.msra.mxu0 0.0
  %3659 = vmatprep.subr.mxu0 0.0
  %3660 = vmatpush1.msra.mxu0 0.0
  %3661 = vmatprep.subr.mxu0 0.0
  %3662 = vmatpush1.msra.mxu0 0.0
  %3663 = vmatprep.subr.mxu0 0.0
  %3664 = vmatpush1.msra.mxu0 0.0
  %3665 = vmatprep.subr.mxu0 0.0
  %3666 = vmatpush1.msra.mxu0 0.0
  %3667 = vmatprep.subr.mxu0 0.0
  %3668 = vmatpush1.msra.mxu0 0.0
  %3669 = vmatprep.subr.mxu0 0.0
  %3670 = vmatpush1.msra.mxu0 0.0
  %3671 = vmatprep.subr.mxu0 0.0
  %3672 = vmatpush1.msra.mxu0 0.0
  %3673 = vmatprep.subr.mxu0 0.0
  %3674 = vmatpush1.msra.mxu0 0.0
  %3675 = vmatprep.subr.mxu0 0.0
  %3676 = vmatpush1.msra.mxu0 0.0
  %3677 = vmatprep.subr.mxu0 0.0
  %3678 = vmatpush1.msra.mxu0 0.0
  %3679 = vmatprep.mubr.f32.mxu0 0.0
  %3680 = vmatmul.mubr.f32.gmra.mrb[0].mxu0 %v3604
  %v3681 = vpop.f32.mrb[0].mxu0
  %v3682 = vadd.f32 0.0, %v3681
  %v3683 = vpop.f32.mrb[0].mxu0
  %3684 = vmatprep.mubr.f32.mxu0 0.0
  %3685 = vmatmul.mubr.f32.gmra.mrb[0].mxu0 %v3607
  %v3686 = vpop.f32.mrb[0].mxu0
  %v3687 = vadd.f32 0.0, %v3686
  %v3688 = vpop.f32.mrb[0].mxu0
  %3689 = vmatprep.mubr.f32.mxu0 0.0
  %3690 = vmatmul.mubr.f32.gmra.mrb[0].mxu0 %v3610
  %v3691 = vpop.f32.mrb[0].mxu0
  %v3692 = vadd.f32 0.0, %v3691
  %v3693 = vpop.f32.mrb[0].mxu0
  %3694 = vmatprep.mubr.f32.mxu0 0.0
  %3695 = vmatmul.mubr.f32.gmra.mrb[0].mxu0 %v3613
  %v3696 = vpop.f32.mrb[0].mxu0
  %v3697 = vadd.f32 0.0, %v3696
  %v3698 = vpop.f32.mrb[0].mxu0
  %3699 = vdwg.mxu0
  %v3701 = vsel %vm3334, %v3483, 0
  %v3704 = vsel %vm3334, %v3488, 0
  %v3707 = vsel %vm3334, %v3493, 0
  %v3710 = vsel %vm3334, %v3498, 0
  %3712 = vmatprep.subr.mxu0 0.0
  %3713 = vmatpush1.msra.mxu0 %v73
  %3714 = vmatprep.subr.mxu0 0.0
  %3715 = vmatpush1.msra.mxu0 %v74
  %3716 = vmatprep.subr.mxu0 0.0
  %3717 = vmatpush1.msra.mxu0 0.0
  %3718 = vmatprep.subr.mxu0 0.0
  %3719 = vmatpush1.msra.mxu0 0.0
  %3720 = vmatprep.subr.mxu0 0.0
  %3721 = vmatpush1.msra.mxu0 0.0
  %3722 = vmatprep.subr.mxu0 0.0
  %3723 = vmatpush1.msra.mxu0 0.0
  %3724 = vmatprep.subr.mxu0 0.0
  %3725 = vmatpush1.msra.mxu0 0.0
  %3726 = vmatprep.subr.mxu0 0.0
  %3727 = vmatpush1.msra.mxu0 0.0
  %3728 = vmatprep.subr.mxu0 0.0
  %3729 = vmatpush1.msra.mxu0 0.0
  %3730 = vmatprep.subr.mxu0 0.0
  %3731 = vmatpush1.msra.mxu0 0.0
  %3732 = vmatprep.subr.mxu0 0.0
  %3733 = vmatpush1.msra.mxu0 0.0
  %3734 = vmatprep.subr.mxu0 0.0
  %3735 = vmatpush1.msra.mxu0 0.0
  %3736 = vmatprep.subr.mxu0 0.0
  %3737 = vmatpush1.msra.mxu0 0.0
  %3738 = vmatprep.subr.mxu0 0.0
  %3739 = vmatpush1.msra.mxu0 0.0
  %3740 = vmatprep.subr.mxu0 0.0
  %3741 = vmatpush1.msra.mxu0 0.0
  %3742 = vmatprep.subr.mxu0 0.0
  %3743 = vmatpush1.msra.mxu0 0.0
  %3744 = vmatprep.subr.mxu0 0.0
  %3745 = vmatpush1.msra.mxu0 0.0
  %3746 = vmatprep.subr.mxu0 0.0
  %3747 = vmatpush1.msra.mxu0 0.0
  %3748 = vmatprep.subr.mxu0 0.0
  %3749 = vmatpush1.msra.mxu0 0.0
  %3750 = vmatprep.subr.mxu0 0.0
  %3751 = vmatpush1.msra.mxu0 0.0
  %3752 = vmatprep.subr.mxu0 0.0
  %3753 = vmatpush1.msra.mxu0 0.0
  %3754 = vmatprep.subr.mxu0 0.0
  %3755 = vmatpush1.msra.mxu0 0.0
  %3756 = vmatprep.subr.mxu0 0.0
  %3757 = vmatpush1.msra.mxu0 0.0
  %3758 = vmatprep.subr.mxu0 0.0
  %3759 = vmatpush1.msra.mxu0 0.0
  %3760 = vmatprep.subr.mxu0 0.0
  %3761 = vmatpush1.msra.mxu0 0.0
  %3762 = vmatprep.subr.mxu0 0.0
  %3763 = vmatpush1.msra.mxu0 0.0
  %3764 = vmatprep.subr.mxu0 0.0
  %3765 = vmatpush1.msra.mxu0 0.0
  %3766 = vmatprep.subr.mxu0 0.0
  %3767 = vmatpush1.msra.mxu0 0.0
  %3768 = vmatprep.subr.mxu0 0.0
  %3769 = vmatpush1.msra.mxu0 0.0
  %3770 = vmatprep.subr.mxu0 0.0
  %3771 = vmatpush1.msra.mxu0 0.0
  %3772 = vmatprep.subr.mxu0 0.0
  %3773 = vmatpush1.msra.mxu0 0.0
  %3774 = vmatprep.subr.mxu0 0.0
  %3775 = vmatpush1.msra.mxu0 0.0
  %3776 = vmatprep.mubr.f32.mxu0 0.0
  %3777 = vmatmul.mubr.f32.gmra.mrb[0].mxu0 %v3701
  %v3778 = vpop.f32.mrb[0].mxu0
  %v3779 = vadd.f32 %v3682, %v3778
  %v3780 = vpop.f32.mrb[0].mxu0
  %3781 = vmatprep.mubr.f32.mxu0 0.0
  %3782 = vmatmul.mubr.f32.gmra.mrb[0].mxu0 %v3704
  %v3783 = vpop.f32.mrb[0].mxu0
  %v3784 = vadd.f32 %v3687, %v3783
  %v3785 = vpop.f32.mrb[0].mxu0
  %3786 = vmatprep.mubr.f32.mxu0 0.0
  %3787 = vmatmul.mubr.f32.gmra.mrb[0].mxu0 %v3707
  %v3788 = vpop.f32.mrb[0].mxu0
  %v3789 = vadd.f32 %v3692, %v3788
  %v3790 = vpop.f32.mrb[0].mxu0
  %3791 = vmatprep.mubr.f32.mxu0 0.0
  %3792 = vmatmul.mubr.f32.gmra.mrb[0].mxu0 %v3710
  %v3793 = vpop.f32.mrb[0].mxu0
  %v3794 = vadd.f32 %v3697, %v3793
  %v3795 = vpop.f32.mrb[0].mxu0
  %3796 = vdwg.mxu0
  %s3797 = scalar_lea.vmem %s4, 64
  %v3798 = vld [vmem:[%s3797] sm:$0xff]
  %v3799 = vld [vmem:[%s3797 + $0x8] sm:$0xff]
  %v3800 = vld [vmem:[%s3797 + $0x10] sm:$0xff]
  %v3801 = vld [vmem:[%s3797 + $0x18] sm:$0xff]
  %v3803 = vsel %vm3334, %v3798, 0
  %v3806 = vsel %vm3334, %v3799, 0
  %v3809 = vsel %vm3334, %v3800, 0
  %v3812 = vsel %vm3334, %v3801, 0
  %3814 = vmatprep.subr.mxu0 0.0
  %3815 = vmatpush1.msra.mxu0 %v3390
  %3816 = vmatprep.subr.mxu0 0.0
  %3817 = vmatpush1.msra.mxu0 %v3391
  %3818 = vmatprep.subr.mxu0 0.0
  %3819 = vmatpush1.msra.mxu0 0.0
  %3820 = vmatprep.subr.mxu0 0.0
  %3821 = vmatpush1.msra.mxu0 0.0
  %3822 = vmatprep.subr.mxu0 0.0
  %3823 = vmatpush1.msra.mxu0 0.0
  %3824 = vmatprep.subr.mxu0 0.0
  %3825 = vmatpush1.msra.mxu0 0.0
  %3826 = vmatprep.subr.mxu0 0.0
  %3827 = vmatpush1.msra.mxu0 0.0
  %3828 = vmatprep.subr.mxu0 0.0
  %3829 = vmatpush1.msra.mxu0 0.0
  %3830 = vmatprep.subr.mxu0 0.0
  %3831 = vmatpush1.msra.mxu0 0.0
  %3832 = vmatprep.subr.mxu0 0.0
  %3833 = vmatpush1.msra.mxu0 0.0
  %3834 = vmatprep.subr.mxu0 0.0
  %3835 = vmatpush1.msra.mxu0 0.0
  %3836 = vmatprep.subr.mxu0 0.0
  %3837 = vmatpush1.msra.mxu0 0.0
  %3838 = vmatprep.subr.mxu0 0.0
  %3839 = vmatpush1.msra.mxu0 0.0
  %3840 = vmatprep.subr.mxu0 0.0
  %3841 = vmatpush1.msra.mxu0 0.0
  %3842 = vmatprep.subr.mxu0 0.0
  %3843 = vmatpush1.msra.mxu0 0.0
  %3844 = vmatprep.subr.mxu0 0.0
  %3845 = vmatpush1.msra.mxu0 0.0
  %3846 = vmatprep.subr.mxu0 0.0
  %3847 = vmatpush1.msra.mxu0 0.0
  %3848 = vmatprep.subr.mxu0 0.0
  %3849 = vmatpush1.msra.mxu0 0.0
  %3850 = vmatprep.subr.mxu0 0.0
  %3851 = vmatpush1.msra.mxu0 0.0
  %3852 = vmatprep.subr.mxu0 0.0
  %3853 = vmatpush1.msra.mxu0 0.0
  %3854 = vmatprep.subr.mxu0 0.0
  %3855 = vmatpush1.msra.mxu0 0.0
  %3856 = vmatprep.subr.mxu0 0.0
  %3857 = vmatpush1.msra.mxu0 0.0
  %3858 = vmatprep.subr.mxu0 0.0
  %3859 = vmatpush1.msra.mxu0 0.0
  %3860 = vmatprep.subr.mxu0 0.0
  %3861 = vmatpush1.msra.mxu0 0.0
  %3862 = vmatprep.subr.mxu0 0.0
  %3863 = vmatpush1.msra.mxu0 0.0
  %3864 = vmatprep.subr.mxu0 0.0
  %3865 = vmatpush1.msra.mxu0 0.0
  %3866 = vmatprep.subr.mxu0 0.0
  %3867 = vmatpush1.msra.mxu0 0.0
  %3868 = vmatprep.subr.mxu0 0.0
  %3869 = vmatpush1.msra.mxu0 0.0
  %3870 = vmatprep.subr.mxu0 0.0
  %3871 = vmatpush1.msra.mxu0 0.0
  %3872 = vmatprep.subr.mxu0 0.0
  %3873 = vmatpush1.msra.mxu0 0.0
  %3874 = vmatprep.subr.mxu0 0.0
  %3875 = vmatpush1.msra.mxu0 0.0
  %3876 = vmatprep.subr.mxu0 0.0
  %3877 = vmatpush1.msra.mxu0 0.0
  %3878 = vmatprep.mubr.f32.mxu0 0.0
  %3879 = vmatmul.mubr.f32.gmra.mrb[0].mxu0 %v3803
  %v3880 = vpop.f32.mrb[0].mxu0
  %v3881 = vadd.f32 0.0, %v3880
  %v3882 = vpop.f32.mrb[0].mxu0
  %3883 = vmatprep.mubr.f32.mxu0 0.0
  %3884 = vmatmul.mubr.f32.gmra.mrb[0].mxu0 %v3806
  %v3885 = vpop.f32.mrb[0].mxu0
  %v3886 = vadd.f32 0.0, %v3885
  %v3887 = vpop.f32.mrb[0].mxu0
  %3888 = vmatprep.mubr.f32.mxu0 0.0
  %3889 = vmatmul.mubr.f32.gmra.mrb[0].mxu0 %v3809
  %v3890 = vpop.f32.mrb[0].mxu0
  %v3891 = vadd.f32 0.0, %v3890
  %v3892 = vpop.f32.mrb[0].mxu0
  %3893 = vmatprep.mubr.f32.mxu0 0.0
  %3894 = vmatmul.mubr.f32.gmra.mrb[0].mxu0 %v3812
  %v3895 = vpop.f32.mrb[0].mxu0
  %v3896 = vadd.f32 0.0, %v3895
  %v3897 = vpop.f32.mrb[0].mxu0
  %3898 = vdwg.mxu0
  %v3900 = vsel %vm3334, %v3881, 0
  %v3903 = vsel %vm3334, %v3886, 0
  %v3906 = vsel %vm3334, %v3891, 0
  %v3909 = vsel %vm3334, %v3896, 0
  %3911 = vmatprep.subr.mxu0 0.0
  %3912 = vmatpush1.msra.mxu0 %v138
  %3913 = vmatprep.subr.mxu0 0.0
  %3914 = vmatpush1.msra.mxu0 %v139
  %3915 = vmatprep.subr.mxu0 0.0
  %3916 = vmatpush1.msra.mxu0 0.0
  %3917 = vmatprep.subr.mxu0 0.0
  %3918 = vmatpush1.msra.mxu0 0.0
  %3919 = vmatprep.subr.mxu0 0.0
  %3920 = vmatpush1.msra.mxu0 0.0
  %3921 = vmatprep.subr.mxu0 0.0
  %3922 = vmatpush1.msra.mxu0 0.0
  %3923 = vmatprep.subr.mxu0 0.0
  %3924 = vmatpush1.msra.mxu0 0.0
  %3925 = vmatprep.subr.mxu0 0.0
  %3926 = vmatpush1.msra.mxu0 0.0
  %3927 = vmatprep.subr.mxu0 0.0
  %3928 = vmatpush1.msra.mxu0 0.0
  %3929 = vmatprep.subr.mxu0 0.0
  %3930 = vmatpush1.msra.mxu0 0.0
  %3931 = vmatprep.subr.mxu0 0.0
  %3932 = vmatpush1.msra.mxu0 0.0
  %3933 = vmatprep.subr.mxu0 0.0
  %3934 = vmatpush1.msra.mxu0 0.0
  %3935 = vmatprep.subr.mxu0 0.0
  %3936 = vmatpush1.msra.mxu0 0.0
  %3937 = vmatprep.subr.mxu0 0.0
  %3938 = vmatpush1.msra.mxu0 0.0
  %3939 = vmatprep.subr.mxu0 0.0
  %3940 = vmatpush1.msra.mxu0 0.0
  %3941 = vmatprep.subr.mxu0 0.0
  %3942 = vmatpush1.msra.mxu0 0.0
  %3943 = vmatprep.subr.mxu0 0.0
  %3944 = vmatpush1.msra.mxu0 0.0
  %3945 = vmatprep.subr.mxu0 0.0
  %3946 = vmatpush1.msra.mxu0 0.0
  %3947 = vmatprep.subr.mxu0 0.0
  %3948 = vmatpush1.msra.mxu0 0.0
  %3949 = vmatprep.subr.mxu0 0.0
  %3950 = vmatpush1.msra.mxu0 0.0
  %3951 = vmatprep.subr.mxu0 0.0
  %3952 = vmatpush1.msra.mxu0 0.0
  %3953 = vmatprep.subr.mxu0 0.0
  %3954 = vmatpush1.msra.mxu0 0.0
  %3955 = vmatprep.subr.mxu0 0.0
  %3956 = vmatpush1.msra.mxu0 0.0
  %3957 = vmatprep.subr.mxu0 0.0
  %3958 = vmatpush1.msra.mxu0 0.0
  %3959 = vmatprep.subr.mxu0 0.0
  %3960 = vmatpush1.msra.mxu0 0.0
  %3961 = vmatprep.subr.mxu0 0.0
  %3962 = vmatpush1.msra.mxu0 0.0
  %3963 = vmatprep.subr.mxu0 0.0
  %3964 = vmatpush1.msra.mxu0 0.0
  %3965 = vmatprep.subr.mxu0 0.0
  %3966 = vmatpush1.msra.mxu0 0.0
  %3967 = vmatprep.subr.mxu0 0.0
  %3968 = vmatpush1.msra.mxu0 0.0
  %3969 = vmatprep.subr.mxu0 0.0
  %3970 = vmatpush1.msra.mxu0 0.0
  %3971 = vmatprep.subr.mxu0 0.0
  %3972 = vmatpush1.msra.mxu0 0.0
  %3973 = vmatprep.subr.mxu0 0.0
  %3974 = vmatpush1.msra.mxu0 0.0
  %3975 = vmatprep.mubr.f32.mxu0 0.0
  %3976 = vmatmul.mubr.f32.gmra.mrb[0].mxu0 %v3900
  %v3977 = vpop.f32.mrb[0].mxu0
  %v3978 = vadd.f32 0.0, %v3977
  %v3979 = vpop.f32.mrb[0].mxu0
  %3980 = vmatprep.mubr.f32.mxu0 0.0
  %3981 = vmatmul.mubr.f32.gmra.mrb[0].mxu0 %v3903
  %v3982 = vpop.f32.mrb[0].mxu0
  %v3983 = vadd.f32 0.0, %v3982
  %v3984 = vpop.f32.mrb[0].mxu0
  %3985 = vmatprep.mubr.f32.mxu0 0.0
  %3986 = vmatmul.mubr.f32.gmra.mrb[0].mxu0 %v3906
  %v3987 = vpop.f32.mrb[0].mxu0
  %v3988 = vadd.f32 0.0, %v3987
  %v3989 = vpop.f32.mrb[0].mxu0
  %3990 = vmatprep.mubr.f32.mxu0 0.0
  %3991 = vmatmul.mubr.f32.gmra.mrb[0].mxu0 %v3909
  %v3992 = vpop.f32.mrb[0].mxu0
  %v3993 = vadd.f32 0.0, %v3992
  %v3994 = vpop.f32.mrb[0].mxu0
  %3995 = vdwg.mxu0
  %v3996 = vadd.f32 %v3779, %v3978
  %v3997 = vadd.f32 %v3784, %v3983
  %v3998 = vadd.f32 %v3789, %v3988
  %v3999 = vadd.f32 %v3794, %v3993
  %s4000 = scalar_lea.vmem %s4, 96
  %v4001 = vld [vmem:[%s4000] sm:$0xff]
  %v4002 = vld [vmem:[%s4000 + $0x8] sm:$0xff]
  %v4003 = vld [vmem:[%s4000 + $0x10] sm:$0xff]
  %v4004 = vld [vmem:[%s4000 + $0x18] sm:$0xff]
  %v4006 = vsel %vm3334, %v4001, 0
  %v4009 = vsel %vm3334, %v4002, 0
  %v4012 = vsel %vm3334, %v4003, 0
  %v4015 = vsel %vm3334, %v4004, 0
  %4017 = vmatprep.subr.mxu0 0.0
  %4018 = vmatpush1.msra.mxu0 %v3390
  %4019 = vmatprep.subr.mxu0 0.0
  %4020 = vmatpush1.msra.mxu0 %v3391
  %4021 = vmatprep.subr.mxu0 0.0
  %4022 = vmatpush1.msra.mxu0 0.0
  %4023 = vmatprep.subr.mxu0 0.0
  %4024 = vmatpush1.msra.mxu0 0.0
  %4025 = vmatprep.subr.mxu0 0.0
  %4026 = vmatpush1.msra.mxu0 0.0
  %4027 = vmatprep.subr.mxu0 0.0
  %4028 = vmatpush1.msra.mxu0 0.0
  %4029 = vmatprep.subr.mxu0 0.0
  %4030 = vmatpush1.msra.mxu0 0.0
  %4031 = vmatprep.subr.mxu0 0.0
  %4032 = vmatpush1.msra.mxu0 0.0
  %4033 = vmatprep.subr.mxu0 0.0
  %4034 = vmatpush1.msra.mxu0 0.0
  %4035 = vmatprep.subr.mxu0 0.0
  %4036 = vmatpush1.msra.mxu0 0.0
  %4037 = vmatprep.subr.mxu0 0.0
  %4038 = vmatpush1.msra.mxu0 0.0
  %4039 = vmatprep.subr.mxu0 0.0
  %4040 = vmatpush1.msra.mxu0 0.0
  %4041 = vmatprep.subr.mxu0 0.0
  %4042 = vmatpush1.msra.mxu0 0.0
  %4043 = vmatprep.subr.mxu0 0.0
  %4044 = vmatpush1.msra.mxu0 0.0
  %4045 = vmatprep.subr.mxu0 0.0
  %4046 = vmatpush1.msra.mxu0 0.0
  %4047 = vmatprep.subr.mxu0 0.0
  %4048 = vmatpush1.msra.mxu0 0.0
  %4049 = vmatprep.subr.mxu0 0.0
  %4050 = vmatpush1.msra.mxu0 0.0
  %4051 = vmatprep.subr.mxu0 0.0
  %4052 = vmatpush1.msra.mxu0 0.0
  %4053 = vmatprep.subr.mxu0 0.0
  %4054 = vmatpush1.msra.mxu0 0.0
  %4055 = vmatprep.subr.mxu0 0.0
  %4056 = vmatpush1.msra.mxu0 0.0
  %4057 = vmatprep.subr.mxu0 0.0
  %4058 = vmatpush1.msra.mxu0 0.0
  %4059 = vmatprep.subr.mxu0 0.0
  %4060 = vmatpush1.msra.mxu0 0.0
  %4061 = vmatprep.subr.mxu0 0.0
  %4062 = vmatpush1.msra.mxu0 0.0
  %4063 = vmatprep.subr.mxu0 0.0
  %4064 = vmatpush1.msra.mxu0 0.0
  %4065 = vmatprep.subr.mxu0 0.0
  %4066 = vmatpush1.msra.mxu0 0.0
  %4067 = vmatprep.subr.mxu0 0.0
  %4068 = vmatpush1.msra.mxu0 0.0
  %4069 = vmatprep.subr.mxu0 0.0
  %4070 = vmatpush1.msra.mxu0 0.0
  %4071 = vmatprep.subr.mxu0 0.0
  %4072 = vmatpush1.msra.mxu0 0.0
  %4073 = vmatprep.subr.mxu0 0.0
  %4074 = vmatpush1.msra.mxu0 0.0
  %4075 = vmatprep.subr.mxu0 0.0
  %4076 = vmatpush1.msra.mxu0 0.0
  %4077 = vmatprep.subr.mxu0 0.0
  %4078 = vmatpush1.msra.mxu0 0.0
  %4079 = vmatprep.subr.mxu0 0.0
  %4080 = vmatpush1.msra.mxu0 0.0
  %4081 = vmatprep.mubr.f32.mxu0 0.0
  %4082 = vmatmul.mubr.f32.gmra.mrb[0].mxu0 %v4006
  %v4083 = vpop.f32.mrb[0].mxu0
  %v4084 = vadd.f32 0.0, %v4083
  %v4085 = vpop.f32.mrb[0].mxu0
  %4086 = vmatprep.mubr.f32.mxu0 0.0
  %4087 = vmatmul.mubr.f32.gmra.mrb[0].mxu0 %v4009
  %v4088 = vpop.f32.mrb[0].mxu0
  %v4089 = vadd.f32 0.0, %v4088
  %v4090 = vpop.f32.mrb[0].mxu0
  %4091 = vmatprep.mubr.f32.mxu0 0.0
  %4092 = vmatmul.mubr.f32.gmra.mrb[0].mxu0 %v4012
  %v4093 = vpop.f32.mrb[0].mxu0
  %v4094 = vadd.f32 0.0, %v4093
  %v4095 = vpop.f32.mrb[0].mxu0
  %4096 = vmatprep.mubr.f32.mxu0 0.0
  %4097 = vmatmul.mubr.f32.gmra.mrb[0].mxu0 %v4015
  %v4098 = vpop.f32.mrb[0].mxu0
  %v4099 = vadd.f32 0.0, %v4098
  %v4100 = vpop.f32.mrb[0].mxu0
  %4101 = vdwg.mxu0
  %v4103 = vsel %vm3334, %v4084, 0
  %v4106 = vsel %vm3334, %v4089, 0
  %v4109 = vsel %vm3334, %v4094, 0
  %v4112 = vsel %vm3334, %v4099, 0
  %4114 = vmatprep.subr.mxu0 0.0
  %4115 = vmatpush1.msra.mxu0 %v171
  %4116 = vmatprep.subr.mxu0 0.0
  %4117 = vmatpush1.msra.mxu0 %v172
  %4118 = vmatprep.subr.mxu0 0.0
  %4119 = vmatpush1.msra.mxu0 0.0
  %4120 = vmatprep.subr.mxu0 0.0
  %4121 = vmatpush1.msra.mxu0 0.0
  %4122 = vmatprep.subr.mxu0 0.0
  %4123 = vmatpush1.msra.mxu0 0.0
  %4124 = vmatprep.subr.mxu0 0.0
  %4125 = vmatpush1.msra.mxu0 0.0
  %4126 = vmatprep.subr.mxu0 0.0
  %4127 = vmatpush1.msra.mxu0 0.0
  %4128 = vmatprep.subr.mxu0 0.0
  %4129 = vmatpush1.msra.mxu0 0.0
  %4130 = vmatprep.subr.mxu0 0.0
  %4131 = vmatpush1.msra.mxu0 0.0
  %4132 = vmatprep.subr.mxu0 0.0
  %4133 = vmatpush1.msra.mxu0 0.0
  %4134 = vmatprep.subr.mxu0 0.0
  %4135 = vmatpush1.msra.mxu0 0.0
  %4136 = vmatprep.subr.mxu0 0.0
  %4137 = vmatpush1.msra.mxu0 0.0
  %4138 = vmatprep.subr.mxu0 0.0
  %4139 = vmatpush1.msra.mxu0 0.0
  %4140 = vmatprep.subr.mxu0 0.0
  %4141 = vmatpush1.msra.mxu0 0.0
  %4142 = vmatprep.subr.mxu0 0.0
  %4143 = vmatpush1.msra.mxu0 0.0
  %4144 = vmatprep.subr.mxu0 0.0
  %4145 = vmatpush1.msra.mxu0 0.0
  %4146 = vmatprep.subr.mxu0 0.0
  %4147 = vmatpush1.msra.mxu0 0.0
  %4148 = vmatprep.subr.mxu0 0.0
  %4149 = vmatpush1.msra.mxu0 0.0
  %4150 = vmatprep.subr.mxu0 0.0
  %4151 = vmatpush1.msra.mxu0 0.0
  %4152 = vmatprep.subr.mxu0 0.0
  %4153 = vmatpush1.msra.mxu0 0.0
  %4154 = vmatprep.subr.mxu0 0.0
  %4155 = vmatpush1.msra.mxu0 0.0
  %4156 = vmatprep.subr.mxu0 0.0
  %4157 = vmatpush1.msra.mxu0 0.0
  %4158 = vmatprep.subr.mxu0 0.0
  %4159 = vmatpush1.msra.mxu0 0.0
  %4160 = vmatprep.subr.mxu0 0.0
  %4161 = vmatpush1.msra.mxu0 0.0
  %4162 = vmatprep.subr.mxu0 0.0
  %4163 = vmatpush1.msra.mxu0 0.0
  %4164 = vmatprep.subr.mxu0 0.0
  %4165 = vmatpush1.msra.mxu0 0.0
  %4166 = vmatprep.subr.mxu0 0.0
  %4167 = vmatpush1.msra.mxu0 0.0
  %4168 = vmatprep.subr.mxu0 0.0
  %4169 = vmatpush1.msra.mxu0 0.0
  %4170 = vmatprep.subr.mxu0 0.0
  %4171 = vmatpush1.msra.mxu0 0.0
  %4172 = vmatprep.subr.mxu0 0.0
  %4173 = vmatpush1.msra.mxu0 0.0
  %4174 = vmatprep.subr.mxu0 0.0
  %4175 = vmatpush1.msra.mxu0 0.0
  %4176 = vmatprep.subr.mxu0 0.0
  %4177 = vmatpush1.msra.mxu0 0.0
  %4178 = vmatprep.mubr.f32.mxu0 0.0
  %4179 = vmatmul.mubr.f32.gmra.mrb[0].mxu0 %v4103
  %v4180 = vpop.f32.mrb[0].mxu0
  %v4181 = vadd.f32 0.0, %v4180
  %v4182 = vpop.f32.mrb[0].mxu0
  %4183 = vmatprep.mubr.f32.mxu0 0.0
  %4184 = vmatmul.mubr.f32.gmra.mrb[0].mxu0 %v4106
  %v4185 = vpop.f32.mrb[0].mxu0
  %v4186 = vadd.f32 0.0, %v4185
  %v4187 = vpop.f32.mrb[0].mxu0
  %4188 = vmatprep.mubr.f32.mxu0 0.0
  %4189 = vmatmul.mubr.f32.gmra.mrb[0].mxu0 %v4109
  %v4190 = vpop.f32.mrb[0].mxu0
  %v4191 = vadd.f32 0.0, %v4190
  %v4192 = vpop.f32.mrb[0].mxu0
  %4193 = vmatprep.mubr.f32.mxu0 0.0
  %4194 = vmatmul.mubr.f32.gmra.mrb[0].mxu0 %v4112
  %v4195 = vpop.f32.mrb[0].mxu0
  %v4196 = vadd.f32 0.0, %v4195
  %v4197 = vpop.f32.mrb[0].mxu0
  %4198 = vdwg.mxu0
  %v4199 = vadd.f32 %v3996, %v4181
  %v4200 = vadd.f32 %v3997, %v4186
  %v4201 = vadd.f32 %v3998, %v4191
  %v4202 = vadd.f32 %v3999, %v4196
  %4203 = vmatprep.subr.mxu0 0.0
  %4204 = vmatpush1.msra.mxu0 %v3398
  %4205 = vmatprep.subr.mxu0 0.0
  %4206 = vmatpush1.msra.mxu0 %v3399
  %4207 = vmatprep.subr.mxu0 0.0
  %4208 = vmatpush1.msra.mxu0 0.0
  %4209 = vmatprep.subr.mxu0 0.0
  %4210 = vmatpush1.msra.mxu0 0.0
  %4211 = vmatprep.subr.mxu0 0.0
  %4212 = vmatpush1.msra.mxu0 0.0
  %4213 = vmatprep.subr.mxu0 0.0
  %4214 = vmatpush1.msra.mxu0 0.0
  %4215 = vmatprep.subr.mxu0 0.0
  %4216 = vmatpush1.msra.mxu0 0.0
  %4217 = vmatprep.subr.mxu0 0.0
  %4218 = vmatpush1.msra.mxu0 0.0
  %4219 = vmatprep.subr.mxu0 0.0
  %4220 = vmatpush1.msra.mxu0 0.0
  %4221 = vmatprep.subr.mxu0 0.0
  %4222 = vmatpush1.msra.mxu0 0.0
  %4223 = vmatprep.subr.mxu0 0.0
  %4224 = vmatpush1.msra.mxu0 0.0
  %4225 = vmatprep.subr.mxu0 0.0
  %4226 = vmatpush1.msra.mxu0 0.0
  %4227 = vmatprep.subr.mxu0 0.0
  %4228 = vmatpush1.msra.mxu0 0.0
  %4229 = vmatprep.subr.mxu0 0.0
  %4230 = vmatpush1.msra.mxu0 0.0
  %4231 = vmatprep.subr.mxu0 0.0
  %4232 = vmatpush1.msra.mxu0 0.0
  %4233 = vmatprep.subr.mxu0 0.0
  %4234 = vmatpush1.msra.mxu0 0.0
  %4235 = vmatprep.subr.mxu0 0.0
  %4236 = vmatpush1.msra.mxu0 0.0
  %4237 = vmatprep.subr.mxu0 0.0
  %4238 = vmatpush1.msra.mxu0 0.0
  %4239 = vmatprep.subr.mxu0 0.0
  %4240 = vmatpush1.msra.mxu0 0.0
  %4241 = vmatprep.subr.mxu0 0.0
  %4242 = vmatpush1.msra.mxu0 0.0
  %4243 = vmatprep.subr.mxu0 0.0
  %4244 = vmatpush1.msra.mxu0 0.0
  %4245 = vmatprep.subr.mxu0 0.0
  %4246 = vmatpush1.msra.mxu0 0.0
  %4247 = vmatprep.subr.mxu0 0.0
  %4248 = vmatpush1.msra.mxu0 0.0
  %4249 = vmatprep.subr.mxu0 0.0
  %4250 = vmatpush1.msra.mxu0 0.0
  %4251 = vmatprep.subr.mxu0 0.0
  %4252 = vmatpush1.msra.mxu0 0.0
  %4253 = vmatprep.subr.mxu0 0.0
  %4254 = vmatpush1.msra.mxu0 0.0
  %4255 = vmatprep.subr.mxu0 0.0
  %4256 = vmatpush1.msra.mxu0 0.0
  %4257 = vmatprep.subr.mxu0 0.0
  %4258 = vmatpush1.msra.mxu0 0.0
  %4259 = vmatprep.subr.mxu0 0.0
  %4260 = vmatpush1.msra.mxu0 0.0
  %4261 = vmatprep.subr.mxu0 0.0
  %4262 = vmatpush1.msra.mxu0 0.0
  %4263 = vmatprep.subr.mxu0 0.0
  %4264 = vmatpush1.msra.mxu0 0.0
  %4265 = vmatprep.subr.mxu0 0.0
  %4266 = vmatpush1.msra.mxu0 0.0
  %4267 = vmatprep.mubr.f32.mxu0 0.0
  %4268 = vmatmul.mubr.f32.gmra.mrb[0].mxu0 %v3405
  %v4269 = vpop.f32.mrb[0].mxu0
  %v4270 = vadd.f32 0.0, %v4269
  %v4271 = vpop.f32.mrb[0].mxu0
  %4272 = vmatprep.mubr.f32.mxu0 0.0
  %4273 = vmatmul.mubr.f32.gmra.mrb[0].mxu0 %v3408
  %v4274 = vpop.f32.mrb[0].mxu0
  %v4275 = vadd.f32 0.0, %v4274
  %v4276 = vpop.f32.mrb[0].mxu0
  %4277 = vmatprep.mubr.f32.mxu0 0.0
  %4278 = vmatmul.mubr.f32.gmra.mrb[0].mxu0 %v3411
  %v4279 = vpop.f32.mrb[0].mxu0
  %v4280 = vadd.f32 0.0, %v4279
  %v4281 = vpop.f32.mrb[0].mxu0
  %4282 = vmatprep.mubr.f32.mxu0 0.0
  %4283 = vmatmul.mubr.f32.gmra.mrb[0].mxu0 %v3414
  %v4284 = vpop.f32.mrb[0].mxu0
  %v4285 = vadd.f32 0.0, %v4284
  %v4286 = vpop.f32.mrb[0].mxu0
  %4287 = vdwg.mxu0
  %4288 = vmatprep.subr.mxu0 0.0
  %4289 = vmatpush1.msra.mxu0 %v3398
  %4290 = vmatprep.subr.mxu0 0.0
  %4291 = vmatpush1.msra.mxu0 %v3399
  %4292 = vmatprep.subr.mxu0 0.0
  %4293 = vmatpush1.msra.mxu0 0.0
  %4294 = vmatprep.subr.mxu0 0.0
  %4295 = vmatpush1.msra.mxu0 0.0
  %4296 = vmatprep.subr.mxu0 0.0
  %4297 = vmatpush1.msra.mxu0 0.0
  %4298 = vmatprep.subr.mxu0 0.0
  %4299 = vmatpush1.msra.mxu0 0.0
  %4300 = vmatprep.subr.mxu0 0.0
  %4301 = vmatpush1.msra.mxu0 0.0
  %4302 = vmatprep.subr.mxu0 0.0
  %4303 = vmatpush1.msra.mxu0 0.0
  %4304 = vmatprep.subr.mxu0 0.0
  %4305 = vmatpush1.msra.mxu0 0.0
  %4306 = vmatprep.subr.mxu0 0.0
  %4307 = vmatpush1.msra.mxu0 0.0
  %4308 = vmatprep.subr.mxu0 0.0
  %4309 = vmatpush1.msra.mxu0 0.0
  %4310 = vmatprep.subr.mxu0 0.0
  %4311 = vmatpush1.msra.mxu0 0.0
  %4312 = vmatprep.subr.mxu0 0.0
  %4313 = vmatpush1.msra.mxu0 0.0
  %4314 = vmatprep.subr.mxu0 0.0
  %4315 = vmatpush1.msra.mxu0 0.0
  %4316 = vmatprep.subr.mxu0 0.0
  %4317 = vmatpush1.msra.mxu0 0.0
  %4318 = vmatprep.subr.mxu0 0.0
  %4319 = vmatpush1.msra.mxu0 0.0
  %4320 = vmatprep.subr.mxu0 0.0
  %4321 = vmatpush1.msra.mxu0 0.0
  %4322 = vmatprep.subr.mxu0 0.0
  %4323 = vmatpush1.msra.mxu0 0.0
  %4324 = vmatprep.subr.mxu0 0.0
  %4325 = vmatpush1.msra.mxu0 0.0
  %4326 = vmatprep.subr.mxu0 0.0
  %4327 = vmatpush1.msra.mxu0 0.0
  %4328 = vmatprep.subr.mxu0 0.0
  %4329 = vmatpush1.msra.mxu0 0.0
  %4330 = vmatprep.subr.mxu0 0.0
  %4331 = vmatpush1.msra.mxu0 0.0
  %4332 = vmatprep.subr.mxu0 0.0
  %4333 = vmatpush1.msra.mxu0 0.0
  %4334 = vmatprep.subr.mxu0 0.0
  %4335 = vmatpush1.msra.mxu0 0.0
  %4336 = vmatprep.subr.mxu0 0.0
  %4337 = vmatpush1.msra.mxu0 0.0
  %4338 = vmatprep.subr.mxu0 0.0
  %4339 = vmatpush1.msra.mxu0 0.0
  %4340 = vmatprep.subr.mxu0 0.0
  %4341 = vmatpush1.msra.mxu0 0.0
  %4342 = vmatprep.subr.mxu0 0.0
  %4343 = vmatpush1.msra.mxu0 0.0
  %4344 = vmatprep.subr.mxu0 0.0
  %4345 = vmatpush1.msra.mxu0 0.0
  %4346 = vmatprep.subr.mxu0 0.0
  %4347 = vmatpush1.msra.mxu0 0.0
  %4348 = vmatprep.subr.mxu0 0.0
  %4349 = vmatpush1.msra.mxu0 0.0
  %4350 = vmatprep.subr.mxu0 0.0
  %4351 = vmatpush1.msra.mxu0 0.0
  %4352 = vmatprep.mubr.f32.mxu0 0.0
  %4353 = vmatmul.mubr.f32.gmra.mrb[0].mxu0 %v3507
  %v4354 = vpop.f32.mrb[0].mxu0
  %v4355 = vadd.f32 0.0, %v4354
  %v4356 = vpop.f32.mrb[0].mxu0
  %4357 = vmatprep.mubr.f32.mxu0 0.0
  %4358 = vmatmul.mubr.f32.gmra.mrb[0].mxu0 %v3510
  %v4359 = vpop.f32.mrb[0].mxu0
  %v4360 = vadd.f32 0.0, %v4359
  %v4361 = vpop.f32.mrb[0].mxu0
  %4362 = vmatprep.mubr.f32.mxu0 0.0
  %4363 = vmatmul.mubr.f32.gmra.mrb[0].mxu0 %v3513
  %v4364 = vpop.f32.mrb[0].mxu0
  %v4365 = vadd.f32 0.0, %v4364
  %v4366 = vpop.f32.mrb[0].mxu0
  %4367 = vmatprep.mubr.f32.mxu0 0.0
  %4368 = vmatmul.mubr.f32.gmra.mrb[0].mxu0 %v3516
  %v4369 = vpop.f32.mrb[0].mxu0
  %v4370 = vadd.f32 0.0, %v4369
  %v4371 = vpop.f32.mrb[0].mxu0
  %4372 = vdwg.mxu0
  %v4374 = vsel %vm3334, %v4355, 0
  %v4377 = vsel %vm3334, %v4360, 0
  %v4380 = vsel %vm3334, %v4365, 0
  %v4383 = vsel %vm3334, %v4370, 0
  %4385 = vmatprep.subr.mxu0 0.0
  %4386 = vmatpush1.msra.mxu0 %v105
  %4387 = vmatprep.subr.mxu0 0.0
  %4388 = vmatpush1.msra.mxu0 %v106
  %4389 = vmatprep.subr.mxu0 0.0
  %4390 = vmatpush1.msra.mxu0 0.0
  %4391 = vmatprep.subr.mxu0 0.0
  %4392 = vmatpush1.msra.mxu0 0.0
  %4393 = vmatprep.subr.mxu0 0.0
  %4394 = vmatpush1.msra.mxu0 0.0
  %4395 = vmatprep.subr.mxu0 0.0
  %4396 = vmatpush1.msra.mxu0 0.0
  %4397 = vmatprep.subr.mxu0 0.0
  %4398 = vmatpush1.msra.mxu0 0.0
  %4399 = vmatprep.subr.mxu0 0.0
  %4400 = vmatpush1.msra.mxu0 0.0
  %4401 = vmatprep.subr.mxu0 0.0
  %4402 = vmatpush1.msra.mxu0 0.0
  %4403 = vmatprep.subr.mxu0 0.0
  %4404 = vmatpush1.msra.mxu0 0.0
  %4405 = vmatprep.subr.mxu0 0.0
  %4406 = vmatpush1.msra.mxu0 0.0
  %4407 = vmatprep.subr.mxu0 0.0
  %4408 = vmatpush1.msra.mxu0 0.0
  %4409 = vmatprep.subr.mxu0 0.0
  %4410 = vmatpush1.msra.mxu0 0.0
  %4411 = vmatprep.subr.mxu0 0.0
  %4412 = vmatpush1.msra.mxu0 0.0
  %4413 = vmatprep.subr.mxu0 0.0
  %4414 = vmatpush1.msra.mxu0 0.0
  %4415 = vmatprep.subr.mxu0 0.0
  %4416 = vmatpush1.msra.mxu0 0.0
  %4417 = vmatprep.subr.mxu0 0.0
  %4418 = vmatpush1.msra.mxu0 0.0
  %4419 = vmatprep.subr.mxu0 0.0
  %4420 = vmatpush1.msra.mxu0 0.0
  %4421 = vmatprep.subr.mxu0 0.0
  %4422 = vmatpush1.msra.mxu0 0.0
  %4423 = vmatprep.subr.mxu0 0.0
  %4424 = vmatpush1.msra.mxu0 0.0
  %4425 = vmatprep.subr.mxu0 0.0
  %4426 = vmatpush1.msra.mxu0 0.0
  %4427 = vmatprep.subr.mxu0 0.0
  %4428 = vmatpush1.msra.mxu0 0.0
  %4429 = vmatprep.subr.mxu0 0.0
  %4430 = vmatpush1.msra.mxu0 0.0
  %4431 = vmatprep.subr.mxu0 0.0
  %4432 = vmatpush1.msra.mxu0 0.0
  %4433 = vmatprep.subr.mxu0 0.0
  %4434 = vmatpush1.msra.mxu0 0.0
  %4435 = vmatprep.subr.mxu0 0.0
  %4436 = vmatpush1.msra.mxu0 0.0
  %4437 = vmatprep.subr.mxu0 0.0
  %4438 = vmatpush1.msra.mxu0 0.0
  %4439 = vmatprep.subr.mxu0 0.0
  %4440 = vmatpush1.msra.mxu0 0.0
  %4441 = vmatprep.subr.mxu0 0.0
  %4442 = vmatpush1.msra.mxu0 0.0
  %4443 = vmatprep.subr.mxu0 0.0
  %4444 = vmatpush1.msra.mxu0 0.0
  %4445 = vmatprep.subr.mxu0 0.0
  %4446 = vmatpush1.msra.mxu0 0.0
  %4447 = vmatprep.subr.mxu0 0.0
  %4448 = vmatpush1.msra.mxu0 0.0
  %4449 = vmatprep.mubr.f32.mxu0 0.0
  %4450 = vmatmul.mubr.f32.gmra.mrb[0].mxu0 %v4374
  %v4451 = vpop.f32.mrb[0].mxu0
  %v4452 = vadd.f32 0.0, %v4451
  %v4453 = vpop.f32.mrb[0].mxu0
  %4454 = vmatprep.mubr.f32.mxu0 0.0
  %4455 = vmatmul.mubr.f32.gmra.mrb[0].mxu0 %v4377
  %v4456 = vpop.f32.mrb[0].mxu0
  %v4457 = vadd.f32 0.0, %v4456
  %v4458 = vpop.f32.mrb[0].mxu0
  %4459 = vmatprep.mubr.f32.mxu0 0.0
  %4460 = vmatmul.mubr.f32.gmra.mrb[0].mxu0 %v4380
  %v4461 = vpop.f32.mrb[0].mxu0
  %v4462 = vadd.f32 0.0, %v4461
  %v4463 = vpop.f32.mrb[0].mxu0
  %4464 = vmatprep.mubr.f32.mxu0 0.0
  %4465 = vmatmul.mubr.f32.gmra.mrb[0].mxu0 %v4383
  %v4466 = vpop.f32.mrb[0].mxu0
  %v4467 = vadd.f32 0.0, %v4466
  %v4468 = vpop.f32.mrb[0].mxu0
  %4469 = vdwg.mxu0
  %v4471 = vsel %vm3334, %v4270, 0
  %v4474 = vsel %vm3334, %v4275, 0
  %v4477 = vsel %vm3334, %v4280, 0
  %v4480 = vsel %vm3334, %v4285, 0
  %4482 = vmatprep.subr.mxu0 0.0
  %4483 = vmatpush1.msra.mxu0 %v73
  %4484 = vmatprep.subr.mxu0 0.0
  %4485 = vmatpush1.msra.mxu0 %v74
  %4486 = vmatprep.subr.mxu0 0.0
  %4487 = vmatpush1.msra.mxu0 0.0
  %4488 = vmatprep.subr.mxu0 0.0
  %4489 = vmatpush1.msra.mxu0 0.0
  %4490 = vmatprep.subr.mxu0 0.0
  %4491 = vmatpush1.msra.mxu0 0.0
  %4492 = vmatprep.subr.mxu0 0.0
  %4493 = vmatpush1.msra.mxu0 0.0
  %4494 = vmatprep.subr.mxu0 0.0
  %4495 = vmatpush1.msra.mxu0 0.0
  %4496 = vmatprep.subr.mxu0 0.0
  %4497 = vmatpush1.msra.mxu0 0.0
  %4498 = vmatprep.subr.mxu0 0.0
  %4499 = vmatpush1.msra.mxu0 0.0
  %4500 = vmatprep.subr.mxu0 0.0
  %4501 = vmatpush1.msra.mxu0 0.0
  %4502 = vmatprep.subr.mxu0 0.0
  %4503 = vmatpush1.msra.mxu0 0.0
  %4504 = vmatprep.subr.mxu0 0.0
  %4505 = vmatpush1.msra.mxu0 0.0
  %4506 = vmatprep.subr.mxu0 0.0
  %4507 = vmatpush1.msra.mxu0 0.0
  %4508 = vmatprep.subr.mxu0 0.0
  %4509 = vmatpush1.msra.mxu0 0.0
  %4510 = vmatprep.subr.mxu0 0.0
  %4511 = vmatpush1.msra.mxu0 0.0
  %4512 = vmatprep.subr.mxu0 0.0
  %4513 = vmatpush1.msra.mxu0 0.0
  %4514 = vmatprep.subr.mxu0 0.0
  %4515 = vmatpush1.msra.mxu0 0.0
  %4516 = vmatprep.subr.mxu0 0.0
  %4517 = vmatpush1.msra.mxu0 0.0
  %4518 = vmatprep.subr.mxu0 0.0
  %4519 = vmatpush1.msra.mxu0 0.0
  %4520 = vmatprep.subr.mxu0 0.0
  %4521 = vmatpush1.msra.mxu0 0.0
  %4522 = vmatprep.subr.mxu0 0.0
  %4523 = vmatpush1.msra.mxu0 0.0
  %4524 = vmatprep.subr.mxu0 0.0
  %4525 = vmatpush1.msra.mxu0 0.0
  %4526 = vmatprep.subr.mxu0 0.0
  %4527 = vmatpush1.msra.mxu0 0.0
  %4528 = vmatprep.subr.mxu0 0.0
  %4529 = vmatpush1.msra.mxu0 0.0
  %4530 = vmatprep.subr.mxu0 0.0
  %4531 = vmatpush1.msra.mxu0 0.0
  %4532 = vmatprep.subr.mxu0 0.0
  %4533 = vmatpush1.msra.mxu0 0.0
  %4534 = vmatprep.subr.mxu0 0.0
  %4535 = vmatpush1.msra.mxu0 0.0
  %4536 = vmatprep.subr.mxu0 0.0
  %4537 = vmatpush1.msra.mxu0 0.0
  %4538 = vmatprep.subr.mxu0 0.0
  %4539 = vmatpush1.msra.mxu0 0.0
  %4540 = vmatprep.subr.mxu0 0.0
  %4541 = vmatpush1.msra.mxu0 0.0
  %4542 = vmatprep.subr.mxu0 0.0
  %4543 = vmatpush1.msra.mxu0 0.0
  %4544 = vmatprep.subr.mxu0 0.0
  %4545 = vmatpush1.msra.mxu0 0.0
  %4546 = vmatprep.mubr.f32.mxu0 0.0
  %4547 = vmatmul.mubr.f32.gmra.mrb[0].mxu0 %v4471
  %v4548 = vpop.f32.mrb[0].mxu0
  %v4549 = vadd.f32 %v4452, %v4548
  %v4550 = vpop.f32.mrb[0].mxu0
  %4551 = vmatprep.mubr.f32.mxu0 0.0
  %4552 = vmatmul.mubr.f32.gmra.mrb[0].mxu0 %v4474
  %v4553 = vpop.f32.mrb[0].mxu0
  %v4554 = vadd.f32 %v4457, %v4553
  %v4555 = vpop.f32.mrb[0].mxu0
  %4556 = vmatprep.mubr.f32.mxu0 0.0
  %4557 = vmatmul.mubr.f32.gmra.mrb[0].mxu0 %v4477
  %v4558 = vpop.f32.mrb[0].mxu0
  %v4559 = vadd.f32 %v4462, %v4558
  %v4560 = vpop.f32.mrb[0].mxu0
  %4561 = vmatprep.mubr.f32.mxu0 0.0
  %4562 = vmatmul.mubr.f32.gmra.mrb[0].mxu0 %v4480
  %v4563 = vpop.f32.mrb[0].mxu0
  %v4564 = vadd.f32 %v4467, %v4563
  %v4565 = vpop.f32.mrb[0].mxu0
  %4566 = vdwg.mxu0
  %4567 = vmatprep.subr.mxu0 0.0
  %4568 = vmatpush1.msra.mxu0 %v3398
  %4569 = vmatprep.subr.mxu0 0.0
  %4570 = vmatpush1.msra.mxu0 %v3399
  %4571 = vmatprep.subr.mxu0 0.0
  %4572 = vmatpush1.msra.mxu0 0.0
  %4573 = vmatprep.subr.mxu0 0.0
  %4574 = vmatpush1.msra.mxu0 0.0
  %4575 = vmatprep.subr.mxu0 0.0
  %4576 = vmatpush1.msra.mxu0 0.0
  %4577 = vmatprep.subr.mxu0 0.0
  %4578 = vmatpush1.msra.mxu0 0.0
  %4579 = vmatprep.subr.mxu0 0.0
  %4580 = vmatpush1.msra.mxu0 0.0
  %4581 = vmatprep.subr.mxu0 0.0
  %4582 = vmatpush1.msra.mxu0 0.0
  %4583 = vmatprep.subr.mxu0 0.0
  %4584 = vmatpush1.msra.mxu0 0.0
  %4585 = vmatprep.subr.mxu0 0.0
  %4586 = vmatpush1.msra.mxu0 0.0
  %4587 = vmatprep.subr.mxu0 0.0
  %4588 = vmatpush1.msra.mxu0 0.0
  %4589 = vmatprep.subr.mxu0 0.0
  %4590 = vmatpush1.msra.mxu0 0.0
  %4591 = vmatprep.subr.mxu0 0.0
  %4592 = vmatpush1.msra.mxu0 0.0
  %4593 = vmatprep.subr.mxu0 0.0
  %4594 = vmatpush1.msra.mxu0 0.0
  %4595 = vmatprep.subr.mxu0 0.0
  %4596 = vmatpush1.msra.mxu0 0.0
  %4597 = vmatprep.subr.mxu0 0.0
  %4598 = vmatpush1.msra.mxu0 0.0
  %4599 = vmatprep.subr.mxu0 0.0
  %4600 = vmatpush1.msra.mxu0 0.0
  %4601 = vmatprep.subr.mxu0 0.0
  %4602 = vmatpush1.msra.mxu0 0.0
  %4603 = vmatprep.subr.mxu0 0.0
  %4604 = vmatpush1.msra.mxu0 0.0
  %4605 = vmatprep.subr.mxu0 0.0
  %4606 = vmatpush1.msra.mxu0 0.0
  %4607 = vmatprep.subr.mxu0 0.0
  %4608 = vmatpush1.msra.mxu0 0.0
  %4609 = vmatprep.subr.mxu0 0.0
  %4610 = vmatpush1.msra.mxu0 0.0
  %4611 = vmatprep.subr.mxu0 0.0
  %4612 = vmatpush1.msra.mxu0 0.0
  %4613 = vmatprep.subr.mxu0 0.0
  %4614 = vmatpush1.msra.mxu0 0.0
  %4615 = vmatprep.subr.mxu0 0.0
  %4616 = vmatpush1.msra.mxu0 0.0
  %4617 = vmatprep.subr.mxu0 0.0
  %4618 = vmatpush1.msra.mxu0 0.0
  %4619 = vmatprep.subr.mxu0 0.0
  %4620 = vmatpush1.msra.mxu0 0.0
  %4621 = vmatprep.subr.mxu0 0.0
  %4622 = vmatpush1.msra.mxu0 0.0
  %4623 = vmatprep.subr.mxu0 0.0
  %4624 = vmatpush1.msra.mxu0 0.0
  %4625 = vmatprep.subr.mxu0 0.0
  %4626 = vmatpush1.msra.mxu0 0.0
  %4627 = vmatprep.subr.mxu0 0.0
  %4628 = vmatpush1.msra.mxu0 0.0
  %4629 = vmatprep.subr.mxu0 0.0
  %4630 = vmatpush1.msra.mxu0 0.0
  %4631 = vmatprep.mubr.f32.mxu0 0.0
  %4632 = vmatmul.mubr.f32.gmra.mrb[0].mxu0 %v3803
  %v4633 = vpop.f32.mrb[0].mxu0
  %v4634 = vadd.f32 0.0, %v4633
  %v4635 = vpop.f32.mrb[0].mxu0
  %4636 = vmatprep.mubr.f32.mxu0 0.0
  %4637 = vmatmul.mubr.f32.gmra.mrb[0].mxu0 %v3806
  %v4638 = vpop.f32.mrb[0].mxu0
  %v4639 = vadd.f32 0.0, %v4638
  %v4640 = vpop.f32.mrb[0].mxu0
  %4641 = vmatprep.mubr.f32.mxu0 0.0
  %4642 = vmatmul.mubr.f32.gmra.mrb[0].mxu0 %v3809
  %v4643 = vpop.f32.mrb[0].mxu0
  %v4644 = vadd.f32 0.0, %v4643
  %v4645 = vpop.f32.mrb[0].mxu0
  %4646 = vmatprep.mubr.f32.mxu0 0.0
  %4647 = vmatmul.mubr.f32.gmra.mrb[0].mxu0 %v3812
  %v4648 = vpop.f32.mrb[0].mxu0
  %v4649 = vadd.f32 0.0, %v4648
  %v4650 = vpop.f32.mrb[0].mxu0
  %4651 = vdwg.mxu0
  %v4653 = vsel %vm3334, %v4634, 0
  %v4656 = vsel %vm3334, %v4639, 0
  %v4659 = vsel %vm3334, %v4644, 0
  %v4662 = vsel %vm3334, %v4649, 0
  %4664 = vmatprep.subr.mxu0 0.0
  %4665 = vmatpush1.msra.mxu0 %v138
  %4666 = vmatprep.subr.mxu0 0.0
  %4667 = vmatpush1.msra.mxu0 %v139
  %4668 = vmatprep.subr.mxu0 0.0
  %4669 = vmatpush1.msra.mxu0 0.0
  %4670 = vmatprep.subr.mxu0 0.0
  %4671 = vmatpush1.msra.mxu0 0.0
  %4672 = vmatprep.subr.mxu0 0.0
  %4673 = vmatpush1.msra.mxu0 0.0
  %4674 = vmatprep.subr.mxu0 0.0
  %4675 = vmatpush1.msra.mxu0 0.0
  %4676 = vmatprep.subr.mxu0 0.0
  %4677 = vmatpush1.msra.mxu0 0.0
  %4678 = vmatprep.subr.mxu0 0.0
  %4679 = vmatpush1.msra.mxu0 0.0
  %4680 = vmatprep.subr.mxu0 0.0
  %4681 = vmatpush1.msra.mxu0 0.0
  %4682 = vmatprep.subr.mxu0 0.0
  %4683 = vmatpush1.msra.mxu0 0.0
  %4684 = vmatprep.subr.mxu0 0.0
  %4685 = vmatpush1.msra.mxu0 0.0
  %4686 = vmatprep.subr.mxu0 0.0
  %4687 = vmatpush1.msra.mxu0 0.0
  %4688 = vmatprep.subr.mxu0 0.0
  %4689 = vmatpush1.msra.mxu0 0.0
  %4690 = vmatprep.subr.mxu0 0.0
  %4691 = vmatpush1.msra.mxu0 0.0
  %4692 = vmatprep.subr.mxu0 0.0
  %4693 = vmatpush1.msra.mxu0 0.0
  %4694 = vmatprep.subr.mxu0 0.0
  %4695 = vmatpush1.msra.mxu0 0.0
  %4696 = vmatprep.subr.mxu0 0.0
  %4697 = vmatpush1.msra.mxu0 0.0
  %4698 = vmatprep.subr.mxu0 0.0
  %4699 = vmatpush1.msra.mxu0 0.0
  %4700 = vmatprep.subr.mxu0 0.0
  %4701 = vmatpush1.msra.mxu0 0.0
  %4702 = vmatprep.subr.mxu0 0.0
  %4703 = vmatpush1.msra.mxu0 0.0
  %4704 = vmatprep.subr.mxu0 0.0
  %4705 = vmatpush1.msra.mxu0 0.0
  %4706 = vmatprep.subr.mxu0 0.0
  %4707 = vmatpush1.msra.mxu0 0.0
  %4708 = vmatprep.subr.mxu0 0.0
  %4709 = vmatpush1.msra.mxu0 0.0
  %4710 = vmatprep.subr.mxu0 0.0
  %4711 = vmatpush1.msra.mxu0 0.0
  %4712 = vmatprep.subr.mxu0 0.0
  %4713 = vmatpush1.msra.mxu0 0.0
  %4714 = vmatprep.subr.mxu0 0.0
  %4715 = vmatpush1.msra.mxu0 0.0
  %4716 = vmatprep.subr.mxu0 0.0
  %4717 = vmatpush1.msra.mxu0 0.0
  %4718 = vmatprep.subr.mxu0 0.0
  %4719 = vmatpush1.msra.mxu0 0.0
  %4720 = vmatprep.subr.mxu0 0.0
  %4721 = vmatpush1.msra.mxu0 0.0
  %4722 = vmatprep.subr.mxu0 0.0
  %4723 = vmatpush1.msra.mxu0 0.0
  %4724 = vmatprep.subr.mxu0 0.0
  %4725 = vmatpush1.msra.mxu0 0.0
  %4726 = vmatprep.subr.mxu0 0.0
  %4727 = vmatpush1.msra.mxu0 0.0
  %4728 = vmatprep.mubr.f32.mxu0 0.0
  %4729 = vmatmul.mubr.f32.gmra.mrb[0].mxu0 %v4653
  %v4730 = vpop.f32.mrb[0].mxu0
  %v4731 = vadd.f32 0.0, %v4730
  %v4732 = vpop.f32.mrb[0].mxu0
  %4733 = vmatprep.mubr.f32.mxu0 0.0
  %4734 = vmatmul.mubr.f32.gmra.mrb[0].mxu0 %v4656
  %v4735 = vpop.f32.mrb[0].mxu0
  %v4736 = vadd.f32 0.0, %v4735
  %v4737 = vpop.f32.mrb[0].mxu0
  %4738 = vmatprep.mubr.f32.mxu0 0.0
  %4739 = vmatmul.mubr.f32.gmra.mrb[0].mxu0 %v4659
  %v4740 = vpop.f32.mrb[0].mxu0
  %v4741 = vadd.f32 0.0, %v4740
  %v4742 = vpop.f32.mrb[0].mxu0
  %4743 = vmatprep.mubr.f32.mxu0 0.0
  %4744 = vmatmul.mubr.f32.gmra.mrb[0].mxu0 %v4662
  %v4745 = vpop.f32.mrb[0].mxu0
  %v4746 = vadd.f32 0.0, %v4745
  %v4747 = vpop.f32.mrb[0].mxu0
  %4748 = vdwg.mxu0
  %v4749 = vadd.f32 %v4549, %v4731
  %v4750 = vadd.f32 %v4554, %v4736
  %v4751 = vadd.f32 %v4559, %v4741
  %v4752 = vadd.f32 %v4564, %v4746
  %4753 = vmatprep.subr.mxu0 0.0
  %4754 = vmatpush1.msra.mxu0 %v3398
  %4755 = vmatprep.subr.mxu0 0.0
  %4756 = vmatpush1.msra.mxu0 %v3399
  %4757 = vmatprep.subr.mxu0 0.0
  %4758 = vmatpush1.msra.mxu0 0.0
  %4759 = vmatprep.subr.mxu0 0.0
  %4760 = vmatpush1.msra.mxu0 0.0
  %4761 = vmatprep.subr.mxu0 0.0
  %4762 = vmatpush1.msra.mxu0 0.0
  %4763 = vmatprep.subr.mxu0 0.0
  %4764 = vmatpush1.msra.mxu0 0.0
  %4765 = vmatprep.subr.mxu0 0.0
  %4766 = vmatpush1.msra.mxu0 0.0
  %4767 = vmatprep.subr.mxu0 0.0
  %4768 = vmatpush1.msra.mxu0 0.0
  %4769 = vmatprep.subr.mxu0 0.0
  %4770 = vmatpush1.msra.mxu0 0.0
  %4771 = vmatprep.subr.mxu0 0.0
  %4772 = vmatpush1.msra.mxu0 0.0
  %4773 = vmatprep.subr.mxu0 0.0
  %4774 = vmatpush1.msra.mxu0 0.0
  %4775 = vmatprep.subr.mxu0 0.0
  %4776 = vmatpush1.msra.mxu0 0.0
  %4777 = vmatprep.subr.mxu0 0.0
  %4778 = vmatpush1.msra.mxu0 0.0
  %4779 = vmatprep.subr.mxu0 0.0
  %4780 = vmatpush1.msra.mxu0 0.0
  %4781 = vmatprep.subr.mxu0 0.0
  %4782 = vmatpush1.msra.mxu0 0.0
  %4783 = vmatprep.subr.mxu0 0.0
  %4784 = vmatpush1.msra.mxu0 0.0
  %4785 = vmatprep.subr.mxu0 0.0
  %4786 = vmatpush1.msra.mxu0 0.0
  %4787 = vmatprep.subr.mxu0 0.0
  %4788 = vmatpush1.msra.mxu0 0.0
  %4789 = vmatprep.subr.mxu0 0.0
  %4790 = vmatpush1.msra.mxu0 0.0
  %4791 = vmatprep.subr.mxu0 0.0
  %4792 = vmatpush1.msra.mxu0 0.0
  %4793 = vmatprep.subr.mxu0 0.0
  %4794 = vmatpush1.msra.mxu0 0.0
  %4795 = vmatprep.subr.mxu0 0.0
  %4796 = vmatpush1.msra.mxu0 0.0
  %4797 = vmatprep.subr.mxu0 0.0
  %4798 = vmatpush1.msra.mxu0 0.0
  %4799 = vmatprep.subr.mxu0 0.0
  %4800 = vmatpush1.msra.mxu0 0.0
  %4801 = vmatprep.subr.mxu0 0.0
  %4802 = vmatpush1.msra.mxu0 0.0
  %4803 = vmatprep.subr.mxu0 0.0
  %4804 = vmatpush1.msra.mxu0 0.0
  %4805 = vmatprep.subr.mxu0 0.0
  %4806 = vmatpush1.msra.mxu0 0.0
  %4807 = vmatprep.subr.mxu0 0.0
  %4808 = vmatpush1.msra.mxu0 0.0
  %4809 = vmatprep.subr.mxu0 0.0
  %4810 = vmatpush1.msra.mxu0 0.0
  %4811 = vmatprep.subr.mxu0 0.0
  %4812 = vmatpush1.msra.mxu0 0.0
  %4813 = vmatprep.subr.mxu0 0.0
  %4814 = vmatpush1.msra.mxu0 0.0
  %4815 = vmatprep.subr.mxu0 0.0
  %4816 = vmatpush1.msra.mxu0 0.0
  %4817 = vmatprep.mubr.f32.mxu0 0.0
  %4818 = vmatmul.mubr.f32.gmra.mrb[0].mxu0 %v4006
  %v4819 = vpop.f32.mrb[0].mxu0
  %v4820 = vadd.f32 0.0, %v4819
  %v4821 = vpop.f32.mrb[0].mxu0
  %4822 = vmatprep.mubr.f32.mxu0 0.0
  %4823 = vmatmul.mubr.f32.gmra.mrb[0].mxu0 %v4009
  %v4824 = vpop.f32.mrb[0].mxu0
  %v4825 = vadd.f32 0.0, %v4824
  %v4826 = vpop.f32.mrb[0].mxu0
  %4827 = vmatprep.mubr.f32.mxu0 0.0
  %4828 = vmatmul.mubr.f32.gmra.mrb[0].mxu0 %v4012
  %v4829 = vpop.f32.mrb[0].mxu0
  %v4830 = vadd.f32 0.0, %v4829
  %v4831 = vpop.f32.mrb[0].mxu0
  %4832 = vmatprep.mubr.f32.mxu0 0.0
  %4833 = vmatmul.mubr.f32.gmra.mrb[0].mxu0 %v4015
  %v4834 = vpop.f32.mrb[0].mxu0
  %v4835 = vadd.f32 0.0, %v4834
  %v4836 = vpop.f32.mrb[0].mxu0
  %4837 = vdwg.mxu0
  %v4839 = vsel %vm3334, %v4820, 0
  %v4842 = vsel %vm3334, %v4825, 0
  %v4845 = vsel %vm3334, %v4830, 0
  %v4848 = vsel %vm3334, %v4835, 0
  %4850 = vmatprep.subr.mxu0 0.0
  %4851 = vmatpush1.msra.mxu0 %v171
  %4852 = vmatprep.subr.mxu0 0.0
  %4853 = vmatpush1.msra.mxu0 %v172
  %4854 = vmatprep.subr.mxu0 0.0
  %4855 = vmatpush1.msra.mxu0 0.0
  %4856 = vmatprep.subr.mxu0 0.0
  %4857 = vmatpush1.msra.mxu0 0.0
  %4858 = vmatprep.subr.mxu0 0.0
  %4859 = vmatpush1.msra.mxu0 0.0
  %4860 = vmatprep.subr.mxu0 0.0
  %4861 = vmatpush1.msra.mxu0 0.0
  %4862 = vmatprep.subr.mxu0 0.0
  %4863 = vmatpush1.msra.mxu0 0.0
  %4864 = vmatprep.subr.mxu0 0.0
  %4865 = vmatpush1.msra.mxu0 0.0
  %4866 = vmatprep.subr.mxu0 0.0
  %4867 = vmatpush1.msra.mxu0 0.0
  %4868 = vmatprep.subr.mxu0 0.0
  %4869 = vmatpush1.msra.mxu0 0.0
  %4870 = vmatprep.subr.mxu0 0.0
  %4871 = vmatpush1.msra.mxu0 0.0
  %4872 = vmatprep.subr.mxu0 0.0
  %4873 = vmatpush1.msra.mxu0 0.0
  %4874 = vmatprep.subr.mxu0 0.0
  %4875 = vmatpush1.msra.mxu0 0.0
  %4876 = vmatprep.subr.mxu0 0.0
  %4877 = vmatpush1.msra.mxu0 0.0
  %4878 = vmatprep.subr.mxu0 0.0
  %4879 = vmatpush1.msra.mxu0 0.0
  %4880 = vmatprep.subr.mxu0 0.0
  %4881 = vmatpush1.msra.mxu0 0.0
  %4882 = vmatprep.subr.mxu0 0.0
  %4883 = vmatpush1.msra.mxu0 0.0
  %4884 = vmatprep.subr.mxu0 0.0
  %4885 = vmatpush1.msra.mxu0 0.0
  %4886 = vmatprep.subr.mxu0 0.0
  %4887 = vmatpush1.msra.mxu0 0.0
  %4888 = vmatprep.subr.mxu0 0.0
  %4889 = vmatpush1.msra.mxu0 0.0
  %4890 = vmatprep.subr.mxu0 0.0
  %4891 = vmatpush1.msra.mxu0 0.0
  %4892 = vmatprep.subr.mxu0 0.0
  %4893 = vmatpush1.msra.mxu0 0.0
  %4894 = vmatprep.subr.mxu0 0.0
  %4895 = vmatpush1.msra.mxu0 0.0
  %4896 = vmatprep.subr.mxu0 0.0
  %4897 = vmatpush1.msra.mxu0 0.0
  %4898 = vmatprep.subr.mxu0 0.0
  %4899 = vmatpush1.msra.mxu0 0.0
  %4900 = vmatprep.subr.mxu0 0.0
  %4901 = vmatpush1.msra.mxu0 0.0
  %4902 = vmatprep.subr.mxu0 0.0
  %4903 = vmatpush1.msra.mxu0 0.0
  %4904 = vmatprep.subr.mxu0 0.0
  %4905 = vmatpush1.msra.mxu0 0.0
  %4906 = vmatprep.subr.mxu0 0.0
  %4907 = vmatpush1.msra.mxu0 0.0
  %4908 = vmatprep.subr.mxu0 0.0
  %4909 = vmatpush1.msra.mxu0 0.0
  %4910 = vmatprep.subr.mxu0 0.0
  %4911 = vmatpush1.msra.mxu0 0.0
  %4912 = vmatprep.subr.mxu0 0.0
  %4913 = vmatpush1.msra.mxu0 0.0
  %4914 = vmatprep.mubr.f32.mxu0 0.0
  %4915 = vmatmul.mubr.f32.gmra.mrb[0].mxu0 %v4839
  %v4916 = vpop.f32.mrb[0].mxu0
  %v4917 = vadd.f32 0.0, %v4916
  %v4918 = vpop.f32.mrb[0].mxu0
  %4919 = vmatprep.mubr.f32.mxu0 0.0
  %4920 = vmatmul.mubr.f32.gmra.mrb[0].mxu0 %v4842
  %v4921 = vpop.f32.mrb[0].mxu0
  %v4922 = vadd.f32 0.0, %v4921
  %v4923 = vpop.f32.mrb[0].mxu0
  %4924 = vmatprep.mubr.f32.mxu0 0.0
  %4925 = vmatmul.mubr.f32.gmra.mrb[0].mxu0 %v4845
  %v4926 = vpop.f32.mrb[0].mxu0
  %v4927 = vadd.f32 0.0, %v4926
  %v4928 = vpop.f32.mrb[0].mxu0
  %4929 = vmatprep.mubr.f32.mxu0 0.0
  %4930 = vmatmul.mubr.f32.gmra.mrb[0].mxu0 %v4848
  %v4931 = vpop.f32.mrb[0].mxu0
  %v4932 = vadd.f32 0.0, %v4931
  %v4933 = vpop.f32.mrb[0].mxu0
  %4934 = vdwg.mxu0
  %v4935 = vadd.f32 %v4749, %v4917
  %v4936 = vadd.f32 %v4750, %v4922
  %v4937 = vadd.f32 %v4751, %v4927
  %v4938 = vadd.f32 %v4752, %v4932
  %v4939 = vsel %vm2044, %v4199, 0.0
  %4940 = vadd.xlane.f32.xlu0 %v4939
  %v4941 = vpop.xlane.xlu0 %4940
  %v4942 = vsel %vm2044, %v4200, 0.0
  %4943 = vadd.xlane.f32.xlu0 %v4942
  %v4944 = vpop.xlane.xlu0 %4943
  %v4945 = vsel %vm2044, %v4201, 0.0
  %4946 = vadd.xlane.f32.xlu0 %v4945
  %v4947 = vpop.xlane.xlu0 %4946
  %v4948 = vsel %vm2044, %v4202, 0.0
  %4949 = vadd.xlane.f32.xlu0 %v4948
  %v4950 = vpop.xlane.xlu0 %4949
  %v4951 = vadd.f32 %v4941, 0.0
  %v4952 = vadd.f32 %v4944, 0.0
  %v4953 = vadd.f32 %v4947, 0.0
  %v4954 = vadd.f32 %v4950, 0.0
  %v4955 = vsel %vm2044, %v4935, 0.0
  %4956 = vadd.xlane.f32.xlu0 %v4955
  %v4957 = vpop.xlane.xlu0 %4956
  %v4958 = vsel %vm2044, %v4936, 0.0
  %4959 = vadd.xlane.f32.xlu0 %v4958
  %v4960 = vpop.xlane.xlu0 %4959
  %v4961 = vsel %vm2044, %v4937, 0.0
  %4962 = vadd.xlane.f32.xlu0 %v4961
  %v4963 = vpop.xlane.xlu0 %4962
  %v4964 = vsel %vm2044, %v4938, 0.0
  %4965 = vadd.xlane.f32.xlu0 %v4964
  %v4966 = vpop.xlane.xlu0 %4965
  %v4967 = vadd.f32 %v4951, %v4957
  %v4968 = vadd.f32 %v4952, %v4960
  %v4969 = vadd.f32 %v4953, %v4963
  %v4970 = vadd.f32 %v4954, %v4966
  %v4971 = vrcp.pop 16.0
  %v4972 = vmul.f32 %v4967, %v4971
  %v4973 = vmul.f32 %v4968, %v4971
  %v4974 = vmul.f32 %v4969, %v4971
  %v4975 = vmul.f32 %v4970, %v4971
  %v4976 = vsub.f32 %v4199, %v4972
  %v4977 = vsub.f32 %v4200, %v4973
  %v4978 = vsub.f32 %v4201, %v4974
  %v4979 = vsub.f32 %v4202, %v4975
  %v4980 = vmul.f32 %v4976, %v4976
  %v4981 = vmul.f32 %v4977, %v4977
  %v4982 = vmul.f32 %v4978, %v4978
  %v4983 = vmul.f32 %v4979, %v4979
  %v4984 = vsel %vm2044, %v4980, 0.0
  %4985 = vadd.xlane.f32.xlu0 %v4984
  %v4986 = vpop.xlane.xlu0 %4985
  %v4987 = vsel %vm2044, %v4981, 0.0
  %4988 = vadd.xlane.f32.xlu0 %v4987
  %v4989 = vpop.xlane.xlu0 %4988
  %v4990 = vsel %vm2044, %v4982, 0.0
  %4991 = vadd.xlane.f32.xlu0 %v4990
  %v4992 = vpop.xlane.xlu0 %4991
  %v4993 = vsel %vm2044, %v4983, 0.0
  %4994 = vadd.xlane.f32.xlu0 %v4993
  %v4995 = vpop.xlane.xlu0 %4994
  %v4996 = vadd.f32 %v4986, 0.0
  %v4997 = vadd.f32 %v4989, 0.0
  %v4998 = vadd.f32 %v4992, 0.0
  %v4999 = vadd.f32 %v4995, 0.0
  %v5000 = vsub.f32 %v4935, %v4972
  %v5001 = vsub.f32 %v4936, %v4973
  %v5002 = vsub.f32 %v4937, %v4974
  %v5003 = vsub.f32 %v4938, %v4975
  %v5004 = vmul.f32 %v5000, %v5000
  %v5005 = vmul.f32 %v5001, %v5001
  %v5006 = vmul.f32 %v5002, %v5002
  %v5007 = vmul.f32 %v5003, %v5003
  %v5008 = vsel %vm2044, %v5004, 0.0
  %5009 = vadd.xlane.f32.xlu0 %v5008
  %v5010 = vpop.xlane.xlu0 %5009
  %v5011 = vsel %vm2044, %v5005, 0.0
  %5012 = vadd.xlane.f32.xlu0 %v5011
  %v5013 = vpop.xlane.xlu0 %5012
  %v5014 = vsel %vm2044, %v5006, 0.0
  %5015 = vadd.xlane.f32.xlu0 %v5014
  %v5016 = vpop.xlane.xlu0 %5015
  %v5017 = vsel %vm2044, %v5007, 0.0
  %5018 = vadd.xlane.f32.xlu0 %v5017
  %v5019 = vpop.xlane.xlu0 %5018
  %v5020 = vadd.f32 %v4996, %v5010
  %v5021 = vadd.f32 %v4997, %v5013
  %v5022 = vadd.f32 %v4998, %v5016
  %v5023 = vadd.f32 %v4999, %v5019
  %v5024 = vmul.f32 %v5020, %v4971
  %v5025 = vmul.f32 %v5021, %v4971
  %v5026 = vmul.f32 %v5022, %v4971
  %v5027 = vmul.f32 %v5023, %v4971
  %v5028 = vadd.f32 %v5024, 1e-05
  %v5029 = vadd.f32 %v5025, 1e-05
  %v5030 = vadd.f32 %v5026, 1e-05
  %v5031 = vadd.f32 %v5027, 1e-05
  %v5032 = vrsqrt.pop %v5028
  %v5033 = vrsqrt.pop %v5029
  %v5034 = vrsqrt.pop %v5030
  %v5035 = vrsqrt.pop %v5031
  %v5036 = vmul.f32 %v4976, %v5032
  %v5037 = vmul.f32 %v4977, %v5033
  %v5038 = vmul.f32 %v4978, %v5034
  %v5039 = vmul.f32 %v4979, %v5035
  %vm5040 = vcmp.gt.f32.partialorder %v5036, 0.0
  %vm5041 = vcmp.gt.f32.partialorder %v5037, 0.0
  %vm5042 = vcmp.gt.f32.partialorder %v5038, 0.0
  %vm5043 = vcmp.gt.f32.partialorder %v5039, 0.0
  %v5044 = vmul.f32 %v5036, 0.2
  %v5045 = vmul.f32 %v5037, 0.2
  %v5046 = vmul.f32 %v5038, 0.2
  %v5047 = vmul.f32 %v5039, 0.2
  %v5048 = vsel %vm5040, %v5036, %v5044
  %v5049 = vsel %vm5041, %v5037, %v5045
  %v5050 = vsel %vm5042, %v5038, %v5046
  %v5051 = vsel %vm5043, %v5039, %v5047
  %v5052 = vmul.f32 %v5000, %v5032
  %v5053 = vmul.f32 %v5001, %v5033
  %v5054 = vmul.f32 %v5002, %v5034
  %v5055 = vmul.f32 %v5003, %v5035
  %vm5056 = vcmp.gt.f32.partialorder %v5052, 0.0
  %vm5057 = vcmp.gt.f32.partialorder %v5053, 0.0
  %vm5058 = vcmp.gt.f32.partialorder %v5054, 0.0
  %vm5059 = vcmp.gt.f32.partialorder %v5055, 0.0
  %v5060 = vmul.f32 %v5052, 0.2
  %v5061 = vmul.f32 %v5053, 0.2
  %v5062 = vmul.f32 %v5054, 0.2
  %v5063 = vmul.f32 %v5055, 0.2
  %v5064 = vsel %vm5056, %v5052, %v5060
  %v5065 = vsel %vm5057, %v5053, %v5061
  %v5066 = vsel %vm5058, %v5054, %v5062
  %v5067 = vsel %vm5059, %v5055, %v5063
  %v5068 = vld [vmem:[%s5] sm:$0xff]
  %v5069 = vld [vmem:[%s5 + $0x8] sm:$0xff]
  %v5070 = vld [vmem:[%s5 + $0x10] sm:$0xff]
  %v5071 = vld [vmem:[%s5 + $0x18] sm:$0xff]
  %v5072 = vld [vmem:[%s5 + $0x20] sm:$0xff]
  %v5073 = vld [vmem:[%s5 + $0x28] sm:$0xff]
  %v5074 = vld [vmem:[%s5 + $0x30] sm:$0xff]
  %v5075 = vld [vmem:[%s5 + $0x38] sm:$0xff]
  %v5077 = vsel %vm2008, %v5068, 0
  %v5080 = vsel %vm2008, %v5069, 0
  %v5083 = vsel %vm2008, %v5070, 0
  %v5086 = vsel %vm2008, %v5071, 0
  %v5089 = vsel %vm2008, %v5072, 0
  %v5092 = vsel %vm2008, %v5073, 0
  %v5095 = vsel %vm2008, %v5074, 0
  %v5098 = vsel %vm2008, %v5075, 0
  %5100 = vmatprep.subr.mxu0 0.0
  %5101 = vmatpush1.msra.mxu0 %v5048
  %5102 = vmatprep.subr.mxu0 0.0
  %5103 = vmatpush1.msra.mxu0 %v5049
  %5104 = vmatprep.subr.mxu0 0.0
  %5105 = vmatpush1.msra.mxu0 %v5050
  %5106 = vmatprep.subr.mxu0 0.0
  %5107 = vmatpush1.msra.mxu0 %v5051
  %5108 = vmatprep.subr.mxu0 0.0
  %5109 = vmatpush1.msra.mxu0 0.0
  %5110 = vmatprep.subr.mxu0 0.0
  %5111 = vmatpush1.msra.mxu0 0.0
  %5112 = vmatprep.subr.mxu0 0.0
  %5113 = vmatpush1.msra.mxu0 0.0
  %5114 = vmatprep.subr.mxu0 0.0
  %5115 = vmatpush1.msra.mxu0 0.0
  %5116 = vmatprep.subr.mxu0 0.0
  %5117 = vmatpush1.msra.mxu0 0.0
  %5118 = vmatprep.subr.mxu0 0.0
  %5119 = vmatpush1.msra.mxu0 0.0
  %5120 = vmatprep.subr.mxu0 0.0
  %5121 = vmatpush1.msra.mxu0 0.0
  %5122 = vmatprep.subr.mxu0 0.0
  %5123 = vmatpush1.msra.mxu0 0.0
  %5124 = vmatprep.subr.mxu0 0.0
  %5125 = vmatpush1.msra.mxu0 0.0
  %5126 = vmatprep.subr.mxu0 0.0
  %5127 = vmatpush1.msra.mxu0 0.0
  %5128 = vmatprep.subr.mxu0 0.0
  %5129 = vmatpush1.msra.mxu0 0.0
  %5130 = vmatprep.subr.mxu0 0.0
  %5131 = vmatpush1.msra.mxu0 0.0
  %5132 = vmatprep.subr.mxu0 0.0
  %5133 = vmatpush1.msra.mxu0 0.0
  %5134 = vmatprep.subr.mxu0 0.0
  %5135 = vmatpush1.msra.mxu0 0.0
  %5136 = vmatprep.subr.mxu0 0.0
  %5137 = vmatpush1.msra.mxu0 0.0
  %5138 = vmatprep.subr.mxu0 0.0
  %5139 = vmatpush1.msra.mxu0 0.0
  %5140 = vmatprep.subr.mxu0 0.0
  %5141 = vmatpush1.msra.mxu0 0.0
  %5142 = vmatprep.subr.mxu0 0.0
  %5143 = vmatpush1.msra.mxu0 0.0
  %5144 = vmatprep.subr.mxu0 0.0
  %5145 = vmatpush1.msra.mxu0 0.0
  %5146 = vmatprep.subr.mxu0 0.0
  %5147 = vmatpush1.msra.mxu0 0.0
  %5148 = vmatprep.subr.mxu0 0.0
  %5149 = vmatpush1.msra.mxu0 0.0
  %5150 = vmatprep.subr.mxu0 0.0
  %5151 = vmatpush1.msra.mxu0 0.0
  %5152 = vmatprep.subr.mxu0 0.0
  %5153 = vmatpush1.msra.mxu0 0.0
  %5154 = vmatprep.subr.mxu0 0.0
  %5155 = vmatpush1.msra.mxu0 0.0
  %5156 = vmatprep.subr.mxu0 0.0
  %5157 = vmatpush1.msra.mxu0 0.0
  %5158 = vmatprep.subr.mxu0 0.0
  %5159 = vmatpush1.msra.mxu0 0.0
  %5160 = vmatprep.subr.mxu0 0.0
  %5161 = vmatpush1.msra.mxu0 0.0
  %5162 = vmatprep.subr.mxu0 0.0
  %5163 = vmatpush1.msra.mxu0 0.0
  %5164 = vmatprep.mubr.f32.mxu0 0.0
  %5165 = vmatmul.mubr.f32.gmra.mrb[0].mxu0 %v5077
  %v5166 = vpop.f32.mrb[0].mxu0
  %v5167 = vadd.f32 0.0, %v5166
  %v5168 = vpop.f32.mrb[0].mxu0
  %5169 = vmatprep.mubr.f32.mxu0 0.0
  %5170 = vmatmul.mubr.f32.gmra.mrb[0].mxu0 %v5080
  %v5171 = vpop.f32.mrb[0].mxu0
  %v5172 = vadd.f32 0.0, %v5171
  %v5173 = vpop.f32.mrb[0].mxu0
  %5174 = vmatprep.mubr.f32.mxu0 0.0
  %5175 = vmatmul.mubr.f32.gmra.mrb[0].mxu0 %v5083
  %v5176 = vpop.f32.mrb[0].mxu0
  %v5177 = vadd.f32 0.0, %v5176
  %v5178 = vpop.f32.mrb[0].mxu0
  %5179 = vmatprep.mubr.f32.mxu0 0.0
  %5180 = vmatmul.mubr.f32.gmra.mrb[0].mxu0 %v5086
  %v5181 = vpop.f32.mrb[0].mxu0
  %v5182 = vadd.f32 0.0, %v5181
  %v5183 = vpop.f32.mrb[0].mxu0
  %5184 = vmatprep.mubr.f32.mxu0 0.0
  %5185 = vmatmul.mubr.f32.gmra.mrb[0].mxu0 %v5089
  %v5186 = vpop.f32.mrb[0].mxu0
  %v5187 = vadd.f32 0.0, %v5186
  %v5188 = vpop.f32.mrb[0].mxu0
  %5189 = vmatprep.mubr.f32.mxu0 0.0
  %5190 = vmatmul.mubr.f32.gmra.mrb[0].mxu0 %v5092
  %v5191 = vpop.f32.mrb[0].mxu0
  %v5192 = vadd.f32 0.0, %v5191
  %v5193 = vpop.f32.mrb[0].mxu0
  %5194 = vmatprep.mubr.f32.mxu0 0.0
  %5195 = vmatmul.mubr.f32.gmra.mrb[0].mxu0 %v5095
  %v5196 = vpop.f32.mrb[0].mxu0
  %v5197 = vadd.f32 0.0, %v5196
  %v5198 = vpop.f32.mrb[0].mxu0
  %5199 = vmatprep.mubr.f32.mxu0 0.0
  %5200 = vmatmul.mubr.f32.gmra.mrb[0].mxu0 %v5098
  %v5201 = vpop.f32.mrb[0].mxu0
  %v5202 = vadd.f32 0.0, %v5201
  %v5203 = vpop.f32.mrb[0].mxu0
  %5204 = vdwg.mxu0
  %s5205 = scalar_lea.vmem %s5, 64
  %v5206 = vld [vmem:[%s5205] sm:$0xff]
  %v5207 = vld [vmem:[%s5205 + $0x8] sm:$0xff]
  %v5208 = vld [vmem:[%s5205 + $0x10] sm:$0xff]
  %v5209 = vld [vmem:[%s5205 + $0x18] sm:$0xff]
  %v5210 = vld [vmem:[%s5205 + $0x20] sm:$0xff]
  %v5211 = vld [vmem:[%s5205 + $0x28] sm:$0xff]
  %v5212 = vld [vmem:[%s5205 + $0x30] sm:$0xff]
  %v5213 = vld [vmem:[%s5205 + $0x38] sm:$0xff]
  %v5215 = vsel %vm2008, %v5206, 0
  %v5218 = vsel %vm2008, %v5207, 0
  %v5221 = vsel %vm2008, %v5208, 0
  %v5224 = vsel %vm2008, %v5209, 0
  %v5227 = vsel %vm2008, %v5210, 0
  %v5230 = vsel %vm2008, %v5211, 0
  %v5233 = vsel %vm2008, %v5212, 0
  %v5236 = vsel %vm2008, %v5213, 0
  %5238 = vmatprep.subr.mxu0 0.0
  %5239 = vmatpush1.msra.mxu0 %v5048
  %5240 = vmatprep.subr.mxu0 0.0
  %5241 = vmatpush1.msra.mxu0 %v5049
  %5242 = vmatprep.subr.mxu0 0.0
  %5243 = vmatpush1.msra.mxu0 %v5050
  %5244 = vmatprep.subr.mxu0 0.0
  %5245 = vmatpush1.msra.mxu0 %v5051
  %5246 = vmatprep.subr.mxu0 0.0
  %5247 = vmatpush1.msra.mxu0 0.0
  %5248 = vmatprep.subr.mxu0 0.0
  %5249 = vmatpush1.msra.mxu0 0.0
  %5250 = vmatprep.subr.mxu0 0.0
  %5251 = vmatpush1.msra.mxu0 0.0
  %5252 = vmatprep.subr.mxu0 0.0
  %5253 = vmatpush1.msra.mxu0 0.0
  %5254 = vmatprep.subr.mxu0 0.0
  %5255 = vmatpush1.msra.mxu0 0.0
  %5256 = vmatprep.subr.mxu0 0.0
  %5257 = vmatpush1.msra.mxu0 0.0
  %5258 = vmatprep.subr.mxu0 0.0
  %5259 = vmatpush1.msra.mxu0 0.0
  %5260 = vmatprep.subr.mxu0 0.0
  %5261 = vmatpush1.msra.mxu0 0.0
  %5262 = vmatprep.subr.mxu0 0.0
  %5263 = vmatpush1.msra.mxu0 0.0
  %5264 = vmatprep.subr.mxu0 0.0
  %5265 = vmatpush1.msra.mxu0 0.0
  %5266 = vmatprep.subr.mxu0 0.0
  %5267 = vmatpush1.msra.mxu0 0.0
  %5268 = vmatprep.subr.mxu0 0.0
  %5269 = vmatpush1.msra.mxu0 0.0
  %5270 = vmatprep.subr.mxu0 0.0
  %5271 = vmatpush1.msra.mxu0 0.0
  %5272 = vmatprep.subr.mxu0 0.0
  %5273 = vmatpush1.msra.mxu0 0.0
  %5274 = vmatprep.subr.mxu0 0.0
  %5275 = vmatpush1.msra.mxu0 0.0
  %5276 = vmatprep.subr.mxu0 0.0
  %5277 = vmatpush1.msra.mxu0 0.0
  %5278 = vmatprep.subr.mxu0 0.0
  %5279 = vmatpush1.msra.mxu0 0.0
  %5280 = vmatprep.subr.mxu0 0.0
  %5281 = vmatpush1.msra.mxu0 0.0
  %5282 = vmatprep.subr.mxu0 0.0
  %5283 = vmatpush1.msra.mxu0 0.0
  %5284 = vmatprep.subr.mxu0 0.0
  %5285 = vmatpush1.msra.mxu0 0.0
  %5286 = vmatprep.subr.mxu0 0.0
  %5287 = vmatpush1.msra.mxu0 0.0
  %5288 = vmatprep.subr.mxu0 0.0
  %5289 = vmatpush1.msra.mxu0 0.0
  %5290 = vmatprep.subr.mxu0 0.0
  %5291 = vmatpush1.msra.mxu0 0.0
  %5292 = vmatprep.subr.mxu0 0.0
  %5293 = vmatpush1.msra.mxu0 0.0
  %5294 = vmatprep.subr.mxu0 0.0
  %5295 = vmatpush1.msra.mxu0 0.0
  %5296 = vmatprep.subr.mxu0 0.0
  %5297 = vmatpush1.msra.mxu0 0.0
  %5298 = vmatprep.subr.mxu0 0.0
  %5299 = vmatpush1.msra.mxu0 0.0
  %5300 = vmatprep.subr.mxu0 0.0
  %5301 = vmatpush1.msra.mxu0 0.0
  %5302 = vmatprep.mubr.f32.mxu0 0.0
  %5303 = vmatmul.mubr.f32.gmra.mrb[0].mxu0 %v5215
  %v5304 = vpop.f32.mrb[0].mxu0
  %v5305 = vadd.f32 0.0, %v5304
  %v5306 = vpop.f32.mrb[0].mxu0
  %5307 = vmatprep.mubr.f32.mxu0 0.0
  %5308 = vmatmul.mubr.f32.gmra.mrb[0].mxu0 %v5218
  %v5309 = vpop.f32.mrb[0].mxu0
  %v5310 = vadd.f32 0.0, %v5309
  %v5311 = vpop.f32.mrb[0].mxu0
  %5312 = vmatprep.mubr.f32.mxu0 0.0
  %5313 = vmatmul.mubr.f32.gmra.mrb[0].mxu0 %v5221
  %v5314 = vpop.f32.mrb[0].mxu0
  %v5315 = vadd.f32 0.0, %v5314
  %v5316 = vpop.f32.mrb[0].mxu0
  %5317 = vmatprep.mubr.f32.mxu0 0.0
  %5318 = vmatmul.mubr.f32.gmra.mrb[0].mxu0 %v5224
  %v5319 = vpop.f32.mrb[0].mxu0
  %v5320 = vadd.f32 0.0, %v5319
  %v5321 = vpop.f32.mrb[0].mxu0
  %5322 = vmatprep.mubr.f32.mxu0 0.0
  %5323 = vmatmul.mubr.f32.gmra.mrb[0].mxu0 %v5227
  %v5324 = vpop.f32.mrb[0].mxu0
  %v5325 = vadd.f32 0.0, %v5324
  %v5326 = vpop.f32.mrb[0].mxu0
  %5327 = vmatprep.mubr.f32.mxu0 0.0
  %5328 = vmatmul.mubr.f32.gmra.mrb[0].mxu0 %v5230
  %v5329 = vpop.f32.mrb[0].mxu0
  %v5330 = vadd.f32 0.0, %v5329
  %v5331 = vpop.f32.mrb[0].mxu0
  %5332 = vmatprep.mubr.f32.mxu0 0.0
  %5333 = vmatmul.mubr.f32.gmra.mrb[0].mxu0 %v5233
  %v5334 = vpop.f32.mrb[0].mxu0
  %v5335 = vadd.f32 0.0, %v5334
  %v5336 = vpop.f32.mrb[0].mxu0
  %5337 = vmatprep.mubr.f32.mxu0 0.0
  %5338 = vmatmul.mubr.f32.gmra.mrb[0].mxu0 %v5236
  %v5339 = vpop.f32.mrb[0].mxu0
  %v5340 = vadd.f32 0.0, %v5339
  %v5341 = vpop.f32.mrb[0].mxu0
  %5342 = vdwg.mxu0
  %v5344 = vsel %vm2044, %v5305, 0
  %v5347 = vsel %vm2044, %v5310, 0
  %v5350 = vsel %vm2044, %v5315, 0
  %v5353 = vsel %vm2044, %v5320, 0
  %v5356 = vsel %vm2044, %v5325, 0
  %v5359 = vsel %vm2044, %v5330, 0
  %v5362 = vsel %vm2044, %v5335, 0
  %v5365 = vsel %vm2044, %v5340, 0
  %5367 = vmatprep.subr.mxu0 0.0
  %5368 = vmatpush1.msra.mxu0 %v105
  %5369 = vmatprep.subr.mxu0 0.0
  %5370 = vmatpush1.msra.mxu0 0.0
  %5371 = vmatprep.subr.mxu0 0.0
  %5372 = vmatpush1.msra.mxu0 0.0
  %5373 = vmatprep.subr.mxu0 0.0
  %5374 = vmatpush1.msra.mxu0 0.0
  %5375 = vmatprep.subr.mxu0 0.0
  %5376 = vmatpush1.msra.mxu0 0.0
  %5377 = vmatprep.subr.mxu0 0.0
  %5378 = vmatpush1.msra.mxu0 0.0
  %5379 = vmatprep.subr.mxu0 0.0
  %5380 = vmatpush1.msra.mxu0 0.0
  %5381 = vmatprep.subr.mxu0 0.0
  %5382 = vmatpush1.msra.mxu0 0.0
  %5383 = vmatprep.subr.mxu0 0.0
  %5384 = vmatpush1.msra.mxu0 0.0
  %5385 = vmatprep.subr.mxu0 0.0
  %5386 = vmatpush1.msra.mxu0 0.0
  %5387 = vmatprep.subr.mxu0 0.0
  %5388 = vmatpush1.msra.mxu0 0.0
  %5389 = vmatprep.subr.mxu0 0.0
  %5390 = vmatpush1.msra.mxu0 0.0
  %5391 = vmatprep.subr.mxu0 0.0
  %5392 = vmatpush1.msra.mxu0 0.0
  %5393 = vmatprep.subr.mxu0 0.0
  %5394 = vmatpush1.msra.mxu0 0.0
  %5395 = vmatprep.subr.mxu0 0.0
  %5396 = vmatpush1.msra.mxu0 0.0
  %5397 = vmatprep.subr.mxu0 0.0
  %5398 = vmatpush1.msra.mxu0 0.0
  %5399 = vmatprep.subr.mxu0 0.0
  %5400 = vmatpush1.msra.mxu0 0.0
  %5401 = vmatprep.subr.mxu0 0.0
  %5402 = vmatpush1.msra.mxu0 0.0
  %5403 = vmatprep.subr.mxu0 0.0
  %5404 = vmatpush1.msra.mxu0 0.0
  %5405 = vmatprep.subr.mxu0 0.0
  %5406 = vmatpush1.msra.mxu0 0.0
  %5407 = vmatprep.subr.mxu0 0.0
  %5408 = vmatpush1.msra.mxu0 0.0
  %5409 = vmatprep.subr.mxu0 0.0
  %5410 = vmatpush1.msra.mxu0 0.0
  %5411 = vmatprep.subr.mxu0 0.0
  %5412 = vmatpush1.msra.mxu0 0.0
  %5413 = vmatprep.subr.mxu0 0.0
  %5414 = vmatpush1.msra.mxu0 0.0
  %5415 = vmatprep.subr.mxu0 0.0
  %5416 = vmatpush1.msra.mxu0 0.0
  %5417 = vmatprep.subr.mxu0 0.0
  %5418 = vmatpush1.msra.mxu0 0.0
  %5419 = vmatprep.subr.mxu0 0.0
  %5420 = vmatpush1.msra.mxu0 0.0
  %5421 = vmatprep.subr.mxu0 0.0
  %5422 = vmatpush1.msra.mxu0 0.0
  %5423 = vmatprep.subr.mxu0 0.0
  %5424 = vmatpush1.msra.mxu0 0.0
  %5425 = vmatprep.subr.mxu0 0.0
  %5426 = vmatpush1.msra.mxu0 0.0
  %5427 = vmatprep.subr.mxu0 0.0
  %5428 = vmatpush1.msra.mxu0 0.0
  %5429 = vmatprep.subr.mxu0 0.0
  %5430 = vmatpush1.msra.mxu0 0.0
  %5431 = vmatprep.mubr.f32.mxu0 0.0
  %5432 = vmatmul.mubr.f32.gmra.mrb[0].mxu0 %v5344
  %v5433 = vpop.f32.mrb[0].mxu0
  %v5434 = vadd.f32 0.0, %v5433
  %v5435 = vpop.f32.mrb[0].mxu0
  %5436 = vmatprep.mubr.f32.mxu0 0.0
  %5437 = vmatmul.mubr.f32.gmra.mrb[0].mxu0 %v5347
  %v5438 = vpop.f32.mrb[0].mxu0
  %v5439 = vadd.f32 0.0, %v5438
  %v5440 = vpop.f32.mrb[0].mxu0
  %5441 = vmatprep.mubr.f32.mxu0 0.0
  %5442 = vmatmul.mubr.f32.gmra.mrb[0].mxu0 %v5350
  %v5443 = vpop.f32.mrb[0].mxu0
  %v5444 = vadd.f32 0.0, %v5443
  %v5445 = vpop.f32.mrb[0].mxu0
  %5446 = vmatprep.mubr.f32.mxu0 0.0
  %5447 = vmatmul.mubr.f32.gmra.mrb[0].mxu0 %v5353
  %v5448 = vpop.f32.mrb[0].mxu0
  %v5449 = vadd.f32 0.0, %v5448
  %v5450 = vpop.f32.mrb[0].mxu0
  %5451 = vmatprep.mubr.f32.mxu0 0.0
  %5452 = vmatmul.mubr.f32.gmra.mrb[0].mxu0 %v5356
  %v5453 = vpop.f32.mrb[0].mxu0
  %v5454 = vadd.f32 0.0, %v5453
  %v5455 = vpop.f32.mrb[0].mxu0
  %5456 = vmatprep.mubr.f32.mxu0 0.0
  %5457 = vmatmul.mubr.f32.gmra.mrb[0].mxu0 %v5359
  %v5458 = vpop.f32.mrb[0].mxu0
  %v5459 = vadd.f32 0.0, %v5458
  %v5460 = vpop.f32.mrb[0].mxu0
  %5461 = vmatprep.mubr.f32.mxu0 0.0
  %5462 = vmatmul.mubr.f32.gmra.mrb[0].mxu0 %v5362
  %v5463 = vpop.f32.mrb[0].mxu0
  %v5464 = vadd.f32 0.0, %v5463
  %v5465 = vpop.f32.mrb[0].mxu0
  %5466 = vmatprep.mubr.f32.mxu0 0.0
  %5467 = vmatmul.mubr.f32.gmra.mrb[0].mxu0 %v5365
  %v5468 = vpop.f32.mrb[0].mxu0
  %v5469 = vadd.f32 0.0, %v5468
  %v5470 = vpop.f32.mrb[0].mxu0
  %5471 = vdwg.mxu0
  %v5473 = vsel %vm2044, %v5167, 0
  %v5476 = vsel %vm2044, %v5172, 0
  %v5479 = vsel %vm2044, %v5177, 0
  %v5482 = vsel %vm2044, %v5182, 0
  %v5485 = vsel %vm2044, %v5187, 0
  %v5488 = vsel %vm2044, %v5192, 0
  %v5491 = vsel %vm2044, %v5197, 0
  %v5494 = vsel %vm2044, %v5202, 0
  %5496 = vmatprep.subr.mxu0 0.0
  %5497 = vmatpush1.msra.mxu0 %v73
  %5498 = vmatprep.subr.mxu0 0.0
  %5499 = vmatpush1.msra.mxu0 0.0
  %5500 = vmatprep.subr.mxu0 0.0
  %5501 = vmatpush1.msra.mxu0 0.0
  %5502 = vmatprep.subr.mxu0 0.0
  %5503 = vmatpush1.msra.mxu0 0.0
  %5504 = vmatprep.subr.mxu0 0.0
  %5505 = vmatpush1.msra.mxu0 0.0
  %5506 = vmatprep.subr.mxu0 0.0
  %5507 = vmatpush1.msra.mxu0 0.0
  %5508 = vmatprep.subr.mxu0 0.0
  %5509 = vmatpush1.msra.mxu0 0.0
  %5510 = vmatprep.subr.mxu0 0.0
  %5511 = vmatpush1.msra.mxu0 0.0
  %5512 = vmatprep.subr.mxu0 0.0
  %5513 = vmatpush1.msra.mxu0 0.0
  %5514 = vmatprep.subr.mxu0 0.0
  %5515 = vmatpush1.msra.mxu0 0.0
  %5516 = vmatprep.subr.mxu0 0.0
  %5517 = vmatpush1.msra.mxu0 0.0
  %5518 = vmatprep.subr.mxu0 0.0
  %5519 = vmatpush1.msra.mxu0 0.0
  %5520 = vmatprep.subr.mxu0 0.0
  %5521 = vmatpush1.msra.mxu0 0.0
  %5522 = vmatprep.subr.mxu0 0.0
  %5523 = vmatpush1.msra.mxu0 0.0
  %5524 = vmatprep.subr.mxu0 0.0
  %5525 = vmatpush1.msra.mxu0 0.0
  %5526 = vmatprep.subr.mxu0 0.0
  %5527 = vmatpush1.msra.mxu0 0.0
  %5528 = vmatprep.subr.mxu0 0.0
  %5529 = vmatpush1.msra.mxu0 0.0
  %5530 = vmatprep.subr.mxu0 0.0
  %5531 = vmatpush1.msra.mxu0 0.0
  %5532 = vmatprep.subr.mxu0 0.0
  %5533 = vmatpush1.msra.mxu0 0.0
  %5534 = vmatprep.subr.mxu0 0.0
  %5535 = vmatpush1.msra.mxu0 0.0
  %5536 = vmatprep.subr.mxu0 0.0
  %5537 = vmatpush1.msra.mxu0 0.0
  %5538 = vmatprep.subr.mxu0 0.0
  %5539 = vmatpush1.msra.mxu0 0.0
  %5540 = vmatprep.subr.mxu0 0.0
  %5541 = vmatpush1.msra.mxu0 0.0
  %5542 = vmatprep.subr.mxu0 0.0
  %5543 = vmatpush1.msra.mxu0 0.0
  %5544 = vmatprep.subr.mxu0 0.0
  %5545 = vmatpush1.msra.mxu0 0.0
  %5546 = vmatprep.subr.mxu0 0.0
  %5547 = vmatpush1.msra.mxu0 0.0
  %5548 = vmatprep.subr.mxu0 0.0
  %5549 = vmatpush1.msra.mxu0 0.0
  %5550 = vmatprep.subr.mxu0 0.0
  %5551 = vmatpush1.msra.mxu0 0.0
  %5552 = vmatprep.subr.mxu0 0.0
  %5553 = vmatpush1.msra.mxu0 0.0
  %5554 = vmatprep.subr.mxu0 0.0
  %5555 = vmatpush1.msra.mxu0 0.0
  %5556 = vmatprep.subr.mxu0 0.0
  %5557 = vmatpush1.msra.mxu0 0.0
  %5558 = vmatprep.subr.mxu0 0.0
  %5559 = vmatpush1.msra.mxu0 0.0
  %5560 = vmatprep.mubr.f32.mxu0 0.0
  %5561 = vmatmul.mubr.f32.gmra.mrb[0].mxu0 %v5473
  %v5562 = vpop.f32.mrb[0].mxu0
  %v5563 = vadd.f32 %v5434, %v5562
  %v5564 = vpop.f32.mrb[0].mxu0
  %5565 = vmatprep.mubr.f32.mxu0 0.0
  %5566 = vmatmul.mubr.f32.gmra.mrb[0].mxu0 %v5476
  %v5567 = vpop.f32.mrb[0].mxu0
  %v5568 = vadd.f32 %v5439, %v5567
  %v5569 = vpop.f32.mrb[0].mxu0
  %5570 = vmatprep.mubr.f32.mxu0 0.0
  %5571 = vmatmul.mubr.f32.gmra.mrb[0].mxu0 %v5479
  %v5572 = vpop.f32.mrb[0].mxu0
  %v5573 = vadd.f32 %v5444, %v5572
  %v5574 = vpop.f32.mrb[0].mxu0
  %5575 = vmatprep.mubr.f32.mxu0 0.0
  %5576 = vmatmul.mubr.f32.gmra.mrb[0].mxu0 %v5482
  %v5577 = vpop.f32.mrb[0].mxu0
  %v5578 = vadd.f32 %v5449, %v5577
  %v5579 = vpop.f32.mrb[0].mxu0
  %5580 = vmatprep.mubr.f32.mxu0 0.0
  %5581 = vmatmul.mubr.f32.gmra.mrb[0].mxu0 %v5485
  %v5582 = vpop.f32.mrb[0].mxu0
  %v5583 = vadd.f32 %v5454, %v5582
  %v5584 = vpop.f32.mrb[0].mxu0
  %5585 = vmatprep.mubr.f32.mxu0 0.0
  %5586 = vmatmul.mubr.f32.gmra.mrb[0].mxu0 %v5488
  %v5587 = vpop.f32.mrb[0].mxu0
  %v5588 = vadd.f32 %v5459, %v5587
  %v5589 = vpop.f32.mrb[0].mxu0
  %5590 = vmatprep.mubr.f32.mxu0 0.0
  %5591 = vmatmul.mubr.f32.gmra.mrb[0].mxu0 %v5491
  %v5592 = vpop.f32.mrb[0].mxu0
  %v5593 = vadd.f32 %v5464, %v5592
  %v5594 = vpop.f32.mrb[0].mxu0
  %5595 = vmatprep.mubr.f32.mxu0 0.0
  %5596 = vmatmul.mubr.f32.gmra.mrb[0].mxu0 %v5494
  %v5597 = vpop.f32.mrb[0].mxu0
  %v5598 = vadd.f32 %v5469, %v5597
  %v5599 = vpop.f32.mrb[0].mxu0
  %5600 = vdwg.mxu0
  %s5601 = scalar_lea.vmem %s5, 128
  %v5602 = vld [vmem:[%s5601] sm:$0xff]
  %v5603 = vld [vmem:[%s5601 + $0x8] sm:$0xff]
  %v5604 = vld [vmem:[%s5601 + $0x10] sm:$0xff]
  %v5605 = vld [vmem:[%s5601 + $0x18] sm:$0xff]
  %v5606 = vld [vmem:[%s5601 + $0x20] sm:$0xff]
  %v5607 = vld [vmem:[%s5601 + $0x28] sm:$0xff]
  %v5608 = vld [vmem:[%s5601 + $0x30] sm:$0xff]
  %v5609 = vld [vmem:[%s5601 + $0x38] sm:$0xff]
  %v5611 = vsel %vm2008, %v5602, 0
  %v5614 = vsel %vm2008, %v5603, 0
  %v5617 = vsel %vm2008, %v5604, 0
  %v5620 = vsel %vm2008, %v5605, 0
  %v5623 = vsel %vm2008, %v5606, 0
  %v5626 = vsel %vm2008, %v5607, 0
  %v5629 = vsel %vm2008, %v5608, 0
  %v5632 = vsel %vm2008, %v5609, 0
  %5634 = vmatprep.subr.mxu0 0.0
  %5635 = vmatpush1.msra.mxu0 %v5048
  %5636 = vmatprep.subr.mxu0 0.0
  %5637 = vmatpush1.msra.mxu0 %v5049
  %5638 = vmatprep.subr.mxu0 0.0
  %5639 = vmatpush1.msra.mxu0 %v5050
  %5640 = vmatprep.subr.mxu0 0.0
  %5641 = vmatpush1.msra.mxu0 %v5051
  %5642 = vmatprep.subr.mxu0 0.0
  %5643 = vmatpush1.msra.mxu0 0.0
  %5644 = vmatprep.subr.mxu0 0.0
  %5645 = vmatpush1.msra.mxu0 0.0
  %5646 = vmatprep.subr.mxu0 0.0
  %5647 = vmatpush1.msra.mxu0 0.0
  %5648 = vmatprep.subr.mxu0 0.0
  %5649 = vmatpush1.msra.mxu0 0.0
  %5650 = vmatprep.subr.mxu0 0.0
  %5651 = vmatpush1.msra.mxu0 0.0
  %5652 = vmatprep.subr.mxu0 0.0
  %5653 = vmatpush1.msra.mxu0 0.0
  %5654 = vmatprep.subr.mxu0 0.0
  %5655 = vmatpush1.msra.mxu0 0.0
  %5656 = vmatprep.subr.mxu0 0.0
  %5657 = vmatpush1.msra.mxu0 0.0
  %5658 = vmatprep.subr.mxu0 0.0
  %5659 = vmatpush1.msra.mxu0 0.0
  %5660 = vmatprep.subr.mxu0 0.0
  %5661 = vmatpush1.msra.mxu0 0.0
  %5662 = vmatprep.subr.mxu0 0.0
  %5663 = vmatpush1.msra.mxu0 0.0
  %5664 = vmatprep.subr.mxu0 0.0
  %5665 = vmatpush1.msra.mxu0 0.0
  %5666 = vmatprep.subr.mxu0 0.0
  %5667 = vmatpush1.msra.mxu0 0.0
  %5668 = vmatprep.subr.mxu0 0.0
  %5669 = vmatpush1.msra.mxu0 0.0
  %5670 = vmatprep.subr.mxu0 0.0
  %5671 = vmatpush1.msra.mxu0 0.0
  %5672 = vmatprep.subr.mxu0 0.0
  %5673 = vmatpush1.msra.mxu0 0.0
  %5674 = vmatprep.subr.mxu0 0.0
  %5675 = vmatpush1.msra.mxu0 0.0
  %5676 = vmatprep.subr.mxu0 0.0
  %5677 = vmatpush1.msra.mxu0 0.0
  %5678 = vmatprep.subr.mxu0 0.0
  %5679 = vmatpush1.msra.mxu0 0.0
  %5680 = vmatprep.subr.mxu0 0.0
  %5681 = vmatpush1.msra.mxu0 0.0
  %5682 = vmatprep.subr.mxu0 0.0
  %5683 = vmatpush1.msra.mxu0 0.0
  %5684 = vmatprep.subr.mxu0 0.0
  %5685 = vmatpush1.msra.mxu0 0.0
  %5686 = vmatprep.subr.mxu0 0.0
  %5687 = vmatpush1.msra.mxu0 0.0
  %5688 = vmatprep.subr.mxu0 0.0
  %5689 = vmatpush1.msra.mxu0 0.0
  %5690 = vmatprep.subr.mxu0 0.0
  %5691 = vmatpush1.msra.mxu0 0.0
  %5692 = vmatprep.subr.mxu0 0.0
  %5693 = vmatpush1.msra.mxu0 0.0
  %5694 = vmatprep.subr.mxu0 0.0
  %5695 = vmatpush1.msra.mxu0 0.0
  %5696 = vmatprep.subr.mxu0 0.0
  %5697 = vmatpush1.msra.mxu0 0.0
  %5698 = vmatprep.mubr.f32.mxu0 0.0
  %5699 = vmatmul.mubr.f32.gmra.mrb[0].mxu0 %v5611
  %v5700 = vpop.f32.mrb[0].mxu0
  %v5701 = vadd.f32 0.0, %v5700
  %v5702 = vpop.f32.mrb[0].mxu0
  %5703 = vmatprep.mubr.f32.mxu0 0.0
  %5704 = vmatmul.mubr.f32.gmra.mrb[0].mxu0 %v5614
  %v5705 = vpop.f32.mrb[0].mxu0
  %v5706 = vadd.f32 0.0, %v5705
  %v5707 = vpop.f32.mrb[0].mxu0
  %5708 = vmatprep.mubr.f32.mxu0 0.0
  %5709 = vmatmul.mubr.f32.gmra.mrb[0].mxu0 %v5617
  %v5710 = vpop.f32.mrb[0].mxu0
  %v5711 = vadd.f32 0.0, %v5710
  %v5712 = vpop.f32.mrb[0].mxu0
  %5713 = vmatprep.mubr.f32.mxu0 0.0
  %5714 = vmatmul.mubr.f32.gmra.mrb[0].mxu0 %v5620
  %v5715 = vpop.f32.mrb[0].mxu0
  %v5716 = vadd.f32 0.0, %v5715
  %v5717 = vpop.f32.mrb[0].mxu0
  %5718 = vmatprep.mubr.f32.mxu0 0.0
  %5719 = vmatmul.mubr.f32.gmra.mrb[0].mxu0 %v5623
  %v5720 = vpop.f32.mrb[0].mxu0
  %v5721 = vadd.f32 0.0, %v5720
  %v5722 = vpop.f32.mrb[0].mxu0
  %5723 = vmatprep.mubr.f32.mxu0 0.0
  %5724 = vmatmul.mubr.f32.gmra.mrb[0].mxu0 %v5626
  %v5725 = vpop.f32.mrb[0].mxu0
  %v5726 = vadd.f32 0.0, %v5725
  %v5727 = vpop.f32.mrb[0].mxu0
  %5728 = vmatprep.mubr.f32.mxu0 0.0
  %5729 = vmatmul.mubr.f32.gmra.mrb[0].mxu0 %v5629
  %v5730 = vpop.f32.mrb[0].mxu0
  %v5731 = vadd.f32 0.0, %v5730
  %v5732 = vpop.f32.mrb[0].mxu0
  %5733 = vmatprep.mubr.f32.mxu0 0.0
  %5734 = vmatmul.mubr.f32.gmra.mrb[0].mxu0 %v5632
  %v5735 = vpop.f32.mrb[0].mxu0
  %v5736 = vadd.f32 0.0, %v5735
  %v5737 = vpop.f32.mrb[0].mxu0
  %5738 = vdwg.mxu0
  %v5740 = vsel %vm2044, %v5701, 0
  %v5743 = vsel %vm2044, %v5706, 0
  %v5746 = vsel %vm2044, %v5711, 0
  %v5749 = vsel %vm2044, %v5716, 0
  %v5752 = vsel %vm2044, %v5721, 0
  %v5755 = vsel %vm2044, %v5726, 0
  %v5758 = vsel %vm2044, %v5731, 0
  %v5761 = vsel %vm2044, %v5736, 0
  %5763 = vmatprep.subr.mxu0 0.0
  %5764 = vmatpush1.msra.mxu0 %v138
  %5765 = vmatprep.subr.mxu0 0.0
  %5766 = vmatpush1.msra.mxu0 0.0
  %5767 = vmatprep.subr.mxu0 0.0
  %5768 = vmatpush1.msra.mxu0 0.0
  %5769 = vmatprep.subr.mxu0 0.0
  %5770 = vmatpush1.msra.mxu0 0.0
  %5771 = vmatprep.subr.mxu0 0.0
  %5772 = vmatpush1.msra.mxu0 0.0
  %5773 = vmatprep.subr.mxu0 0.0
  %5774 = vmatpush1.msra.mxu0 0.0
  %5775 = vmatprep.subr.mxu0 0.0
  %5776 = vmatpush1.msra.mxu0 0.0
  %5777 = vmatprep.subr.mxu0 0.0
  %5778 = vmatpush1.msra.mxu0 0.0
  %5779 = vmatprep.subr.mxu0 0.0
  %5780 = vmatpush1.msra.mxu0 0.0
  %5781 = vmatprep.subr.mxu0 0.0
  %5782 = vmatpush1.msra.mxu0 0.0
  %5783 = vmatprep.subr.mxu0 0.0
  %5784 = vmatpush1.msra.mxu0 0.0
  %5785 = vmatprep.subr.mxu0 0.0
  %5786 = vmatpush1.msra.mxu0 0.0
  %5787 = vmatprep.subr.mxu0 0.0
  %5788 = vmatpush1.msra.mxu0 0.0
  %5789 = vmatprep.subr.mxu0 0.0
  %5790 = vmatpush1.msra.mxu0 0.0
  %5791 = vmatprep.subr.mxu0 0.0
  %5792 = vmatpush1.msra.mxu0 0.0
  %5793 = vmatprep.subr.mxu0 0.0
  %5794 = vmatpush1.msra.mxu0 0.0
  %5795 = vmatprep.subr.mxu0 0.0
  %5796 = vmatpush1.msra.mxu0 0.0
  %5797 = vmatprep.subr.mxu0 0.0
  %5798 = vmatpush1.msra.mxu0 0.0
  %5799 = vmatprep.subr.mxu0 0.0
  %5800 = vmatpush1.msra.mxu0 0.0
  %5801 = vmatprep.subr.mxu0 0.0
  %5802 = vmatpush1.msra.mxu0 0.0
  %5803 = vmatprep.subr.mxu0 0.0
  %5804 = vmatpush1.msra.mxu0 0.0
  %5805 = vmatprep.subr.mxu0 0.0
  %5806 = vmatpush1.msra.mxu0 0.0
  %5807 = vmatprep.subr.mxu0 0.0
  %5808 = vmatpush1.msra.mxu0 0.0
  %5809 = vmatprep.subr.mxu0 0.0
  %5810 = vmatpush1.msra.mxu0 0.0
  %5811 = vmatprep.subr.mxu0 0.0
  %5812 = vmatpush1.msra.mxu0 0.0
  %5813 = vmatprep.subr.mxu0 0.0
  %5814 = vmatpush1.msra.mxu0 0.0
  %5815 = vmatprep.subr.mxu0 0.0
  %5816 = vmatpush1.msra.mxu0 0.0
  %5817 = vmatprep.subr.mxu0 0.0
  %5818 = vmatpush1.msra.mxu0 0.0
  %5819 = vmatprep.subr.mxu0 0.0
  %5820 = vmatpush1.msra.mxu0 0.0
  %5821 = vmatprep.subr.mxu0 0.0
  %5822 = vmatpush1.msra.mxu0 0.0
  %5823 = vmatprep.subr.mxu0 0.0
  %5824 = vmatpush1.msra.mxu0 0.0
  %5825 = vmatprep.subr.mxu0 0.0
  %5826 = vmatpush1.msra.mxu0 0.0
  %5827 = vmatprep.mubr.f32.mxu0 0.0
  %5828 = vmatmul.mubr.f32.gmra.mrb[0].mxu0 %v5740
  %v5829 = vpop.f32.mrb[0].mxu0
  %v5830 = vadd.f32 0.0, %v5829
  %v5831 = vpop.f32.mrb[0].mxu0
  %5832 = vmatprep.mubr.f32.mxu0 0.0
  %5833 = vmatmul.mubr.f32.gmra.mrb[0].mxu0 %v5743
  %v5834 = vpop.f32.mrb[0].mxu0
  %v5835 = vadd.f32 0.0, %v5834
  %v5836 = vpop.f32.mrb[0].mxu0
  %5837 = vmatprep.mubr.f32.mxu0 0.0
  %5838 = vmatmul.mubr.f32.gmra.mrb[0].mxu0 %v5746
  %v5839 = vpop.f32.mrb[0].mxu0
  %v5840 = vadd.f32 0.0, %v5839
  %v5841 = vpop.f32.mrb[0].mxu0
  %5842 = vmatprep.mubr.f32.mxu0 0.0
  %5843 = vmatmul.mubr.f32.gmra.mrb[0].mxu0 %v5749
  %v5844 = vpop.f32.mrb[0].mxu0
  %v5845 = vadd.f32 0.0, %v5844
  %v5846 = vpop.f32.mrb[0].mxu0
  %5847 = vmatprep.mubr.f32.mxu0 0.0
  %5848 = vmatmul.mubr.f32.gmra.mrb[0].mxu0 %v5752
  %v5849 = vpop.f32.mrb[0].mxu0
  %v5850 = vadd.f32 0.0, %v5849
  %v5851 = vpop.f32.mrb[0].mxu0
  %5852 = vmatprep.mubr.f32.mxu0 0.0
  %5853 = vmatmul.mubr.f32.gmra.mrb[0].mxu0 %v5755
  %v5854 = vpop.f32.mrb[0].mxu0
  %v5855 = vadd.f32 0.0, %v5854
  %v5856 = vpop.f32.mrb[0].mxu0
  %5857 = vmatprep.mubr.f32.mxu0 0.0
  %5858 = vmatmul.mubr.f32.gmra.mrb[0].mxu0 %v5758
  %v5859 = vpop.f32.mrb[0].mxu0
  %v5860 = vadd.f32 0.0, %v5859
  %v5861 = vpop.f32.mrb[0].mxu0
  %5862 = vmatprep.mubr.f32.mxu0 0.0
  %5863 = vmatmul.mubr.f32.gmra.mrb[0].mxu0 %v5761
  %v5864 = vpop.f32.mrb[0].mxu0
  %v5865 = vadd.f32 0.0, %v5864
  %v5866 = vpop.f32.mrb[0].mxu0
  %5867 = vdwg.mxu0
  %v5868 = vadd.f32 %v5563, %v5830
  %v5869 = vadd.f32 %v5568, %v5835
  %v5870 = vadd.f32 %v5573, %v5840
  %v5871 = vadd.f32 %v5578, %v5845
  %v5872 = vadd.f32 %v5583, %v5850
  %v5873 = vadd.f32 %v5588, %v5855
  %v5874 = vadd.f32 %v5593, %v5860
  %v5875 = vadd.f32 %v5598, %v5865
  %s5876 = scalar_lea.vmem %s5, 192
  %v5877 = vld [vmem:[%s5876] sm:$0xff]
  %v5878 = vld [vmem:[%s5876 + $0x8] sm:$0xff]
  %v5879 = vld [vmem:[%s5876 + $0x10] sm:$0xff]
  %v5880 = vld [vmem:[%s5876 + $0x18] sm:$0xff]
  %v5881 = vld [vmem:[%s5876 + $0x20] sm:$0xff]
  %v5882 = vld [vmem:[%s5876 + $0x28] sm:$0xff]
  %v5883 = vld [vmem:[%s5876 + $0x30] sm:$0xff]
  %v5884 = vld [vmem:[%s5876 + $0x38] sm:$0xff]
  %v5886 = vsel %vm2008, %v5877, 0
  %v5889 = vsel %vm2008, %v5878, 0
  %v5892 = vsel %vm2008, %v5879, 0
  %v5895 = vsel %vm2008, %v5880, 0
  %v5898 = vsel %vm2008, %v5881, 0
  %v5901 = vsel %vm2008, %v5882, 0
  %v5904 = vsel %vm2008, %v5883, 0
  %v5907 = vsel %vm2008, %v5884, 0
  %5909 = vmatprep.subr.mxu0 0.0
  %5910 = vmatpush1.msra.mxu0 %v5048
  %5911 = vmatprep.subr.mxu0 0.0
  %5912 = vmatpush1.msra.mxu0 %v5049
  %5913 = vmatprep.subr.mxu0 0.0
  %5914 = vmatpush1.msra.mxu0 %v5050
  %5915 = vmatprep.subr.mxu0 0.0
  %5916 = vmatpush1.msra.mxu0 %v5051
  %5917 = vmatprep.subr.mxu0 0.0
  %5918 = vmatpush1.msra.mxu0 0.0
  %5919 = vmatprep.subr.mxu0 0.0
  %5920 = vmatpush1.msra.mxu0 0.0
  %5921 = vmatprep.subr.mxu0 0.0
  %5922 = vmatpush1.msra.mxu0 0.0
  %5923 = vmatprep.subr.mxu0 0.0
  %5924 = vmatpush1.msra.mxu0 0.0
  %5925 = vmatprep.subr.mxu0 0.0
  %5926 = vmatpush1.msra.mxu0 0.0
  %5927 = vmatprep.subr.mxu0 0.0
  %5928 = vmatpush1.msra.mxu0 0.0
  %5929 = vmatprep.subr.mxu0 0.0
  %5930 = vmatpush1.msra.mxu0 0.0
  %5931 = vmatprep.subr.mxu0 0.0
  %5932 = vmatpush1.msra.mxu0 0.0
  %5933 = vmatprep.subr.mxu0 0.0
  %5934 = vmatpush1.msra.mxu0 0.0
  %5935 = vmatprep.subr.mxu0 0.0
  %5936 = vmatpush1.msra.mxu0 0.0
  %5937 = vmatprep.subr.mxu0 0.0
  %5938 = vmatpush1.msra.mxu0 0.0
  %5939 = vmatprep.subr.mxu0 0.0
  %5940 = vmatpush1.msra.mxu0 0.0
  %5941 = vmatprep.subr.mxu0 0.0
  %5942 = vmatpush1.msra.mxu0 0.0
  %5943 = vmatprep.subr.mxu0 0.0
  %5944 = vmatpush1.msra.mxu0 0.0
  %5945 = vmatprep.subr.mxu0 0.0
  %5946 = vmatpush1.msra.mxu0 0.0
  %5947 = vmatprep.subr.mxu0 0.0
  %5948 = vmatpush1.msra.mxu0 0.0
  %5949 = vmatprep.subr.mxu0 0.0
  %5950 = vmatpush1.msra.mxu0 0.0
  %5951 = vmatprep.subr.mxu0 0.0
  %5952 = vmatpush1.msra.mxu0 0.0
  %5953 = vmatprep.subr.mxu0 0.0
  %5954 = vmatpush1.msra.mxu0 0.0
  %5955 = vmatprep.subr.mxu0 0.0
  %5956 = vmatpush1.msra.mxu0 0.0
  %5957 = vmatprep.subr.mxu0 0.0
  %5958 = vmatpush1.msra.mxu0 0.0
  %5959 = vmatprep.subr.mxu0 0.0
  %5960 = vmatpush1.msra.mxu0 0.0
  %5961 = vmatprep.subr.mxu0 0.0
  %5962 = vmatpush1.msra.mxu0 0.0
  %5963 = vmatprep.subr.mxu0 0.0
  %5964 = vmatpush1.msra.mxu0 0.0
  %5965 = vmatprep.subr.mxu0 0.0
  %5966 = vmatpush1.msra.mxu0 0.0
  %5967 = vmatprep.subr.mxu0 0.0
  %5968 = vmatpush1.msra.mxu0 0.0
  %5969 = vmatprep.subr.mxu0 0.0
  %5970 = vmatpush1.msra.mxu0 0.0
  %5971 = vmatprep.subr.mxu0 0.0
  %5972 = vmatpush1.msra.mxu0 0.0
  %5973 = vmatprep.mubr.f32.mxu0 0.0
  %5974 = vmatmul.mubr.f32.gmra.mrb[0].mxu0 %v5886
  %v5975 = vpop.f32.mrb[0].mxu0
  %v5976 = vadd.f32 0.0, %v5975
  %v5977 = vpop.f32.mrb[0].mxu0
  %5978 = vmatprep.mubr.f32.mxu0 0.0
  %5979 = vmatmul.mubr.f32.gmra.mrb[0].mxu0 %v5889
  %v5980 = vpop.f32.mrb[0].mxu0
  %v5981 = vadd.f32 0.0, %v5980
  %v5982 = vpop.f32.mrb[0].mxu0
  %5983 = vmatprep.mubr.f32.mxu0 0.0
  %5984 = vmatmul.mubr.f32.gmra.mrb[0].mxu0 %v5892
  %v5985 = vpop.f32.mrb[0].mxu0
  %v5986 = vadd.f32 0.0, %v5985
  %v5987 = vpop.f32.mrb[0].mxu0
  %5988 = vmatprep.mubr.f32.mxu0 0.0
  %5989 = vmatmul.mubr.f32.gmra.mrb[0].mxu0 %v5895
  %v5990 = vpop.f32.mrb[0].mxu0
  %v5991 = vadd.f32 0.0, %v5990
  %v5992 = vpop.f32.mrb[0].mxu0
  %5993 = vmatprep.mubr.f32.mxu0 0.0
  %5994 = vmatmul.mubr.f32.gmra.mrb[0].mxu0 %v5898
  %v5995 = vpop.f32.mrb[0].mxu0
  %v5996 = vadd.f32 0.0, %v5995
  %v5997 = vpop.f32.mrb[0].mxu0
  %5998 = vmatprep.mubr.f32.mxu0 0.0
  %5999 = vmatmul.mubr.f32.gmra.mrb[0].mxu0 %v5901
  %v6000 = vpop.f32.mrb[0].mxu0
  %v6001 = vadd.f32 0.0, %v6000
  %v6002 = vpop.f32.mrb[0].mxu0
  %6003 = vmatprep.mubr.f32.mxu0 0.0
  %6004 = vmatmul.mubr.f32.gmra.mrb[0].mxu0 %v5904
  %v6005 = vpop.f32.mrb[0].mxu0
  %v6006 = vadd.f32 0.0, %v6005
  %v6007 = vpop.f32.mrb[0].mxu0
  %6008 = vmatprep.mubr.f32.mxu0 0.0
  %6009 = vmatmul.mubr.f32.gmra.mrb[0].mxu0 %v5907
  %v6010 = vpop.f32.mrb[0].mxu0
  %v6011 = vadd.f32 0.0, %v6010
  %v6012 = vpop.f32.mrb[0].mxu0
  %6013 = vdwg.mxu0
  %v6015 = vsel %vm2044, %v5976, 0
  %v6018 = vsel %vm2044, %v5981, 0
  %v6021 = vsel %vm2044, %v5986, 0
  %v6024 = vsel %vm2044, %v5991, 0
  %v6027 = vsel %vm2044, %v5996, 0
  %v6030 = vsel %vm2044, %v6001, 0
  %v6033 = vsel %vm2044, %v6006, 0
  %v6036 = vsel %vm2044, %v6011, 0
  %6038 = vmatprep.subr.mxu0 0.0
  %6039 = vmatpush1.msra.mxu0 %v171
  %6040 = vmatprep.subr.mxu0 0.0
  %6041 = vmatpush1.msra.mxu0 0.0
  %6042 = vmatprep.subr.mxu0 0.0
  %6043 = vmatpush1.msra.mxu0 0.0
  %6044 = vmatprep.subr.mxu0 0.0
  %6045 = vmatpush1.msra.mxu0 0.0
  %6046 = vmatprep.subr.mxu0 0.0
  %6047 = vmatpush1.msra.mxu0 0.0
  %6048 = vmatprep.subr.mxu0 0.0
  %6049 = vmatpush1.msra.mxu0 0.0
  %6050 = vmatprep.subr.mxu0 0.0
  %6051 = vmatpush1.msra.mxu0 0.0
  %6052 = vmatprep.subr.mxu0 0.0
  %6053 = vmatpush1.msra.mxu0 0.0
  %6054 = vmatprep.subr.mxu0 0.0
  %6055 = vmatpush1.msra.mxu0 0.0
  %6056 = vmatprep.subr.mxu0 0.0
  %6057 = vmatpush1.msra.mxu0 0.0
  %6058 = vmatprep.subr.mxu0 0.0
  %6059 = vmatpush1.msra.mxu0 0.0
  %6060 = vmatprep.subr.mxu0 0.0
  %6061 = vmatpush1.msra.mxu0 0.0
  %6062 = vmatprep.subr.mxu0 0.0
  %6063 = vmatpush1.msra.mxu0 0.0
  %6064 = vmatprep.subr.mxu0 0.0
  %6065 = vmatpush1.msra.mxu0 0.0
  %6066 = vmatprep.subr.mxu0 0.0
  %6067 = vmatpush1.msra.mxu0 0.0
  %6068 = vmatprep.subr.mxu0 0.0
  %6069 = vmatpush1.msra.mxu0 0.0
  %6070 = vmatprep.subr.mxu0 0.0
  %6071 = vmatpush1.msra.mxu0 0.0
  %6072 = vmatprep.subr.mxu0 0.0
  %6073 = vmatpush1.msra.mxu0 0.0
  %6074 = vmatprep.subr.mxu0 0.0
  %6075 = vmatpush1.msra.mxu0 0.0
  %6076 = vmatprep.subr.mxu0 0.0
  %6077 = vmatpush1.msra.mxu0 0.0
  %6078 = vmatprep.subr.mxu0 0.0
  %6079 = vmatpush1.msra.mxu0 0.0
  %6080 = vmatprep.subr.mxu0 0.0
  %6081 = vmatpush1.msra.mxu0 0.0
  %6082 = vmatprep.subr.mxu0 0.0
  %6083 = vmatpush1.msra.mxu0 0.0
  %6084 = vmatprep.subr.mxu0 0.0
  %6085 = vmatpush1.msra.mxu0 0.0
  %6086 = vmatprep.subr.mxu0 0.0
  %6087 = vmatpush1.msra.mxu0 0.0
  %6088 = vmatprep.subr.mxu0 0.0
  %6089 = vmatpush1.msra.mxu0 0.0
  %6090 = vmatprep.subr.mxu0 0.0
  %6091 = vmatpush1.msra.mxu0 0.0
  %6092 = vmatprep.subr.mxu0 0.0
  %6093 = vmatpush1.msra.mxu0 0.0
  %6094 = vmatprep.subr.mxu0 0.0
  %6095 = vmatpush1.msra.mxu0 0.0
  %6096 = vmatprep.subr.mxu0 0.0
  %6097 = vmatpush1.msra.mxu0 0.0
  %6098 = vmatprep.subr.mxu0 0.0
  %6099 = vmatpush1.msra.mxu0 0.0
  %6100 = vmatprep.subr.mxu0 0.0
  %6101 = vmatpush1.msra.mxu0 0.0
  %6102 = vmatprep.mubr.f32.mxu0 0.0
  %6103 = vmatmul.mubr.f32.gmra.mrb[0].mxu0 %v6015
  %v6104 = vpop.f32.mrb[0].mxu0
  %v6105 = vadd.f32 0.0, %v6104
  %v6106 = vpop.f32.mrb[0].mxu0
  %6107 = vmatprep.mubr.f32.mxu0 0.0
  %6108 = vmatmul.mubr.f32.gmra.mrb[0].mxu0 %v6018
  %v6109 = vpop.f32.mrb[0].mxu0
  %v6110 = vadd.f32 0.0, %v6109
  %v6111 = vpop.f32.mrb[0].mxu0
  %6112 = vmatprep.mubr.f32.mxu0 0.0
  %6113 = vmatmul.mubr.f32.gmra.mrb[0].mxu0 %v6021
  %v6114 = vpop.f32.mrb[0].mxu0
  %v6115 = vadd.f32 0.0, %v6114
  %v6116 = vpop.f32.mrb[0].mxu0
  %6117 = vmatprep.mubr.f32.mxu0 0.0
  %6118 = vmatmul.mubr.f32.gmra.mrb[0].mxu0 %v6024
  %v6119 = vpop.f32.mrb[0].mxu0
  %v6120 = vadd.f32 0.0, %v6119
  %v6121 = vpop.f32.mrb[0].mxu0
  %6122 = vmatprep.mubr.f32.mxu0 0.0
  %6123 = vmatmul.mubr.f32.gmra.mrb[0].mxu0 %v6027
  %v6124 = vpop.f32.mrb[0].mxu0
  %v6125 = vadd.f32 0.0, %v6124
  %v6126 = vpop.f32.mrb[0].mxu0
  %6127 = vmatprep.mubr.f32.mxu0 0.0
  %6128 = vmatmul.mubr.f32.gmra.mrb[0].mxu0 %v6030
  %v6129 = vpop.f32.mrb[0].mxu0
  %v6130 = vadd.f32 0.0, %v6129
  %v6131 = vpop.f32.mrb[0].mxu0
  %6132 = vmatprep.mubr.f32.mxu0 0.0
  %6133 = vmatmul.mubr.f32.gmra.mrb[0].mxu0 %v6033
  %v6134 = vpop.f32.mrb[0].mxu0
  %v6135 = vadd.f32 0.0, %v6134
  %v6136 = vpop.f32.mrb[0].mxu0
  %6137 = vmatprep.mubr.f32.mxu0 0.0
  %6138 = vmatmul.mubr.f32.gmra.mrb[0].mxu0 %v6036
  %v6139 = vpop.f32.mrb[0].mxu0
  %v6140 = vadd.f32 0.0, %v6139
  %v6141 = vpop.f32.mrb[0].mxu0
  %6142 = vdwg.mxu0
  %v6143 = vadd.f32 %v5868, %v6105
  %v6144 = vadd.f32 %v5869, %v6110
  %v6145 = vadd.f32 %v5870, %v6115
  %v6146 = vadd.f32 %v5871, %v6120
  %v6147 = vadd.f32 %v5872, %v6125
  %v6148 = vadd.f32 %v5873, %v6130
  %v6149 = vadd.f32 %v5874, %v6135
  %v6150 = vadd.f32 %v5875, %v6140
  %6151 = vmatprep.subr.mxu0 0.0
  %6152 = vmatpush1.msra.mxu0 %v5064
  %6153 = vmatprep.subr.mxu0 0.0
  %6154 = vmatpush1.msra.mxu0 %v5065
  %6155 = vmatprep.subr.mxu0 0.0
  %6156 = vmatpush1.msra.mxu0 %v5066
  %6157 = vmatprep.subr.mxu0 0.0
  %6158 = vmatpush1.msra.mxu0 %v5067
  %6159 = vmatprep.subr.mxu0 0.0
  %6160 = vmatpush1.msra.mxu0 0.0
  %6161 = vmatprep.subr.mxu0 0.0
  %6162 = vmatpush1.msra.mxu0 0.0
  %6163 = vmatprep.subr.mxu0 0.0
  %6164 = vmatpush1.msra.mxu0 0.0
  %6165 = vmatprep.subr.mxu0 0.0
  %6166 = vmatpush1.msra.mxu0 0.0
  %6167 = vmatprep.subr.mxu0 0.0
  %6168 = vmatpush1.msra.mxu0 0.0
  %6169 = vmatprep.subr.mxu0 0.0
  %6170 = vmatpush1.msra.mxu0 0.0
  %6171 = vmatprep.subr.mxu0 0.0
  %6172 = vmatpush1.msra.mxu0 0.0
  %6173 = vmatprep.subr.mxu0 0.0
  %6174 = vmatpush1.msra.mxu0 0.0
  %6175 = vmatprep.subr.mxu0 0.0
  %6176 = vmatpush1.msra.mxu0 0.0
  %6177 = vmatprep.subr.mxu0 0.0
  %6178 = vmatpush1.msra.mxu0 0.0
  %6179 = vmatprep.subr.mxu0 0.0
  %6180 = vmatpush1.msra.mxu0 0.0
  %6181 = vmatprep.subr.mxu0 0.0
  %6182 = vmatpush1.msra.mxu0 0.0
  %6183 = vmatprep.subr.mxu0 0.0
  %6184 = vmatpush1.msra.mxu0 0.0
  %6185 = vmatprep.subr.mxu0 0.0
  %6186 = vmatpush1.msra.mxu0 0.0
  %6187 = vmatprep.subr.mxu0 0.0
  %6188 = vmatpush1.msra.mxu0 0.0
  %6189 = vmatprep.subr.mxu0 0.0
  %6190 = vmatpush1.msra.mxu0 0.0
  %6191 = vmatprep.subr.mxu0 0.0
  %6192 = vmatpush1.msra.mxu0 0.0
  %6193 = vmatprep.subr.mxu0 0.0
  %6194 = vmatpush1.msra.mxu0 0.0
  %6195 = vmatprep.subr.mxu0 0.0
  %6196 = vmatpush1.msra.mxu0 0.0
  %6197 = vmatprep.subr.mxu0 0.0
  %6198 = vmatpush1.msra.mxu0 0.0
  %6199 = vmatprep.subr.mxu0 0.0
  %6200 = vmatpush1.msra.mxu0 0.0
  %6201 = vmatprep.subr.mxu0 0.0
  %6202 = vmatpush1.msra.mxu0 0.0
  %6203 = vmatprep.subr.mxu0 0.0
  %6204 = vmatpush1.msra.mxu0 0.0
  %6205 = vmatprep.subr.mxu0 0.0
  %6206 = vmatpush1.msra.mxu0 0.0
  %6207 = vmatprep.subr.mxu0 0.0
  %6208 = vmatpush1.msra.mxu0 0.0
  %6209 = vmatprep.subr.mxu0 0.0
  %6210 = vmatpush1.msra.mxu0 0.0
  %6211 = vmatprep.subr.mxu0 0.0
  %6212 = vmatpush1.msra.mxu0 0.0
  %6213 = vmatprep.subr.mxu0 0.0
  %6214 = vmatpush1.msra.mxu0 0.0
  %6215 = vmatprep.mubr.f32.mxu0 0.0
  %6216 = vmatmul.mubr.f32.gmra.mrb[0].mxu0 %v5077
  %v6217 = vpop.f32.mrb[0].mxu0
  %v6218 = vadd.f32 0.0, %v6217
  %v6219 = vpop.f32.mrb[0].mxu0
  %6220 = vmatprep.mubr.f32.mxu0 0.0
  %6221 = vmatmul.mubr.f32.gmra.mrb[0].mxu0 %v5080
  %v6222 = vpop.f32.mrb[0].mxu0
  %v6223 = vadd.f32 0.0, %v6222
  %v6224 = vpop.f32.mrb[0].mxu0
  %6225 = vmatprep.mubr.f32.mxu0 0.0
  %6226 = vmatmul.mubr.f32.gmra.mrb[0].mxu0 %v5083
  %v6227 = vpop.f32.mrb[0].mxu0
  %v6228 = vadd.f32 0.0, %v6227
  %v6229 = vpop.f32.mrb[0].mxu0
  %6230 = vmatprep.mubr.f32.mxu0 0.0
  %6231 = vmatmul.mubr.f32.gmra.mrb[0].mxu0 %v5086
  %v6232 = vpop.f32.mrb[0].mxu0
  %v6233 = vadd.f32 0.0, %v6232
  %v6234 = vpop.f32.mrb[0].mxu0
  %6235 = vmatprep.mubr.f32.mxu0 0.0
  %6236 = vmatmul.mubr.f32.gmra.mrb[0].mxu0 %v5089
  %v6237 = vpop.f32.mrb[0].mxu0
  %v6238 = vadd.f32 0.0, %v6237
  %v6239 = vpop.f32.mrb[0].mxu0
  %6240 = vmatprep.mubr.f32.mxu0 0.0
  %6241 = vmatmul.mubr.f32.gmra.mrb[0].mxu0 %v5092
  %v6242 = vpop.f32.mrb[0].mxu0
  %v6243 = vadd.f32 0.0, %v6242
  %v6244 = vpop.f32.mrb[0].mxu0
  %6245 = vmatprep.mubr.f32.mxu0 0.0
  %6246 = vmatmul.mubr.f32.gmra.mrb[0].mxu0 %v5095
  %v6247 = vpop.f32.mrb[0].mxu0
  %v6248 = vadd.f32 0.0, %v6247
  %v6249 = vpop.f32.mrb[0].mxu0
  %6250 = vmatprep.mubr.f32.mxu0 0.0
  %6251 = vmatmul.mubr.f32.gmra.mrb[0].mxu0 %v5098
  %v6252 = vpop.f32.mrb[0].mxu0
  %v6253 = vadd.f32 0.0, %v6252
  %v6254 = vpop.f32.mrb[0].mxu0
  %6255 = vdwg.mxu0
  %6256 = vmatprep.subr.mxu0 0.0
  %6257 = vmatpush1.msra.mxu0 %v5064
  %6258 = vmatprep.subr.mxu0 0.0
  %6259 = vmatpush1.msra.mxu0 %v5065
  %6260 = vmatprep.subr.mxu0 0.0
  %6261 = vmatpush1.msra.mxu0 %v5066
  %6262 = vmatprep.subr.mxu0 0.0
  %6263 = vmatpush1.msra.mxu0 %v5067
  %6264 = vmatprep.subr.mxu0 0.0
  %6265 = vmatpush1.msra.mxu0 0.0
  %6266 = vmatprep.subr.mxu0 0.0
  %6267 = vmatpush1.msra.mxu0 0.0
  %6268 = vmatprep.subr.mxu0 0.0
  %6269 = vmatpush1.msra.mxu0 0.0
  %6270 = vmatprep.subr.mxu0 0.0
  %6271 = vmatpush1.msra.mxu0 0.0
  %6272 = vmatprep.subr.mxu0 0.0
  %6273 = vmatpush1.msra.mxu0 0.0
  %6274 = vmatprep.subr.mxu0 0.0
  %6275 = vmatpush1.msra.mxu0 0.0
  %6276 = vmatprep.subr.mxu0 0.0
  %6277 = vmatpush1.msra.mxu0 0.0
  %6278 = vmatprep.subr.mxu0 0.0
  %6279 = vmatpush1.msra.mxu0 0.0
  %6280 = vmatprep.subr.mxu0 0.0
  %6281 = vmatpush1.msra.mxu0 0.0
  %6282 = vmatprep.subr.mxu0 0.0
  %6283 = vmatpush1.msra.mxu0 0.0
  %6284 = vmatprep.subr.mxu0 0.0
  %6285 = vmatpush1.msra.mxu0 0.0
  %6286 = vmatprep.subr.mxu0 0.0
  %6287 = vmatpush1.msra.mxu0 0.0
  %6288 = vmatprep.subr.mxu0 0.0
  %6289 = vmatpush1.msra.mxu0 0.0
  %6290 = vmatprep.subr.mxu0 0.0
  %6291 = vmatpush1.msra.mxu0 0.0
  %6292 = vmatprep.subr.mxu0 0.0
  %6293 = vmatpush1.msra.mxu0 0.0
  %6294 = vmatprep.subr.mxu0 0.0
  %6295 = vmatpush1.msra.mxu0 0.0
  %6296 = vmatprep.subr.mxu0 0.0
  %6297 = vmatpush1.msra.mxu0 0.0
  %6298 = vmatprep.subr.mxu0 0.0
  %6299 = vmatpush1.msra.mxu0 0.0
  %6300 = vmatprep.subr.mxu0 0.0
  %6301 = vmatpush1.msra.mxu0 0.0
  %6302 = vmatprep.subr.mxu0 0.0
  %6303 = vmatpush1.msra.mxu0 0.0
  %6304 = vmatprep.subr.mxu0 0.0
  %6305 = vmatpush1.msra.mxu0 0.0
  %6306 = vmatprep.subr.mxu0 0.0
  %6307 = vmatpush1.msra.mxu0 0.0
  %6308 = vmatprep.subr.mxu0 0.0
  %6309 = vmatpush1.msra.mxu0 0.0
  %6310 = vmatprep.subr.mxu0 0.0
  %6311 = vmatpush1.msra.mxu0 0.0
  %6312 = vmatprep.subr.mxu0 0.0
  %6313 = vmatpush1.msra.mxu0 0.0
  %6314 = vmatprep.subr.mxu0 0.0
  %6315 = vmatpush1.msra.mxu0 0.0
  %6316 = vmatprep.subr.mxu0 0.0
  %6317 = vmatpush1.msra.mxu0 0.0
  %6318 = vmatprep.subr.mxu0 0.0
  %6319 = vmatpush1.msra.mxu0 0.0
  %6320 = vmatprep.mubr.f32.mxu0 0.0
  %6321 = vmatmul.mubr.f32.gmra.mrb[0].mxu0 %v5215
  %v6322 = vpop.f32.mrb[0].mxu0
  %v6323 = vadd.f32 0.0, %v6322
  %v6324 = vpop.f32.mrb[0].mxu0
  %6325 = vmatprep.mubr.f32.mxu0 0.0
  %6326 = vmatmul.mubr.f32.gmra.mrb[0].mxu0 %v5218
  %v6327 = vpop.f32.mrb[0].mxu0
  %v6328 = vadd.f32 0.0, %v6327
  %v6329 = vpop.f32.mrb[0].mxu0
  %6330 = vmatprep.mubr.f32.mxu0 0.0
  %6331 = vmatmul.mubr.f32.gmra.mrb[0].mxu0 %v5221
  %v6332 = vpop.f32.mrb[0].mxu0
  %v6333 = vadd.f32 0.0, %v6332
  %v6334 = vpop.f32.mrb[0].mxu0
  %6335 = vmatprep.mubr.f32.mxu0 0.0
  %6336 = vmatmul.mubr.f32.gmra.mrb[0].mxu0 %v5224
  %v6337 = vpop.f32.mrb[0].mxu0
  %v6338 = vadd.f32 0.0, %v6337
  %v6339 = vpop.f32.mrb[0].mxu0
  %6340 = vmatprep.mubr.f32.mxu0 0.0
  %6341 = vmatmul.mubr.f32.gmra.mrb[0].mxu0 %v5227
  %v6342 = vpop.f32.mrb[0].mxu0
  %v6343 = vadd.f32 0.0, %v6342
  %v6344 = vpop.f32.mrb[0].mxu0
  %6345 = vmatprep.mubr.f32.mxu0 0.0
  %6346 = vmatmul.mubr.f32.gmra.mrb[0].mxu0 %v5230
  %v6347 = vpop.f32.mrb[0].mxu0
  %v6348 = vadd.f32 0.0, %v6347
  %v6349 = vpop.f32.mrb[0].mxu0
  %6350 = vmatprep.mubr.f32.mxu0 0.0
  %6351 = vmatmul.mubr.f32.gmra.mrb[0].mxu0 %v5233
  %v6352 = vpop.f32.mrb[0].mxu0
  %v6353 = vadd.f32 0.0, %v6352
  %v6354 = vpop.f32.mrb[0].mxu0
  %6355 = vmatprep.mubr.f32.mxu0 0.0
  %6356 = vmatmul.mubr.f32.gmra.mrb[0].mxu0 %v5236
  %v6357 = vpop.f32.mrb[0].mxu0
  %v6358 = vadd.f32 0.0, %v6357
  %v6359 = vpop.f32.mrb[0].mxu0
  %6360 = vdwg.mxu0
  %v6362 = vsel %vm2044, %v6323, 0
  %v6365 = vsel %vm2044, %v6328, 0
  %v6368 = vsel %vm2044, %v6333, 0
  %v6371 = vsel %vm2044, %v6338, 0
  %v6374 = vsel %vm2044, %v6343, 0
  %v6377 = vsel %vm2044, %v6348, 0
  %v6380 = vsel %vm2044, %v6353, 0
  %v6383 = vsel %vm2044, %v6358, 0
  %6385 = vmatprep.subr.mxu0 0.0
  %6386 = vmatpush1.msra.mxu0 %v105
  %6387 = vmatprep.subr.mxu0 0.0
  %6388 = vmatpush1.msra.mxu0 0.0
  %6389 = vmatprep.subr.mxu0 0.0
  %6390 = vmatpush1.msra.mxu0 0.0
  %6391 = vmatprep.subr.mxu0 0.0
  %6392 = vmatpush1.msra.mxu0 0.0
  %6393 = vmatprep.subr.mxu0 0.0
  %6394 = vmatpush1.msra.mxu0 0.0
  %6395 = vmatprep.subr.mxu0 0.0
  %6396 = vmatpush1.msra.mxu0 0.0
  %6397 = vmatprep.subr.mxu0 0.0
  %6398 = vmatpush1.msra.mxu0 0.0
  %6399 = vmatprep.subr.mxu0 0.0
  %6400 = vmatpush1.msra.mxu0 0.0
  %6401 = vmatprep.subr.mxu0 0.0
  %6402 = vmatpush1.msra.mxu0 0.0
  %6403 = vmatprep.subr.mxu0 0.0
  %6404 = vmatpush1.msra.mxu0 0.0
  %6405 = vmatprep.subr.mxu0 0.0
  %6406 = vmatpush1.msra.mxu0 0.0
  %6407 = vmatprep.subr.mxu0 0.0
  %6408 = vmatpush1.msra.mxu0 0.0
  %6409 = vmatprep.subr.mxu0 0.0
  %6410 = vmatpush1.msra.mxu0 0.0
  %6411 = vmatprep.subr.mxu0 0.0
  %6412 = vmatpush1.msra.mxu0 0.0
  %6413 = vmatprep.subr.mxu0 0.0
  %6414 = vmatpush1.msra.mxu0 0.0
  %6415 = vmatprep.subr.mxu0 0.0
  %6416 = vmatpush1.msra.mxu0 0.0
  %6417 = vmatprep.subr.mxu0 0.0
  %6418 = vmatpush1.msra.mxu0 0.0
  %6419 = vmatprep.subr.mxu0 0.0
  %6420 = vmatpush1.msra.mxu0 0.0
  %6421 = vmatprep.subr.mxu0 0.0
  %6422 = vmatpush1.msra.mxu0 0.0
  %6423 = vmatprep.subr.mxu0 0.0
  %6424 = vmatpush1.msra.mxu0 0.0
  %6425 = vmatprep.subr.mxu0 0.0
  %6426 = vmatpush1.msra.mxu0 0.0
  %6427 = vmatprep.subr.mxu0 0.0
  %6428 = vmatpush1.msra.mxu0 0.0
  %6429 = vmatprep.subr.mxu0 0.0
  %6430 = vmatpush1.msra.mxu0 0.0
  %6431 = vmatprep.subr.mxu0 0.0
  %6432 = vmatpush1.msra.mxu0 0.0
  %6433 = vmatprep.subr.mxu0 0.0
  %6434 = vmatpush1.msra.mxu0 0.0
  %6435 = vmatprep.subr.mxu0 0.0
  %6436 = vmatpush1.msra.mxu0 0.0
  %6437 = vmatprep.subr.mxu0 0.0
  %6438 = vmatpush1.msra.mxu0 0.0
  %6439 = vmatprep.subr.mxu0 0.0
  %6440 = vmatpush1.msra.mxu0 0.0
  %6441 = vmatprep.subr.mxu0 0.0
  %6442 = vmatpush1.msra.mxu0 0.0
  %6443 = vmatprep.subr.mxu0 0.0
  %6444 = vmatpush1.msra.mxu0 0.0
  %6445 = vmatprep.subr.mxu0 0.0
  %6446 = vmatpush1.msra.mxu0 0.0
  %6447 = vmatprep.subr.mxu0 0.0
  %6448 = vmatpush1.msra.mxu0 0.0
  %6449 = vmatprep.mubr.f32.mxu0 0.0
  %6450 = vmatmul.mubr.f32.gmra.mrb[0].mxu0 %v6362
  %v6451 = vpop.f32.mrb[0].mxu0
  %v6452 = vadd.f32 0.0, %v6451
  %v6453 = vpop.f32.mrb[0].mxu0
  %6454 = vmatprep.mubr.f32.mxu0 0.0
  %6455 = vmatmul.mubr.f32.gmra.mrb[0].mxu0 %v6365
  %v6456 = vpop.f32.mrb[0].mxu0
  %v6457 = vadd.f32 0.0, %v6456
  %v6458 = vpop.f32.mrb[0].mxu0
  %6459 = vmatprep.mubr.f32.mxu0 0.0
  %6460 = vmatmul.mubr.f32.gmra.mrb[0].mxu0 %v6368
  %v6461 = vpop.f32.mrb[0].mxu0
  %v6462 = vadd.f32 0.0, %v6461
  %v6463 = vpop.f32.mrb[0].mxu0
  %6464 = vmatprep.mubr.f32.mxu0 0.0
  %6465 = vmatmul.mubr.f32.gmra.mrb[0].mxu0 %v6371
  %v6466 = vpop.f32.mrb[0].mxu0
  %v6467 = vadd.f32 0.0, %v6466
  %v6468 = vpop.f32.mrb[0].mxu0
  %6469 = vmatprep.mubr.f32.mxu0 0.0
  %6470 = vmatmul.mubr.f32.gmra.mrb[0].mxu0 %v6374
  %v6471 = vpop.f32.mrb[0].mxu0
  %v6472 = vadd.f32 0.0, %v6471
  %v6473 = vpop.f32.mrb[0].mxu0
  %6474 = vmatprep.mubr.f32.mxu0 0.0
  %6475 = vmatmul.mubr.f32.gmra.mrb[0].mxu0 %v6377
  %v6476 = vpop.f32.mrb[0].mxu0
  %v6477 = vadd.f32 0.0, %v6476
  %v6478 = vpop.f32.mrb[0].mxu0
  %6479 = vmatprep.mubr.f32.mxu0 0.0
  %6480 = vmatmul.mubr.f32.gmra.mrb[0].mxu0 %v6380
  %v6481 = vpop.f32.mrb[0].mxu0
  %v6482 = vadd.f32 0.0, %v6481
  %v6483 = vpop.f32.mrb[0].mxu0
  %6484 = vmatprep.mubr.f32.mxu0 0.0
  %6485 = vmatmul.mubr.f32.gmra.mrb[0].mxu0 %v6383
  %v6486 = vpop.f32.mrb[0].mxu0
  %v6487 = vadd.f32 0.0, %v6486
  %v6488 = vpop.f32.mrb[0].mxu0
  %6489 = vdwg.mxu0
  %v6491 = vsel %vm2044, %v6218, 0
  %v6494 = vsel %vm2044, %v6223, 0
  %v6497 = vsel %vm2044, %v6228, 0
  %v6500 = vsel %vm2044, %v6233, 0
  %v6503 = vsel %vm2044, %v6238, 0
  %v6506 = vsel %vm2044, %v6243, 0
  %v6509 = vsel %vm2044, %v6248, 0
  %v6512 = vsel %vm2044, %v6253, 0
  %6514 = vmatprep.subr.mxu0 0.0
  %6515 = vmatpush1.msra.mxu0 %v73
  %6516 = vmatprep.subr.mxu0 0.0
  %6517 = vmatpush1.msra.mxu0 0.0
  %6518 = vmatprep.subr.mxu0 0.0
  %6519 = vmatpush1.msra.mxu0 0.0
  %6520 = vmatprep.subr.mxu0 0.0
  %6521 = vmatpush1.msra.mxu0 0.0
  %6522 = vmatprep.subr.mxu0 0.0
  %6523 = vmatpush1.msra.mxu0 0.0
  %6524 = vmatprep.subr.mxu0 0.0
  %6525 = vmatpush1.msra.mxu0 0.0
  %6526 = vmatprep.subr.mxu0 0.0
  %6527 = vmatpush1.msra.mxu0 0.0
  %6528 = vmatprep.subr.mxu0 0.0
  %6529 = vmatpush1.msra.mxu0 0.0
  %6530 = vmatprep.subr.mxu0 0.0
  %6531 = vmatpush1.msra.mxu0 0.0
  %6532 = vmatprep.subr.mxu0 0.0
  %6533 = vmatpush1.msra.mxu0 0.0
  %6534 = vmatprep.subr.mxu0 0.0
  %6535 = vmatpush1.msra.mxu0 0.0
  %6536 = vmatprep.subr.mxu0 0.0
  %6537 = vmatpush1.msra.mxu0 0.0
  %6538 = vmatprep.subr.mxu0 0.0
  %6539 = vmatpush1.msra.mxu0 0.0
  %6540 = vmatprep.subr.mxu0 0.0
  %6541 = vmatpush1.msra.mxu0 0.0
  %6542 = vmatprep.subr.mxu0 0.0
  %6543 = vmatpush1.msra.mxu0 0.0
  %6544 = vmatprep.subr.mxu0 0.0
  %6545 = vmatpush1.msra.mxu0 0.0
  %6546 = vmatprep.subr.mxu0 0.0
  %6547 = vmatpush1.msra.mxu0 0.0
  %6548 = vmatprep.subr.mxu0 0.0
  %6549 = vmatpush1.msra.mxu0 0.0
  %6550 = vmatprep.subr.mxu0 0.0
  %6551 = vmatpush1.msra.mxu0 0.0
  %6552 = vmatprep.subr.mxu0 0.0
  %6553 = vmatpush1.msra.mxu0 0.0
  %6554 = vmatprep.subr.mxu0 0.0
  %6555 = vmatpush1.msra.mxu0 0.0
  %6556 = vmatprep.subr.mxu0 0.0
  %6557 = vmatpush1.msra.mxu0 0.0
  %6558 = vmatprep.subr.mxu0 0.0
  %6559 = vmatpush1.msra.mxu0 0.0
  %6560 = vmatprep.subr.mxu0 0.0
  %6561 = vmatpush1.msra.mxu0 0.0
  %6562 = vmatprep.subr.mxu0 0.0
  %6563 = vmatpush1.msra.mxu0 0.0
  %6564 = vmatprep.subr.mxu0 0.0
  %6565 = vmatpush1.msra.mxu0 0.0
  %6566 = vmatprep.subr.mxu0 0.0
  %6567 = vmatpush1.msra.mxu0 0.0
  %6568 = vmatprep.subr.mxu0 0.0
  %6569 = vmatpush1.msra.mxu0 0.0
  %6570 = vmatprep.subr.mxu0 0.0
  %6571 = vmatpush1.msra.mxu0 0.0
  %6572 = vmatprep.subr.mxu0 0.0
  %6573 = vmatpush1.msra.mxu0 0.0
  %6574 = vmatprep.subr.mxu0 0.0
  %6575 = vmatpush1.msra.mxu0 0.0
  %6576 = vmatprep.subr.mxu0 0.0
  %6577 = vmatpush1.msra.mxu0 0.0
  %6578 = vmatprep.mubr.f32.mxu0 0.0
  %6579 = vmatmul.mubr.f32.gmra.mrb[0].mxu0 %v6491
  %v6580 = vpop.f32.mrb[0].mxu0
  %v6581 = vadd.f32 %v6452, %v6580
  %v6582 = vpop.f32.mrb[0].mxu0
  %6583 = vmatprep.mubr.f32.mxu0 0.0
  %6584 = vmatmul.mubr.f32.gmra.mrb[0].mxu0 %v6494
  %v6585 = vpop.f32.mrb[0].mxu0
  %v6586 = vadd.f32 %v6457, %v6585
  %v6587 = vpop.f32.mrb[0].mxu0
  %6588 = vmatprep.mubr.f32.mxu0 0.0
  %6589 = vmatmul.mubr.f32.gmra.mrb[0].mxu0 %v6497
  %v6590 = vpop.f32.mrb[0].mxu0
  %v6591 = vadd.f32 %v6462, %v6590
  %v6592 = vpop.f32.mrb[0].mxu0
  %6593 = vmatprep.mubr.f32.mxu0 0.0
  %6594 = vmatmul.mubr.f32.gmra.mrb[0].mxu0 %v6500
  %v6595 = vpop.f32.mrb[0].mxu0
  %v6596 = vadd.f32 %v6467, %v6595
  %v6597 = vpop.f32.mrb[0].mxu0
  %6598 = vmatprep.mubr.f32.mxu0 0.0
  %6599 = vmatmul.mubr.f32.gmra.mrb[0].mxu0 %v6503
  %v6600 = vpop.f32.mrb[0].mxu0
  %v6601 = vadd.f32 %v6472, %v6600
  %v6602 = vpop.f32.mrb[0].mxu0
  %6603 = vmatprep.mubr.f32.mxu0 0.0
  %6604 = vmatmul.mubr.f32.gmra.mrb[0].mxu0 %v6506
  %v6605 = vpop.f32.mrb[0].mxu0
  %v6606 = vadd.f32 %v6477, %v6605
  %v6607 = vpop.f32.mrb[0].mxu0
  %6608 = vmatprep.mubr.f32.mxu0 0.0
  %6609 = vmatmul.mubr.f32.gmra.mrb[0].mxu0 %v6509
  %v6610 = vpop.f32.mrb[0].mxu0
  %v6611 = vadd.f32 %v6482, %v6610
  %v6612 = vpop.f32.mrb[0].mxu0
  %6613 = vmatprep.mubr.f32.mxu0 0.0
  %6614 = vmatmul.mubr.f32.gmra.mrb[0].mxu0 %v6512
  %v6615 = vpop.f32.mrb[0].mxu0
  %v6616 = vadd.f32 %v6487, %v6615
  %v6617 = vpop.f32.mrb[0].mxu0
  %6618 = vdwg.mxu0
  %6619 = vmatprep.subr.mxu0 0.0
  %6620 = vmatpush1.msra.mxu0 %v5064
  %6621 = vmatprep.subr.mxu0 0.0
  %6622 = vmatpush1.msra.mxu0 %v5065
  %6623 = vmatprep.subr.mxu0 0.0
  %6624 = vmatpush1.msra.mxu0 %v5066
  %6625 = vmatprep.subr.mxu0 0.0
  %6626 = vmatpush1.msra.mxu0 %v5067
  %6627 = vmatprep.subr.mxu0 0.0
  %6628 = vmatpush1.msra.mxu0 0.0
  %6629 = vmatprep.subr.mxu0 0.0
  %6630 = vmatpush1.msra.mxu0 0.0
  %6631 = vmatprep.subr.mxu0 0.0
  %6632 = vmatpush1.msra.mxu0 0.0
  %6633 = vmatprep.subr.mxu0 0.0
  %6634 = vmatpush1.msra.mxu0 0.0
  %6635 = vmatprep.subr.mxu0 0.0
  %6636 = vmatpush1.msra.mxu0 0.0
  %6637 = vmatprep.subr.mxu0 0.0
  %6638 = vmatpush1.msra.mxu0 0.0
  %6639 = vmatprep.subr.mxu0 0.0
  %6640 = vmatpush1.msra.mxu0 0.0
  %6641 = vmatprep.subr.mxu0 0.0
  %6642 = vmatpush1.msra.mxu0 0.0
  %6643 = vmatprep.subr.mxu0 0.0
  %6644 = vmatpush1.msra.mxu0 0.0
  %6645 = vmatprep.subr.mxu0 0.0
  %6646 = vmatpush1.msra.mxu0 0.0
  %6647 = vmatprep.subr.mxu0 0.0
  %6648 = vmatpush1.msra.mxu0 0.0
  %6649 = vmatprep.subr.mxu0 0.0
  %6650 = vmatpush1.msra.mxu0 0.0
  %6651 = vmatprep.subr.mxu0 0.0
  %6652 = vmatpush1.msra.mxu0 0.0
  %6653 = vmatprep.subr.mxu0 0.0
  %6654 = vmatpush1.msra.mxu0 0.0
  %6655 = vmatprep.subr.mxu0 0.0
  %6656 = vmatpush1.msra.mxu0 0.0
  %6657 = vmatprep.subr.mxu0 0.0
  %6658 = vmatpush1.msra.mxu0 0.0
  %6659 = vmatprep.subr.mxu0 0.0
  %6660 = vmatpush1.msra.mxu0 0.0
  %6661 = vmatprep.subr.mxu0 0.0
  %6662 = vmatpush1.msra.mxu0 0.0
  %6663 = vmatprep.subr.mxu0 0.0
  %6664 = vmatpush1.msra.mxu0 0.0
  %6665 = vmatprep.subr.mxu0 0.0
  %6666 = vmatpush1.msra.mxu0 0.0
  %6667 = vmatprep.subr.mxu0 0.0
  %6668 = vmatpush1.msra.mxu0 0.0
  %6669 = vmatprep.subr.mxu0 0.0
  %6670 = vmatpush1.msra.mxu0 0.0
  %6671 = vmatprep.subr.mxu0 0.0
  %6672 = vmatpush1.msra.mxu0 0.0
  %6673 = vmatprep.subr.mxu0 0.0
  %6674 = vmatpush1.msra.mxu0 0.0
  %6675 = vmatprep.subr.mxu0 0.0
  %6676 = vmatpush1.msra.mxu0 0.0
  %6677 = vmatprep.subr.mxu0 0.0
  %6678 = vmatpush1.msra.mxu0 0.0
  %6679 = vmatprep.subr.mxu0 0.0
  %6680 = vmatpush1.msra.mxu0 0.0
  %6681 = vmatprep.subr.mxu0 0.0
  %6682 = vmatpush1.msra.mxu0 0.0
  %6683 = vmatprep.mubr.f32.mxu0 0.0
  %6684 = vmatmul.mubr.f32.gmra.mrb[0].mxu0 %v5611
  %v6685 = vpop.f32.mrb[0].mxu0
  %v6686 = vadd.f32 0.0, %v6685
  %v6687 = vpop.f32.mrb[0].mxu0
  %6688 = vmatprep.mubr.f32.mxu0 0.0
  %6689 = vmatmul.mubr.f32.gmra.mrb[0].mxu0 %v5614
  %v6690 = vpop.f32.mrb[0].mxu0
  %v6691 = vadd.f32 0.0, %v6690
  %v6692 = vpop.f32.mrb[0].mxu0
  %6693 = vmatprep.mubr.f32.mxu0 0.0
  %6694 = vmatmul.mubr.f32.gmra.mrb[0].mxu0 %v5617
  %v6695 = vpop.f32.mrb[0].mxu0
  %v6696 = vadd.f32 0.0, %v6695
  %v6697 = vpop.f32.mrb[0].mxu0
  %6698 = vmatprep.mubr.f32.mxu0 0.0
  %6699 = vmatmul.mubr.f32.gmra.mrb[0].mxu0 %v5620
  %v6700 = vpop.f32.mrb[0].mxu0
  %v6701 = vadd.f32 0.0, %v6700
  %v6702 = vpop.f32.mrb[0].mxu0
  %6703 = vmatprep.mubr.f32.mxu0 0.0
  %6704 = vmatmul.mubr.f32.gmra.mrb[0].mxu0 %v5623
  %v6705 = vpop.f32.mrb[0].mxu0
  %v6706 = vadd.f32 0.0, %v6705
  %v6707 = vpop.f32.mrb[0].mxu0
  %6708 = vmatprep.mubr.f32.mxu0 0.0
  %6709 = vmatmul.mubr.f32.gmra.mrb[0].mxu0 %v5626
  %v6710 = vpop.f32.mrb[0].mxu0
  %v6711 = vadd.f32 0.0, %v6710
  %v6712 = vpop.f32.mrb[0].mxu0
  %6713 = vmatprep.mubr.f32.mxu0 0.0
  %6714 = vmatmul.mubr.f32.gmra.mrb[0].mxu0 %v5629
  %v6715 = vpop.f32.mrb[0].mxu0
  %v6716 = vadd.f32 0.0, %v6715
  %v6717 = vpop.f32.mrb[0].mxu0
  %6718 = vmatprep.mubr.f32.mxu0 0.0
  %6719 = vmatmul.mubr.f32.gmra.mrb[0].mxu0 %v5632
  %v6720 = vpop.f32.mrb[0].mxu0
  %v6721 = vadd.f32 0.0, %v6720
  %v6722 = vpop.f32.mrb[0].mxu0
  %6723 = vdwg.mxu0
  %v6725 = vsel %vm2044, %v6686, 0
  %v6728 = vsel %vm2044, %v6691, 0
  %v6731 = vsel %vm2044, %v6696, 0
  %v6734 = vsel %vm2044, %v6701, 0
  %v6737 = vsel %vm2044, %v6706, 0
  %v6740 = vsel %vm2044, %v6711, 0
  %v6743 = vsel %vm2044, %v6716, 0
  %v6746 = vsel %vm2044, %v6721, 0
  %6748 = vmatprep.subr.mxu0 0.0
  %6749 = vmatpush1.msra.mxu0 %v138
  %6750 = vmatprep.subr.mxu0 0.0
  %6751 = vmatpush1.msra.mxu0 0.0
  %6752 = vmatprep.subr.mxu0 0.0
  %6753 = vmatpush1.msra.mxu0 0.0
  %6754 = vmatprep.subr.mxu0 0.0
  %6755 = vmatpush1.msra.mxu0 0.0
  %6756 = vmatprep.subr.mxu0 0.0
  %6757 = vmatpush1.msra.mxu0 0.0
  %6758 = vmatprep.subr.mxu0 0.0
  %6759 = vmatpush1.msra.mxu0 0.0
  %6760 = vmatprep.subr.mxu0 0.0
  %6761 = vmatpush1.msra.mxu0 0.0
  %6762 = vmatprep.subr.mxu0 0.0
  %6763 = vmatpush1.msra.mxu0 0.0
  %6764 = vmatprep.subr.mxu0 0.0
  %6765 = vmatpush1.msra.mxu0 0.0
  %6766 = vmatprep.subr.mxu0 0.0
  %6767 = vmatpush1.msra.mxu0 0.0
  %6768 = vmatprep.subr.mxu0 0.0
  %6769 = vmatpush1.msra.mxu0 0.0
  %6770 = vmatprep.subr.mxu0 0.0
  %6771 = vmatpush1.msra.mxu0 0.0
  %6772 = vmatprep.subr.mxu0 0.0
  %6773 = vmatpush1.msra.mxu0 0.0
  %6774 = vmatprep.subr.mxu0 0.0
  %6775 = vmatpush1.msra.mxu0 0.0
  %6776 = vmatprep.subr.mxu0 0.0
  %6777 = vmatpush1.msra.mxu0 0.0
  %6778 = vmatprep.subr.mxu0 0.0
  %6779 = vmatpush1.msra.mxu0 0.0
  %6780 = vmatprep.subr.mxu0 0.0
  %6781 = vmatpush1.msra.mxu0 0.0
  %6782 = vmatprep.subr.mxu0 0.0
  %6783 = vmatpush1.msra.mxu0 0.0
  %6784 = vmatprep.subr.mxu0 0.0
  %6785 = vmatpush1.msra.mxu0 0.0
  %6786 = vmatprep.subr.mxu0 0.0
  %6787 = vmatpush1.msra.mxu0 0.0
  %6788 = vmatprep.subr.mxu0 0.0
  %6789 = vmatpush1.msra.mxu0 0.0
  %6790 = vmatprep.subr.mxu0 0.0
  %6791 = vmatpush1.msra.mxu0 0.0
  %6792 = vmatprep.subr.mxu0 0.0
  %6793 = vmatpush1.msra.mxu0 0.0
  %6794 = vmatprep.subr.mxu0 0.0
  %6795 = vmatpush1.msra.mxu0 0.0
  %6796 = vmatprep.subr.mxu0 0.0
  %6797 = vmatpush1.msra.mxu0 0.0
  %6798 = vmatprep.subr.mxu0 0.0
  %6799 = vmatpush1.msra.mxu0 0.0
  %6800 = vmatprep.subr.mxu0 0.0
  %6801 = vmatpush1.msra.mxu0 0.0
  %6802 = vmatprep.subr.mxu0 0.0
  %6803 = vmatpush1.msra.mxu0 0.0
  %6804 = vmatprep.subr.mxu0 0.0
  %6805 = vmatpush1.msra.mxu0 0.0
  %6806 = vmatprep.subr.mxu0 0.0
  %6807 = vmatpush1.msra.mxu0 0.0
  %6808 = vmatprep.subr.mxu0 0.0
  %6809 = vmatpush1.msra.mxu0 0.0
  %6810 = vmatprep.subr.mxu0 0.0
  %6811 = vmatpush1.msra.mxu0 0.0
  %6812 = vmatprep.mubr.f32.mxu0 0.0
  %6813 = vmatmul.mubr.f32.gmra.mrb[0].mxu0 %v6725
  %v6814 = vpop.f32.mrb[0].mxu0
  %v6815 = vadd.f32 0.0, %v6814
  %v6816 = vpop.f32.mrb[0].mxu0
  %6817 = vmatprep.mubr.f32.mxu0 0.0
  %6818 = vmatmul.mubr.f32.gmra.mrb[0].mxu0 %v6728
  %v6819 = vpop.f32.mrb[0].mxu0
  %v6820 = vadd.f32 0.0, %v6819
  %v6821 = vpop.f32.mrb[0].mxu0
  %6822 = vmatprep.mubr.f32.mxu0 0.0
  %6823 = vmatmul.mubr.f32.gmra.mrb[0].mxu0 %v6731
  %v6824 = vpop.f32.mrb[0].mxu0
  %v6825 = vadd.f32 0.0, %v6824
  %v6826 = vpop.f32.mrb[0].mxu0
  %6827 = vmatprep.mubr.f32.mxu0 0.0
  %6828 = vmatmul.mubr.f32.gmra.mrb[0].mxu0 %v6734
  %v6829 = vpop.f32.mrb[0].mxu0
  %v6830 = vadd.f32 0.0, %v6829
  %v6831 = vpop.f32.mrb[0].mxu0
  %6832 = vmatprep.mubr.f32.mxu0 0.0
  %6833 = vmatmul.mubr.f32.gmra.mrb[0].mxu0 %v6737
  %v6834 = vpop.f32.mrb[0].mxu0
  %v6835 = vadd.f32 0.0, %v6834
  %v6836 = vpop.f32.mrb[0].mxu0
  %6837 = vmatprep.mubr.f32.mxu0 0.0
  %6838 = vmatmul.mubr.f32.gmra.mrb[0].mxu0 %v6740
  %v6839 = vpop.f32.mrb[0].mxu0
  %v6840 = vadd.f32 0.0, %v6839
  %v6841 = vpop.f32.mrb[0].mxu0
  %6842 = vmatprep.mubr.f32.mxu0 0.0
  %6843 = vmatmul.mubr.f32.gmra.mrb[0].mxu0 %v6743
  %v6844 = vpop.f32.mrb[0].mxu0
  %v6845 = vadd.f32 0.0, %v6844
  %v6846 = vpop.f32.mrb[0].mxu0
  %6847 = vmatprep.mubr.f32.mxu0 0.0
  %6848 = vmatmul.mubr.f32.gmra.mrb[0].mxu0 %v6746
  %v6849 = vpop.f32.mrb[0].mxu0
  %v6850 = vadd.f32 0.0, %v6849
  %v6851 = vpop.f32.mrb[0].mxu0
  %6852 = vdwg.mxu0
  %v6853 = vadd.f32 %v6581, %v6815
  %v6854 = vadd.f32 %v6586, %v6820
  %v6855 = vadd.f32 %v6591, %v6825
  %v6856 = vadd.f32 %v6596, %v6830
  %v6857 = vadd.f32 %v6601, %v6835
  %v6858 = vadd.f32 %v6606, %v6840
  %v6859 = vadd.f32 %v6611, %v6845
  %v6860 = vadd.f32 %v6616, %v6850
  %6861 = vmatprep.subr.mxu0 0.0
  %6862 = vmatpush1.msra.mxu0 %v5064
  %6863 = vmatprep.subr.mxu0 0.0
  %6864 = vmatpush1.msra.mxu0 %v5065
  %6865 = vmatprep.subr.mxu0 0.0
  %6866 = vmatpush1.msra.mxu0 %v5066
  %6867 = vmatprep.subr.mxu0 0.0
  %6868 = vmatpush1.msra.mxu0 %v5067
  %6869 = vmatprep.subr.mxu0 0.0
  %6870 = vmatpush1.msra.mxu0 0.0
  %6871 = vmatprep.subr.mxu0 0.0
  %6872 = vmatpush1.msra.mxu0 0.0
  %6873 = vmatprep.subr.mxu0 0.0
  %6874 = vmatpush1.msra.mxu0 0.0
  %6875 = vmatprep.subr.mxu0 0.0
  %6876 = vmatpush1.msra.mxu0 0.0
  %6877 = vmatprep.subr.mxu0 0.0
  %6878 = vmatpush1.msra.mxu0 0.0
  %6879 = vmatprep.subr.mxu0 0.0
  %6880 = vmatpush1.msra.mxu0 0.0
  %6881 = vmatprep.subr.mxu0 0.0
  %6882 = vmatpush1.msra.mxu0 0.0
  %6883 = vmatprep.subr.mxu0 0.0
  %6884 = vmatpush1.msra.mxu0 0.0
  %6885 = vmatprep.subr.mxu0 0.0
  %6886 = vmatpush1.msra.mxu0 0.0
  %6887 = vmatprep.subr.mxu0 0.0
  %6888 = vmatpush1.msra.mxu0 0.0
  %6889 = vmatprep.subr.mxu0 0.0
  %6890 = vmatpush1.msra.mxu0 0.0
  %6891 = vmatprep.subr.mxu0 0.0
  %6892 = vmatpush1.msra.mxu0 0.0
  %6893 = vmatprep.subr.mxu0 0.0
  %6894 = vmatpush1.msra.mxu0 0.0
  %6895 = vmatprep.subr.mxu0 0.0
  %6896 = vmatpush1.msra.mxu0 0.0
  %6897 = vmatprep.subr.mxu0 0.0
  %6898 = vmatpush1.msra.mxu0 0.0
  %6899 = vmatprep.subr.mxu0 0.0
  %6900 = vmatpush1.msra.mxu0 0.0
  %6901 = vmatprep.subr.mxu0 0.0
  %6902 = vmatpush1.msra.mxu0 0.0
  %6903 = vmatprep.subr.mxu0 0.0
  %6904 = vmatpush1.msra.mxu0 0.0
  %6905 = vmatprep.subr.mxu0 0.0
  %6906 = vmatpush1.msra.mxu0 0.0
  %6907 = vmatprep.subr.mxu0 0.0
  %6908 = vmatpush1.msra.mxu0 0.0
  %6909 = vmatprep.subr.mxu0 0.0
  %6910 = vmatpush1.msra.mxu0 0.0
  %6911 = vmatprep.subr.mxu0 0.0
  %6912 = vmatpush1.msra.mxu0 0.0
  %6913 = vmatprep.subr.mxu0 0.0
  %6914 = vmatpush1.msra.mxu0 0.0
  %6915 = vmatprep.subr.mxu0 0.0
  %6916 = vmatpush1.msra.mxu0 0.0
  %6917 = vmatprep.subr.mxu0 0.0
  %6918 = vmatpush1.msra.mxu0 0.0
  %6919 = vmatprep.subr.mxu0 0.0
  %6920 = vmatpush1.msra.mxu0 0.0
  %6921 = vmatprep.subr.mxu0 0.0
  %6922 = vmatpush1.msra.mxu0 0.0
  %6923 = vmatprep.subr.mxu0 0.0
  %6924 = vmatpush1.msra.mxu0 0.0
  %6925 = vmatprep.mubr.f32.mxu0 0.0
  %6926 = vmatmul.mubr.f32.gmra.mrb[0].mxu0 %v5886
  %v6927 = vpop.f32.mrb[0].mxu0
  %v6928 = vadd.f32 0.0, %v6927
  %v6929 = vpop.f32.mrb[0].mxu0
  %6930 = vmatprep.mubr.f32.mxu0 0.0
  %6931 = vmatmul.mubr.f32.gmra.mrb[0].mxu0 %v5889
  %v6932 = vpop.f32.mrb[0].mxu0
  %v6933 = vadd.f32 0.0, %v6932
  %v6934 = vpop.f32.mrb[0].mxu0
  %6935 = vmatprep.mubr.f32.mxu0 0.0
  %6936 = vmatmul.mubr.f32.gmra.mrb[0].mxu0 %v5892
  %v6937 = vpop.f32.mrb[0].mxu0
  %v6938 = vadd.f32 0.0, %v6937
  %v6939 = vpop.f32.mrb[0].mxu0
  %6940 = vmatprep.mubr.f32.mxu0 0.0
  %6941 = vmatmul.mubr.f32.gmra.mrb[0].mxu0 %v5895
  %v6942 = vpop.f32.mrb[0].mxu0
  %v6943 = vadd.f32 0.0, %v6942
  %v6944 = vpop.f32.mrb[0].mxu0
  %6945 = vmatprep.mubr.f32.mxu0 0.0
  %6946 = vmatmul.mubr.f32.gmra.mrb[0].mxu0 %v5898
  %v6947 = vpop.f32.mrb[0].mxu0
  %v6948 = vadd.f32 0.0, %v6947
  %v6949 = vpop.f32.mrb[0].mxu0
  %6950 = vmatprep.mubr.f32.mxu0 0.0
  %6951 = vmatmul.mubr.f32.gmra.mrb[0].mxu0 %v5901
  %v6952 = vpop.f32.mrb[0].mxu0
  %v6953 = vadd.f32 0.0, %v6952
  %v6954 = vpop.f32.mrb[0].mxu0
  %6955 = vmatprep.mubr.f32.mxu0 0.0
  %6956 = vmatmul.mubr.f32.gmra.mrb[0].mxu0 %v5904
  %v6957 = vpop.f32.mrb[0].mxu0
  %v6958 = vadd.f32 0.0, %v6957
  %v6959 = vpop.f32.mrb[0].mxu0
  %6960 = vmatprep.mubr.f32.mxu0 0.0
  %6961 = vmatmul.mubr.f32.gmra.mrb[0].mxu0 %v5907
  %v6962 = vpop.f32.mrb[0].mxu0
  %v6963 = vadd.f32 0.0, %v6962
  %v6964 = vpop.f32.mrb[0].mxu0
  %6965 = vdwg.mxu0
  %v6967 = vsel %vm2044, %v6928, 0
  %v6970 = vsel %vm2044, %v6933, 0
  %v6973 = vsel %vm2044, %v6938, 0
  %v6976 = vsel %vm2044, %v6943, 0
  %v6979 = vsel %vm2044, %v6948, 0
  %v6982 = vsel %vm2044, %v6953, 0
  %v6985 = vsel %vm2044, %v6958, 0
  %v6988 = vsel %vm2044, %v6963, 0
  %6990 = vmatprep.subr.mxu0 0.0
  %6991 = vmatpush1.msra.mxu0 %v171
  %6992 = vmatprep.subr.mxu0 0.0
  %6993 = vmatpush1.msra.mxu0 0.0
  %6994 = vmatprep.subr.mxu0 0.0
  %6995 = vmatpush1.msra.mxu0 0.0
  %6996 = vmatprep.subr.mxu0 0.0
  %6997 = vmatpush1.msra.mxu0 0.0
  %6998 = vmatprep.subr.mxu0 0.0
  %6999 = vmatpush1.msra.mxu0 0.0
  %7000 = vmatprep.subr.mxu0 0.0
  %7001 = vmatpush1.msra.mxu0 0.0
  %7002 = vmatprep.subr.mxu0 0.0
  %7003 = vmatpush1.msra.mxu0 0.0
  %7004 = vmatprep.subr.mxu0 0.0
  %7005 = vmatpush1.msra.mxu0 0.0
  %7006 = vmatprep.subr.mxu0 0.0
  %7007 = vmatpush1.msra.mxu0 0.0
  %7008 = vmatprep.subr.mxu0 0.0
  %7009 = vmatpush1.msra.mxu0 0.0
  %7010 = vmatprep.subr.mxu0 0.0
  %7011 = vmatpush1.msra.mxu0 0.0
  %7012 = vmatprep.subr.mxu0 0.0
  %7013 = vmatpush1.msra.mxu0 0.0
  %7014 = vmatprep.subr.mxu0 0.0
  %7015 = vmatpush1.msra.mxu0 0.0
  %7016 = vmatprep.subr.mxu0 0.0
  %7017 = vmatpush1.msra.mxu0 0.0
  %7018 = vmatprep.subr.mxu0 0.0
  %7019 = vmatpush1.msra.mxu0 0.0
  %7020 = vmatprep.subr.mxu0 0.0
  %7021 = vmatpush1.msra.mxu0 0.0
  %7022 = vmatprep.subr.mxu0 0.0
  %7023 = vmatpush1.msra.mxu0 0.0
  %7024 = vmatprep.subr.mxu0 0.0
  %7025 = vmatpush1.msra.mxu0 0.0
  %7026 = vmatprep.subr.mxu0 0.0
  %7027 = vmatpush1.msra.mxu0 0.0
  %7028 = vmatprep.subr.mxu0 0.0
  %7029 = vmatpush1.msra.mxu0 0.0
  %7030 = vmatprep.subr.mxu0 0.0
  %7031 = vmatpush1.msra.mxu0 0.0
  %7032 = vmatprep.subr.mxu0 0.0
  %7033 = vmatpush1.msra.mxu0 0.0
  %7034 = vmatprep.subr.mxu0 0.0
  %7035 = vmatpush1.msra.mxu0 0.0
  %7036 = vmatprep.subr.mxu0 0.0
  %7037 = vmatpush1.msra.mxu0 0.0
  %7038 = vmatprep.subr.mxu0 0.0
  %7039 = vmatpush1.msra.mxu0 0.0
  %7040 = vmatprep.subr.mxu0 0.0
  %7041 = vmatpush1.msra.mxu0 0.0
  %7042 = vmatprep.subr.mxu0 0.0
  %7043 = vmatpush1.msra.mxu0 0.0
  %7044 = vmatprep.subr.mxu0 0.0
  %7045 = vmatpush1.msra.mxu0 0.0
  %7046 = vmatprep.subr.mxu0 0.0
  %7047 = vmatpush1.msra.mxu0 0.0
  %7048 = vmatprep.subr.mxu0 0.0
  %7049 = vmatpush1.msra.mxu0 0.0
  %7050 = vmatprep.subr.mxu0 0.0
  %7051 = vmatpush1.msra.mxu0 0.0
  %7052 = vmatprep.subr.mxu0 0.0
  %7053 = vmatpush1.msra.mxu0 0.0
  %7054 = vmatprep.mubr.f32.mxu0 0.0
  %7055 = vmatmul.mubr.f32.gmra.mrb[0].mxu0 %v6967
  %v7056 = vpop.f32.mrb[0].mxu0
  %v7057 = vadd.f32 0.0, %v7056
  %v7058 = vpop.f32.mrb[0].mxu0
  %7059 = vmatprep.mubr.f32.mxu0 0.0
  %7060 = vmatmul.mubr.f32.gmra.mrb[0].mxu0 %v6970
  %v7061 = vpop.f32.mrb[0].mxu0
  %v7062 = vadd.f32 0.0, %v7061
  %v7063 = vpop.f32.mrb[0].mxu0
  %7064 = vmatprep.mubr.f32.mxu0 0.0
  %7065 = vmatmul.mubr.f32.gmra.mrb[0].mxu0 %v6973
  %v7066 = vpop.f32.mrb[0].mxu0
  %v7067 = vadd.f32 0.0, %v7066
  %v7068 = vpop.f32.mrb[0].mxu0
  %7069 = vmatprep.mubr.f32.mxu0 0.0
  %7070 = vmatmul.mubr.f32.gmra.mrb[0].mxu0 %v6976
  %v7071 = vpop.f32.mrb[0].mxu0
  %v7072 = vadd.f32 0.0, %v7071
  %v7073 = vpop.f32.mrb[0].mxu0
  %7074 = vmatprep.mubr.f32.mxu0 0.0
  %7075 = vmatmul.mubr.f32.gmra.mrb[0].mxu0 %v6979
  %v7076 = vpop.f32.mrb[0].mxu0
  %v7077 = vadd.f32 0.0, %v7076
  %v7078 = vpop.f32.mrb[0].mxu0
  %7079 = vmatprep.mubr.f32.mxu0 0.0
  %7080 = vmatmul.mubr.f32.gmra.mrb[0].mxu0 %v6982
  %v7081 = vpop.f32.mrb[0].mxu0
  %v7082 = vadd.f32 0.0, %v7081
  %v7083 = vpop.f32.mrb[0].mxu0
  %7084 = vmatprep.mubr.f32.mxu0 0.0
  %7085 = vmatmul.mubr.f32.gmra.mrb[0].mxu0 %v6985
  %v7086 = vpop.f32.mrb[0].mxu0
  %v7087 = vadd.f32 0.0, %v7086
  %v7088 = vpop.f32.mrb[0].mxu0
  %7089 = vmatprep.mubr.f32.mxu0 0.0
  %7090 = vmatmul.mubr.f32.gmra.mrb[0].mxu0 %v6988
  %v7091 = vpop.f32.mrb[0].mxu0
  %v7092 = vadd.f32 0.0, %v7091
  %v7093 = vpop.f32.mrb[0].mxu0
  %7094 = vdwg.mxu0
  %v7095 = vadd.f32 %v6853, %v7057
  %v7096 = vadd.f32 %v6854, %v7062
  %v7097 = vadd.f32 %v6855, %v7067
  %v7098 = vadd.f32 %v6856, %v7072
  %v7099 = vadd.f32 %v6857, %v7077
  %v7100 = vadd.f32 %v6858, %v7082
  %v7101 = vadd.f32 %v6859, %v7087
  %v7102 = vadd.f32 %v6860, %v7092
  %v7103 = vsel %vm833, %v6143, 0.0
  %7104 = vadd.xlane.f32.xlu0 %v7103
  %v7105 = vpop.xlane.xlu0 %7104
  %v7106 = vsel %vm833, %v6144, 0.0
  %7107 = vadd.xlane.f32.xlu0 %v7106
  %v7108 = vpop.xlane.xlu0 %7107
  %v7109 = vsel %vm833, %v6145, 0.0
  %7110 = vadd.xlane.f32.xlu0 %v7109
  %v7111 = vpop.xlane.xlu0 %7110
  %v7112 = vsel %vm833, %v6146, 0.0
  %7113 = vadd.xlane.f32.xlu0 %v7112
  %v7114 = vpop.xlane.xlu0 %7113
  %v7115 = vsel %vm833, %v6147, 0.0
  %7116 = vadd.xlane.f32.xlu0 %v7115
  %v7117 = vpop.xlane.xlu0 %7116
  %v7118 = vsel %vm833, %v6148, 0.0
  %7119 = vadd.xlane.f32.xlu0 %v7118
  %v7120 = vpop.xlane.xlu0 %7119
  %v7121 = vsel %vm833, %v6149, 0.0
  %7122 = vadd.xlane.f32.xlu0 %v7121
  %v7123 = vpop.xlane.xlu0 %7122
  %v7124 = vsel %vm833, %v6150, 0.0
  %7125 = vadd.xlane.f32.xlu0 %v7124
  %v7126 = vpop.xlane.xlu0 %7125
  %v7127 = vadd.f32 %v7105, 0.0
  %v7128 = vadd.f32 %v7108, 0.0
  %v7129 = vadd.f32 %v7111, 0.0
  %v7130 = vadd.f32 %v7114, 0.0
  %v7131 = vadd.f32 %v7117, 0.0
  %v7132 = vadd.f32 %v7120, 0.0
  %v7133 = vadd.f32 %v7123, 0.0
  %v7134 = vadd.f32 %v7126, 0.0
  %v7135 = vsel %vm833, %v7095, 0.0
  %7136 = vadd.xlane.f32.xlu0 %v7135
  %v7137 = vpop.xlane.xlu0 %7136
  %v7138 = vsel %vm833, %v7096, 0.0
  %7139 = vadd.xlane.f32.xlu0 %v7138
  %v7140 = vpop.xlane.xlu0 %7139
  %v7141 = vsel %vm833, %v7097, 0.0
  %7142 = vadd.xlane.f32.xlu0 %v7141
  %v7143 = vpop.xlane.xlu0 %7142
  %v7144 = vsel %vm833, %v7098, 0.0
  %7145 = vadd.xlane.f32.xlu0 %v7144
  %v7146 = vpop.xlane.xlu0 %7145
  %v7147 = vsel %vm833, %v7099, 0.0
  %7148 = vadd.xlane.f32.xlu0 %v7147
  %v7149 = vpop.xlane.xlu0 %7148
  %v7150 = vsel %vm833, %v7100, 0.0
  %7151 = vadd.xlane.f32.xlu0 %v7150
  %v7152 = vpop.xlane.xlu0 %7151
  %v7153 = vsel %vm833, %v7101, 0.0
  %7154 = vadd.xlane.f32.xlu0 %v7153
  %v7155 = vpop.xlane.xlu0 %7154
  %v7156 = vsel %vm833, %v7102, 0.0
  %7157 = vadd.xlane.f32.xlu0 %v7156
  %v7158 = vpop.xlane.xlu0 %7157
  %v7159 = vadd.f32 %v7127, %v7137
  %v7160 = vadd.f32 %v7128, %v7140
  %v7161 = vadd.f32 %v7129, %v7143
  %v7162 = vadd.f32 %v7130, %v7146
  %v7163 = vadd.f32 %v7131, %v7149
  %v7164 = vadd.f32 %v7132, %v7152
  %v7165 = vadd.f32 %v7133, %v7155
  %v7166 = vadd.f32 %v7134, %v7158
  %v7167 = vrcp.pop 8.0
  %v7168 = vmul.f32 %v7159, %v7167
  %v7169 = vmul.f32 %v7160, %v7167
  %v7170 = vmul.f32 %v7161, %v7167
  %v7171 = vmul.f32 %v7162, %v7167
  %v7172 = vmul.f32 %v7163, %v7167
  %v7173 = vmul.f32 %v7164, %v7167
  %v7174 = vmul.f32 %v7165, %v7167
  %v7175 = vmul.f32 %v7166, %v7167
  %v7176 = vsub.f32 %v6143, %v7168
  %v7177 = vsub.f32 %v6144, %v7169
  %v7178 = vsub.f32 %v6145, %v7170
  %v7179 = vsub.f32 %v6146, %v7171
  %v7180 = vsub.f32 %v6147, %v7172
  %v7181 = vsub.f32 %v6148, %v7173
  %v7182 = vsub.f32 %v6149, %v7174
  %v7183 = vsub.f32 %v6150, %v7175
  %v7184 = vmul.f32 %v7176, %v7176
  %v7185 = vmul.f32 %v7177, %v7177
  %v7186 = vmul.f32 %v7178, %v7178
  %v7187 = vmul.f32 %v7179, %v7179
  %v7188 = vmul.f32 %v7180, %v7180
  %v7189 = vmul.f32 %v7181, %v7181
  %v7190 = vmul.f32 %v7182, %v7182
  %v7191 = vmul.f32 %v7183, %v7183
  %v7192 = vsel %vm833, %v7184, 0.0
  %7193 = vadd.xlane.f32.xlu0 %v7192
  %v7194 = vpop.xlane.xlu0 %7193
  %v7195 = vsel %vm833, %v7185, 0.0
  %7196 = vadd.xlane.f32.xlu0 %v7195
  %v7197 = vpop.xlane.xlu0 %7196
  %v7198 = vsel %vm833, %v7186, 0.0
  %7199 = vadd.xlane.f32.xlu0 %v7198
  %v7200 = vpop.xlane.xlu0 %7199
  %v7201 = vsel %vm833, %v7187, 0.0
  %7202 = vadd.xlane.f32.xlu0 %v7201
  %v7203 = vpop.xlane.xlu0 %7202
  %v7204 = vsel %vm833, %v7188, 0.0
  %7205 = vadd.xlane.f32.xlu0 %v7204
  %v7206 = vpop.xlane.xlu0 %7205
  %v7207 = vsel %vm833, %v7189, 0.0
  %7208 = vadd.xlane.f32.xlu0 %v7207
  %v7209 = vpop.xlane.xlu0 %7208
  %v7210 = vsel %vm833, %v7190, 0.0
  %7211 = vadd.xlane.f32.xlu0 %v7210
  %v7212 = vpop.xlane.xlu0 %7211
  %v7213 = vsel %vm833, %v7191, 0.0
  %7214 = vadd.xlane.f32.xlu0 %v7213
  %v7215 = vpop.xlane.xlu0 %7214
  %v7216 = vadd.f32 %v7194, 0.0
  %v7217 = vadd.f32 %v7197, 0.0
  %v7218 = vadd.f32 %v7200, 0.0
  %v7219 = vadd.f32 %v7203, 0.0
  %v7220 = vadd.f32 %v7206, 0.0
  %v7221 = vadd.f32 %v7209, 0.0
  %v7222 = vadd.f32 %v7212, 0.0
  %v7223 = vadd.f32 %v7215, 0.0
  %v7224 = vsub.f32 %v7095, %v7168
  %v7225 = vsub.f32 %v7096, %v7169
  %v7226 = vsub.f32 %v7097, %v7170
  %v7227 = vsub.f32 %v7098, %v7171
  %v7228 = vsub.f32 %v7099, %v7172
  %v7229 = vsub.f32 %v7100, %v7173
  %v7230 = vsub.f32 %v7101, %v7174
  %v7231 = vsub.f32 %v7102, %v7175
  %v7232 = vmul.f32 %v7224, %v7224
  %v7233 = vmul.f32 %v7225, %v7225
  %v7234 = vmul.f32 %v7226, %v7226
  %v7235 = vmul.f32 %v7227, %v7227
  %v7236 = vmul.f32 %v7228, %v7228
  %v7237 = vmul.f32 %v7229, %v7229
  %v7238 = vmul.f32 %v7230, %v7230
  %v7239 = vmul.f32 %v7231, %v7231
  %v7240 = vsel %vm833, %v7232, 0.0
  %7241 = vadd.xlane.f32.xlu0 %v7240
  %v7242 = vpop.xlane.xlu0 %7241
  %v7243 = vsel %vm833, %v7233, 0.0
  %7244 = vadd.xlane.f32.xlu0 %v7243
  %v7245 = vpop.xlane.xlu0 %7244
  %v7246 = vsel %vm833, %v7234, 0.0
  %7247 = vadd.xlane.f32.xlu0 %v7246
  %v7248 = vpop.xlane.xlu0 %7247
  %v7249 = vsel %vm833, %v7235, 0.0
  %7250 = vadd.xlane.f32.xlu0 %v7249
  %v7251 = vpop.xlane.xlu0 %7250
  %v7252 = vsel %vm833, %v7236, 0.0
  %7253 = vadd.xlane.f32.xlu0 %v7252
  %v7254 = vpop.xlane.xlu0 %7253
  %v7255 = vsel %vm833, %v7237, 0.0
  %7256 = vadd.xlane.f32.xlu0 %v7255
  %v7257 = vpop.xlane.xlu0 %7256
  %v7258 = vsel %vm833, %v7238, 0.0
  %7259 = vadd.xlane.f32.xlu0 %v7258
  %v7260 = vpop.xlane.xlu0 %7259
  %v7261 = vsel %vm833, %v7239, 0.0
  %7262 = vadd.xlane.f32.xlu0 %v7261
  %v7263 = vpop.xlane.xlu0 %7262
  %v7264 = vadd.f32 %v7216, %v7242
  %v7265 = vadd.f32 %v7217, %v7245
  %v7266 = vadd.f32 %v7218, %v7248
  %v7267 = vadd.f32 %v7219, %v7251
  %v7268 = vadd.f32 %v7220, %v7254
  %v7269 = vadd.f32 %v7221, %v7257
  %v7270 = vadd.f32 %v7222, %v7260
  %v7271 = vadd.f32 %v7223, %v7263
  %v7272 = vmul.f32 %v7264, %v7167
  %v7273 = vmul.f32 %v7265, %v7167
  %v7274 = vmul.f32 %v7266, %v7167
  %v7275 = vmul.f32 %v7267, %v7167
  %v7276 = vmul.f32 %v7268, %v7167
  %v7277 = vmul.f32 %v7269, %v7167
  %v7278 = vmul.f32 %v7270, %v7167
  %v7279 = vmul.f32 %v7271, %v7167
  %v7280 = vadd.f32 %v7272, 1e-05
  %v7281 = vadd.f32 %v7273, 1e-05
  %v7282 = vadd.f32 %v7274, 1e-05
  %v7283 = vadd.f32 %v7275, 1e-05
  %v7284 = vadd.f32 %v7276, 1e-05
  %v7285 = vadd.f32 %v7277, 1e-05
  %v7286 = vadd.f32 %v7278, 1e-05
  %v7287 = vadd.f32 %v7279, 1e-05
  %v7288 = vrsqrt.pop %v7280
  %v7289 = vrsqrt.pop %v7281
  %v7290 = vrsqrt.pop %v7282
  %v7291 = vrsqrt.pop %v7283
  %v7292 = vrsqrt.pop %v7284
  %v7293 = vrsqrt.pop %v7285
  %v7294 = vrsqrt.pop %v7286
  %v7295 = vrsqrt.pop %v7287
  %v7296 = vmul.f32 %v7176, %v7288
  %v7297 = vmul.f32 %v7177, %v7289
  %v7298 = vmul.f32 %v7178, %v7290
  %v7299 = vmul.f32 %v7179, %v7291
  %v7300 = vmul.f32 %v7180, %v7292
  %v7301 = vmul.f32 %v7181, %v7293
  %v7302 = vmul.f32 %v7182, %v7294
  %v7303 = vmul.f32 %v7183, %v7295
  %vm7304 = vcmp.gt.f32.partialorder %v7296, 0.0
  %vm7305 = vcmp.gt.f32.partialorder %v7297, 0.0
  %vm7306 = vcmp.gt.f32.partialorder %v7298, 0.0
  %vm7307 = vcmp.gt.f32.partialorder %v7299, 0.0
  %vm7308 = vcmp.gt.f32.partialorder %v7300, 0.0
  %vm7309 = vcmp.gt.f32.partialorder %v7301, 0.0
  %vm7310 = vcmp.gt.f32.partialorder %v7302, 0.0
  %vm7311 = vcmp.gt.f32.partialorder %v7303, 0.0
  %v7312 = vmul.f32 %v7296, 0.2
  %v7313 = vmul.f32 %v7297, 0.2
  %v7314 = vmul.f32 %v7298, 0.2
  %v7315 = vmul.f32 %v7299, 0.2
  %v7316 = vmul.f32 %v7300, 0.2
  %v7317 = vmul.f32 %v7301, 0.2
  %v7318 = vmul.f32 %v7302, 0.2
  %v7319 = vmul.f32 %v7303, 0.2
  %v7320 = vsel %vm7304, %v7296, %v7312
  %v7321 = vsel %vm7305, %v7297, %v7313
  %v7322 = vsel %vm7306, %v7298, %v7314
  %v7323 = vsel %vm7307, %v7299, %v7315
  %v7324 = vsel %vm7308, %v7300, %v7316
  %v7325 = vsel %vm7309, %v7301, %v7317
  %v7326 = vsel %vm7310, %v7302, %v7318
  %v7327 = vsel %vm7311, %v7303, %v7319
  %v7328 = vmul.f32 %v7224, %v7288
  %v7329 = vmul.f32 %v7225, %v7289
  %v7330 = vmul.f32 %v7226, %v7290
  %v7331 = vmul.f32 %v7227, %v7291
  %v7332 = vmul.f32 %v7228, %v7292
  %v7333 = vmul.f32 %v7229, %v7293
  %v7334 = vmul.f32 %v7230, %v7294
  %v7335 = vmul.f32 %v7231, %v7295
  %vm7336 = vcmp.gt.f32.partialorder %v7328, 0.0
  %vm7337 = vcmp.gt.f32.partialorder %v7329, 0.0
  %vm7338 = vcmp.gt.f32.partialorder %v7330, 0.0
  %vm7339 = vcmp.gt.f32.partialorder %v7331, 0.0
  %vm7340 = vcmp.gt.f32.partialorder %v7332, 0.0
  %vm7341 = vcmp.gt.f32.partialorder %v7333, 0.0
  %vm7342 = vcmp.gt.f32.partialorder %v7334, 0.0
  %vm7343 = vcmp.gt.f32.partialorder %v7335, 0.0
  %v7344 = vmul.f32 %v7328, 0.2
  %v7345 = vmul.f32 %v7329, 0.2
  %v7346 = vmul.f32 %v7330, 0.2
  %v7347 = vmul.f32 %v7331, 0.2
  %v7348 = vmul.f32 %v7332, 0.2
  %v7349 = vmul.f32 %v7333, 0.2
  %v7350 = vmul.f32 %v7334, 0.2
  %v7351 = vmul.f32 %v7335, 0.2
  %v7352 = vsel %vm7336, %v7328, %v7344
  %v7353 = vsel %vm7337, %v7329, %v7345
  %v7354 = vsel %vm7338, %v7330, %v7346
  %v7355 = vsel %vm7339, %v7331, %v7347
  %v7356 = vsel %vm7340, %v7332, %v7348
  %v7357 = vsel %vm7341, %v7333, %v7349
  %v7358 = vsel %vm7342, %v7334, %v7350
  %v7359 = vsel %vm7343, %v7335, %v7351
  %7360 = vst.msk [vmem:[%s8] sm:$0xff] %vm833, %v7320
  %7361 = vst.msk [vmem:[%s8 + $0x8] sm:$0xff] %vm833, %v7321
  %7362 = vst.msk [vmem:[%s8 + $0x10] sm:$0xff] %vm833, %v7322
  %7363 = vst.msk [vmem:[%s8 + $0x18] sm:$0xff] %vm833, %v7323
  %7364 = vst.msk [vmem:[%s8 + $0x20] sm:$0xff] %vm833, %v7324
  %7365 = vst.msk [vmem:[%s8 + $0x28] sm:$0xff] %vm833, %v7325
  %7366 = vst.msk [vmem:[%s8 + $0x30] sm:$0xff] %vm833, %v7326
  %7367 = vst.msk [vmem:[%s8 + $0x38] sm:$0xff] %vm833, %v7327
  %s7368 = scalar_lea.vmem %s8, 64
  %7369 = vst.msk [vmem:[%s7368] sm:$0xff] %vm833, %v7352
  %7370 = vst.msk [vmem:[%s7368 + $0x8] sm:$0xff] %vm833, %v7353
  %7371 = vst.msk [vmem:[%s7368 + $0x10] sm:$0xff] %vm833, %v7354
  %7372 = vst.msk [vmem:[%s7368 + $0x18] sm:$0xff] %vm833, %v7355
  %7373 = vst.msk [vmem:[%s7368 + $0x20] sm:$0xff] %vm833, %v7356
  %7374 = vst.msk [vmem:[%s7368 + $0x28] sm:$0xff] %vm833, %v7357
  %7375 = vst.msk [vmem:[%s7368 + $0x30] sm:$0xff] %vm833, %v7358
  %7376 = vst.msk [vmem:[%s7368 + $0x38] sm:$0xff] %vm833, %v7359
  %vm7377 = vcmp.eq.s32.totalorder %v37, %v54
  %v7378 = vsel %vm7377, 1.0, 0.0
  %v7379 = vadd.s32 %v54, 1
  %vm7380 = vcmp.eq.s32.totalorder %v37, %v7379
  %v7381 = vsel %vm7380, 1.0, 0.0
  %v7382 = vadd.s32 %v54, 2
  %vm7383 = vcmp.eq.s32.totalorder %v37, %v7382
  %v7384 = vsel %vm7383, 1.0, 0.0
  %v7385 = vadd.s32 %v54, 3
  %vm7386 = vcmp.eq.s32.totalorder %v37, %v7385
  %v7387 = vsel %vm7386, 1.0, 0.0
  %v7389 = vsel %vm833, %v7320, 0
  %v7392 = vsel %vm833, %v7321, 0
  %v7395 = vsel %vm833, %v7322, 0
  %v7398 = vsel %vm833, %v7323, 0
  %v7401 = vsel %vm833, %v7324, 0
  %v7404 = vsel %vm833, %v7325, 0
  %v7407 = vsel %vm833, %v7326, 0
  %v7410 = vsel %vm833, %v7327, 0
  %v7413 = vsel %vm837, %v7378, 0
  %7415 = vmatprep.subr.mxu0 0.0
  %7416 = vmatpush1.msra.mxu0 %v7413
  %7417 = vmatprep.subr.mxu0 0.0
  %7418 = vmatpush1.msra.mxu0 0.0
  %7419 = vmatprep.subr.mxu0 0.0
  %7420 = vmatpush1.msra.mxu0 0.0
  %7421 = vmatprep.subr.mxu0 0.0
  %7422 = vmatpush1.msra.mxu0 0.0
  %7423 = vmatprep.subr.mxu0 0.0
  %7424 = vmatpush1.msra.mxu0 0.0
  %7425 = vmatprep.subr.mxu0 0.0
  %7426 = vmatpush1.msra.mxu0 0.0
  %7427 = vmatprep.subr.mxu0 0.0
  %7428 = vmatpush1.msra.mxu0 0.0
  %7429 = vmatprep.subr.mxu0 0.0
  %7430 = vmatpush1.msra.mxu0 0.0
  %7431 = vmatprep.subr.mxu0 0.0
  %7432 = vmatpush1.msra.mxu0 0.0
  %7433 = vmatprep.subr.mxu0 0.0
  %7434 = vmatpush1.msra.mxu0 0.0
  %7435 = vmatprep.subr.mxu0 0.0
  %7436 = vmatpush1.msra.mxu0 0.0
  %7437 = vmatprep.subr.mxu0 0.0
  %7438 = vmatpush1.msra.mxu0 0.0
  %7439 = vmatprep.subr.mxu0 0.0
  %7440 = vmatpush1.msra.mxu0 0.0
  %7441 = vmatprep.subr.mxu0 0.0
  %7442 = vmatpush1.msra.mxu0 0.0
  %7443 = vmatprep.subr.mxu0 0.0
  %7444 = vmatpush1.msra.mxu0 0.0
  %7445 = vmatprep.subr.mxu0 0.0
  %7446 = vmatpush1.msra.mxu0 0.0
  %7447 = vmatprep.subr.mxu0 0.0
  %7448 = vmatpush1.msra.mxu0 0.0
  %7449 = vmatprep.subr.mxu0 0.0
  %7450 = vmatpush1.msra.mxu0 0.0
  %7451 = vmatprep.subr.mxu0 0.0
  %7452 = vmatpush1.msra.mxu0 0.0
  %7453 = vmatprep.subr.mxu0 0.0
  %7454 = vmatpush1.msra.mxu0 0.0
  %7455 = vmatprep.subr.mxu0 0.0
  %7456 = vmatpush1.msra.mxu0 0.0
  %7457 = vmatprep.subr.mxu0 0.0
  %7458 = vmatpush1.msra.mxu0 0.0
  %7459 = vmatprep.subr.mxu0 0.0
  %7460 = vmatpush1.msra.mxu0 0.0
  %7461 = vmatprep.subr.mxu0 0.0
  %7462 = vmatpush1.msra.mxu0 0.0
  %7463 = vmatprep.subr.mxu0 0.0
  %7464 = vmatpush1.msra.mxu0 0.0
  %7465 = vmatprep.subr.mxu0 0.0
  %7466 = vmatpush1.msra.mxu0 0.0
  %7467 = vmatprep.subr.mxu0 0.0
  %7468 = vmatpush1.msra.mxu0 0.0
  %7469 = vmatprep.subr.mxu0 0.0
  %7470 = vmatpush1.msra.mxu0 0.0
  %7471 = vmatprep.subr.mxu0 0.0
  %7472 = vmatpush1.msra.mxu0 0.0
  %7473 = vmatprep.subr.mxu0 0.0
  %7474 = vmatpush1.msra.mxu0 0.0
  %7475 = vmatprep.subr.mxu0 0.0
  %7476 = vmatpush1.msra.mxu0 0.0
  %7477 = vmatprep.subr.mxu0 0.0
  %7478 = vmatpush1.msra.mxu0 0.0
  %7479 = vmatprep.mubr.f32.mxu0 0.0
  %7480 = vmatmul.mubr.f32.gmra.mrb[0].mxu0 %v7389
  %v7481 = vpop.f32.mrb[0].mxu0
  %v7482 = vadd.f32 0.0, %v7481
  %v7483 = vpop.f32.mrb[0].mxu0
  %7484 = vmatprep.mubr.f32.mxu0 0.0
  %7485 = vmatmul.mubr.f32.gmra.mrb[0].mxu0 %v7392
  %v7486 = vpop.f32.mrb[0].mxu0
  %v7487 = vadd.f32 0.0, %v7486
  %v7488 = vpop.f32.mrb[0].mxu0
  %7489 = vmatprep.mubr.f32.mxu0 0.0
  %7490 = vmatmul.mubr.f32.gmra.mrb[0].mxu0 %v7395
  %v7491 = vpop.f32.mrb[0].mxu0
  %v7492 = vadd.f32 0.0, %v7491
  %v7493 = vpop.f32.mrb[0].mxu0
  %7494 = vmatprep.mubr.f32.mxu0 0.0
  %7495 = vmatmul.mubr.f32.gmra.mrb[0].mxu0 %v7398
  %v7496 = vpop.f32.mrb[0].mxu0
  %v7497 = vadd.f32 0.0, %v7496
  %v7498 = vpop.f32.mrb[0].mxu0
  %7499 = vmatprep.mubr.f32.mxu0 0.0
  %7500 = vmatmul.mubr.f32.gmra.mrb[0].mxu0 %v7401
  %v7501 = vpop.f32.mrb[0].mxu0
  %v7502 = vadd.f32 0.0, %v7501
  %v7503 = vpop.f32.mrb[0].mxu0
  %7504 = vmatprep.mubr.f32.mxu0 0.0
  %7505 = vmatmul.mubr.f32.gmra.mrb[0].mxu0 %v7404
  %v7506 = vpop.f32.mrb[0].mxu0
  %v7507 = vadd.f32 0.0, %v7506
  %v7508 = vpop.f32.mrb[0].mxu0
  %7509 = vmatprep.mubr.f32.mxu0 0.0
  %7510 = vmatmul.mubr.f32.gmra.mrb[0].mxu0 %v7407
  %v7511 = vpop.f32.mrb[0].mxu0
  %v7512 = vadd.f32 0.0, %v7511
  %v7513 = vpop.f32.mrb[0].mxu0
  %7514 = vmatprep.mubr.f32.mxu0 0.0
  %7515 = vmatmul.mubr.f32.gmra.mrb[0].mxu0 %v7410
  %v7516 = vpop.f32.mrb[0].mxu0
  %v7517 = vadd.f32 0.0, %v7516
  %v7518 = vpop.f32.mrb[0].mxu0
  %7519 = vdwg.mxu0
  %v7520 = vld [vmem:[%s6] sm:$0xff]
  %v7521 = vld [vmem:[%s6 + $0x8] sm:$0xff]
  %v7522 = vld [vmem:[%s6 + $0x10] sm:$0xff]
  %v7523 = vld [vmem:[%s6 + $0x18] sm:$0xff]
  %v7524 = vld [vmem:[%s6 + $0x20] sm:$0xff]
  %v7525 = vld [vmem:[%s6 + $0x28] sm:$0xff]
  %v7526 = vld [vmem:[%s6 + $0x30] sm:$0xff]
  %v7527 = vld [vmem:[%s6 + $0x38] sm:$0xff]
  %v7528 = vmul.f32 %v7520, %v7482
  %v7529 = vmul.f32 %v7521, %v7487
  %v7530 = vmul.f32 %v7522, %v7492
  %v7531 = vmul.f32 %v7523, %v7497
  %v7532 = vmul.f32 %v7524, %v7502
  %v7533 = vmul.f32 %v7525, %v7507
  %v7534 = vmul.f32 %v7526, %v7512
  %v7535 = vmul.f32 %v7527, %v7517
  %vm7536 = vcmask 7168
  %v7537 = vsel %vm7536, %v7528, 0.0
  %v7538 = vsel %vm7536, %v7529, 0.0
  %v7539 = vadd.f32 %v7537, %v7538
  %v7540 = vsel %vm7536, %v7530, 0.0
  %v7541 = vadd.f32 %v7539, %v7540
  %v7542 = vsel %vm7536, %v7531, 0.0
  %v7543 = vadd.f32 %v7541, %v7542
  %v7544 = vsel %vm7536, %v7532, 0.0
  %v7545 = vadd.f32 %v7543, %v7544
  %v7546 = vsel %vm7536, %v7533, 0.0
  %v7547 = vadd.f32 %v7545, %v7546
  %v7548 = vsel %vm7536, %v7534, 0.0
  %v7549 = vadd.f32 %v7547, %v7548
  %v7550 = vsel %vm7536, %v7535, 0.0
  %v7551 = vadd.f32 %v7549, %v7550
  %v7552 = vrot.slane %v7551, 4
  %v7553 = vadd.f32 %v7551, %v7552
  %v7554 = vrot.slane %v7553, 2
  %v7555 = vadd.f32 %v7553, %v7554
  %v7556 = vrot.slane %v7555, 1
  %v7557 = vadd.f32 %v7555, %v7556
  %v7558 = vadd.f32 %v7557, 0.0
  %v7560 = vsel %vm837, %v7381, 0
  %7562 = vmatprep.subr.mxu0 0.0
  %7563 = vmatpush1.msra.mxu0 %v7560
  %7564 = vmatprep.subr.mxu0 0.0
  %7565 = vmatpush1.msra.mxu0 0.0
  %7566 = vmatprep.subr.mxu0 0.0
  %7567 = vmatpush1.msra.mxu0 0.0
  %7568 = vmatprep.subr.mxu0 0.0
  %7569 = vmatpush1.msra.mxu0 0.0
  %7570 = vmatprep.subr.mxu0 0.0
  %7571 = vmatpush1.msra.mxu0 0.0
  %7572 = vmatprep.subr.mxu0 0.0
  %7573 = vmatpush1.msra.mxu0 0.0
  %7574 = vmatprep.subr.mxu0 0.0
  %7575 = vmatpush1.msra.mxu0 0.0
  %7576 = vmatprep.subr.mxu0 0.0
  %7577 = vmatpush1.msra.mxu0 0.0
  %7578 = vmatprep.subr.mxu0 0.0
  %7579 = vmatpush1.msra.mxu0 0.0
  %7580 = vmatprep.subr.mxu0 0.0
  %7581 = vmatpush1.msra.mxu0 0.0
  %7582 = vmatprep.subr.mxu0 0.0
  %7583 = vmatpush1.msra.mxu0 0.0
  %7584 = vmatprep.subr.mxu0 0.0
  %7585 = vmatpush1.msra.mxu0 0.0
  %7586 = vmatprep.subr.mxu0 0.0
  %7587 = vmatpush1.msra.mxu0 0.0
  %7588 = vmatprep.subr.mxu0 0.0
  %7589 = vmatpush1.msra.mxu0 0.0
  %7590 = vmatprep.subr.mxu0 0.0
  %7591 = vmatpush1.msra.mxu0 0.0
  %7592 = vmatprep.subr.mxu0 0.0
  %7593 = vmatpush1.msra.mxu0 0.0
  %7594 = vmatprep.subr.mxu0 0.0
  %7595 = vmatpush1.msra.mxu0 0.0
  %7596 = vmatprep.subr.mxu0 0.0
  %7597 = vmatpush1.msra.mxu0 0.0
  %7598 = vmatprep.subr.mxu0 0.0
  %7599 = vmatpush1.msra.mxu0 0.0
  %7600 = vmatprep.subr.mxu0 0.0
  %7601 = vmatpush1.msra.mxu0 0.0
  %7602 = vmatprep.subr.mxu0 0.0
  %7603 = vmatpush1.msra.mxu0 0.0
  %7604 = vmatprep.subr.mxu0 0.0
  %7605 = vmatpush1.msra.mxu0 0.0
  %7606 = vmatprep.subr.mxu0 0.0
  %7607 = vmatpush1.msra.mxu0 0.0
  %7608 = vmatprep.subr.mxu0 0.0
  %7609 = vmatpush1.msra.mxu0 0.0
  %7610 = vmatprep.subr.mxu0 0.0
  %7611 = vmatpush1.msra.mxu0 0.0
  %7612 = vmatprep.subr.mxu0 0.0
  %7613 = vmatpush1.msra.mxu0 0.0
  %7614 = vmatprep.subr.mxu0 0.0
  %7615 = vmatpush1.msra.mxu0 0.0
  %7616 = vmatprep.subr.mxu0 0.0
  %7617 = vmatpush1.msra.mxu0 0.0
  %7618 = vmatprep.subr.mxu0 0.0
  %7619 = vmatpush1.msra.mxu0 0.0
  %7620 = vmatprep.subr.mxu0 0.0
  %7621 = vmatpush1.msra.mxu0 0.0
  %7622 = vmatprep.subr.mxu0 0.0
  %7623 = vmatpush1.msra.mxu0 0.0
  %7624 = vmatprep.subr.mxu0 0.0
  %7625 = vmatpush1.msra.mxu0 0.0
  %7626 = vmatprep.mubr.f32.mxu0 0.0
  %7627 = vmatmul.mubr.f32.gmra.mrb[0].mxu0 %v7389
  %v7628 = vpop.f32.mrb[0].mxu0
  %v7629 = vadd.f32 0.0, %v7628
  %v7630 = vpop.f32.mrb[0].mxu0
  %7631 = vmatprep.mubr.f32.mxu0 0.0
  %7632 = vmatmul.mubr.f32.gmra.mrb[0].mxu0 %v7392
  %v7633 = vpop.f32.mrb[0].mxu0
  %v7634 = vadd.f32 0.0, %v7633
  %v7635 = vpop.f32.mrb[0].mxu0
  %7636 = vmatprep.mubr.f32.mxu0 0.0
  %7637 = vmatmul.mubr.f32.gmra.mrb[0].mxu0 %v7395
  %v7638 = vpop.f32.mrb[0].mxu0
  %v7639 = vadd.f32 0.0, %v7638
  %v7640 = vpop.f32.mrb[0].mxu0
  %7641 = vmatprep.mubr.f32.mxu0 0.0
  %7642 = vmatmul.mubr.f32.gmra.mrb[0].mxu0 %v7398
  %v7643 = vpop.f32.mrb[0].mxu0
  %v7644 = vadd.f32 0.0, %v7643
  %v7645 = vpop.f32.mrb[0].mxu0
  %7646 = vmatprep.mubr.f32.mxu0 0.0
  %7647 = vmatmul.mubr.f32.gmra.mrb[0].mxu0 %v7401
  %v7648 = vpop.f32.mrb[0].mxu0
  %v7649 = vadd.f32 0.0, %v7648
  %v7650 = vpop.f32.mrb[0].mxu0
  %7651 = vmatprep.mubr.f32.mxu0 0.0
  %7652 = vmatmul.mubr.f32.gmra.mrb[0].mxu0 %v7404
  %v7653 = vpop.f32.mrb[0].mxu0
  %v7654 = vadd.f32 0.0, %v7653
  %v7655 = vpop.f32.mrb[0].mxu0
  %7656 = vmatprep.mubr.f32.mxu0 0.0
  %7657 = vmatmul.mubr.f32.gmra.mrb[0].mxu0 %v7407
  %v7658 = vpop.f32.mrb[0].mxu0
  %v7659 = vadd.f32 0.0, %v7658
  %v7660 = vpop.f32.mrb[0].mxu0
  %7661 = vmatprep.mubr.f32.mxu0 0.0
  %7662 = vmatmul.mubr.f32.gmra.mrb[0].mxu0 %v7410
  %v7663 = vpop.f32.mrb[0].mxu0
  %v7664 = vadd.f32 0.0, %v7663
  %v7665 = vpop.f32.mrb[0].mxu0
  %7666 = vdwg.mxu0
  %s7667 = scalar_lea.vmem %s6, 64
  %v7668 = vld [vmem:[%s7667] sm:$0xff]
  %v7669 = vld [vmem:[%s7667 + $0x8] sm:$0xff]
  %v7670 = vld [vmem:[%s7667 + $0x10] sm:$0xff]
  %v7671 = vld [vmem:[%s7667 + $0x18] sm:$0xff]
  %v7672 = vld [vmem:[%s7667 + $0x20] sm:$0xff]
  %v7673 = vld [vmem:[%s7667 + $0x28] sm:$0xff]
  %v7674 = vld [vmem:[%s7667 + $0x30] sm:$0xff]
  %v7675 = vld [vmem:[%s7667 + $0x38] sm:$0xff]
  %v7676 = vmul.f32 %v7668, %v7629
  %v7677 = vmul.f32 %v7669, %v7634
  %v7678 = vmul.f32 %v7670, %v7639
  %v7679 = vmul.f32 %v7671, %v7644
  %v7680 = vmul.f32 %v7672, %v7649
  %v7681 = vmul.f32 %v7673, %v7654
  %v7682 = vmul.f32 %v7674, %v7659
  %v7683 = vmul.f32 %v7675, %v7664
  %v7684 = vsel %vm7536, %v7676, 0.0
  %v7685 = vsel %vm7536, %v7677, 0.0
  %v7686 = vadd.f32 %v7684, %v7685
  %v7687 = vsel %vm7536, %v7678, 0.0
  %v7688 = vadd.f32 %v7686, %v7687
  %v7689 = vsel %vm7536, %v7679, 0.0
  %v7690 = vadd.f32 %v7688, %v7689
  %v7691 = vsel %vm7536, %v7680, 0.0
  %v7692 = vadd.f32 %v7690, %v7691
  %v7693 = vsel %vm7536, %v7681, 0.0
  %v7694 = vadd.f32 %v7692, %v7693
  %v7695 = vsel %vm7536, %v7682, 0.0
  %v7696 = vadd.f32 %v7694, %v7695
  %v7697 = vsel %vm7536, %v7683, 0.0
  %v7698 = vadd.f32 %v7696, %v7697
  %v7699 = vrot.slane %v7698, 4
  %v7700 = vadd.f32 %v7698, %v7699
  %v7701 = vrot.slane %v7700, 2
  %v7702 = vadd.f32 %v7700, %v7701
  %v7703 = vrot.slane %v7702, 1
  %v7704 = vadd.f32 %v7702, %v7703
  %v7705 = vadd.f32 %v7558, %v7704
  %v7707 = vsel %vm837, %v7384, 0
  %7709 = vmatprep.subr.mxu0 0.0
  %7710 = vmatpush1.msra.mxu0 %v7707
  %7711 = vmatprep.subr.mxu0 0.0
  %7712 = vmatpush1.msra.mxu0 0.0
  %7713 = vmatprep.subr.mxu0 0.0
  %7714 = vmatpush1.msra.mxu0 0.0
  %7715 = vmatprep.subr.mxu0 0.0
  %7716 = vmatpush1.msra.mxu0 0.0
  %7717 = vmatprep.subr.mxu0 0.0
  %7718 = vmatpush1.msra.mxu0 0.0
  %7719 = vmatprep.subr.mxu0 0.0
  %7720 = vmatpush1.msra.mxu0 0.0
  %7721 = vmatprep.subr.mxu0 0.0
  %7722 = vmatpush1.msra.mxu0 0.0
  %7723 = vmatprep.subr.mxu0 0.0
  %7724 = vmatpush1.msra.mxu0 0.0
  %7725 = vmatprep.subr.mxu0 0.0
  %7726 = vmatpush1.msra.mxu0 0.0
  %7727 = vmatprep.subr.mxu0 0.0
  %7728 = vmatpush1.msra.mxu0 0.0
  %7729 = vmatprep.subr.mxu0 0.0
  %7730 = vmatpush1.msra.mxu0 0.0
  %7731 = vmatprep.subr.mxu0 0.0
  %7732 = vmatpush1.msra.mxu0 0.0
  %7733 = vmatprep.subr.mxu0 0.0
  %7734 = vmatpush1.msra.mxu0 0.0
  %7735 = vmatprep.subr.mxu0 0.0
  %7736 = vmatpush1.msra.mxu0 0.0
  %7737 = vmatprep.subr.mxu0 0.0
  %7738 = vmatpush1.msra.mxu0 0.0
  %7739 = vmatprep.subr.mxu0 0.0
  %7740 = vmatpush1.msra.mxu0 0.0
  %7741 = vmatprep.subr.mxu0 0.0
  %7742 = vmatpush1.msra.mxu0 0.0
  %7743 = vmatprep.subr.mxu0 0.0
  %7744 = vmatpush1.msra.mxu0 0.0
  %7745 = vmatprep.subr.mxu0 0.0
  %7746 = vmatpush1.msra.mxu0 0.0
  %7747 = vmatprep.subr.mxu0 0.0
  %7748 = vmatpush1.msra.mxu0 0.0
  %7749 = vmatprep.subr.mxu0 0.0
  %7750 = vmatpush1.msra.mxu0 0.0
  %7751 = vmatprep.subr.mxu0 0.0
  %7752 = vmatpush1.msra.mxu0 0.0
  %7753 = vmatprep.subr.mxu0 0.0
  %7754 = vmatpush1.msra.mxu0 0.0
  %7755 = vmatprep.subr.mxu0 0.0
  %7756 = vmatpush1.msra.mxu0 0.0
  %7757 = vmatprep.subr.mxu0 0.0
  %7758 = vmatpush1.msra.mxu0 0.0
  %7759 = vmatprep.subr.mxu0 0.0
  %7760 = vmatpush1.msra.mxu0 0.0
  %7761 = vmatprep.subr.mxu0 0.0
  %7762 = vmatpush1.msra.mxu0 0.0
  %7763 = vmatprep.subr.mxu0 0.0
  %7764 = vmatpush1.msra.mxu0 0.0
  %7765 = vmatprep.subr.mxu0 0.0
  %7766 = vmatpush1.msra.mxu0 0.0
  %7767 = vmatprep.subr.mxu0 0.0
  %7768 = vmatpush1.msra.mxu0 0.0
  %7769 = vmatprep.subr.mxu0 0.0
  %7770 = vmatpush1.msra.mxu0 0.0
  %7771 = vmatprep.subr.mxu0 0.0
  %7772 = vmatpush1.msra.mxu0 0.0
  %7773 = vmatprep.mubr.f32.mxu0 0.0
  %7774 = vmatmul.mubr.f32.gmra.mrb[0].mxu0 %v7389
  %v7775 = vpop.f32.mrb[0].mxu0
  %v7776 = vadd.f32 0.0, %v7775
  %v7777 = vpop.f32.mrb[0].mxu0
  %7778 = vmatprep.mubr.f32.mxu0 0.0
  %7779 = vmatmul.mubr.f32.gmra.mrb[0].mxu0 %v7392
  %v7780 = vpop.f32.mrb[0].mxu0
  %v7781 = vadd.f32 0.0, %v7780
  %v7782 = vpop.f32.mrb[0].mxu0
  %7783 = vmatprep.mubr.f32.mxu0 0.0
  %7784 = vmatmul.mubr.f32.gmra.mrb[0].mxu0 %v7395
  %v7785 = vpop.f32.mrb[0].mxu0
  %v7786 = vadd.f32 0.0, %v7785
  %v7787 = vpop.f32.mrb[0].mxu0
  %7788 = vmatprep.mubr.f32.mxu0 0.0
  %7789 = vmatmul.mubr.f32.gmra.mrb[0].mxu0 %v7398
  %v7790 = vpop.f32.mrb[0].mxu0
  %v7791 = vadd.f32 0.0, %v7790
  %v7792 = vpop.f32.mrb[0].mxu0
  %7793 = vmatprep.mubr.f32.mxu0 0.0
  %7794 = vmatmul.mubr.f32.gmra.mrb[0].mxu0 %v7401
  %v7795 = vpop.f32.mrb[0].mxu0
  %v7796 = vadd.f32 0.0, %v7795
  %v7797 = vpop.f32.mrb[0].mxu0
  %7798 = vmatprep.mubr.f32.mxu0 0.0
  %7799 = vmatmul.mubr.f32.gmra.mrb[0].mxu0 %v7404
  %v7800 = vpop.f32.mrb[0].mxu0
  %v7801 = vadd.f32 0.0, %v7800
  %v7802 = vpop.f32.mrb[0].mxu0
  %7803 = vmatprep.mubr.f32.mxu0 0.0
  %7804 = vmatmul.mubr.f32.gmra.mrb[0].mxu0 %v7407
  %v7805 = vpop.f32.mrb[0].mxu0
  %v7806 = vadd.f32 0.0, %v7805
  %v7807 = vpop.f32.mrb[0].mxu0
  %7808 = vmatprep.mubr.f32.mxu0 0.0
  %7809 = vmatmul.mubr.f32.gmra.mrb[0].mxu0 %v7410
  %v7810 = vpop.f32.mrb[0].mxu0
  %v7811 = vadd.f32 0.0, %v7810
  %v7812 = vpop.f32.mrb[0].mxu0
  %7813 = vdwg.mxu0
  %s7814 = scalar_lea.vmem %s6, 128
  %v7815 = vld [vmem:[%s7814] sm:$0xff]
  %v7816 = vld [vmem:[%s7814 + $0x8] sm:$0xff]
  %v7817 = vld [vmem:[%s7814 + $0x10] sm:$0xff]
  %v7818 = vld [vmem:[%s7814 + $0x18] sm:$0xff]
  %v7819 = vld [vmem:[%s7814 + $0x20] sm:$0xff]
  %v7820 = vld [vmem:[%s7814 + $0x28] sm:$0xff]
  %v7821 = vld [vmem:[%s7814 + $0x30] sm:$0xff]
  %v7822 = vld [vmem:[%s7814 + $0x38] sm:$0xff]
  %v7823 = vmul.f32 %v7815, %v7776
  %v7824 = vmul.f32 %v7816, %v7781
  %v7825 = vmul.f32 %v7817, %v7786
  %v7826 = vmul.f32 %v7818, %v7791
  %v7827 = vmul.f32 %v7819, %v7796
  %v7828 = vmul.f32 %v7820, %v7801
  %v7829 = vmul.f32 %v7821, %v7806
  %v7830 = vmul.f32 %v7822, %v7811
  %v7831 = vsel %vm7536, %v7823, 0.0
  %v7832 = vsel %vm7536, %v7824, 0.0
  %v7833 = vadd.f32 %v7831, %v7832
  %v7834 = vsel %vm7536, %v7825, 0.0
  %v7835 = vadd.f32 %v7833, %v7834
  %v7836 = vsel %vm7536, %v7826, 0.0
  %v7837 = vadd.f32 %v7835, %v7836
  %v7838 = vsel %vm7536, %v7827, 0.0
  %v7839 = vadd.f32 %v7837, %v7838
  %v7840 = vsel %vm7536, %v7828, 0.0
  %v7841 = vadd.f32 %v7839, %v7840
  %v7842 = vsel %vm7536, %v7829, 0.0
  %v7843 = vadd.f32 %v7841, %v7842
  %v7844 = vsel %vm7536, %v7830, 0.0
  %v7845 = vadd.f32 %v7843, %v7844
  %v7846 = vrot.slane %v7845, 4
  %v7847 = vadd.f32 %v7845, %v7846
  %v7848 = vrot.slane %v7847, 2
  %v7849 = vadd.f32 %v7847, %v7848
  %v7850 = vrot.slane %v7849, 1
  %v7851 = vadd.f32 %v7849, %v7850
  %v7852 = vadd.f32 %v7705, %v7851
  %v7854 = vsel %vm837, %v7387, 0
  %7856 = vmatprep.subr.mxu0 0.0
  %7857 = vmatpush1.msra.mxu0 %v7854
  %7858 = vmatprep.subr.mxu0 0.0
  %7859 = vmatpush1.msra.mxu0 0.0
  %7860 = vmatprep.subr.mxu0 0.0
  %7861 = vmatpush1.msra.mxu0 0.0
  %7862 = vmatprep.subr.mxu0 0.0
  %7863 = vmatpush1.msra.mxu0 0.0
  %7864 = vmatprep.subr.mxu0 0.0
  %7865 = vmatpush1.msra.mxu0 0.0
  %7866 = vmatprep.subr.mxu0 0.0
  %7867 = vmatpush1.msra.mxu0 0.0
  %7868 = vmatprep.subr.mxu0 0.0
  %7869 = vmatpush1.msra.mxu0 0.0
  %7870 = vmatprep.subr.mxu0 0.0
  %7871 = vmatpush1.msra.mxu0 0.0
  %7872 = vmatprep.subr.mxu0 0.0
  %7873 = vmatpush1.msra.mxu0 0.0
  %7874 = vmatprep.subr.mxu0 0.0
  %7875 = vmatpush1.msra.mxu0 0.0
  %7876 = vmatprep.subr.mxu0 0.0
  %7877 = vmatpush1.msra.mxu0 0.0
  %7878 = vmatprep.subr.mxu0 0.0
  %7879 = vmatpush1.msra.mxu0 0.0
  %7880 = vmatprep.subr.mxu0 0.0
  %7881 = vmatpush1.msra.mxu0 0.0
  %7882 = vmatprep.subr.mxu0 0.0
  %7883 = vmatpush1.msra.mxu0 0.0
  %7884 = vmatprep.subr.mxu0 0.0
  %7885 = vmatpush1.msra.mxu0 0.0
  %7886 = vmatprep.subr.mxu0 0.0
  %7887 = vmatpush1.msra.mxu0 0.0
  %7888 = vmatprep.subr.mxu0 0.0
  %7889 = vmatpush1.msra.mxu0 0.0
  %7890 = vmatprep.subr.mxu0 0.0
  %7891 = vmatpush1.msra.mxu0 0.0
  %7892 = vmatprep.subr.mxu0 0.0
  %7893 = vmatpush1.msra.mxu0 0.0
  %7894 = vmatprep.subr.mxu0 0.0
  %7895 = vmatpush1.msra.mxu0 0.0
  %7896 = vmatprep.subr.mxu0 0.0
  %7897 = vmatpush1.msra.mxu0 0.0
  %7898 = vmatprep.subr.mxu0 0.0
  %7899 = vmatpush1.msra.mxu0 0.0
  %7900 = vmatprep.subr.mxu0 0.0
  %7901 = vmatpush1.msra.mxu0 0.0
  %7902 = vmatprep.subr.mxu0 0.0
  %7903 = vmatpush1.msra.mxu0 0.0
  %7904 = vmatprep.subr.mxu0 0.0
  %7905 = vmatpush1.msra.mxu0 0.0
  %7906 = vmatprep.subr.mxu0 0.0
  %7907 = vmatpush1.msra.mxu0 0.0
  %7908 = vmatprep.subr.mxu0 0.0
  %7909 = vmatpush1.msra.mxu0 0.0
  %7910 = vmatprep.subr.mxu0 0.0
  %7911 = vmatpush1.msra.mxu0 0.0
  %7912 = vmatprep.subr.mxu0 0.0
  %7913 = vmatpush1.msra.mxu0 0.0
  %7914 = vmatprep.subr.mxu0 0.0
  %7915 = vmatpush1.msra.mxu0 0.0
  %7916 = vmatprep.subr.mxu0 0.0
  %7917 = vmatpush1.msra.mxu0 0.0
  %7918 = vmatprep.subr.mxu0 0.0
  %7919 = vmatpush1.msra.mxu0 0.0
  %7920 = vmatprep.mubr.f32.mxu0 0.0
  %7921 = vmatmul.mubr.f32.gmra.mrb[0].mxu0 %v7389
  %v7922 = vpop.f32.mrb[0].mxu0
  %v7923 = vadd.f32 0.0, %v7922
  %v7924 = vpop.f32.mrb[0].mxu0
  %7925 = vmatprep.mubr.f32.mxu0 0.0
  %7926 = vmatmul.mubr.f32.gmra.mrb[0].mxu0 %v7392
  %v7927 = vpop.f32.mrb[0].mxu0
  %v7928 = vadd.f32 0.0, %v7927
  %v7929 = vpop.f32.mrb[0].mxu0
  %7930 = vmatprep.mubr.f32.mxu0 0.0
  %7931 = vmatmul.mubr.f32.gmra.mrb[0].mxu0 %v7395
  %v7932 = vpop.f32.mrb[0].mxu0
  %v7933 = vadd.f32 0.0, %v7932
  %v7934 = vpop.f32.mrb[0].mxu0
  %7935 = vmatprep.mubr.f32.mxu0 0.0
  %7936 = vmatmul.mubr.f32.gmra.mrb[0].mxu0 %v7398
  %v7937 = vpop.f32.mrb[0].mxu0
  %v7938 = vadd.f32 0.0, %v7937
  %v7939 = vpop.f32.mrb[0].mxu0
  %7940 = vmatprep.mubr.f32.mxu0 0.0
  %7941 = vmatmul.mubr.f32.gmra.mrb[0].mxu0 %v7401
  %v7942 = vpop.f32.mrb[0].mxu0
  %v7943 = vadd.f32 0.0, %v7942
  %v7944 = vpop.f32.mrb[0].mxu0
  %7945 = vmatprep.mubr.f32.mxu0 0.0
  %7946 = vmatmul.mubr.f32.gmra.mrb[0].mxu0 %v7404
  %v7947 = vpop.f32.mrb[0].mxu0
  %v7948 = vadd.f32 0.0, %v7947
  %v7949 = vpop.f32.mrb[0].mxu0
  %7950 = vmatprep.mubr.f32.mxu0 0.0
  %7951 = vmatmul.mubr.f32.gmra.mrb[0].mxu0 %v7407
  %v7952 = vpop.f32.mrb[0].mxu0
  %v7953 = vadd.f32 0.0, %v7952
  %v7954 = vpop.f32.mrb[0].mxu0
  %7955 = vmatprep.mubr.f32.mxu0 0.0
  %7956 = vmatmul.mubr.f32.gmra.mrb[0].mxu0 %v7410
  %v7957 = vpop.f32.mrb[0].mxu0
  %v7958 = vadd.f32 0.0, %v7957
  %v7959 = vpop.f32.mrb[0].mxu0
  %7960 = vdwg.mxu0
  %s7961 = scalar_lea.vmem %s6, 192
  %v7962 = vld [vmem:[%s7961] sm:$0xff]
  %v7963 = vld [vmem:[%s7961 + $0x8] sm:$0xff]
  %v7964 = vld [vmem:[%s7961 + $0x10] sm:$0xff]
  %v7965 = vld [vmem:[%s7961 + $0x18] sm:$0xff]
  %v7966 = vld [vmem:[%s7961 + $0x20] sm:$0xff]
  %v7967 = vld [vmem:[%s7961 + $0x28] sm:$0xff]
  %v7968 = vld [vmem:[%s7961 + $0x30] sm:$0xff]
  %v7969 = vld [vmem:[%s7961 + $0x38] sm:$0xff]
  %v7970 = vmul.f32 %v7962, %v7923
  %v7971 = vmul.f32 %v7963, %v7928
  %v7972 = vmul.f32 %v7964, %v7933
  %v7973 = vmul.f32 %v7965, %v7938
  %v7974 = vmul.f32 %v7966, %v7943
  %v7975 = vmul.f32 %v7967, %v7948
  %v7976 = vmul.f32 %v7968, %v7953
  %v7977 = vmul.f32 %v7969, %v7958
  %v7978 = vsel %vm7536, %v7970, 0.0
  %v7979 = vsel %vm7536, %v7971, 0.0
  %v7980 = vadd.f32 %v7978, %v7979
  %v7981 = vsel %vm7536, %v7972, 0.0
  %v7982 = vadd.f32 %v7980, %v7981
  %v7983 = vsel %vm7536, %v7973, 0.0
  %v7984 = vadd.f32 %v7982, %v7983
  %v7985 = vsel %vm7536, %v7974, 0.0
  %v7986 = vadd.f32 %v7984, %v7985
  %v7987 = vsel %vm7536, %v7975, 0.0
  %v7988 = vadd.f32 %v7986, %v7987
  %v7989 = vsel %vm7536, %v7976, 0.0
  %v7990 = vadd.f32 %v7988, %v7989
  %v7991 = vsel %vm7536, %v7977, 0.0
  %v7992 = vadd.f32 %v7990, %v7991
  %v7993 = vrot.slane %v7992, 4
  %v7994 = vadd.f32 %v7992, %v7993
  %v7995 = vrot.slane %v7994, 2
  %v7996 = vadd.f32 %v7994, %v7995
  %v7997 = vrot.slane %v7996, 1
  %v7998 = vadd.f32 %v7996, %v7997
  %v7999 = vadd.f32 %v7852, %v7998
  %v8000 = vld [vmem:[#allocation2] sm:$0x1]
  %v8001 = vadd.f32 %v7999, %v8000
  %v8002 = vxor.u32 %v8001, 2147483648
  %v8003 = vmul.f32 %v8002, 1.442695
  %v8004 = vpow.pop %v8003
  %v8005 = vadd.f32 %v8004, 1.0
  %v8006 = vrcp.pop %v8005
  %v8007 = vmul.f32 1.0, %v8006
  %vm8008 = vcmask 0
  %8009 = vst.msk [vmem:[%s9] sm:$0x1] %vm8008, %v8007
  %v8011 = vsel %vm833, %v7352, 0
  %v8014 = vsel %vm833, %v7353, 0
  %v8017 = vsel %vm833, %v7354, 0
  %v8020 = vsel %vm833, %v7355, 0
  %v8023 = vsel %vm833, %v7356, 0
  %v8026 = vsel %vm833, %v7357, 0
  %v8029 = vsel %vm833, %v7358, 0
  %v8032 = vsel %vm833, %v7359, 0
  %8034 = vmatprep.subr.mxu0 0.0
  %8035 = vmatpush1.msra.mxu0 %v7413
  %8036 = vmatprep.subr.mxu0 0.0
  %8037 = vmatpush1.msra.mxu0 0.0
  %8038 = vmatprep.subr.mxu0 0.0
  %8039 = vmatpush1.msra.mxu0 0.0
  %8040 = vmatprep.subr.mxu0 0.0
  %8041 = vmatpush1.msra.mxu0 0.0
  %8042 = vmatprep.subr.mxu0 0.0
  %8043 = vmatpush1.msra.mxu0 0.0
  %8044 = vmatprep.subr.mxu0 0.0
  %8045 = vmatpush1.msra.mxu0 0.0
  %8046 = vmatprep.subr.mxu0 0.0
  %8047 = vmatpush1.msra.mxu0 0.0
  %8048 = vmatprep.subr.mxu0 0.0
  %8049 = vmatpush1.msra.mxu0 0.0
  %8050 = vmatprep.subr.mxu0 0.0
  %8051 = vmatpush1.msra.mxu0 0.0
  %8052 = vmatprep.subr.mxu0 0.0
  %8053 = vmatpush1.msra.mxu0 0.0
  %8054 = vmatprep.subr.mxu0 0.0
  %8055 = vmatpush1.msra.mxu0 0.0
  %8056 = vmatprep.subr.mxu0 0.0
  %8057 = vmatpush1.msra.mxu0 0.0
  %8058 = vmatprep.subr.mxu0 0.0
  %8059 = vmatpush1.msra.mxu0 0.0
  %8060 = vmatprep.subr.mxu0 0.0
  %8061 = vmatpush1.msra.mxu0 0.0
  %8062 = vmatprep.subr.mxu0 0.0
  %8063 = vmatpush1.msra.mxu0 0.0
  %8064 = vmatprep.subr.mxu0 0.0
  %8065 = vmatpush1.msra.mxu0 0.0
  %8066 = vmatprep.subr.mxu0 0.0
  %8067 = vmatpush1.msra.mxu0 0.0
  %8068 = vmatprep.subr.mxu0 0.0
  %8069 = vmatpush1.msra.mxu0 0.0
  %8070 = vmatprep.subr.mxu0 0.0
  %8071 = vmatpush1.msra.mxu0 0.0
  %8072 = vmatprep.subr.mxu0 0.0
  %8073 = vmatpush1.msra.mxu0 0.0
  %8074 = vmatprep.subr.mxu0 0.0
  %8075 = vmatpush1.msra.mxu0 0.0
  %8076 = vmatprep.subr.mxu0 0.0
  %8077 = vmatpush1.msra.mxu0 0.0
  %8078 = vmatprep.subr.mxu0 0.0
  %8079 = vmatpush1.msra.mxu0 0.0
  %8080 = vmatprep.subr.mxu0 0.0
  %8081 = vmatpush1.msra.mxu0 0.0
  %8082 = vmatprep.subr.mxu0 0.0
  %8083 = vmatpush1.msra.mxu0 0.0
  %8084 = vmatprep.subr.mxu0 0.0
  %8085 = vmatpush1.msra.mxu0 0.0
  %8086 = vmatprep.subr.mxu0 0.0
  %8087 = vmatpush1.msra.mxu0 0.0
  %8088 = vmatprep.subr.mxu0 0.0
  %8089 = vmatpush1.msra.mxu0 0.0
  %8090 = vmatprep.subr.mxu0 0.0
  %8091 = vmatpush1.msra.mxu0 0.0
  %8092 = vmatprep.subr.mxu0 0.0
  %8093 = vmatpush1.msra.mxu0 0.0
  %8094 = vmatprep.subr.mxu0 0.0
  %8095 = vmatpush1.msra.mxu0 0.0
  %8096 = vmatprep.subr.mxu0 0.0
  %8097 = vmatpush1.msra.mxu0 0.0
  %8098 = vmatprep.mubr.f32.mxu0 0.0
  %8099 = vmatmul.mubr.f32.gmra.mrb[0].mxu0 %v8011
  %v8100 = vpop.f32.mrb[0].mxu0
  %v8101 = vadd.f32 0.0, %v8100
  %v8102 = vpop.f32.mrb[0].mxu0
  %8103 = vmatprep.mubr.f32.mxu0 0.0
  %8104 = vmatmul.mubr.f32.gmra.mrb[0].mxu0 %v8014
  %v8105 = vpop.f32.mrb[0].mxu0
  %v8106 = vadd.f32 0.0, %v8105
  %v8107 = vpop.f32.mrb[0].mxu0
  %8108 = vmatprep.mubr.f32.mxu0 0.0
  %8109 = vmatmul.mubr.f32.gmra.mrb[0].mxu0 %v8017
  %v8110 = vpop.f32.mrb[0].mxu0
  %v8111 = vadd.f32 0.0, %v8110
  %v8112 = vpop.f32.mrb[0].mxu0
  %8113 = vmatprep.mubr.f32.mxu0 0.0
  %8114 = vmatmul.mubr.f32.gmra.mrb[0].mxu0 %v8020
  %v8115 = vpop.f32.mrb[0].mxu0
  %v8116 = vadd.f32 0.0, %v8115
  %v8117 = vpop.f32.mrb[0].mxu0
  %8118 = vmatprep.mubr.f32.mxu0 0.0
  %8119 = vmatmul.mubr.f32.gmra.mrb[0].mxu0 %v8023
  %v8120 = vpop.f32.mrb[0].mxu0
  %v8121 = vadd.f32 0.0, %v8120
  %v8122 = vpop.f32.mrb[0].mxu0
  %8123 = vmatprep.mubr.f32.mxu0 0.0
  %8124 = vmatmul.mubr.f32.gmra.mrb[0].mxu0 %v8026
  %v8125 = vpop.f32.mrb[0].mxu0
  %v8126 = vadd.f32 0.0, %v8125
  %v8127 = vpop.f32.mrb[0].mxu0
  %8128 = vmatprep.mubr.f32.mxu0 0.0
  %8129 = vmatmul.mubr.f32.gmra.mrb[0].mxu0 %v8029
  %v8130 = vpop.f32.mrb[0].mxu0
  %v8131 = vadd.f32 0.0, %v8130
  %v8132 = vpop.f32.mrb[0].mxu0
  %8133 = vmatprep.mubr.f32.mxu0 0.0
  %8134 = vmatmul.mubr.f32.gmra.mrb[0].mxu0 %v8032
  %v8135 = vpop.f32.mrb[0].mxu0
  %v8136 = vadd.f32 0.0, %v8135
  %v8137 = vpop.f32.mrb[0].mxu0
  %8138 = vdwg.mxu0
  %v8139 = vld [vmem:[%s6] sm:$0xff]
  %v8140 = vld [vmem:[%s6 + $0x8] sm:$0xff]
  %v8141 = vld [vmem:[%s6 + $0x10] sm:$0xff]
  %v8142 = vld [vmem:[%s6 + $0x18] sm:$0xff]
  %v8143 = vld [vmem:[%s6 + $0x20] sm:$0xff]
  %v8144 = vld [vmem:[%s6 + $0x28] sm:$0xff]
  %v8145 = vld [vmem:[%s6 + $0x30] sm:$0xff]
  %v8146 = vld [vmem:[%s6 + $0x38] sm:$0xff]
  %v8147 = vmul.f32 %v8139, %v8101
  %v8148 = vmul.f32 %v8140, %v8106
  %v8149 = vmul.f32 %v8141, %v8111
  %v8150 = vmul.f32 %v8142, %v8116
  %v8151 = vmul.f32 %v8143, %v8121
  %v8152 = vmul.f32 %v8144, %v8126
  %v8153 = vmul.f32 %v8145, %v8131
  %v8154 = vmul.f32 %v8146, %v8136
  %v8155 = vsel %vm7536, %v8147, 0.0
  %v8156 = vsel %vm7536, %v8148, 0.0
  %v8157 = vadd.f32 %v8155, %v8156
  %v8158 = vsel %vm7536, %v8149, 0.0
  %v8159 = vadd.f32 %v8157, %v8158
  %v8160 = vsel %vm7536, %v8150, 0.0
  %v8161 = vadd.f32 %v8159, %v8160
  %v8162 = vsel %vm7536, %v8151, 0.0
  %v8163 = vadd.f32 %v8161, %v8162
  %v8164 = vsel %vm7536, %v8152, 0.0
  %v8165 = vadd.f32 %v8163, %v8164
  %v8166 = vsel %vm7536, %v8153, 0.0
  %v8167 = vadd.f32 %v8165, %v8166
  %v8168 = vsel %vm7536, %v8154, 0.0
  %v8169 = vadd.f32 %v8167, %v8168
  %v8170 = vrot.slane %v8169, 4
  %v8171 = vadd.f32 %v8169, %v8170
  %v8172 = vrot.slane %v8171, 2
  %v8173 = vadd.f32 %v8171, %v8172
  %v8174 = vrot.slane %v8173, 1
  %v8175 = vadd.f32 %v8173, %v8174
  %v8176 = vadd.f32 %v8175, 0.0
  %8177 = vmatprep.subr.mxu0 0.0
  %8178 = vmatpush1.msra.mxu0 %v7560
  %8179 = vmatprep.subr.mxu0 0.0
  %8180 = vmatpush1.msra.mxu0 0.0
  %8181 = vmatprep.subr.mxu0 0.0
  %8182 = vmatpush1.msra.mxu0 0.0
  %8183 = vmatprep.subr.mxu0 0.0
  %8184 = vmatpush1.msra.mxu0 0.0
  %8185 = vmatprep.subr.mxu0 0.0
  %8186 = vmatpush1.msra.mxu0 0.0
  %8187 = vmatprep.subr.mxu0 0.0
  %8188 = vmatpush1.msra.mxu0 0.0
  %8189 = vmatprep.subr.mxu0 0.0
  %8190 = vmatpush1.msra.mxu0 0.0
  %8191 = vmatprep.subr.mxu0 0.0
  %8192 = vmatpush1.msra.mxu0 0.0
  %8193 = vmatprep.subr.mxu0 0.0
  %8194 = vmatpush1.msra.mxu0 0.0
  %8195 = vmatprep.subr.mxu0 0.0
  %8196 = vmatpush1.msra.mxu0 0.0
  %8197 = vmatprep.subr.mxu0 0.0
  %8198 = vmatpush1.msra.mxu0 0.0
  %8199 = vmatprep.subr.mxu0 0.0
  %8200 = vmatpush1.msra.mxu0 0.0
  %8201 = vmatprep.subr.mxu0 0.0
  %8202 = vmatpush1.msra.mxu0 0.0
  %8203 = vmatprep.subr.mxu0 0.0
  %8204 = vmatpush1.msra.mxu0 0.0
  %8205 = vmatprep.subr.mxu0 0.0
  %8206 = vmatpush1.msra.mxu0 0.0
  %8207 = vmatprep.subr.mxu0 0.0
  %8208 = vmatpush1.msra.mxu0 0.0
  %8209 = vmatprep.subr.mxu0 0.0
  %8210 = vmatpush1.msra.mxu0 0.0
  %8211 = vmatprep.subr.mxu0 0.0
  %8212 = vmatpush1.msra.mxu0 0.0
  %8213 = vmatprep.subr.mxu0 0.0
  %8214 = vmatpush1.msra.mxu0 0.0
  %8215 = vmatprep.subr.mxu0 0.0
  %8216 = vmatpush1.msra.mxu0 0.0
  %8217 = vmatprep.subr.mxu0 0.0
  %8218 = vmatpush1.msra.mxu0 0.0
  %8219 = vmatprep.subr.mxu0 0.0
  %8220 = vmatpush1.msra.mxu0 0.0
  %8221 = vmatprep.subr.mxu0 0.0
  %8222 = vmatpush1.msra.mxu0 0.0
  %8223 = vmatprep.subr.mxu0 0.0
  %8224 = vmatpush1.msra.mxu0 0.0
  %8225 = vmatprep.subr.mxu0 0.0
  %8226 = vmatpush1.msra.mxu0 0.0
  %8227 = vmatprep.subr.mxu0 0.0
  %8228 = vmatpush1.msra.mxu0 0.0
  %8229 = vmatprep.subr.mxu0 0.0
  %8230 = vmatpush1.msra.mxu0 0.0
  %8231 = vmatprep.subr.mxu0 0.0
  %8232 = vmatpush1.msra.mxu0 0.0
  %8233 = vmatprep.subr.mxu0 0.0
  %8234 = vmatpush1.msra.mxu0 0.0
  %8235 = vmatprep.subr.mxu0 0.0
  %8236 = vmatpush1.msra.mxu0 0.0
  %8237 = vmatprep.subr.mxu0 0.0
  %8238 = vmatpush1.msra.mxu0 0.0
  %8239 = vmatprep.subr.mxu0 0.0
  %8240 = vmatpush1.msra.mxu0 0.0
  %8241 = vmatprep.mubr.f32.mxu0 0.0
  %8242 = vmatmul.mubr.f32.gmra.mrb[0].mxu0 %v8011
  %v8243 = vpop.f32.mrb[0].mxu0
  %v8244 = vadd.f32 0.0, %v8243
  %v8245 = vpop.f32.mrb[0].mxu0
  %8246 = vmatprep.mubr.f32.mxu0 0.0
  %8247 = vmatmul.mubr.f32.gmra.mrb[0].mxu0 %v8014
  %v8248 = vpop.f32.mrb[0].mxu0
  %v8249 = vadd.f32 0.0, %v8248
  %v8250 = vpop.f32.mrb[0].mxu0
  %8251 = vmatprep.mubr.f32.mxu0 0.0
  %8252 = vmatmul.mubr.f32.gmra.mrb[0].mxu0 %v8017
  %v8253 = vpop.f32.mrb[0].mxu0
  %v8254 = vadd.f32 0.0, %v8253
  %v8255 = vpop.f32.mrb[0].mxu0
  %8256 = vmatprep.mubr.f32.mxu0 0.0
  %8257 = vmatmul.mubr.f32.gmra.mrb[0].mxu0 %v8020
  %v8258 = vpop.f32.mrb[0].mxu0
  %v8259 = vadd.f32 0.0, %v8258
  %v8260 = vpop.f32.mrb[0].mxu0
  %8261 = vmatprep.mubr.f32.mxu0 0.0
  %8262 = vmatmul.mubr.f32.gmra.mrb[0].mxu0 %v8023
  %v8263 = vpop.f32.mrb[0].mxu0
  %v8264 = vadd.f32 0.0, %v8263
  %v8265 = vpop.f32.mrb[0].mxu0
  %8266 = vmatprep.mubr.f32.mxu0 0.0
  %8267 = vmatmul.mubr.f32.gmra.mrb[0].mxu0 %v8026
  %v8268 = vpop.f32.mrb[0].mxu0
  %v8269 = vadd.f32 0.0, %v8268
  %v8270 = vpop.f32.mrb[0].mxu0
  %8271 = vmatprep.mubr.f32.mxu0 0.0
  %8272 = vmatmul.mubr.f32.gmra.mrb[0].mxu0 %v8029
  %v8273 = vpop.f32.mrb[0].mxu0
  %v8274 = vadd.f32 0.0, %v8273
  %v8275 = vpop.f32.mrb[0].mxu0
  %8276 = vmatprep.mubr.f32.mxu0 0.0
  %8277 = vmatmul.mubr.f32.gmra.mrb[0].mxu0 %v8032
  %v8278 = vpop.f32.mrb[0].mxu0
  %v8279 = vadd.f32 0.0, %v8278
  %v8280 = vpop.f32.mrb[0].mxu0
  %8281 = vdwg.mxu0
  %v8282 = vld [vmem:[%s7667] sm:$0xff]
  %v8283 = vld [vmem:[%s7667 + $0x8] sm:$0xff]
  %v8284 = vld [vmem:[%s7667 + $0x10] sm:$0xff]
  %v8285 = vld [vmem:[%s7667 + $0x18] sm:$0xff]
  %v8286 = vld [vmem:[%s7667 + $0x20] sm:$0xff]
  %v8287 = vld [vmem:[%s7667 + $0x28] sm:$0xff]
  %v8288 = vld [vmem:[%s7667 + $0x30] sm:$0xff]
  %v8289 = vld [vmem:[%s7667 + $0x38] sm:$0xff]
  %v8290 = vmul.f32 %v8282, %v8244
  %v8291 = vmul.f32 %v8283, %v8249
  %v8292 = vmul.f32 %v8284, %v8254
  %v8293 = vmul.f32 %v8285, %v8259
  %v8294 = vmul.f32 %v8286, %v8264
  %v8295 = vmul.f32 %v8287, %v8269
  %v8296 = vmul.f32 %v8288, %v8274
  %v8297 = vmul.f32 %v8289, %v8279
  %v8298 = vsel %vm7536, %v8290, 0.0
  %v8299 = vsel %vm7536, %v8291, 0.0
  %v8300 = vadd.f32 %v8298, %v8299
  %v8301 = vsel %vm7536, %v8292, 0.0
  %v8302 = vadd.f32 %v8300, %v8301
  %v8303 = vsel %vm7536, %v8293, 0.0
  %v8304 = vadd.f32 %v8302, %v8303
  %v8305 = vsel %vm7536, %v8294, 0.0
  %v8306 = vadd.f32 %v8304, %v8305
  %v8307 = vsel %vm7536, %v8295, 0.0
  %v8308 = vadd.f32 %v8306, %v8307
  %v8309 = vsel %vm7536, %v8296, 0.0
  %v8310 = vadd.f32 %v8308, %v8309
  %v8311 = vsel %vm7536, %v8297, 0.0
  %v8312 = vadd.f32 %v8310, %v8311
  %v8313 = vrot.slane %v8312, 4
  %v8314 = vadd.f32 %v8312, %v8313
  %v8315 = vrot.slane %v8314, 2
  %v8316 = vadd.f32 %v8314, %v8315
  %v8317 = vrot.slane %v8316, 1
  %v8318 = vadd.f32 %v8316, %v8317
  %v8319 = vadd.f32 %v8176, %v8318
  %8320 = vmatprep.subr.mxu0 0.0
  %8321 = vmatpush1.msra.mxu0 %v7707
  %8322 = vmatprep.subr.mxu0 0.0
  %8323 = vmatpush1.msra.mxu0 0.0
  %8324 = vmatprep.subr.mxu0 0.0
  %8325 = vmatpush1.msra.mxu0 0.0
  %8326 = vmatprep.subr.mxu0 0.0
  %8327 = vmatpush1.msra.mxu0 0.0
  %8328 = vmatprep.subr.mxu0 0.0
  %8329 = vmatpush1.msra.mxu0 0.0
  %8330 = vmatprep.subr.mxu0 0.0
  %8331 = vmatpush1.msra.mxu0 0.0
  %8332 = vmatprep.subr.mxu0 0.0
  %8333 = vmatpush1.msra.mxu0 0.0
  %8334 = vmatprep.subr.mxu0 0.0
  %8335 = vmatpush1.msra.mxu0 0.0
  %8336 = vmatprep.subr.mxu0 0.0
  %8337 = vmatpush1.msra.mxu0 0.0
  %8338 = vmatprep.subr.mxu0 0.0
  %8339 = vmatpush1.msra.mxu0 0.0
  %8340 = vmatprep.subr.mxu0 0.0
  %8341 = vmatpush1.msra.mxu0 0.0
  %8342 = vmatprep.subr.mxu0 0.0
  %8343 = vmatpush1.msra.mxu0 0.0
  %8344 = vmatprep.subr.mxu0 0.0
  %8345 = vmatpush1.msra.mxu0 0.0
  %8346 = vmatprep.subr.mxu0 0.0
  %8347 = vmatpush1.msra.mxu0 0.0
  %8348 = vmatprep.subr.mxu0 0.0
  %8349 = vmatpush1.msra.mxu0 0.0
  %8350 = vmatprep.subr.mxu0 0.0
  %8351 = vmatpush1.msra.mxu0 0.0
  %8352 = vmatprep.subr.mxu0 0.0
  %8353 = vmatpush1.msra.mxu0 0.0
  %8354 = vmatprep.subr.mxu0 0.0
  %8355 = vmatpush1.msra.mxu0 0.0
  %8356 = vmatprep.subr.mxu0 0.0
  %8357 = vmatpush1.msra.mxu0 0.0
  %8358 = vmatprep.subr.mxu0 0.0
  %8359 = vmatpush1.msra.mxu0 0.0
  %8360 = vmatprep.subr.mxu0 0.0
  %8361 = vmatpush1.msra.mxu0 0.0
  %8362 = vmatprep.subr.mxu0 0.0
  %8363 = vmatpush1.msra.mxu0 0.0
  %8364 = vmatprep.subr.mxu0 0.0
  %8365 = vmatpush1.msra.mxu0 0.0
  %8366 = vmatprep.subr.mxu0 0.0
  %8367 = vmatpush1.msra.mxu0 0.0
  %8368 = vmatprep.subr.mxu0 0.0
  %8369 = vmatpush1.msra.mxu0 0.0
  %8370 = vmatprep.subr.mxu0 0.0
  %8371 = vmatpush1.msra.mxu0 0.0
  %8372 = vmatprep.subr.mxu0 0.0
  %8373 = vmatpush1.msra.mxu0 0.0
  %8374 = vmatprep.subr.mxu0 0.0
  %8375 = vmatpush1.msra.mxu0 0.0
  %8376 = vmatprep.subr.mxu0 0.0
  %8377 = vmatpush1.msra.mxu0 0.0
  %8378 = vmatprep.subr.mxu0 0.0
  %8379 = vmatpush1.msra.mxu0 0.0
  %8380 = vmatprep.subr.mxu0 0.0
  %8381 = vmatpush1.msra.mxu0 0.0
  %8382 = vmatprep.subr.mxu0 0.0
  %8383 = vmatpush1.msra.mxu0 0.0
  %8384 = vmatprep.mubr.f32.mxu0 0.0
  %8385 = vmatmul.mubr.f32.gmra.mrb[0].mxu0 %v8011
  %v8386 = vpop.f32.mrb[0].mxu0
  %v8387 = vadd.f32 0.0, %v8386
  %v8388 = vpop.f32.mrb[0].mxu0
  %8389 = vmatprep.mubr.f32.mxu0 0.0
  %8390 = vmatmul.mubr.f32.gmra.mrb[0].mxu0 %v8014
  %v8391 = vpop.f32.mrb[0].mxu0
  %v8392 = vadd.f32 0.0, %v8391
  %v8393 = vpop.f32.mrb[0].mxu0
  %8394 = vmatprep.mubr.f32.mxu0 0.0
  %8395 = vmatmul.mubr.f32.gmra.mrb[0].mxu0 %v8017
  %v8396 = vpop.f32.mrb[0].mxu0
  %v8397 = vadd.f32 0.0, %v8396
  %v8398 = vpop.f32.mrb[0].mxu0
  %8399 = vmatprep.mubr.f32.mxu0 0.0
  %8400 = vmatmul.mubr.f32.gmra.mrb[0].mxu0 %v8020
  %v8401 = vpop.f32.mrb[0].mxu0
  %v8402 = vadd.f32 0.0, %v8401
  %v8403 = vpop.f32.mrb[0].mxu0
  %8404 = vmatprep.mubr.f32.mxu0 0.0
  %8405 = vmatmul.mubr.f32.gmra.mrb[0].mxu0 %v8023
  %v8406 = vpop.f32.mrb[0].mxu0
  %v8407 = vadd.f32 0.0, %v8406
  %v8408 = vpop.f32.mrb[0].mxu0
  %8409 = vmatprep.mubr.f32.mxu0 0.0
  %8410 = vmatmul.mubr.f32.gmra.mrb[0].mxu0 %v8026
  %v8411 = vpop.f32.mrb[0].mxu0
  %v8412 = vadd.f32 0.0, %v8411
  %v8413 = vpop.f32.mrb[0].mxu0
  %8414 = vmatprep.mubr.f32.mxu0 0.0
  %8415 = vmatmul.mubr.f32.gmra.mrb[0].mxu0 %v8029
  %v8416 = vpop.f32.mrb[0].mxu0
  %v8417 = vadd.f32 0.0, %v8416
  %v8418 = vpop.f32.mrb[0].mxu0
  %8419 = vmatprep.mubr.f32.mxu0 0.0
  %8420 = vmatmul.mubr.f32.gmra.mrb[0].mxu0 %v8032
  %v8421 = vpop.f32.mrb[0].mxu0
  %v8422 = vadd.f32 0.0, %v8421
  %v8423 = vpop.f32.mrb[0].mxu0
  %8424 = vdwg.mxu0
  %v8425 = vld [vmem:[%s7814] sm:$0xff]
  %v8426 = vld [vmem:[%s7814 + $0x8] sm:$0xff]
  %v8427 = vld [vmem:[%s7814 + $0x10] sm:$0xff]
  %v8428 = vld [vmem:[%s7814 + $0x18] sm:$0xff]
  %v8429 = vld [vmem:[%s7814 + $0x20] sm:$0xff]
  %v8430 = vld [vmem:[%s7814 + $0x28] sm:$0xff]
  %v8431 = vld [vmem:[%s7814 + $0x30] sm:$0xff]
  %v8432 = vld [vmem:[%s7814 + $0x38] sm:$0xff]
  %v8433 = vmul.f32 %v8425, %v8387
  %v8434 = vmul.f32 %v8426, %v8392
  %v8435 = vmul.f32 %v8427, %v8397
  %v8436 = vmul.f32 %v8428, %v8402
  %v8437 = vmul.f32 %v8429, %v8407
  %v8438 = vmul.f32 %v8430, %v8412
  %v8439 = vmul.f32 %v8431, %v8417
  %v8440 = vmul.f32 %v8432, %v8422
  %v8441 = vsel %vm7536, %v8433, 0.0
  %v8442 = vsel %vm7536, %v8434, 0.0
  %v8443 = vadd.f32 %v8441, %v8442
  %v8444 = vsel %vm7536, %v8435, 0.0
  %v8445 = vadd.f32 %v8443, %v8444
  %v8446 = vsel %vm7536, %v8436, 0.0
  %v8447 = vadd.f32 %v8445, %v8446
  %v8448 = vsel %vm7536, %v8437, 0.0
  %v8449 = vadd.f32 %v8447, %v8448
  %v8450 = vsel %vm7536, %v8438, 0.0
  %v8451 = vadd.f32 %v8449, %v8450
  %v8452 = vsel %vm7536, %v8439, 0.0
  %v8453 = vadd.f32 %v8451, %v8452
  %v8454 = vsel %vm7536, %v8440, 0.0
  %v8455 = vadd.f32 %v8453, %v8454
  %v8456 = vrot.slane %v8455, 4
  %v8457 = vadd.f32 %v8455, %v8456
  %v8458 = vrot.slane %v8457, 2
  %v8459 = vadd.f32 %v8457, %v8458
  %v8460 = vrot.slane %v8459, 1
  %v8461 = vadd.f32 %v8459, %v8460
  %v8462 = vadd.f32 %v8319, %v8461
  %8463 = vmatprep.subr.mxu0 0.0
  %8464 = vmatpush1.msra.mxu0 %v7854
  %8465 = vmatprep.subr.mxu0 0.0
  %8466 = vmatpush1.msra.mxu0 0.0
  %8467 = vmatprep.subr.mxu0 0.0
  %8468 = vmatpush1.msra.mxu0 0.0
  %8469 = vmatprep.subr.mxu0 0.0
  %8470 = vmatpush1.msra.mxu0 0.0
  %8471 = vmatprep.subr.mxu0 0.0
  %8472 = vmatpush1.msra.mxu0 0.0
  %8473 = vmatprep.subr.mxu0 0.0
  %8474 = vmatpush1.msra.mxu0 0.0
  %8475 = vmatprep.subr.mxu0 0.0
  %8476 = vmatpush1.msra.mxu0 0.0
  %8477 = vmatprep.subr.mxu0 0.0
  %8478 = vmatpush1.msra.mxu0 0.0
  %8479 = vmatprep.subr.mxu0 0.0
  %8480 = vmatpush1.msra.mxu0 0.0
  %8481 = vmatprep.subr.mxu0 0.0
  %8482 = vmatpush1.msra.mxu0 0.0
  %8483 = vmatprep.subr.mxu0 0.0
  %8484 = vmatpush1.msra.mxu0 0.0
  %8485 = vmatprep.subr.mxu0 0.0
  %8486 = vmatpush1.msra.mxu0 0.0
  %8487 = vmatprep.subr.mxu0 0.0
  %8488 = vmatpush1.msra.mxu0 0.0
  %8489 = vmatprep.subr.mxu0 0.0
  %8490 = vmatpush1.msra.mxu0 0.0
  %8491 = vmatprep.subr.mxu0 0.0
  %8492 = vmatpush1.msra.mxu0 0.0
  %8493 = vmatprep.subr.mxu0 0.0
  %8494 = vmatpush1.msra.mxu0 0.0
  %8495 = vmatprep.subr.mxu0 0.0
  %8496 = vmatpush1.msra.mxu0 0.0
  %8497 = vmatprep.subr.mxu0 0.0
  %8498 = vmatpush1.msra.mxu0 0.0
  %8499 = vmatprep.subr.mxu0 0.0
  %8500 = vmatpush1.msra.mxu0 0.0
  %8501 = vmatprep.subr.mxu0 0.0
  %8502 = vmatpush1.msra.mxu0 0.0
  %8503 = vmatprep.subr.mxu0 0.0
  %8504 = vmatpush1.msra.mxu0 0.0
  %8505 = vmatprep.subr.mxu0 0.0
  %8506 = vmatpush1.msra.mxu0 0.0
  %8507 = vmatprep.subr.mxu0 0.0
  %8508 = vmatpush1.msra.mxu0 0.0
  %8509 = vmatprep.subr.mxu0 0.0
  %8510 = vmatpush1.msra.mxu0 0.0
  %8511 = vmatprep.subr.mxu0 0.0
  %8512 = vmatpush1.msra.mxu0 0.0
  %8513 = vmatprep.subr.mxu0 0.0
  %8514 = vmatpush1.msra.mxu0 0.0
  %8515 = vmatprep.subr.mxu0 0.0
  %8516 = vmatpush1.msra.mxu0 0.0
  %8517 = vmatprep.subr.mxu0 0.0
  %8518 = vmatpush1.msra.mxu0 0.0
  %8519 = vmatprep.subr.mxu0 0.0
  %8520 = vmatpush1.msra.mxu0 0.0
  %8521 = vmatprep.subr.mxu0 0.0
  %8522 = vmatpush1.msra.mxu0 0.0
  %8523 = vmatprep.subr.mxu0 0.0
  %8524 = vmatpush1.msra.mxu0 0.0
  %8525 = vmatprep.subr.mxu0 0.0
  %8526 = vmatpush1.msra.mxu0 0.0
  %8527 = vmatprep.mubr.f32.mxu0 0.0
  %8528 = vmatmul.mubr.f32.gmra.mrb[0].mxu0 %v8011
  %v8529 = vpop.f32.mrb[0].mxu0
  %v8530 = vadd.f32 0.0, %v8529
  %v8531 = vpop.f32.mrb[0].mxu0
  %8532 = vmatprep.mubr.f32.mxu0 0.0
  %8533 = vmatmul.mubr.f32.gmra.mrb[0].mxu0 %v8014
  %v8534 = vpop.f32.mrb[0].mxu0
  %v8535 = vadd.f32 0.0, %v8534
  %v8536 = vpop.f32.mrb[0].mxu0
  %8537 = vmatprep.mubr.f32.mxu0 0.0
  %8538 = vmatmul.mubr.f32.gmra.mrb[0].mxu0 %v8017
  %v8539 = vpop.f32.mrb[0].mxu0
  %v8540 = vadd.f32 0.0, %v8539
  %v8541 = vpop.f32.mrb[0].mxu0
  %8542 = vmatprep.mubr.f32.mxu0 0.0
  %8543 = vmatmul.mubr.f32.gmra.mrb[0].mxu0 %v8020
  %v8544 = vpop.f32.mrb[0].mxu0
  %v8545 = vadd.f32 0.0, %v8544
  %v8546 = vpop.f32.mrb[0].mxu0
  %8547 = vmatprep.mubr.f32.mxu0 0.0
  %8548 = vmatmul.mubr.f32.gmra.mrb[0].mxu0 %v8023
  %v8549 = vpop.f32.mrb[0].mxu0
  %v8550 = vadd.f32 0.0, %v8549
  %v8551 = vpop.f32.mrb[0].mxu0
  %8552 = vmatprep.mubr.f32.mxu0 0.0
  %8553 = vmatmul.mubr.f32.gmra.mrb[0].mxu0 %v8026
  %v8554 = vpop.f32.mrb[0].mxu0
  %v8555 = vadd.f32 0.0, %v8554
  %v8556 = vpop.f32.mrb[0].mxu0
  %8557 = vmatprep.mubr.f32.mxu0 0.0
  %8558 = vmatmul.mubr.f32.gmra.mrb[0].mxu0 %v8029
  %v8559 = vpop.f32.mrb[0].mxu0
  %v8560 = vadd.f32 0.0, %v8559
  %v8561 = vpop.f32.mrb[0].mxu0
  %8562 = vmatprep.mubr.f32.mxu0 0.0
  %8563 = vmatmul.mubr.f32.gmra.mrb[0].mxu0 %v8032
  %v8564 = vpop.f32.mrb[0].mxu0
  %v8565 = vadd.f32 0.0, %v8564
  %v8566 = vpop.f32.mrb[0].mxu0
  %8567 = vdwg.mxu0
  %v8568 = vld [vmem:[%s7961] sm:$0xff]
  %v8569 = vld [vmem:[%s7961 + $0x8] sm:$0xff]
  %v8570 = vld [vmem:[%s7961 + $0x10] sm:$0xff]
  %v8571 = vld [vmem:[%s7961 + $0x18] sm:$0xff]
  %v8572 = vld [vmem:[%s7961 + $0x20] sm:$0xff]
  %v8573 = vld [vmem:[%s7961 + $0x28] sm:$0xff]
  %v8574 = vld [vmem:[%s7961 + $0x30] sm:$0xff]
  %v8575 = vld [vmem:[%s7961 + $0x38] sm:$0xff]
  %v8576 = vmul.f32 %v8568, %v8530
  %v8577 = vmul.f32 %v8569, %v8535
  %v8578 = vmul.f32 %v8570, %v8540
  %v8579 = vmul.f32 %v8571, %v8545
  %v8580 = vmul.f32 %v8572, %v8550
  %v8581 = vmul.f32 %v8573, %v8555
  %v8582 = vmul.f32 %v8574, %v8560
  %v8583 = vmul.f32 %v8575, %v8565
  %v8584 = vsel %vm7536, %v8576, 0.0
  %v8585 = vsel %vm7536, %v8577, 0.0
  %v8586 = vadd.f32 %v8584, %v8585
  %v8587 = vsel %vm7536, %v8578, 0.0
  %v8588 = vadd.f32 %v8586, %v8587
  %v8589 = vsel %vm7536, %v8579, 0.0
  %v8590 = vadd.f32 %v8588, %v8589
  %v8591 = vsel %vm7536, %v8580, 0.0
  %v8592 = vadd.f32 %v8590, %v8591
  %v8593 = vsel %vm7536, %v8581, 0.0
  %v8594 = vadd.f32 %v8592, %v8593
  %v8595 = vsel %vm7536, %v8582, 0.0
  %v8596 = vadd.f32 %v8594, %v8595
  %v8597 = vsel %vm7536, %v8583, 0.0
  %v8598 = vadd.f32 %v8596, %v8597
  %v8599 = vrot.slane %v8598, 4
  %v8600 = vadd.f32 %v8598, %v8599
  %v8601 = vrot.slane %v8600, 2
  %v8602 = vadd.f32 %v8600, %v8601
  %v8603 = vrot.slane %v8602, 1
  %v8604 = vadd.f32 %v8602, %v8603
  %v8605 = vadd.f32 %v8462, %v8604
  %v8606 = vld [vmem:[#allocation2] sm:$0x1]
  %v8607 = vadd.f32 %v8605, %v8606
  %v8608 = vxor.u32 %v8607, 2147483648
  %v8609 = vmul.f32 %v8608, 1.442695
  %v8610 = vpow.pop %v8609
  %v8611 = vadd.f32 %v8610, 1.0
  %v8612 = vrcp.pop %v8611
  %v8613 = vmul.f32 1.0, %v8612
  %s8614 = scalar_lea.vmem %s9, 1
  %8615 = vst.msk [vmem:[%s8614] sm:$0x1] %vm8008, %v8613
  // Predicated region
  $region34: #{discriminator_latent_forward.1} parent=0 // pred_check
    _
  $region35: #{discriminator_latent_forward.1} parent=0 // pred_check_branch
    %8617 = sbr.rel (0) target = $region37
  $region36: #{discriminator_latent_forward.1} parent=0 // pred_region
    _
  $region37: #{discriminator_latent_forward.1} parent=0 // pred_fallthru
    _
  // Predicated region
  $region38: #{discriminator_latent_forward.1} parent=0 // pred_check
    _
  $region39: #{discriminator_latent_forward.1} parent=0 // pred_check_branch
    %8619 = sbr.rel (0) target = $region41
  $region40: #{discriminator_latent_forward.1} parent=0 // pred_region
    _
  $region41: #{discriminator_latent_forward.1} parent=0 // pred_fallthru
    _
  // Predicated region
  $region42: #{discriminator_latent_forward.1} parent=0 // pred_check
    _
  $region43: #{discriminator_latent_forward.1} parent=0 // pred_check_branch
    %8621 = sbr.rel (0) target = $region45
  $region44: #{discriminator_latent_forward.1} parent=0 // pred_region
    _
  $region45: #{discriminator_latent_forward.1} parent=0 // pred_fallthru
    _
  // Predicated region
  $region46: #{discriminator_latent_forward.1} parent=0 // pred_check
    _
  $region47: #{discriminator_latent_forward.1} parent=0 // pred_check_branch
    %8623 = sbr.rel (0) target = $region49
  $region48: #{discriminator_latent_forward.1} parent=0 // pred_region
    _
  $region49: #{discriminator_latent_forward.1} parent=0 // pred_fallthru
    _

</llo_original>
